<compile_context>
chip_gen: v6e
topology: v6e:2x2x1
jax: 0.10.0
libtpu: 0.0.40
codegen_flags: <defaults>
</compile_context>

<pallas_src>
import jax
import jax.numpy as jnp
from jax.experimental import pallas as pl
from jax.experimental.pallas import tpu as pltpu

# ---------------- model config (matches the PyTorch ViT defaults) ----------------
IMG = 28
PATCH = 7
C_IN = 1
EMBED = 128                          # lane-aligned embed dim
DEPTH = 6                            # module default depth
HEADS = 4
HEAD_DIM = EMBED // HEADS
MLP_HIDDEN = 4 * EMBED
NUM_CLASSES = 10
N_PATCH = (IMG // PATCH) ** 2        # 16
SEQ = N_PATCH + 1                    # 17 (cls + patches)
P_USED = SEQ + 2 + C_IN * PATCH * PATCH   # 68 = pos one-hot + cls sel + bias sel + pixels
P_PAD = 128                          # lane-aligned augmented width
NC_PAD = 128                         # lane-aligned classifier width

BATCH = 16
BLK_B = 8                            # images per grid step -> M = 136 rows; grid=(2,) keeps
BLK_TOK = BLK_B * SEQ                # 136 (multiple of 8)    both v7x TensorCores busy
NEG = -1e30                          # additive mask value


# ---------------- shared math helpers (kernel + JAX reference) ------------------------------
def _layer_norm(x, g, b, eps=1e-5):
    mu = jnp.mean(x, axis=-1, keepdims=True)
    var = jnp.mean(jnp.square(x - mu), axis=-1, keepdims=True)
    return (x - mu) * jax.lax.rsqrt(var + eps) * g + b


def _erf(x, recip=None):
    # TODO(synk): lax.erf has no guaranteed Mosaic lowering; Abramowitz-Stegun 7.1.26
    # approximation (|err| < 1.5e-7) matches torch's exact (erf-based) GELU to f32 precision.
    a1, a2, a3, a4, a5 = 0.254829592, -0.284496736, 1.421413741, -1.453152027, 1.061405429
    p = 0.3275911
    ax = jnp.abs(x)
    denom = 1.0 + p * ax
    t = recip(denom) if recip is not None else 1.0 / denom   # kernel: EUP approx reciprocal
    poly = ((((a5 * t + a4) * t + a3) * t + a2) * t + a1) * t
    y = 1.0 - poly * jnp.exp(-ax * ax)
    return jnp.where(x >= 0.0, y, -y)


def _gelu(x, recip=None):
    return 0.5 * x * (1.0 + _erf(x * 0.7071067811865476, recip))


# ---------------------------------- fused Pallas kernel -------------------------------------
def vit_fused_kernel(a_ref, mask_ref, w_patch_ref,
                     ln1g_ref, ln1b_ref, wqkv_ref, bqkv_ref, wo_ref, bo_ref,
                     ln2g_ref, ln2b_ref, w1_ref, b1_ref, w2_ref, b2_ref,
                     lnf_g_ref, lnf_b_ref, w_head_ref, b_head_ref,
                     out_ref, o_scratch):
    m_rows = a_ref.shape[0]                      # BLK_TOK = BLK_B * SEQ
    bf16 = jnp.bfloat16
    approx_recip = lambda v: pl.reciprocal(v, approx=True)

    # ---- patch embed + cls + conv bias + pos: ONE matmul (runs once -> keep f32) ----
    x0 = jnp.dot(a_ref[...], w_patch_ref[...], preferred_element_type=jnp.float32)  # (M, E)

    mask = mask_ref[...]                         # block-diagonal additive mask (0 / -1e30)

    def layer_body(l, x):                        # l is dynamic -> bounded live ranges
        # ---- attention branch: x += Wo @ concat_h softmax(QK^T + mask) V ----
        # (1/sqrt(HEAD_DIM) is pre-folded into the Q columns of wqkv/bqkv)
        h = _layer_norm(x, ln1g_ref[l], ln1b_ref[l])
        qkv = (jnp.dot(h.astype(bf16), wqkv_ref[l],
                       preferred_element_type=jnp.float32) + bqkv_ref[l]).astype(bf16)
        for hh in range(HEADS):                  # static unroll over heads (lane slices)
            q = qkv[:, hh * HEAD_DIM:(hh + 1) * HEAD_DIM]
            k = qkv[:, EMBED + hh * HEAD_DIM:EMBED + (hh + 1) * HEAD_DIM]
            v = qkv[:, 2 * EMBED + hh * HEAD_DIM:2 * EMBED + (hh + 1) * HEAD_DIM]
            s = jax.lax.dot_general(q, k, (((1,), (1,)), ((), ())),
                                    preferred_element_type=jnp.float32) + mask
            s = s - jnp.max(s, axis=-1, keepdims=True)
            p = jnp.exp(s)
            p = p * pl.reciprocal(jnp.sum(p, axis=-1, keepdims=True), approx=True)
            # write each head's output into its 32-lane slice (no lane concat relayout)
            o_scratch[:, hh * HEAD_DIM:(hh + 1) * HEAD_DIM] = jnp.dot(
                p.astype(bf16), v, preferred_element_type=jnp.float32)
        x = x + jnp.dot(o_scratch[...].astype(bf16), wo_ref[l],
                        preferred_element_type=jnp.float32) + bo_ref[l]

        # ---- MLP branch: x += W2 @ gelu(W1 @ LN2(x)) ----
        h2 = _layer_norm(x, ln2g_ref[l], ln2b_ref[l])
        mlp = _gelu(jnp.dot(h2.astype(bf16), w1_ref[l],
                            preferred_element_type=jnp.float32) + b1_ref[l],
                    recip=approx_recip)
        x = x + jnp.dot(mlp.astype(bf16), w2_ref[l],
                        preferred_element_type=jnp.float32) + b2_ref[l]
        return x

    x = jax.lax.fori_loop(0, DEPTH, layer_body, x0)

    # ---- head: pick cls rows with a one-hot selection matmul, LN, lane-padded linear ----
    row = jax.lax.broadcasted_iota(jnp.int32, (BLK_B, m_rows), 0)
    col = jax.lax.broadcasted_iota(jnp.int32, (BLK_B, m_rows), 1)
    sel = (col == row * SEQ).astype(jnp.float32)                                  # (BLK_B, M)
    cls = jnp.dot(sel, x, preferred_element_type=jnp.float32)                     # (BLK_B, E)
    hf = _layer_norm(cls, lnf_g_ref[...], lnf_b_ref[...])
    out_ref[...] = jnp.dot(hf.astype(jnp.bfloat16), w_head_ref[...],
                           preferred_element_type=jnp.float32) + b_head_ref[...]


# ---------------------------------- wrapper / glue -------------------------------------------
def _const_spec(a):
    return pl.BlockSpec(a.shape, lambda g, _n=a.ndim: (0,) * _n)


def build_patch_matrix(x):
    """(B, C, H, W) NCHW -> flat augmented patch matrix (B*SEQ, P_PAD)."""
    B = x.shape[0]
    p = x.reshape(B, C_IN, IMG // PATCH, PATCH, IMG // PATCH, PATCH)
    p = p.transpose(0, 2, 4, 1, 3, 5).reshape(B, N_PATCH, C_IN * PATCH * PATCH)
    pix = jnp.concatenate([jnp.zeros((B, 1, C_IN * PATCH * PATCH), x.dtype), p], axis=1)
    pos_oh = jnp.broadcast_to(jnp.eye(SEQ, dtype=x.dtype), (B, SEQ, SEQ))
    cls_sel = jnp.zeros((B, SEQ, 1), x.dtype).at[:, 0, 0].set(1.0)
    bias_sel = jnp.ones((B, SEQ, 1), x.dtype).at[:, 0, 0].set(0.0)
    A = jnp.concatenate([pos_oh, cls_sel, bias_sel, pix], axis=-1)   # (B, SEQ, P_USED)
    A = jnp.pad(A, ((0, 0), (0, 0), (0, P_PAD - P_USED)))
    return A.reshape(B * SEQ, P_PAD)


def build_block_mask():
    ids = jnp.repeat(jnp.arange(BLK_B), SEQ)
    same = ids[:, None] == ids[None, :]
    return jnp.where(same, 0.0, NEG).astype(jnp.float32)             # (BLK_TOK, BLK_TOK)


def vit_forward(x, params):
    B = x.shape[0]
    assert B % BLK_B == 0, "batch must be a multiple of BLK_B"
    A = build_patch_matrix(x)
    mask = build_block_mask()
    bf = lambda a: a.astype(jnp.bfloat16)

    # fold the attention scale into the Q projection weights/bias (free: weight-side constant)
    scale = 1.0 / float(HEAD_DIM) ** 0.5
    wqkv_s = params["wqkv"].at[:, :, :EMBED].multiply(scale)
    bqkv_s = params["bqkv"].at[:, :, :EMBED].multiply(scale)

    w_head_pad = jnp.zeros((EMBED, NC_PAD), jnp.float32).at[:, :NUM_CLASSES].set(params["w_head"])
    b_head_pad = jnp.zeros((1, NC_PAD), jnp.float32).at[:, :NUM_CLASSES].set(params["b_head"])

    ins = [A, mask, params["w_patch_aug"],
           params["ln1g"], params["ln1b"],
           bf(wqkv_s), bqkv_s, bf(params["wo"]), params["bo"],
           params["ln2g"], params["ln2b"],
           bf(params["w1"]), params["b1"], bf(params["w2"]), params["b2"],
           params["lnf_g"], params["lnf_b"], bf(w_head_pad), b_head_pad]

    in_specs = [pl.BlockSpec((BLK_TOK, P_PAD), lambda g: (g, 0))] + \
               [_const_spec(a) for a in ins[1:]]

    logits_pad = pl.pallas_call(
        vit_fused_kernel,
        out_shape=jax.ShapeDtypeStruct((B, NC_PAD), jnp.float32),
        grid=(B // BLK_B,),
        in_specs=in_specs,
        out_specs=pl.BlockSpec((BLK_B, NC_PAD), lambda g: (g, 0)),
        scratch_shapes=[pltpu.VMEM((BLK_TOK, EMBED), jnp.float32)],   # per-head output slab
        compiler_params=pltpu.CompilerParams(
            dimension_semantics=("parallel",),            # v7x: shard batch blocks over 2 TCs
            vmem_limit_bytes=32 * 1024 * 1024),           # explicit (v5e default is 16 MiB)
    )(*ins)
    return logits_pad[:, :NUM_CLASSES]


# ---------------------------------- pure-JAX f32 reference ----------------------------------
def vit_reference(x, params):
    B = x.shape[0]
    A = build_patch_matrix(x).reshape(B, SEQ, P_PAD)
    tok = jnp.einsum("bsp,pd->bsd", A, params["w_patch_aug"])
    scale = 1.0 / float(HEAD_DIM) ** 0.5
    for l in range(DEPTH):
        h = _layer_norm(tok, params["ln1g"][l], params["ln1b"][l])
        qkv = jnp.einsum("bsd,de->bse", h, params["wqkv"][l]) + params["bqkv"][l]
        outs = []
        for hh in range(HEADS):
            q = qkv[..., hh * HEAD_DIM:(hh + 1) * HEAD_DIM]
            k = qkv[..., EMBED + hh * HEAD_DIM:EMBED + (hh + 1) * HEAD_DIM]
            v = qkv[..., 2 * EMBED + hh * HEAD_DIM:2 * EMBED + (hh + 1) * HEAD_DIM]
            s = jnp.einsum("bqe,bke->bqk", q, k) * scale
            p = jax.nn.softmax(s, axis=-1)
            outs.append(jnp.einsum("bqk,bke->bqe", p, v))
        o = jnp.concatenate(outs, axis=-1)
        tok = tok + jnp.einsum("bqe,ed->bqd", o, params["wo"][l]) + params["bo"][l]
        h2 = _layer_norm(tok, params["ln2g"][l], params["ln2b"][l])
        m = _gelu(jnp.einsum("bsh,dh->bsh".replace("dh", "dh"),  # placeholder avoided below
                             h2, params["w1"][l]) + params["b1"][l]) if False else \
            _gelu(jnp.einsum("bsd,dh->bsh", h2, params["w1"][l]) + params["b1"][l])
        tok = tok + jnp.einsum("bsh,hd->bsd", m, params["w2"][l]) + params["b2"][l]
    cls = tok[:, 0, :]
    h = _layer_norm(cls, params["lnf_g"], params["lnf_b"])
    return h @ params["w_head"] + params["b_head"]


# ---------------------------------- deterministic params ------------------------------------
def init_params(key):
    def nrm(k, shape, scale=0.02):
        return (scale * jax.random.normal(k, shape)).astype(jnp.float32)

    keys = jax.random.split(key, 6)
    w_conv = nrm(keys[0], (EMBED, C_IN, PATCH, PATCH))               # torch Conv2d layout
    b_conv = nrm(keys[1], (1, EMBED))
    cls_tok = jnp.zeros((1, EMBED), jnp.float32)                     # torch.zeros cls token
    pos = jax.random.normal(keys[2], (SEQ, EMBED), dtype=jnp.float32)  # torch.randn pos emb
    w2d = w_conv.reshape(EMBED, C_IN * PATCH * PATCH).T              # (49, E)
    w_aug = jnp.concatenate([pos, cls_tok, b_conv, w2d], axis=0)     # (P_USED, E)
    w_patch_aug = jnp.pad(w_aug, ((0, P_PAD - P_USED), (0, 0)))      # (P_PAD, E)

    wqkv, bqkv, wo, bo, w1, b1, w2, b2 = ([] for _ in range(8))
    layer_keys = jax.random.split(keys[3], DEPTH)
    for i in range(DEPTH):
        ks = jax.random.split(layer_keys[i], 8)
        wqkv.append(nrm(ks[0], (EMBED, 3 * EMBED)))                  # fused [Q|K|V] projection
        bqkv.append(nrm(ks[1], (1, 3 * EMBED)))
        wo.append(nrm(ks[2], (EMBED, EMBED)))
        bo.append(nrm(ks[3], (1, EMBED)))
        w1.append(nrm(ks[4], (EMBED, MLP_HIDDEN)))
        b1.append(nrm(ks[5], (1, MLP_HIDDEN)))
        w2.append(nrm(ks[6], (MLP_HIDDEN, EMBED)))
        b2.append(nrm(ks[7], (1, EMBED)))
    stk = lambda xs: jnp.stack(xs, axis=0)

    kf = jax.random.split(keys[4], 2)
    return dict(
        w_patch_aug=w_patch_aug,
        ln1g=jnp.ones((DEPTH, 1, EMBED), jnp.float32), ln1b=jnp.zeros((DEPTH, 1, EMBED), jnp.float32),
        ln2g=jnp.ones((DEPTH, 1, EMBED), jnp.float32), ln2b=jnp.zeros((DEPTH, 1, EMBED), jnp.float32),
        wqkv=stk(wqkv), bqkv=stk(bqkv), wo=stk(wo), bo=stk(bo),
        w1=stk(w1), b1=stk(b1), w2=stk(w2), b2=stk(b2),
        lnf_g=jnp.ones((1, EMBED), jnp.float32), lnf_b=jnp.zeros((1, EMBED), jnp.float32),
        w_head=nrm(kf[0], (EMBED, NUM_CLASSES)), b_head=nrm(kf[1], (1, NUM_CLASSES)),
    )


# --------------------------------------- main -----------------------------------------------
if __name__ == "__main__":
    key = jax.random.PRNGKey(0)
    kx, kp = jax.random.split(key)
    x = jax.random.normal(kx, (BATCH, C_IN, IMG, IMG), jnp.float32)   # NCHW, like PyTorch

    params = init_params(kp)

    logits = jax.block_until_ready(vit_forward(x, params))

    assert logits.shape == (BATCH, NUM_CLASSES)
    assert bool(jnp.all(jnp.isfinite(logits)))

    ref = vit_reference(x, params)                                    # f32 reference
    # bf16 matmul operands (f32 accumulation) + approx EUP reciprocals cause small drift
    # vs the f32 reference.
    if not jnp.allclose(logits, ref, rtol=2.5e-2, atol=2.5e-2):
        raise AssertionError(
            f"Pallas output deviates from reference: max|diff|="
            f"{float(jnp.max(jnp.abs(logits - ref)))}")

    print("KERNEL_OK")
</pallas_src>

<mosaic_0001>
module attributes {stable_mosaic.version = 11 : i64} {
  func.func @vit_fused_kernel(%arg0: i32, %arg1: memref<136x128xf32, #tpu.memory_space<vmem>>, %arg2: memref<136x136xf32, #tpu.memory_space<vmem>>, %arg3: memref<128x128xf32, #tpu.memory_space<vmem>>, %arg4: memref<6x1x128xf32, #tpu.memory_space<vmem>>, %arg5: memref<6x1x128xf32, #tpu.memory_space<vmem>>, %arg6: memref<6x128x384xbf16, #tpu.memory_space<vmem>>, %arg7: memref<6x1x384xf32, #tpu.memory_space<vmem>>, %arg8: memref<6x128x128xbf16, #tpu.memory_space<vmem>>, %arg9: memref<6x1x128xf32, #tpu.memory_space<vmem>>, %arg10: memref<6x1x128xf32, #tpu.memory_space<vmem>>, %arg11: memref<6x1x128xf32, #tpu.memory_space<vmem>>, %arg12: memref<6x128x512xbf16, #tpu.memory_space<vmem>>, %arg13: memref<6x1x512xf32, #tpu.memory_space<vmem>>, %arg14: memref<6x512x128xbf16, #tpu.memory_space<vmem>>, %arg15: memref<6x1x128xf32, #tpu.memory_space<vmem>>, %arg16: memref<1x128xf32, #tpu.memory_space<vmem>>, %arg17: memref<1x128xf32, #tpu.memory_space<vmem>>, %arg18: memref<128x128xbf16, #tpu.memory_space<vmem>>, %arg19: memref<1x128xf32, #tpu.memory_space<vmem>>, %arg20: memref<8x128xf32, #tpu.memory_space<vmem>>, %arg21: memref<136x128xf32, #tpu.memory_space<vmem>>) attributes {dimension_semantics = [#tpu.dimension_semantics<parallel>], iteration_bounds = array<i64: 2>, scalar_prefetch = 0 : i64, scratch_operands = 1 : i64, tpu.core_type = #tpu.core_type<tc>, window_params = [{transform_indices = @transform_0, window_bounds = array<i64: 136, 128>}, {pipeline_mode = #tpu.pipeline_mode<synchronous>, transform_indices = @transform_1, window_bounds = array<i64: 136, 136>}, {pipeline_mode = #tpu.pipeline_mode<synchronous>, transform_indices = @transform_2, window_bounds = array<i64: 128, 128>}, {pipeline_mode = #tpu.pipeline_mode<synchronous>, transform_indices = @transform_3, window_bounds = array<i64: 6, 1, 128>}, {pipeline_mode = #tpu.pipeline_mode<synchronous>, transform_indices = @transform_4, window_bounds = array<i64: 6, 1, 128>}, {pipeline_mode = #tpu.pipeline_mode<synchronous>, transform_indices = @transform_5, window_bounds = array<i64: 6, 128, 384>}, {pipeline_mode = #tpu.pipeline_mode<synchronous>, transform_indices = @transform_6, window_bounds = array<i64: 6, 1, 384>}, {pipeline_mode = #tpu.pipeline_mode<synchronous>, transform_indices = @transform_7, window_bounds = array<i64: 6, 128, 128>}, {pipeline_mode = #tpu.pipeline_mode<synchronous>, transform_indices = @transform_8, window_bounds = array<i64: 6, 1, 128>}, {pipeline_mode = #tpu.pipeline_mode<synchronous>, transform_indices = @transform_9, window_bounds = array<i64: 6, 1, 128>}, {pipeline_mode = #tpu.pipeline_mode<synchronous>, transform_indices = @transform_10, window_bounds = array<i64: 6, 1, 128>}, {pipeline_mode = #tpu.pipeline_mode<synchronous>, transform_indices = @transform_11, window_bounds = array<i64: 6, 128, 512>}, {pipeline_mode = #tpu.pipeline_mode<synchronous>, transform_indices = @transform_12, window_bounds = array<i64: 6, 1, 512>}, {pipeline_mode = #tpu.pipeline_mode<synchronous>, transform_indices = @transform_13, window_bounds = array<i64: 6, 512, 128>}, {pipeline_mode = #tpu.pipeline_mode<synchronous>, transform_indices = @transform_14, window_bounds = array<i64: 6, 1, 128>}, {pipeline_mode = #tpu.pipeline_mode<synchronous>, transform_indices = @transform_15, window_bounds = array<i64: 1, 128>}, {pipeline_mode = #tpu.pipeline_mode<synchronous>, transform_indices = @transform_16, window_bounds = array<i64: 1, 128>}, {pipeline_mode = #tpu.pipeline_mode<synchronous>, transform_indices = @transform_17, window_bounds = array<i64: 128, 128>}, {pipeline_mode = #tpu.pipeline_mode<synchronous>, transform_indices = @transform_18, window_bounds = array<i64: 1, 128>}, {transform_indices = @transform_19, window_bounds = array<i64: 8, 128>}]} {
    %c0 = arith.constant 0 : index
    %c0_0 = arith.constant 0 : index
    %0 = vector.load %arg1[%c0, %c0_0] : memref<136x128xf32, #tpu.memory_space<vmem>>, vector<136x128xf32>
    %c0_1 = arith.constant 0 : index
    %c0_2 = arith.constant 0 : index
    %1 = vector.load %arg3[%c0_1, %c0_2] : memref<128x128xf32, #tpu.memory_space<vmem>>, vector<128x128xf32>
    %cst = arith.constant dense<0.000000e+00> : vector<136x128xf32>
    %2 = tpu.matmul %0, %1, %cst {dimension_numbers = #tpu.dot_dimension_numbers<[1], [0], [0], [1], [0, 0, 1, 1], [], []>} : vector<136x128xf32>, vector<128x128xf32>, vector<136x128xf32> -> vector<136x128xf32>
    %c0_3 = arith.constant 0 : index
    %c0_4 = arith.constant 0 : index
    %3 = vector.load %arg2[%c0_3, %c0_4] : memref<136x136xf32, #tpu.memory_space<vmem>>, vector<136x136xf32>
    %c0_i32 = arith.constant 0 : i32
    %c6_i32 = arith.constant 6 : i32
    %4 = arith.addi %c0_i32, %c6_i32 : i32
    %c1_i32 = arith.constant 1 : i32
    %5 = scf.for %arg22 = %c0_i32 to %4 step %c1_i32 iter_args(%arg23 = %2) -> (vector<136x128xf32>)  : i32 {
      %45 = arith.index_cast %arg22 : i32 to index
      %c0_23 = arith.constant 0 : index
      %c0_24 = arith.constant 0 : index
      %46 = vector.load %arg4[%45, %c0_23, %c0_24] : memref<6x1x128xf32, #tpu.memory_space<vmem>>, vector<1x1x128xf32>
      %47 = vector.shape_cast %46 : vector<1x1x128xf32> to vector<1x128xf32>
      %48 = arith.index_cast %arg22 : i32 to index
      %c0_25 = arith.constant 0 : index
      %c0_26 = arith.constant 0 : index
      %49 = vector.load %arg5[%48, %c0_25, %c0_26] : memref<6x1x128xf32, #tpu.memory_space<vmem>>, vector<1x1x128xf32>
      %50 = vector.shape_cast %49 : vector<1x1x128xf32> to vector<1x128xf32>
      %cst_27 = arith.constant dense<0.000000e+00> : vector<136xf32>
      %51 = vector.multi_reduction <add>, %arg23, %cst_27 [1] : vector<136x128xf32> to vector<136xf32>
      %52 = vector.shape_cast %51 : vector<136xf32> to vector<136x1xf32>
      %cst_28 = arith.constant 1.280000e+02 : f32
      %53 = vector.broadcast %cst_28 : f32 to vector<136x1xf32>
      %54 = arith.divf %52, %53 : vector<136x1xf32>
      %55 = vector.broadcast %54 : vector<136x1xf32> to vector<136x128xf32>
      %56 = arith.subf %arg23, %55 : vector<136x128xf32>
      %57 = arith.mulf %56, %56 : vector<136x128xf32>
      %cst_29 = arith.constant dense<0.000000e+00> : vector<136xf32>
      %58 = vector.multi_reduction <add>, %57, %cst_29 [1] : vector<136x128xf32> to vector<136xf32>
      %59 = vector.shape_cast %58 : vector<136xf32> to vector<136x1xf32>
      %cst_30 = arith.constant 1.280000e+02 : f32
      %60 = vector.broadcast %cst_30 : f32 to vector<136x1xf32>
      %61 = arith.divf %59, %60 : vector<136x1xf32>
      %62 = vector.broadcast %54 : vector<136x1xf32> to vector<136x128xf32>
      %63 = arith.subf %arg23, %62 : vector<136x128xf32>
      %cst_31 = arith.constant 9.99999974E-6 : f32
      %64 = vector.broadcast %cst_31 : f32 to vector<136x1xf32>
      %65 = arith.addf %61, %64 : vector<136x1xf32>
      %66 = math.rsqrt %65 : vector<136x1xf32>
      %67 = vector.broadcast %66 : vector<136x1xf32> to vector<136x128xf32>
      %68 = arith.mulf %63, %67 : vector<136x128xf32>
      %69 = vector.broadcast %47 : vector<1x128xf32> to vector<136x128xf32>
      %70 = arith.mulf %68, %69 : vector<136x128xf32>
      %71 = vector.broadcast %50 : vector<1x128xf32> to vector<136x128xf32>
      %72 = arith.addf %70, %71 : vector<136x128xf32>
      %73 = arith.truncf %72 : vector<136x128xf32> to vector<136x128xbf16>
      %74 = arith.index_cast %arg22 : i32 to index
      %c0_32 = arith.constant 0 : index
      %c0_33 = arith.constant 0 : index
      %75 = vector.load %arg6[%74, %c0_32, %c0_33] : memref<6x128x384xbf16, #tpu.memory_space<vmem>>, vector<1x128x384xbf16>
      %76 = vector.shape_cast %75 : vector<1x128x384xbf16> to vector<128x384xbf16>
      %cst_34 = arith.constant dense<0.000000e+00> : vector<136x384xf32>
      %77 = tpu.matmul %73, %76, %cst_34 {dimension_numbers = #tpu.dot_dimension_numbers<[1], [0], [0], [1], [0, 0, 1, 1], [], []>} : vector<136x128xbf16>, vector<128x384xbf16>, vector<136x384xf32> -> vector<136x384xf32>
      %78 = arith.index_cast %arg22 : i32 to index
      %c0_35 = arith.constant 0 : index
      %c0_36 = arith.constant 0 : index
      %79 = vector.load %arg7[%78, %c0_35, %c0_36] : memref<6x1x384xf32, #tpu.memory_space<vmem>>, vector<1x1x384xf32>
      %80 = vector.shape_cast %79 : vector<1x1x384xf32> to vector<1x384xf32>
      %81 = vector.broadcast %80 : vector<1x384xf32> to vector<136x384xf32>
      %82 = arith.addf %77, %81 : vector<136x384xf32>
      %83 = arith.truncf %82 : vector<136x384xf32> to vector<136x384xbf16>
      %84 = vector.extract_strided_slice %83 {offsets = [0, 0], sizes = [136, 32], strides = [1, 1]} : vector<136x384xbf16> to vector<136x32xbf16>
      %85 = vector.extract_strided_slice %83 {offsets = [0, 128], sizes = [136, 32], strides = [1, 1]} : vector<136x384xbf16> to vector<136x32xbf16>
      %86 = vector.extract_strided_slice %83 {offsets = [0, 256], sizes = [136, 32], strides = [1, 1]} : vector<136x384xbf16> to vector<136x32xbf16>
      %cst_37 = arith.constant dense<0.000000e+00> : vector<136x136xf32>
      %87 = tpu.matmul %84, %85, %cst_37 {dimension_numbers = #tpu.dot_dimension_numbers<[1], [1], [0], [0], [0, 0, 1, 0], [], []>} : vector<136x32xbf16>, vector<136x32xbf16>, vector<136x136xf32> -> vector<136x136xf32>
      %88 = arith.addf %87, %3 : vector<136x136xf32>
      %cst_38 = arith.constant dense<0xFF800000> : vector<136xf32>
      %89 = vector.multi_reduction <maximumf>, %88, %cst_38 [1] : vector<136x136xf32> to vector<136xf32>
      %90 = vector.shape_cast %89 : vector<136xf32> to vector<136x1xf32>
      %91 = vector.broadcast %90 : vector<136x1xf32> to vector<136x136xf32>
      %92 = arith.subf %88, %91 : vector<136x136xf32>
      %93 = math.exp %92 : vector<136x136xf32>
      %cst_39 = arith.constant dense<0.000000e+00> : vector<136xf32>
      %94 = vector.multi_reduction <add>, %93, %cst_39 [1] : vector<136x136xf32> to vector<136xf32>
      %95 = vector.shape_cast %94 : vector<136xf32> to vector<136x1xf32>
      %96 = tpu.reciprocal %95 {approx = true} : vector<136x1xf32> -> vector<136x1xf32>
      %97 = vector.broadcast %96 : vector<136x1xf32> to vector<136x136xf32>
      %98 = arith.mulf %93, %97 : vector<136x136xf32>
      %99 = arith.truncf %98 : vector<136x136xf32> to vector<136x136xbf16>
      %cst_40 = arith.constant dense<0.000000e+00> : vector<136x32xf32>
      %100 = tpu.matmul %99, %86, %cst_40 {dimension_numbers = #tpu.dot_dimension_numbers<[1], [0], [0], [1], [0, 0, 1, 1], [], []>} : vector<136x136xbf16>, vector<136x32xbf16>, vector<136x32xf32> -> vector<136x32xf32>
      %c0_41 = arith.constant 0 : index
      %c0_42 = arith.constant 0 : index
      %101 = vector.load %arg21[%c0_41, %c0_42] : memref<136x128xf32, #tpu.memory_space<vmem>>, vector<136x32xf32>
      tpu.vector_store %arg21[%c0_41, %c0_42], %100 {strides = array<i32>} : memref<136x128xf32, #tpu.memory_space<vmem>>, vector<136x32xf32>,
      %102 = vector.extract_strided_slice %83 {offsets = [0, 32], sizes = [136, 32], strides = [1, 1]} : vector<136x384xbf16> to vector<136x32xbf16>
      %103 = vector.extract_strided_slice %83 {offsets = [0, 160], sizes = [136, 32], strides = [1, 1]} : vector<136x384xbf16> to vector<136x32xbf16>
      %104 = vector.extract_strided_slice %83 {offsets = [0, 288], sizes = [136, 32], strides = [1, 1]} : vector<136x384xbf16> to vector<136x32xbf16>
      %cst_43 = arith.constant dense<0.000000e+00> : vector<136x136xf32>
      %105 = tpu.matmul %102, %103, %cst_43 {dimension_numbers = #tpu.dot_dimension_numbers<[1], [1], [0], [0], [0, 0, 1, 0], [], []>} : vector<136x32xbf16>, vector<136x32xbf16>, vector<136x136xf32> -> vector<136x136xf32>
      %106 = arith.addf %105, %3 : vector<136x136xf32>
      %cst_44 = arith.constant dense<0xFF800000> : vector<136xf32>
      %107 = vector.multi_reduction <maximumf>, %106, %cst_44 [1] : vector<136x136xf32> to vector<136xf32>
      %108 = vector.shape_cast %107 : vector<136xf32> to vector<136x1xf32>
      %109 = vector.broadcast %108 : vector<136x1xf32> to vector<136x136xf32>
      %110 = arith.subf %106, %109 : vector<136x136xf32>
      %111 = math.exp %110 : vector<136x136xf32>
      %cst_45 = arith.constant dense<0.000000e+00> : vector<136xf32>
      %112 = vector.multi_reduction <add>, %111, %cst_45 [1] : vector<136x136xf32> to vector<136xf32>
      %113 = vector.shape_cast %112 : vector<136xf32> to vector<136x1xf32>
      %114 = tpu.reciprocal %113 {approx = true} : vector<136x1xf32> -> vector<136x1xf32>
      %115 = vector.broadcast %114 : vector<136x1xf32> to vector<136x136xf32>
      %116 = arith.mulf %111, %115 : vector<136x136xf32>
      %117 = arith.truncf %116 : vector<136x136xf32> to vector<136x136xbf16>
      %cst_46 = arith.constant dense<0.000000e+00> : vector<136x32xf32>
      %118 = tpu.matmul %117, %104, %cst_46 {dimension_numbers = #tpu.dot_dimension_numbers<[1], [0], [0], [1], [0, 0, 1, 1], [], []>} : vector<136x136xbf16>, vector<136x32xbf16>, vector<136x32xf32> -> vector<136x32xf32>
      %c0_47 = arith.constant 0 : index
      %c32 = arith.constant 32 : index
      %119 = vector.load %arg21[%c0_47, %c32] : memref<136x128xf32, #tpu.memory_space<vmem>>, vector<136x32xf32>
      tpu.vector_store %arg21[%c0_47, %c32], %118 {strides = array<i32>} : memref<136x128xf32, #tpu.memory_space<vmem>>, vector<136x32xf32>,
      %120 = vector.extract_strided_slice %83 {offsets = [0, 64], sizes = [136, 32], strides = [1, 1]} : vector<136x384xbf16> to vector<136x32xbf16>
      %121 = vector.extract_strided_slice %83 {offsets = [0, 192], sizes = [136, 32], strides = [1, 1]} : vector<136x384xbf16> to vector<136x32xbf16>
      %122 = vector.extract_strided_slice %83 {offsets = [0, 320], sizes = [136, 32], strides = [1, 1]} : vector<136x384xbf16> to vector<136x32xbf16>
      %cst_48 = arith.constant dense<0.000000e+00> : vector<136x136xf32>
      %123 = tpu.matmul %120, %121, %cst_48 {dimension_numbers = #tpu.dot_dimension_numbers<[1], [1], [0], [0], [0, 0, 1, 0], [], []>} : vector<136x32xbf16>, vector<136x32xbf16>, vector<136x136xf32> -> vector<136x136xf32>
      %124 = arith.addf %123, %3 : vector<136x136xf32>
      %cst_49 = arith.constant dense<0xFF800000> : vector<136xf32>
      %125 = vector.multi_reduction <maximumf>, %124, %cst_49 [1] : vector<136x136xf32> to vector<136xf32>
      %126 = vector.shape_cast %125 : vector<136xf32> to vector<136x1xf32>
      %127 = vector.broadcast %126 : vector<136x1xf32> to vector<136x136xf32>
      %128 = arith.subf %124, %127 : vector<136x136xf32>
      %129 = math.exp %128 : vector<136x136xf32>
      %cst_50 = arith.constant dense<0.000000e+00> : vector<136xf32>
      %130 = vector.multi_reduction <add>, %129, %cst_50 [1] : vector<136x136xf32> to vector<136xf32>
      %131 = vector.shape_cast %130 : vector<136xf32> to vector<136x1xf32>
      %132 = tpu.reciprocal %131 {approx = true} : vector<136x1xf32> -> vector<136x1xf32>
      %133 = vector.broadcast %132 : vector<136x1xf32> to vector<136x136xf32>
      %134 = arith.mulf %129, %133 : vector<136x136xf32>
      %135 = arith.truncf %134 : vector<136x136xf32> to vector<136x136xbf16>
      %cst_51 = arith.constant dense<0.000000e+00> : vector<136x32xf32>
      %136 = tpu.matmul %135, %122, %cst_51 {dimension_numbers = #tpu.dot_dimension_numbers<[1], [0], [0], [1], [0, 0, 1, 1], [], []>} : vector<136x136xbf16>, vector<136x32xbf16>, vector<136x32xf32> -> vector<136x32xf32>
      %c0_52 = arith.constant 0 : index
      %c64 = arith.constant 64 : index
      %137 = vector.load %arg21[%c0_52, %c64] : memref<136x128xf32, #tpu.memory_space<vmem>>, vector<136x32xf32>
      tpu.vector_store %arg21[%c0_52, %c64], %136 {strides = array<i32>} : memref<136x128xf32, #tpu.memory_space<vmem>>, vector<136x32xf32>,
      %138 = vector.extract_strided_slice %83 {offsets = [0, 96], sizes = [136, 32], strides = [1, 1]} : vector<136x384xbf16> to vector<136x32xbf16>
      %139 = vector.extract_strided_slice %83 {offsets = [0, 224], sizes = [136, 32], strides = [1, 1]} : vector<136x384xbf16> to vector<136x32xbf16>
      %140 = vector.extract_strided_slice %83 {offsets = [0, 352], sizes = [136, 32], strides = [1, 1]} : vector<136x384xbf16> to vector<136x32xbf16>
      %cst_53 = arith.constant dense<0.000000e+00> : vector<136x136xf32>
      %141 = tpu.matmul %138, %139, %cst_53 {dimension_numbers = #tpu.dot_dimension_numbers<[1], [1], [0], [0], [0, 0, 1, 0], [], []>} : vector<136x32xbf16>, vector<136x32xbf16>, vector<136x136xf32> -> vector<136x136xf32>
      %142 = arith.addf %141, %3 : vector<136x136xf32>
      %cst_54 = arith.constant dense<0xFF800000> : vector<136xf32>
      %143 = vector.multi_reduction <maximumf>, %142, %cst_54 [1] : vector<136x136xf32> to vector<136xf32>
      %144 = vector.shape_cast %143 : vector<136xf32> to vector<136x1xf32>
      %145 = vector.broadcast %144 : vector<136x1xf32> to vector<136x136xf32>
      %146 = arith.subf %142, %145 : vector<136x136xf32>
      %147 = math.exp %146 : vector<136x136xf32>
      %cst_55 = arith.constant dense<0.000000e+00> : vector<136xf32>
      %148 = vector.multi_reduction <add>, %147, %cst_55 [1] : vector<136x136xf32> to vector<136xf32>
      %149 = vector.shape_cast %148 : vector<136xf32> to vector<136x1xf32>
      %150 = tpu.reciprocal %149 {approx = true} : vector<136x1xf32> -> vector<136x1xf32>
      %151 = vector.broadcast %150 : vector<136x1xf32> to vector<136x136xf32>
      %152 = arith.mulf %147, %151 : vector<136x136xf32>
      %153 = arith.truncf %152 : vector<136x136xf32> to vector<136x136xbf16>
      %cst_56 = arith.constant dense<0.000000e+00> : vector<136x32xf32>
      %154 = tpu.matmul %153, %140, %cst_56 {dimension_numbers = #tpu.dot_dimension_numbers<[1], [0], [0], [1], [0, 0, 1, 1], [], []>} : vector<136x136xbf16>, vector<136x32xbf16>, vector<136x32xf32> -> vector<136x32xf32>
      %c0_57 = arith.constant 0 : index
      %c96 = arith.constant 96 : index
      %155 = vector.load %arg21[%c0_57, %c96] : memref<136x128xf32, #tpu.memory_space<vmem>>, vector<136x32xf32>
      tpu.vector_store %arg21[%c0_57, %c96], %154 {strides = array<i32>} : memref<136x128xf32, #tpu.memory_space<vmem>>, vector<136x32xf32>,
      %c0_58 = arith.constant 0 : index
      %c0_59 = arith.constant 0 : index
      %156 = vector.load %arg21[%c0_58, %c0_59] : memref<136x128xf32, #tpu.memory_space<vmem>>, vector<136x128xf32>
      %157 = arith.truncf %156 : vector<136x128xf32> to vector<136x128xbf16>
      %158 = arith.index_cast %arg22 : i32 to index
      %c0_60 = arith.constant 0 : index
      %c0_61 = arith.constant 0 : index
      %159 = vector.load %arg8[%158, %c0_60, %c0_61] : memref<6x128x128xbf16, #tpu.memory_space<vmem>>, vector<1x128x128xbf16>
      %160 = vector.shape_cast %159 : vector<1x128x128xbf16> to vector<128x128xbf16>
      %cst_62 = arith.constant dense<0.000000e+00> : vector<136x128xf32>
      %161 = tpu.matmul %157, %160, %cst_62 {dimension_numbers = #tpu.dot_dimension_numbers<[1], [0], [0], [1], [0, 0, 1, 1], [], []>} : vector<136x128xbf16>, vector<128x128xbf16>, vector<136x128xf32> -> vector<136x128xf32>
      %162 = arith.addf %arg23, %161 : vector<136x128xf32>
      %163 = arith.index_cast %arg22 : i32 to index
      %c0_63 = arith.constant 0 : index
      %c0_64 = arith.constant 0 : index
      %164 = vector.load %arg9[%163, %c0_63, %c0_64] : memref<6x1x128xf32, #tpu.memory_space<vmem>>, vector<1x1x128xf32>
      %165 = vector.shape_cast %164 : vector<1x1x128xf32> to vector<1x128xf32>
      %166 = vector.broadcast %165 : vector<1x128xf32> to vector<136x128xf32>
      %167 = arith.addf %162, %166 : vector<136x128xf32>
      %168 = arith.index_cast %arg22 : i32 to index
      %c0_65 = arith.constant 0 : index
      %c0_66 = arith.constant 0 : index
      %169 = vector.load %arg10[%168, %c0_65, %c0_66] : memref<6x1x128xf32, #tpu.memory_space<vmem>>, vector<1x1x128xf32>
      %170 = vector.shape_cast %169 : vector<1x1x128xf32> to vector<1x128xf32>
      %171 = arith.index_cast %arg22 : i32 to index
      %c0_67 = arith.constant 0 : index
      %c0_68 = arith.constant 0 : index
      %172 = vector.load %arg11[%171, %c0_67, %c0_68] : memref<6x1x128xf32, #tpu.memory_space<vmem>>, vector<1x1x128xf32>
      %173 = vector.shape_cast %172 : vector<1x1x128xf32> to vector<1x128xf32>
      %cst_69 = arith.constant dense<0.000000e+00> : vector<136xf32>
      %174 = vector.multi_reduction <add>, %167, %cst_69 [1] : vector<136x128xf32> to vector<136xf32>
      %175 = vector.shape_cast %174 : vector<136xf32> to vector<136x1xf32>
      %cst_70 = arith.constant 1.280000e+02 : f32
      %176 = vector.broadcast %cst_70 : f32 to vector<136x1xf32>
      %177 = arith.divf %175, %176 : vector<136x1xf32>
      %178 = vector.broadcast %177 : vector<136x1xf32> to vector<136x128xf32>
      %179 = arith.subf %167, %178 : vector<136x128xf32>
      %180 = arith.mulf %179, %179 : vector<136x128xf32>
      %cst_71 = arith.constant dense<0.000000e+00> : vector<136xf32>
      %181 = vector.multi_reduction <add>, %180, %cst_71 [1] : vector<136x128xf32> to vector<136xf32>
      %182 = vector.shape_cast %181 : vector<136xf32> to vector<136x1xf32>
      %cst_72 = arith.constant 1.280000e+02 : f32
      %183 = vector.broadcast %cst_72 : f32 to vector<136x1xf32>
      %184 = arith.divf %182, %183 : vector<136x1xf32>
      %185 = vector.broadcast %177 : vector<136x1xf32> to vector<136x128xf32>
      %186 = arith.subf %167, %185 : vector<136x128xf32>
      %cst_73 = arith.constant 9.99999974E-6 : f32
      %187 = vector.broadcast %cst_73 : f32 to vector<136x1xf32>
      %188 = arith.addf %184, %187 : vector<136x1xf32>
      %189 = math.rsqrt %188 : vector<136x1xf32>
      %190 = vector.broadcast %189 : vector<136x1xf32> to vector<136x128xf32>
      %191 = arith.mulf %186, %190 : vector<136x128xf32>
      %192 = vector.broadcast %170 : vector<1x128xf32> to vector<136x128xf32>
      %193 = arith.mulf %191, %192 : vector<136x128xf32>
      %194 = vector.broadcast %173 : vector<1x128xf32> to vector<136x128xf32>
      %195 = arith.addf %193, %194 : vector<136x128xf32>
      %196 = arith.truncf %195 : vector<136x128xf32> to vector<136x128xbf16>
      %197 = arith.index_cast %arg22 : i32 to index
      %c0_74 = arith.constant 0 : index
      %c0_75 = arith.constant 0 : index
      %198 = vector.load %arg12[%197, %c0_74, %c0_75] : memref<6x128x512xbf16, #tpu.memory_space<vmem>>, vector<1x128x512xbf16>
      %199 = vector.shape_cast %198 : vector<1x128x512xbf16> to vector<128x512xbf16>
      %cst_76 = arith.constant dense<0.000000e+00> : vector<136x512xf32>
      %200 = tpu.matmul %196, %199, %cst_76 {dimension_numbers = #tpu.dot_dimension_numbers<[1], [0], [0], [1], [0, 0, 1, 1], [], []>} : vector<136x128xbf16>, vector<128x512xbf16>, vector<136x512xf32> -> vector<136x512xf32>
      %201 = arith.index_cast %arg22 : i32 to index
      %c0_77 = arith.constant 0 : index
      %c0_78 = arith.constant 0 : index
      %202 = vector.load %arg13[%201, %c0_77, %c0_78] : memref<6x1x512xf32, #tpu.memory_space<vmem>>, vector<1x1x512xf32>
      %203 = vector.shape_cast %202 : vector<1x1x512xf32> to vector<1x512xf32>
      %204 = vector.broadcast %203 : vector<1x512xf32> to vector<136x512xf32>
      %205 = arith.addf %200, %204 : vector<136x512xf32>
      %cst_79 = arith.constant 5.000000e-01 : f32
      %206 = vector.broadcast %cst_79 : f32 to vector<136x512xf32>
      %207 = arith.mulf %206, %205 : vector<136x512xf32>
      %cst_80 = arith.constant 0.707106769 : f32
      %208 = vector.broadcast %cst_80 : f32 to vector<136x512xf32>
      %209 = arith.mulf %205, %208 : vector<136x512xf32>
      %210 = math.absf %209 : vector<136x512xf32>
      %cst_81 = arith.constant 0.327591091 : f32
      %211 = vector.broadcast %cst_81 : f32 to vector<136x512xf32>
      %212 = arith.mulf %211, %210 : vector<136x512xf32>
      %cst_82 = arith.constant 1.000000e+00 : f32
      %213 = vector.broadcast %cst_82 : f32 to vector<136x512xf32>
      %214 = arith.addf %213, %212 : vector<136x512xf32>
      %215 = tpu.reciprocal %214 {approx = true} : vector<136x512xf32> -> vector<136x512xf32>
      %cst_83 = arith.constant 1.06140542 : f32
      %216 = vector.broadcast %cst_83 : f32 to vector<136x512xf32>
      %217 = arith.mulf %216, %215 : vector<136x512xf32>
      %cst_84 = arith.constant -1.45315206 : f32
      %218 = vector.broadcast %cst_84 : f32 to vector<136x512xf32>
      %219 = arith.addf %217, %218 : vector<136x512xf32>
      %220 = arith.mulf %219, %215 : vector<136x512xf32>
      %cst_85 = arith.constant 1.42141378 : f32
      %221 = vector.broadcast %cst_85 : f32 to vector<136x512xf32>
      %222 = arith.addf %220, %221 : vector<136x512xf32>
      %223 = arith.mulf %222, %215 : vector<136x512xf32>
      %cst_86 = arith.constant -0.284496725 : f32
      %224 = vector.broadcast %cst_86 : f32 to vector<136x512xf32>
      %225 = arith.addf %223, %224 : vector<136x512xf32>
      %226 = arith.mulf %225, %215 : vector<136x512xf32>
      %cst_87 = arith.constant 0.254829586 : f32
      %227 = vector.broadcast %cst_87 : f32 to vector<136x512xf32>
      %228 = arith.addf %226, %227 : vector<136x512xf32>
      %229 = arith.mulf %228, %215 : vector<136x512xf32>
      %cst_88 = arith.constant 0.000000e+00 : f32
      %230 = vector.broadcast %cst_88 : f32 to vector<136x512xf32>
      %231 = arith.subf %230, %210 : vector<136x512xf32>
      %232 = arith.mulf %231, %210 : vector<136x512xf32>
      %233 = math.exp %232 : vector<136x512xf32>
      %234 = arith.mulf %229, %233 : vector<136x512xf32>
      %cst_89 = arith.constant 1.000000e+00 : f32
      %235 = vector.broadcast %cst_89 : f32 to vector<136x512xf32>
      %236 = arith.subf %235, %234 : vector<136x512xf32>
      %cst_90 = arith.constant 0.000000e+00 : f32
      %237 = vector.broadcast %cst_90 : f32 to vector<136x512xf32>
      %238 = arith.cmpf oge, %209, %237 : vector<136x512xf32>
      %cst_91 = arith.constant 0.000000e+00 : f32
      %239 = vector.broadcast %cst_91 : f32 to vector<136x512xf32>
      %240 = arith.subf %239, %236 : vector<136x512xf32>
      %241 = arith.select %238, %236, %240 : vector<136x512xi1>, vector<136x512xf32>
      %cst_92 = arith.constant 1.000000e+00 : f32
      %242 = vector.broadcast %cst_92 : f32 to vector<136x512xf32>
      %243 = arith.addf %242, %241 : vector<136x512xf32>
      %244 = arith.mulf %207, %243 : vector<136x512xf32>
      %245 = arith.truncf %244 : vector<136x512xf32> to vector<136x512xbf16>
      %246 = arith.index_cast %arg22 : i32 to index
      %c0_93 = arith.constant 0 : index
      %c0_94 = arith.constant 0 : index
      %247 = vector.load %arg14[%246, %c0_93, %c0_94] : memref<6x512x128xbf16, #tpu.memory_space<vmem>>, vector<1x512x128xbf16>
      %248 = vector.shape_cast %247 : vector<1x512x128xbf16> to vector<512x128xbf16>
      %cst_95 = arith.constant dense<0.000000e+00> : vector<136x128xf32>
      %249 = tpu.matmul %245, %248, %cst_95 {dimension_numbers = #tpu.dot_dimension_numbers<[1], [0], [0], [1], [0, 0, 1, 1], [], []>} : vector<136x512xbf16>, vector<512x128xbf16>, vector<136x128xf32> -> vector<136x128xf32>
      %250 = arith.addf %167, %249 : vector<136x128xf32>
      %251 = arith.index_cast %arg22 : i32 to index
      %c0_96 = arith.constant 0 : index
      %c0_97 = arith.constant 0 : index
      %252 = vector.load %arg15[%251, %c0_96, %c0_97] : memref<6x1x128xf32, #tpu.memory_space<vmem>>, vector<1x1x128xf32>
      %253 = vector.shape_cast %252 : vector<1x1x128xf32> to vector<1x128xf32>
      %254 = vector.broadcast %253 : vector<1x128xf32> to vector<136x128xf32>
      %255 = arith.addf %250, %254 : vector<136x128xf32>
      scf.yield %255 : vector<136x128xf32>
    }
    %c6_i32_5 = arith.constant 6 : i32
    %6 = tpu.iota {dimensions = array<i32: 0>} : vector<8x136xi32>
    %7 = tpu.iota {dimensions = array<i32: 1>} : vector<8x136xi32>
    %c17_i32 = arith.constant 17 : i32
    %8 = vector.broadcast %c17_i32 : i32 to vector<8x136xi32>
    %9 = arith.muli %6, %8 : vector<8x136xi32>
    %10 = arith.cmpi eq, %7, %9 : vector<8x136xi32>
    %11 = arith.extui %10 : vector<8x136xi1> to vector<8x136xi32>
    %12 = arith.sitofp %11 : vector<8x136xi32> to vector<8x136xf32>
    %cst_6 = arith.constant dense<0.000000e+00> : vector<8x128xf32>
    %13 = tpu.matmul %12, %5, %cst_6 {dimension_numbers = #tpu.dot_dimension_numbers<[1], [0], [0], [1], [0, 0, 1, 1], [], []>} : vector<8x136xf32>, vector<136x128xf32>, vector<8x128xf32> -> vector<8x128xf32>
    %c0_7 = arith.constant 0 : index
    %c0_8 = arith.constant 0 : index
    %14 = vector.load %arg16[%c0_7, %c0_8] : memref<1x128xf32, #tpu.memory_space<vmem>>, vector<1x128xf32>
    %c0_9 = arith.constant 0 : index
    %c0_10 = arith.constant 0 : index
    %15 = vector.load %arg17[%c0_9, %c0_10] : memref<1x128xf32, #tpu.memory_space<vmem>>, vector<1x128xf32>
    %cst_11 = arith.constant dense<0.000000e+00> : vector<8xf32>
    %16 = vector.multi_reduction <add>, %13, %cst_11 [1] : vector<8x128xf32> to vector<8xf32>
    %17 = vector.shape_cast %16 : vector<8xf32> to vector<8x1xf32>
    %cst_12 = arith.constant 1.280000e+02 : f32
    %18 = vector.broadcast %cst_12 : f32 to vector<8x1xf32>
    %19 = arith.divf %17, %18 : vector<8x1xf32>
    %20 = vector.broadcast %19 : vector<8x1xf32> to vector<8x128xf32>
    %21 = arith.subf %13, %20 : vector<8x128xf32>
    %22 = arith.mulf %21, %21 : vector<8x128xf32>
    %cst_13 = arith.constant dense<0.000000e+00> : vector<8xf32>
    %23 = vector.multi_reduction <add>, %22, %cst_13 [1] : vector<8x128xf32> to vector<8xf32>
    %24 = vector.shape_cast %23 : vector<8xf32> to vector<8x1xf32>
    %cst_14 = arith.constant 1.280000e+02 : f32
    %25 = vector.broadcast %cst_14 : f32 to vector<8x1xf32>
    %26 = arith.divf %24, %25 : vector<8x1xf32>
    %27 = vector.broadcast %19 : vector<8x1xf32> to vector<8x128xf32>
    %28 = arith.subf %13, %27 : vector<8x128xf32>
    %cst_15 = arith.constant 9.99999974E-6 : f32
    %29 = vector.broadcast %cst_15 : f32 to vector<8x1xf32>
    %30 = arith.addf %26, %29 : vector<8x1xf32>
    %31 = math.rsqrt %30 : vector<8x1xf32>
    %32 = vector.broadcast %31 : vector<8x1xf32> to vector<8x128xf32>
    %33 = arith.mulf %28, %32 : vector<8x128xf32>
    %34 = vector.broadcast %14 : vector<1x128xf32> to vector<8x128xf32>
    %35 = arith.mulf %33, %34 : vector<8x128xf32>
    %36 = vector.broadcast %15 : vector<1x128xf32> to vector<8x128xf32>
    %37 = arith.addf %35, %36 : vector<8x128xf32>
    %38 = arith.truncf %37 : vector<8x128xf32> to vector<8x128xbf16>
    %c0_16 = arith.constant 0 : index
    %c0_17 = arith.constant 0 : index
    %39 = vector.load %arg18[%c0_16, %c0_17] : memref<128x128xbf16, #tpu.memory_space<vmem>>, vector<128x128xbf16>
    %cst_18 = arith.constant dense<0.000000e+00> : vector<8x128xf32>
    %40 = tpu.matmul %38, %39, %cst_18 {dimension_numbers = #tpu.dot_dimension_numbers<[1], [0], [0], [1], [0, 0, 1, 1], [], []>} : vector<8x128xbf16>, vector<128x128xbf16>, vector<8x128xf32> -> vector<8x128xf32>
    %c0_19 = arith.constant 0 : index
    %c0_20 = arith.constant 0 : index
    %41 = vector.load %arg19[%c0_19, %c0_20] : memref<1x128xf32, #tpu.memory_space<vmem>>, vector<1x128xf32>
    %42 = vector.broadcast %41 : vector<1x128xf32> to vector<8x128xf32>
    %43 = arith.addf %40, %42 : vector<8x128xf32>
    %c0_21 = arith.constant 0 : index
    %c0_22 = arith.constant 0 : index
    %44 = vector.load %arg20[%c0_21, %c0_22] : memref<8x128xf32, #tpu.memory_space<vmem>>, vector<8x128xf32>
    tpu.vector_store %arg20[%c0_21, %c0_22], %43 {strides = array<i32>} : memref<8x128xf32, #tpu.memory_space<vmem>>, vector<8x128xf32>,
    return
  }
  func.func @transform_0(%arg0: i32) -> (i32, i32) {
    %c0_i32 = arith.constant 0 : i32
    %c0_i32_0 = arith.constant 0 : i32
    return %arg0, %c0_i32 : i32, i32
  }
  func.func @transform_1(%arg0: i32) -> (i32, i32) {
    %c0_i32 = arith.constant 0 : i32
    %c0_i32_0 = arith.constant 0 : i32
    %c0_i32_1 = arith.constant 0 : i32
    return %c0_i32, %c0_i32_0 : i32, i32
  }
  func.func @transform_2(%arg0: i32) -> (i32, i32) {
    %c0_i32 = arith.constant 0 : i32
    %c0_i32_0 = arith.constant 0 : i32
    %c0_i32_1 = arith.constant 0 : i32
    return %c0_i32, %c0_i32_0 : i32, i32
  }
  func.func @transform_3(%arg0: i32) -> (i32, i32, i32) {
    %c0_i32 = arith.constant 0 : i32
    %c0_i32_0 = arith.constant 0 : i32
    %c0_i32_1 = arith.constant 0 : i32
    %c0_i32_2 = arith.constant 0 : i32
    return %c0_i32, %c0_i32_0, %c0_i32_1 : i32, i32, i32
  }
  func.func @transform_4(%arg0: i32) -> (i32, i32, i32) {
    %c0_i32 = arith.constant 0 : i32
    %c0_i32_0 = arith.constant 0 : i32
    %c0_i32_1 = arith.constant 0 : i32
    %c0_i32_2 = arith.constant 0 : i32
    return %c0_i32, %c0_i32_0, %c0_i32_1 : i32, i32, i32
  }
  func.func @transform_5(%arg0: i32) -> (i32, i32, i32) {
    %c0_i32 = arith.constant 0 : i32
    %c0_i32_0 = arith.constant 0 : i32
    %c0_i32_1 = arith.constant 0 : i32
    %c0_i32_2 = arith.constant 0 : i32
    return %c0_i32, %c0_i32_0, %c0_i32_1 : i32, i32, i32
  }
  func.func @transform_6(%arg0: i32) -> (i32, i32, i32) {
    %c0_i32 = arith.constant 0 : i32
    %c0_i32_0 = arith.constant 0 : i32
    %c0_i32_1 = arith.constant 0 : i32
    %c0_i32_2 = arith.constant 0 : i32
    return %c0_i32, %c0_i32_0, %c0_i32_1 : i32, i32, i32
  }
  func.func @transform_7(%arg0: i32) -> (i32, i32, i32) {
    %c0_i32 = arith.constant 0 : i32
    %c0_i32_0 = arith.constant 0 : i32
    %c0_i32_1 = arith.constant 0 : i32
    %c0_i32_2 = arith.constant 0 : i32
    return %c0_i32, %c0_i32_0, %c0_i32_1 : i32, i32, i32
  }
  func.func @transform_8(%arg0: i32) -> (i32, i32, i32) {
    %c0_i32 = arith.constant 0 : i32
    %c0_i32_0 = arith.constant 0 : i32
    %c0_i32_1 = arith.constant 0 : i32
    %c0_i32_2 = arith.constant 0 : i32
    return %c0_i32, %c0_i32_0, %c0_i32_1 : i32, i32, i32
  }
  func.func @transform_9(%arg0: i32) -> (i32, i32, i32) {
    %c0_i32 = arith.constant 0 : i32
    %c0_i32_0 = arith.constant 0 : i32
    %c0_i32_1 = arith.constant 0 : i32
    %c0_i32_2 = arith.constant 0 : i32
    return %c0_i32, %c0_i32_0, %c0_i32_1 : i32, i32, i32
  }
  func.func @transform_10(%arg0: i32) -> (i32, i32, i32) {
    %c0_i32 = arith.constant 0 : i32
    %c0_i32_0 = arith.constant 0 : i32
    %c0_i32_1 = arith.constant 0 : i32
    %c0_i32_2 = arith.constant 0 : i32
    return %c0_i32, %c0_i32_0, %c0_i32_1 : i32, i32, i32
  }
  func.func @transform_11(%arg0: i32) -> (i32, i32, i32) {
    %c0_i32 = arith.constant 0 : i32
    %c0_i32_0 = arith.constant 0 : i32
    %c0_i32_1 = arith.constant 0 : i32
    %c0_i32_2 = arith.constant 0 : i32
    return %c0_i32, %c0_i32_0, %c0_i32_1 : i32, i32, i32
  }
  func.func @transform_12(%arg0: i32) -> (i32, i32, i32) {
    %c0_i32 = arith.constant 0 : i32
    %c0_i32_0 = arith.constant 0 : i32
    %c0_i32_1 = arith.constant 0 : i32
    %c0_i32_2 = arith.constant 0 : i32
    return %c0_i32, %c0_i32_0, %c0_i32_1 : i32, i32, i32
  }
  func.func @transform_13(%arg0: i32) -> (i32, i32, i32) {
    %c0_i32 = arith.constant 0 : i32
    %c0_i32_0 = arith.constant 0 : i32
    %c0_i32_1 = arith.constant 0 : i32
    %c0_i32_2 = arith.constant 0 : i32
    return %c0_i32, %c0_i32_0, %c0_i32_1 : i32, i32, i32
  }
  func.func @transform_14(%arg0: i32) -> (i32, i32, i32) {
    %c0_i32 = arith.constant 0 : i32
    %c0_i32_0 = arith.constant 0 : i32
    %c0_i32_1 = arith.constant 0 : i32
    %c0_i32_2 = arith.constant 0 : i32
    return %c0_i32, %c0_i32_0, %c0_i32_1 : i32, i32, i32
  }
  func.func @transform_15(%arg0: i32) -> (i32, i32) {
    %c0_i32 = arith.constant 0 : i32
    %c0_i32_0 = arith.constant 0 : i32
    %c0_i32_1 = arith.constant 0 : i32
    return %c0_i32, %c0_i32_0 : i32, i32
  }
  func.func @transform_16(%arg0: i32) -> (i32, i32) {
    %c0_i32 = arith.constant 0 : i32
    %c0_i32_0 = arith.constant 0 : i32
    %c0_i32_1 = arith.constant 0 : i32
    return %c0_i32, %c0_i32_0 : i32, i32
  }
  func.func @transform_17(%arg0: i32) -> (i32, i32) {
    %c0_i32 = arith.constant 0 : i32
    %c0_i32_0 = arith.constant 0 : i32
    %c0_i32_1 = arith.constant 0 : i32
    return %c0_i32, %c0_i32_0 : i32, i32
  }
  func.func @transform_18(%arg0: i32) -> (i32, i32) {
    %c0_i32 = arith.constant 0 : i32
    %c0_i32_0 = arith.constant 0 : i32
    %c0_i32_1 = arith.constant 0 : i32
    return %c0_i32, %c0_i32_0 : i32, i32
  }
  func.func @transform_19(%arg0: i32) -> (i32, i32) {
    %c0_i32 = arith.constant 0 : i32
    %c0_i32_0 = arith.constant 0 : i32
    return %arg0, %c0_i32 : i32, i32
  }
}

</mosaic_0001>

<llo_original>
// kernel: tpu_custom_call.1
$region0: #{tpu_custom_call.1}
  #allocation0 [shape = 'u32[]', space=smem, size = 0x4, offset = 0x4, fixed_abs, tag = 'smem constant byte address 0x4 - core index']
  #allocation1 [shape = 'u32[144,128]{1,0:T(1,128)}', space=vmem, size = 0x12000, scoped, tag = 'internal scratch']
  #allocation2 [shape = 'f32[136,128]{1,0:T(8,128)}', space=vmem, size = 0x11000, scoped, tag = 'scratch operand']
  %s0 = inlined_call_operand.hbm [shape: f32[272,128], index: 0, kind: input, shape index: {}]
  %s1 = inlined_call_operand.hbm [shape: f32[136,136], index: 1, kind: input, shape index: {}]
  %s2 = inlined_call_operand.hbm [shape: f32[128,128], index: 2, kind: input, shape index: {}]
  %s3 = inlined_call_operand.hbm [shape: f32[6,1,128], index: 3, kind: input, shape index: {}]
  %s4 = inlined_call_operand.vmem [shape: f32[6,1,128], index: 4, kind: input, shape index: {}]
  %s5 = inlined_call_operand.hbm [shape: bf16[6,128,384], index: 5, kind: input, shape index: {}]
  %s6 = inlined_call_operand.hbm [shape: f32[6,1,384], index: 6, kind: input, shape index: {}]
  %s7 = inlined_call_operand.hbm [shape: bf16[6,128,128], index: 7, kind: input, shape index: {}]
  %s8 = inlined_call_operand.vmem [shape: f32[6,1,128], index: 8, kind: input, shape index: {}]
  %s9 = inlined_call_operand.hbm [shape: f32[6,1,128], index: 9, kind: input, shape index: {}]
  %s10 = inlined_call_operand.vmem [shape: f32[6,1,128], index: 10, kind: input, shape index: {}]
  %s11 = inlined_call_operand.hbm [shape: bf16[6,128,512], index: 11, kind: input, shape index: {}]
  %s12 = inlined_call_operand.hbm [shape: f32[6,1,512], index: 12, kind: input, shape index: {}]
  %s13 = inlined_call_operand.hbm [shape: bf16[6,512,128], index: 13, kind: input, shape index: {}]
  %s14 = inlined_call_operand.vmem [shape: f32[6,1,128], index: 14, kind: input, shape index: {}]
  %s15 = inlined_call_operand.vmem [shape: f32[1,128], index: 15, kind: input, shape index: {}]
  %s16 = inlined_call_operand.vmem [shape: f32[1,128], index: 16, kind: input, shape index: {}]
  %s17 = inlined_call_operand.hbm [shape: bf16[128,128], index: 17, kind: input, shape index: {}]
  %s18 = inlined_call_operand.vmem [shape: f32[1,128], index: 18, kind: input, shape index: {}]
  %s19 = inlined_call_operand.hbm [shape: f32[16,128], index: 19, kind: output, shape index: {}]
  %s20 = sld [smem:[#allocation0]]
  $region164: #{tpu_custom_call.1} parent=0
    _
  %s22 = ssub.s32 1, %s20
  %s23 = scalar_select 0, %s22, %s20
  $region1: #{tpu_custom_call.1} parent=0
    #allocation3 [shape = 'u8[139264]{0}', space=vmem, size = 0x22000, scoped, tag = 'input window, operand 0']
    #allocation4 [shape = 's32[2]{0}', space=sflag, size = 0x8, scoped, tag = 'scoped memory for tpu_custom_call.1']
    #allocation5 [shape = 's32[2]{0}', space=sflag, size = 0x8, scoped, tag = 'scoped memory for tpu_custom_call.1']
    #allocation6 [shape = 'u8[139264]{0}', space=vmem, size = 0x22000, scoped, tag = 'input window, operand 1, single buffered']
    #allocation7 [shape = 's32[1]{0}', space=sflag, size = 0x4, scoped, tag = 'scoped memory for tpu_custom_call.1']
    #allocation8 [shape = 'u8[65536]{0}', space=vmem, size = 0x10000, scoped, tag = 'input window, operand 2, single buffered']
    #allocation9 [shape = 'u8[3072]{0}', space=vmem, size = 0xc00, scoped, tag = 'input window, operand 3, single buffered']
    #allocation10 [shape = 's32[1]{0}', space=sflag, size = 0x4, scoped, tag = 'scoped memory for tpu_custom_call.1']
    #allocation11 [shape = 'u8[589824]{0}', space=vmem, size = 0x90000, scoped, tag = 'input window, operand 5, single buffered']
    #allocation12 [shape = 'u8[9216]{0}', space=vmem, size = 0x2400, scoped, tag = 'input window, operand 6, single buffered']
    #allocation13 [shape = 's32[1]{0}', space=sflag, size = 0x4, scoped, tag = 'scoped memory for tpu_custom_call.1']
    #allocation14 [shape = 'u8[196608]{0}', space=vmem, size = 0x30000, scoped, tag = 'input window, operand 7, single buffered']
    #allocation15 [shape = 'u8[3072]{0}', space=vmem, size = 0xc00, scoped, tag = 'input window, operand 9, single buffered']
    #allocation16 [shape = 's32[1]{0}', space=sflag, size = 0x4, scoped, tag = 'scoped memory for tpu_custom_call.1']
    #allocation17 [shape = 'u8[786432]{0}', space=vmem, size = 0xc0000, scoped, tag = 'input window, operand 11, single buffered']
    #allocation18 [shape = 'u8[12288]{0}', space=vmem, size = 0x3000, scoped, tag = 'input window, operand 12, single buffered']
    #allocation19 [shape = 's32[1]{0}', space=sflag, size = 0x4, scoped, tag = 'scoped memory for tpu_custom_call.1']
    #allocation20 [shape = 'u8[786432]{0}', space=vmem, size = 0xc0000, scoped, tag = 'input window, operand 13, single buffered']
    #allocation21 [shape = 'u8[32768]{0}', space=vmem, size = 0x8000, scoped, tag = 'input window, operand 17, single buffered']
    #allocation22 [shape = 's32[1]{0}', space=sflag, size = 0x4, scoped, tag = 'scoped memory for tpu_custom_call.1']
    #allocation23 [shape = 'u8[8192]{0}', space=vmem, size = 0x2000, scoped, tag = 'output window, operand 0']
    %24 = vsyncpa [#allocation4], 0
    %s25 = scalar_lea.sflag [#allocation4], 1
    %26 = vsyncpa %s25, 0
    %27 = vsyncpa [#allocation7], 0
    %28 = vsyncpa [#allocation10], 0
    %29 = vsyncpa [#allocation13], 0
    %30 = vsyncpa [#allocation16], 0
    %31 = vsyncpa [#allocation19], 0
    %32 = vsyncpa [#allocation22], 0
    %33 = vsyncpa [#allocation5], 0
    %s34 = scalar_lea.sflag [#allocation5], 1
    %35 = vsyncpa %s34, 0
    loop: start=0, step=1, limit=4
    $region2: #{tpu_custom_call.1} parent=1 // loop_pre_header
      _
    $region3: #{tpu_custom_call.1} parent=1 // loop_header
      %s37 = sphi 0, %s41
      %p38 = scmp.ge.s32.totalorder %s37, 4
      %s47 = sphi 0, %s49
      %s50 = sphi 0, %s47
      %s51 = sphi 0, %s50
      %s67 = sphi 0, %s51
      %s71 = sphi 0, %s71
      %s73 = sphi 0, %s71
      %s74 = sphi 0, %s73
      %s88 = sphi 0, %s74
      %s92 = sphi 0, %s92
      %s94 = sphi 0, %s92
      %s95 = sphi 0, %s94
      %s109 = sphi 0, %s95
      %s113 = sphi 0, %s113
      %s115 = sphi 0, %s113
      %s116 = sphi 0, %s115
      %s130 = sphi 0, %s116
      %s134 = sphi 0, %s134
      %s136 = sphi 0, %s134
      %s137 = sphi 0, %s136
      %s151 = sphi 0, %s137
      %s155 = sphi 0, %s155
      %s157 = sphi 0, %s155
      %s158 = sphi 0, %s157
      %s172 = sphi 0, %s158
      %s176 = sphi 0, %s176
      %s178 = sphi 0, %s176
      %s179 = sphi 0, %s178
      %s193 = sphi 0, %s179
      %s197 = sphi 0, %s197
      %s199 = sphi 0, %s197
      %s200 = sphi 0, %s199
      %s214 = sphi 0, %s200
      %s218 = sphi 0, %s218
      %s220 = sphi 0, %s218
      %s221 = sphi 0, %s220
      %s235 = sphi 0, %s221
      %s239 = sphi 0, %s239
      %s241 = sphi 0, %s239
      %s242 = sphi 0, %s241
      %s256 = sphi 0, %s242
      %s260 = sphi 0, %s260
      %s262 = sphi 0, %s260
      %s263 = sphi 0, %s262
      %s277 = sphi 0, %s263
      %s281 = sphi 0, %s281
      %s283 = sphi 0, %s281
      %s284 = sphi 0, %s283
      %s298 = sphi 0, %s284
      %s302 = sphi 0, %s302
      %s304 = sphi 0, %s302
      %s305 = sphi 0, %s304
      %s319 = sphi 0, %s305
      %s323 = sphi 0, %s323
      %s325 = sphi 0, %s323
      %s326 = sphi 0, %s325
      %s340 = sphi 0, %s326
      %s344 = sphi 0, %s344
      %s346 = sphi 0, %s344
      %s347 = sphi 0, %s346
      %s361 = sphi 0, %s347
      %s365 = sphi 0, %s365
      %s367 = sphi 0, %s365
      %s368 = sphi 0, %s367
      %s382 = sphi 0, %s368
      %s386 = sphi 0, %s386
      %s388 = sphi 0, %s386
      %s389 = sphi 0, %s388
      %s403 = sphi 0, %s389
      %s407 = sphi 0, %s407
      %s409 = sphi 0, %s407
      %s410 = sphi 0, %s409
      %s424 = sphi 0, %s410
      %s428 = sphi 0, %s428
      %s430 = sphi 0, %s428
      %s431 = sphi 0, %s430
      %s445 = sphi 0, %s431
      %s451 = sphi 0, %s453
      %s454 = sphi 0, %s451
      %s455 = sphi 0, %s454
      %s471 = sphi 0, %s455
    $region4: #{tpu_custom_call.1} parent=1 // loop_header_branch
      %40 = sbr.rel (%p38) target = $region8
    $region5: #{tpu_custom_call.1} parent=1 // loop_body
      %s42 = ssub.s32 %s37, 1
      %s43 = ssub.s32 %s37, 2
      %s44 = sadd.s32 %s37, 1
      %s45 = ssub.s32 %s37, %s44
      %p46 = scmp.eq.s32.totalorder %s45, 0
      %s48 = sadd.s32 %s47, 1
      %s49 = scalar_select %p46, %s47, %s48
      %p52 = pneg %p46
      %p53 = scmp.eq.s32.totalorder %s37, 1
      %p54 = por %p52, %p53
      %p55 = scmp.ne.s32.totalorder %s47, %s50
      %p56 = scmp.eq.s32.totalorder %s37, 0
      %p57 = por %p55, %p56
      %p58 = scmp.ne.s32.totalorder %s47, %s50
      %p59 = scmp.eq.s32.totalorder %s42, 1
      %p60 = por %p58, %p59
      %p61 = scmp.ne.s32.totalorder %s50, %s51
      %p62 = scmp.eq.s32.totalorder %s42, 0
      %p63 = por %p61, %p62
      %p64 = scmp.ne.s32.totalorder %s50, %s51
      %p65 = scmp.eq.s32.totalorder %s43, 1
      %p66 = por %p64, %p65
      %p68 = scmp.ne.s32.totalorder %s51, %s67
      %p69 = scmp.eq.s32.totalorder %s43, 0
      %p70 = por %p68, %p69
      %s72 = sadd.s32 %s71, 1
      %p75 = scmp.eq.s32.totalorder %s37, 1
      %p76 = scmp.ne.s32.totalorder %s71, %s73
      %p77 = scmp.eq.s32.totalorder %s37, 0
      %p78 = por %p76, %p77
      %p79 = scmp.ne.s32.totalorder %s71, %s73
      %p80 = scmp.eq.s32.totalorder %s42, 1
      %p81 = por %p79, %p80
      %p82 = scmp.ne.s32.totalorder %s73, %s74
      %p83 = scmp.eq.s32.totalorder %s42, 0
      %p84 = por %p82, %p83
      %p85 = scmp.ne.s32.totalorder %s73, %s74
      %p86 = scmp.eq.s32.totalorder %s43, 1
      %p87 = por %p85, %p86
      %p89 = scmp.ne.s32.totalorder %s74, %s88
      %p90 = scmp.eq.s32.totalorder %s43, 0
      %p91 = por %p89, %p90
      %s93 = sadd.s32 %s92, 1
      %p96 = scmp.eq.s32.totalorder %s37, 1
      %p97 = scmp.ne.s32.totalorder %s92, %s94
      %p98 = scmp.eq.s32.totalorder %s37, 0
      %p99 = por %p97, %p98
      %p100 = scmp.ne.s32.totalorder %s92, %s94
      %p101 = scmp.eq.s32.totalorder %s42, 1
      %p102 = por %p100, %p101
      %p103 = scmp.ne.s32.totalorder %s94, %s95
      %p104 = scmp.eq.s32.totalorder %s42, 0
      %p105 = por %p103, %p104
      %p106 = scmp.ne.s32.totalorder %s94, %s95
      %p107 = scmp.eq.s32.totalorder %s43, 1
      %p108 = por %p106, %p107
      %p110 = scmp.ne.s32.totalorder %s95, %s109
      %p111 = scmp.eq.s32.totalorder %s43, 0
      %p112 = por %p110, %p111
      %s114 = sadd.s32 %s113, 1
      %p117 = scmp.eq.s32.totalorder %s37, 1
      %p118 = scmp.ne.s32.totalorder %s113, %s115
      %p119 = scmp.eq.s32.totalorder %s37, 0
      %p120 = por %p118, %p119
      %p121 = scmp.ne.s32.totalorder %s113, %s115
      %p122 = scmp.eq.s32.totalorder %s42, 1
      %p123 = por %p121, %p122
      %p124 = scmp.ne.s32.totalorder %s115, %s116
      %p125 = scmp.eq.s32.totalorder %s42, 0
      %p126 = por %p124, %p125
      %p127 = scmp.ne.s32.totalorder %s115, %s116
      %p128 = scmp.eq.s32.totalorder %s43, 1
      %p129 = por %p127, %p128
      %p131 = scmp.ne.s32.totalorder %s116, %s130
      %p132 = scmp.eq.s32.totalorder %s43, 0
      %p133 = por %p131, %p132
      %s135 = sadd.s32 %s134, 1
      %p138 = scmp.eq.s32.totalorder %s37, 1
      %p139 = scmp.ne.s32.totalorder %s134, %s136
      %p140 = scmp.eq.s32.totalorder %s37, 0
      %p141 = por %p139, %p140
      %p142 = scmp.ne.s32.totalorder %s134, %s136
      %p143 = scmp.eq.s32.totalorder %s42, 1
      %p144 = por %p142, %p143
      %p145 = scmp.ne.s32.totalorder %s136, %s137
      %p146 = scmp.eq.s32.totalorder %s42, 0
      %p147 = por %p145, %p146
      %p148 = scmp.ne.s32.totalorder %s136, %s137
      %p149 = scmp.eq.s32.totalorder %s43, 1
      %p150 = por %p148, %p149
      %p152 = scmp.ne.s32.totalorder %s137, %s151
      %p153 = scmp.eq.s32.totalorder %s43, 0
      %p154 = por %p152, %p153
      %s156 = sadd.s32 %s155, 1
      %p159 = scmp.eq.s32.totalorder %s37, 1
      %p160 = scmp.ne.s32.totalorder %s155, %s157
      %p161 = scmp.eq.s32.totalorder %s37, 0
      %p162 = por %p160, %p161
      %p163 = scmp.ne.s32.totalorder %s155, %s157
      %p164 = scmp.eq.s32.totalorder %s42, 1
      %p165 = por %p163, %p164
      %p166 = scmp.ne.s32.totalorder %s157, %s158
      %p167 = scmp.eq.s32.totalorder %s42, 0
      %p168 = por %p166, %p167
      %p169 = scmp.ne.s32.totalorder %s157, %s158
      %p170 = scmp.eq.s32.totalorder %s43, 1
      %p171 = por %p169, %p170
      %p173 = scmp.ne.s32.totalorder %s158, %s172
      %p174 = scmp.eq.s32.totalorder %s43, 0
      %p175 = por %p173, %p174
      %s177 = sadd.s32 %s176, 1
      %p180 = scmp.eq.s32.totalorder %s37, 1
      %p181 = scmp.ne.s32.totalorder %s176, %s178
      %p182 = scmp.eq.s32.totalorder %s37, 0
      %p183 = por %p181, %p182
      %p184 = scmp.ne.s32.totalorder %s176, %s178
      %p185 = scmp.eq.s32.totalorder %s42, 1
      %p186 = por %p184, %p185
      %p187 = scmp.ne.s32.totalorder %s178, %s179
      %p188 = scmp.eq.s32.totalorder %s42, 0
      %p189 = por %p187, %p188
      %p190 = scmp.ne.s32.totalorder %s178, %s179
      %p191 = scmp.eq.s32.totalorder %s43, 1
      %p192 = por %p190, %p191
      %p194 = scmp.ne.s32.totalorder %s179, %s193
      %p195 = scmp.eq.s32.totalorder %s43, 0
      %p196 = por %p194, %p195
      %s198 = sadd.s32 %s197, 1
      %p201 = scmp.eq.s32.totalorder %s37, 1
      %p202 = scmp.ne.s32.totalorder %s197, %s199
      %p203 = scmp.eq.s32.totalorder %s37, 0
      %p204 = por %p202, %p203
      %p205 = scmp.ne.s32.totalorder %s197, %s199
      %p206 = scmp.eq.s32.totalorder %s42, 1
      %p207 = por %p205, %p206
      %p208 = scmp.ne.s32.totalorder %s199, %s200
      %p209 = scmp.eq.s32.totalorder %s42, 0
      %p210 = por %p208, %p209
      %p211 = scmp.ne.s32.totalorder %s199, %s200
      %p212 = scmp.eq.s32.totalorder %s43, 1
      %p213 = por %p211, %p212
      %p215 = scmp.ne.s32.totalorder %s200, %s214
      %p216 = scmp.eq.s32.totalorder %s43, 0
      %p217 = por %p215, %p216
      %s219 = sadd.s32 %s218, 1
      %p222 = scmp.eq.s32.totalorder %s37, 1
      %p223 = scmp.ne.s32.totalorder %s218, %s220
      %p224 = scmp.eq.s32.totalorder %s37, 0
      %p225 = por %p223, %p224
      %p226 = scmp.ne.s32.totalorder %s218, %s220
      %p227 = scmp.eq.s32.totalorder %s42, 1
      %p228 = por %p226, %p227
      %p229 = scmp.ne.s32.totalorder %s220, %s221
      %p230 = scmp.eq.s32.totalorder %s42, 0
      %p231 = por %p229, %p230
      %p232 = scmp.ne.s32.totalorder %s220, %s221
      %p233 = scmp.eq.s32.totalorder %s43, 1
      %p234 = por %p232, %p233
      %p236 = scmp.ne.s32.totalorder %s221, %s235
      %p237 = scmp.eq.s32.totalorder %s43, 0
      %p238 = por %p236, %p237
      %s240 = sadd.s32 %s239, 1
      %p243 = scmp.eq.s32.totalorder %s37, 1
      %p244 = scmp.ne.s32.totalorder %s239, %s241
      %p245 = scmp.eq.s32.totalorder %s37, 0
      %p246 = por %p244, %p245
      %p247 = scmp.ne.s32.totalorder %s239, %s241
      %p248 = scmp.eq.s32.totalorder %s42, 1
      %p249 = por %p247, %p248
      %p250 = scmp.ne.s32.totalorder %s241, %s242
      %p251 = scmp.eq.s32.totalorder %s42, 0
      %p252 = por %p250, %p251
      %p253 = scmp.ne.s32.totalorder %s241, %s242
      %p254 = scmp.eq.s32.totalorder %s43, 1
      %p255 = por %p253, %p254
      %p257 = scmp.ne.s32.totalorder %s242, %s256
      %p258 = scmp.eq.s32.totalorder %s43, 0
      %p259 = por %p257, %p258
      %s261 = sadd.s32 %s260, 1
      %p264 = scmp.eq.s32.totalorder %s37, 1
      %p265 = scmp.ne.s32.totalorder %s260, %s262
      %p266 = scmp.eq.s32.totalorder %s37, 0
      %p267 = por %p265, %p266
      %p268 = scmp.ne.s32.totalorder %s260, %s262
      %p269 = scmp.eq.s32.totalorder %s42, 1
      %p270 = por %p268, %p269
      %p271 = scmp.ne.s32.totalorder %s262, %s263
      %p272 = scmp.eq.s32.totalorder %s42, 0
      %p273 = por %p271, %p272
      %p274 = scmp.ne.s32.totalorder %s262, %s263
      %p275 = scmp.eq.s32.totalorder %s43, 1
      %p276 = por %p274, %p275
      %p278 = scmp.ne.s32.totalorder %s263, %s277
      %p279 = scmp.eq.s32.totalorder %s43, 0
      %p280 = por %p278, %p279
      %s282 = sadd.s32 %s281, 1
      %p285 = scmp.eq.s32.totalorder %s37, 1
      %p286 = scmp.ne.s32.totalorder %s281, %s283
      %p287 = scmp.eq.s32.totalorder %s37, 0
      %p288 = por %p286, %p287
      %p289 = scmp.ne.s32.totalorder %s281, %s283
      %p290 = scmp.eq.s32.totalorder %s42, 1
      %p291 = por %p289, %p290
      %p292 = scmp.ne.s32.totalorder %s283, %s284
      %p293 = scmp.eq.s32.totalorder %s42, 0
      %p294 = por %p292, %p293
      %p295 = scmp.ne.s32.totalorder %s283, %s284
      %p296 = scmp.eq.s32.totalorder %s43, 1
      %p297 = por %p295, %p296
      %p299 = scmp.ne.s32.totalorder %s284, %s298
      %p300 = scmp.eq.s32.totalorder %s43, 0
      %p301 = por %p299, %p300
      %s303 = sadd.s32 %s302, 1
      %p306 = scmp.eq.s32.totalorder %s37, 1
      %p307 = scmp.ne.s32.totalorder %s302, %s304
      %p308 = scmp.eq.s32.totalorder %s37, 0
      %p309 = por %p307, %p308
      %p310 = scmp.ne.s32.totalorder %s302, %s304
      %p311 = scmp.eq.s32.totalorder %s42, 1
      %p312 = por %p310, %p311
      %p313 = scmp.ne.s32.totalorder %s304, %s305
      %p314 = scmp.eq.s32.totalorder %s42, 0
      %p315 = por %p313, %p314
      %p316 = scmp.ne.s32.totalorder %s304, %s305
      %p317 = scmp.eq.s32.totalorder %s43, 1
      %p318 = por %p316, %p317
      %p320 = scmp.ne.s32.totalorder %s305, %s319
      %p321 = scmp.eq.s32.totalorder %s43, 0
      %p322 = por %p320, %p321
      %s324 = sadd.s32 %s323, 1
      %p327 = scmp.eq.s32.totalorder %s37, 1
      %p328 = scmp.ne.s32.totalorder %s323, %s325
      %p329 = scmp.eq.s32.totalorder %s37, 0
      %p330 = por %p328, %p329
      %p331 = scmp.ne.s32.totalorder %s323, %s325
      %p332 = scmp.eq.s32.totalorder %s42, 1
      %p333 = por %p331, %p332
      %p334 = scmp.ne.s32.totalorder %s325, %s326
      %p335 = scmp.eq.s32.totalorder %s42, 0
      %p336 = por %p334, %p335
      %p337 = scmp.ne.s32.totalorder %s325, %s326
      %p338 = scmp.eq.s32.totalorder %s43, 1
      %p339 = por %p337, %p338
      %p341 = scmp.ne.s32.totalorder %s326, %s340
      %p342 = scmp.eq.s32.totalorder %s43, 0
      %p343 = por %p341, %p342
      %s345 = sadd.s32 %s344, 1
      %p348 = scmp.eq.s32.totalorder %s37, 1
      %p349 = scmp.ne.s32.totalorder %s344, %s346
      %p350 = scmp.eq.s32.totalorder %s37, 0
      %p351 = por %p349, %p350
      %p352 = scmp.ne.s32.totalorder %s344, %s346
      %p353 = scmp.eq.s32.totalorder %s42, 1
      %p354 = por %p352, %p353
      %p355 = scmp.ne.s32.totalorder %s346, %s347
      %p356 = scmp.eq.s32.totalorder %s42, 0
      %p357 = por %p355, %p356
      %p358 = scmp.ne.s32.totalorder %s346, %s347
      %p359 = scmp.eq.s32.totalorder %s43, 1
      %p360 = por %p358, %p359
      %p362 = scmp.ne.s32.totalorder %s347, %s361
      %p363 = scmp.eq.s32.totalorder %s43, 0
      %p364 = por %p362, %p363
      %s366 = sadd.s32 %s365, 1
      %p369 = scmp.eq.s32.totalorder %s37, 1
      %p370 = scmp.ne.s32.totalorder %s365, %s367
      %p371 = scmp.eq.s32.totalorder %s37, 0
      %p372 = por %p370, %p371
      %p373 = scmp.ne.s32.totalorder %s365, %s367
      %p374 = scmp.eq.s32.totalorder %s42, 1
      %p375 = por %p373, %p374
      %p376 = scmp.ne.s32.totalorder %s367, %s368
      %p377 = scmp.eq.s32.totalorder %s42, 0
      %p378 = por %p376, %p377
      %p379 = scmp.ne.s32.totalorder %s367, %s368
      %p380 = scmp.eq.s32.totalorder %s43, 1
      %p381 = por %p379, %p380
      %p383 = scmp.ne.s32.totalorder %s368, %s382
      %p384 = scmp.eq.s32.totalorder %s43, 0
      %p385 = por %p383, %p384
      %s387 = sadd.s32 %s386, 1
      %p390 = scmp.eq.s32.totalorder %s37, 1
      %p391 = scmp.ne.s32.totalorder %s386, %s388
      %p392 = scmp.eq.s32.totalorder %s37, 0
      %p393 = por %p391, %p392
      %p394 = scmp.ne.s32.totalorder %s386, %s388
      %p395 = scmp.eq.s32.totalorder %s42, 1
      %p396 = por %p394, %p395
      %p397 = scmp.ne.s32.totalorder %s388, %s389
      %p398 = scmp.eq.s32.totalorder %s42, 0
      %p399 = por %p397, %p398
      %p400 = scmp.ne.s32.totalorder %s388, %s389
      %p401 = scmp.eq.s32.totalorder %s43, 1
      %p402 = por %p400, %p401
      %p404 = scmp.ne.s32.totalorder %s389, %s403
      %p405 = scmp.eq.s32.totalorder %s43, 0
      %p406 = por %p404, %p405
      %s408 = sadd.s32 %s407, 1
      %p411 = scmp.eq.s32.totalorder %s37, 1
      %p412 = scmp.ne.s32.totalorder %s407, %s409
      %p413 = scmp.eq.s32.totalorder %s37, 0
      %p414 = por %p412, %p413
      %p415 = scmp.ne.s32.totalorder %s407, %s409
      %p416 = scmp.eq.s32.totalorder %s42, 1
      %p417 = por %p415, %p416
      %p418 = scmp.ne.s32.totalorder %s409, %s410
      %p419 = scmp.eq.s32.totalorder %s42, 0
      %p420 = por %p418, %p419
      %p421 = scmp.ne.s32.totalorder %s409, %s410
      %p422 = scmp.eq.s32.totalorder %s43, 1
      %p423 = por %p421, %p422
      %p425 = scmp.ne.s32.totalorder %s410, %s424
      %p426 = scmp.eq.s32.totalorder %s43, 0
      %p427 = por %p425, %p426
      %s429 = sadd.s32 %s428, 1
      %p432 = scmp.eq.s32.totalorder %s37, 1
      %p433 = scmp.ne.s32.totalorder %s428, %s430
      %p434 = scmp.eq.s32.totalorder %s37, 0
      %p435 = por %p433, %p434
      %p436 = scmp.ne.s32.totalorder %s428, %s430
      %p437 = scmp.eq.s32.totalorder %s42, 1
      %p438 = por %p436, %p437
      %p439 = scmp.ne.s32.totalorder %s430, %s431
      %p440 = scmp.eq.s32.totalorder %s42, 0
      %p441 = por %p439, %p440
      %p442 = scmp.ne.s32.totalorder %s430, %s431
      %p443 = scmp.eq.s32.totalorder %s43, 1
      %p444 = por %p442, %p443
      %p446 = scmp.ne.s32.totalorder %s431, %s445
      %p447 = scmp.eq.s32.totalorder %s43, 0
      %p448 = por %p446, %p447
      %s449 = ssub.s32 %s37, %s44
      %p450 = scmp.eq.s32.totalorder %s449, 0
      %s452 = sadd.s32 %s451, 1
      %s453 = scalar_select %p450, %s451, %s452
      %p456 = pneg %p450
      %p457 = scmp.eq.s32.totalorder %s37, 1
      %p458 = por %p456, %p457
      %p459 = scmp.ne.s32.totalorder %s451, %s454
      %p460 = scmp.eq.s32.totalorder %s37, 0
      %p461 = por %p459, %p460
      %p462 = scmp.ne.s32.totalorder %s451, %s454
      %p463 = scmp.eq.s32.totalorder %s42, 1
      %p464 = por %p462, %p463
      %p465 = scmp.ne.s32.totalorder %s454, %s455
      %p466 = scmp.eq.s32.totalorder %s42, 0
      %p467 = por %p465, %p466
      %p468 = scmp.ne.s32.totalorder %s454, %s455
      %p469 = scmp.eq.s32.totalorder %s43, 1
      %p470 = por %p468, %p469
      %p472 = scmp.ne.s32.totalorder %s455, %s471
      %p473 = scmp.eq.s32.totalorder %s43, 0
      %p474 = por %p472, %p473
      %p475 = scmp.le.s32.totalorder 1, %s37
      %p476 = scmp.lt.s32.totalorder %s37, 3
      %p477 = pnand %p475, %p476
      %p478 = pneg %p477
      // Predicated region
      $region9: #{tpu_custom_call.1} parent=5 // pred_check
        _
      $region10: #{tpu_custom_call.1} parent=5 // pred_check_branch
        %480 = sbr.rel (%p477) target = $region12
      $region11: #{tpu_custom_call.1} parent=5 // pred_region
        %s481 = ssub.s32 %s37, 1
        // Predicated region
        $region13: #{tpu_custom_call.1} parent=11 // pred_check
          %p482 = pneg %p84
        $region14: #{tpu_custom_call.1} parent=11 // pred_check_branch
          %484 = sbr.rel (%p482) target = $region16
        $region15: #{tpu_custom_call.1} parent=11 // pred_region
          %s486 = ssub.s32 4352, 4352
          %487 = vsyncadd [#allocation7], %s486
          %s488 = sshll.u32 [#allocation6], 4
          %s489 = int_to_ptr.vmem [resolvable:$true] %s488
          %494 = dma.hbm_to_vmem [thread:$0]  %s1, 4352, %s489, [#allocation7], 256, 256, 16
        $region16: #{tpu_custom_call.1} parent=11 // pred_fallthru
          _
        // Predicated region
        $region17: #{tpu_custom_call.1} parent=11 // pred_check
          %p495 = pneg %p105
        $region18: #{tpu_custom_call.1} parent=11 // pred_check_branch
          %497 = sbr.rel (%p495) target = $region20
        $region19: #{tpu_custom_call.1} parent=11 // pred_region
          %s499 = ssub.s32 2048, 2048
          %500 = vsyncadd [#allocation7], %s499
          %s501 = sshll.u32 [#allocation8], 4
          %s502 = int_to_ptr.vmem [resolvable:$true] %s501
          %507 = dma.hbm_to_vmem [thread:$0]  %s2, 2048, %s502, [#allocation7], 128, 128, 8
        $region20: #{tpu_custom_call.1} parent=11 // pred_fallthru
          _
        // Predicated region
        $region21: #{tpu_custom_call.1} parent=11 // pred_check
          %p508 = pneg %p126
        $region22: #{tpu_custom_call.1} parent=11 // pred_check_branch
          %510 = sbr.rel (%p508) target = $region24
        $region23: #{tpu_custom_call.1} parent=11 // pred_region
          %s512 = ssub.s32 96, 96
          %513 = vsyncadd [#allocation10], %s512
          %s514 = sshll.u32 [#allocation9], 4
          %s515 = int_to_ptr.vmem [resolvable:$true] %s514
          %520 = dma.hbm_to_vmem [thread:$0]  %s3, 96, %s515, [#allocation10], 16, 16, 1
        $region24: #{tpu_custom_call.1} parent=11 // pred_fallthru
          _
        // Predicated region
        $region25: #{tpu_custom_call.1} parent=11 // pred_check
          %p521 = pneg %p147
        $region26: #{tpu_custom_call.1} parent=11 // pred_check_branch
          %523 = sbr.rel (%p521) target = $region28
        $region27: #{tpu_custom_call.1} parent=11 // pred_region
          _
        $region28: #{tpu_custom_call.1} parent=11 // pred_fallthru
          _
        // Predicated region
        $region29: #{tpu_custom_call.1} parent=11 // pred_check
          %p524 = pneg %p168
        $region30: #{tpu_custom_call.1} parent=11 // pred_check_branch
          %526 = sbr.rel (%p524) target = $region32
        $region31: #{tpu_custom_call.1} parent=11 // pred_region
          %s528 = ssub.s32 18432, 18432
          %529 = vsyncadd [#allocation10], %s528
          %s530 = sshll.u32 [#allocation11], 4
          %s531 = int_to_ptr.vmem [resolvable:$true] %s530
          %536 = dma.hbm_to_vmem [thread:$0]  %s5, 18432, %s531, [#allocation10], 192, 192, 12
        $region32: #{tpu_custom_call.1} parent=11 // pred_fallthru
          _
        // Predicated region
        $region33: #{tpu_custom_call.1} parent=11 // pred_check
          %p537 = pneg %p189
        $region34: #{tpu_custom_call.1} parent=11 // pred_check_branch
          %539 = sbr.rel (%p537) target = $region36
        $region35: #{tpu_custom_call.1} parent=11 // pred_region
          %s541 = ssub.s32 288, 288
          %542 = vsyncadd [#allocation13], %s541
          %s543 = sshll.u32 [#allocation12], 4
          %s544 = int_to_ptr.vmem [resolvable:$true] %s543
          %549 = dma.hbm_to_vmem [thread:$0]  %s6, 288, %s544, [#allocation13], 48, 48, 3
        $region36: #{tpu_custom_call.1} parent=11 // pred_fallthru
          _
        // Predicated region
        $region37: #{tpu_custom_call.1} parent=11 // pred_check
          %p550 = pneg %p210
        $region38: #{tpu_custom_call.1} parent=11 // pred_check_branch
          %552 = sbr.rel (%p550) target = $region40
        $region39: #{tpu_custom_call.1} parent=11 // pred_region
          %s554 = ssub.s32 6144, 6144
          %555 = vsyncadd [#allocation13], %s554
          %s556 = sshll.u32 [#allocation14], 4
          %s557 = int_to_ptr.vmem [resolvable:$true] %s556
          %562 = dma.hbm_to_vmem [thread:$0]  %s7, 6144, %s557, [#allocation13], 64, 64, 4
        $region40: #{tpu_custom_call.1} parent=11 // pred_fallthru
          _
        // Predicated region
        $region41: #{tpu_custom_call.1} parent=11 // pred_check
          %p563 = pneg %p231
        $region42: #{tpu_custom_call.1} parent=11 // pred_check_branch
          %565 = sbr.rel (%p563) target = $region44
        $region43: #{tpu_custom_call.1} parent=11 // pred_region
          _
        $region44: #{tpu_custom_call.1} parent=11 // pred_fallthru
          _
        // Predicated region
        $region45: #{tpu_custom_call.1} parent=11 // pred_check
          %p566 = pneg %p252
        $region46: #{tpu_custom_call.1} parent=11 // pred_check_branch
          %568 = sbr.rel (%p566) target = $region48
        $region47: #{tpu_custom_call.1} parent=11 // pred_region
          %s570 = ssub.s32 96, 96
          %571 = vsyncadd [#allocation16], %s570
          %s572 = sshll.u32 [#allocation15], 4
          %s573 = int_to_ptr.vmem [resolvable:$true] %s572
          %578 = dma.hbm_to_vmem [thread:$0]  %s9, 96, %s573, [#allocation16], 16, 16, 1
        $region48: #{tpu_custom_call.1} parent=11 // pred_fallthru
          _
        // Predicated region
        $region49: #{tpu_custom_call.1} parent=11 // pred_check
          %p579 = pneg %p273
        $region50: #{tpu_custom_call.1} parent=11 // pred_check_branch
          %581 = sbr.rel (%p579) target = $region52
        $region51: #{tpu_custom_call.1} parent=11 // pred_region
          _
        $region52: #{tpu_custom_call.1} parent=11 // pred_fallthru
          _
        // Predicated region
        $region53: #{tpu_custom_call.1} parent=11 // pred_check
          %p582 = pneg %p294
        $region54: #{tpu_custom_call.1} parent=11 // pred_check_branch
          %584 = sbr.rel (%p582) target = $region56
        $region55: #{tpu_custom_call.1} parent=11 // pred_region
          %s586 = ssub.s32 24576, 24576
          %587 = vsyncadd [#allocation16], %s586
          %s588 = sshll.u32 [#allocation17], 4
          %s589 = int_to_ptr.vmem [resolvable:$true] %s588
          %594 = dma.hbm_to_vmem [thread:$0]  %s11, 24576, %s589, [#allocation16], 256, 256, 16
        $region56: #{tpu_custom_call.1} parent=11 // pred_fallthru
          _
        // Predicated region
        $region57: #{tpu_custom_call.1} parent=11 // pred_check
          %p595 = pneg %p315
        $region58: #{tpu_custom_call.1} parent=11 // pred_check_branch
          %597 = sbr.rel (%p595) target = $region60
        $region59: #{tpu_custom_call.1} parent=11 // pred_region
          %s599 = ssub.s32 384, 384
          %600 = vsyncadd [#allocation19], %s599
          %s601 = sshll.u32 [#allocation18], 4
          %s602 = int_to_ptr.vmem [resolvable:$true] %s601
          %607 = dma.hbm_to_vmem [thread:$0]  %s12, 384, %s602, [#allocation19], 64, 64, 4
        $region60: #{tpu_custom_call.1} parent=11 // pred_fallthru
          _
        // Predicated region
        $region61: #{tpu_custom_call.1} parent=11 // pred_check
          %p608 = pneg %p336
        $region62: #{tpu_custom_call.1} parent=11 // pred_check_branch
          %610 = sbr.rel (%p608) target = $region64
        $region63: #{tpu_custom_call.1} parent=11 // pred_region
          %s612 = ssub.s32 24576, 24576
          %613 = vsyncadd [#allocation19], %s612
          %s614 = sshll.u32 [#allocation20], 4
          %s615 = int_to_ptr.vmem [resolvable:$true] %s614
          %620 = dma.hbm_to_vmem [thread:$0]  %s13, 24576, %s615, [#allocation19], 64, 64, 4
        $region64: #{tpu_custom_call.1} parent=11 // pred_fallthru
          _
        // Predicated region
        $region65: #{tpu_custom_call.1} parent=11 // pred_check
          %p621 = pneg %p357
        $region66: #{tpu_custom_call.1} parent=11 // pred_check_branch
          %623 = sbr.rel (%p621) target = $region68
        $region67: #{tpu_custom_call.1} parent=11 // pred_region
          _
        $region68: #{tpu_custom_call.1} parent=11 // pred_fallthru
          _
        // Predicated region
        $region69: #{tpu_custom_call.1} parent=11 // pred_check
          %p624 = pneg %p378
        $region70: #{tpu_custom_call.1} parent=11 // pred_check_branch
          %626 = sbr.rel (%p624) target = $region72
        $region71: #{tpu_custom_call.1} parent=11 // pred_region
          _
        $region72: #{tpu_custom_call.1} parent=11 // pred_fallthru
          _
        // Predicated region
        $region73: #{tpu_custom_call.1} parent=11 // pred_check
          %p627 = pneg %p399
        $region74: #{tpu_custom_call.1} parent=11 // pred_check_branch
          %629 = sbr.rel (%p627) target = $region76
        $region75: #{tpu_custom_call.1} parent=11 // pred_region
          _
        $region76: #{tpu_custom_call.1} parent=11 // pred_fallthru
          _
        // Predicated region
        $region77: #{tpu_custom_call.1} parent=11 // pred_check
          %p630 = pneg %p420
        $region78: #{tpu_custom_call.1} parent=11 // pred_check_branch
          %632 = sbr.rel (%p630) target = $region80
        $region79: #{tpu_custom_call.1} parent=11 // pred_region
          %s634 = ssub.s32 1024, 1024
          %635 = vsyncadd [#allocation22], %s634
          %s636 = sshll.u32 [#allocation21], 4
          %s637 = int_to_ptr.vmem [resolvable:$true] %s636
          %642 = dma.hbm_to_vmem [thread:$0]  %s17, 1024, %s637, [#allocation22], 64, 64, 4
        $region80: #{tpu_custom_call.1} parent=11 // pred_fallthru
          _
        // Predicated region
        $region81: #{tpu_custom_call.1} parent=11 // pred_check
          %p643 = pneg %p441
        $region82: #{tpu_custom_call.1} parent=11 // pred_check_branch
          %645 = sbr.rel (%p643) target = $region84
        $region83: #{tpu_custom_call.1} parent=11 // pred_region
          _
        $region84: #{tpu_custom_call.1} parent=11 // pred_fallthru
          _
      $region12: #{tpu_custom_call.1} parent=5 // pred_fallthru
        _
      %p646 = scmp.lt.s32.totalorder %s37, 2
      // Predicated region
      $region85: #{tpu_custom_call.1} parent=5 // pred_check
        %p647 = pneg %p646
      $region86: #{tpu_custom_call.1} parent=5 // pred_check_branch
        %649 = sbr.rel (%p647) target = $region88
      $region87: #{tpu_custom_call.1} parent=5 // pred_region
        // Predicated region
        $region89: #{tpu_custom_call.1} parent=87 // pred_check
          %p650 = pneg %p57
        $region90: #{tpu_custom_call.1} parent=87 // pred_check_branch
          %652 = sbr.rel (%p650) target = $region92
        $region91: #{tpu_custom_call.1} parent=87 // pred_region
          %s653 = sand.u32 %s47, 1
          %s654 = scalar_lea.sflag [#allocation4], %s653
          %s655 = sand.u32 %s47, 1
          %s656 = smul.addr %s655, 136
          %s657 = scalar_lea.vmem [#allocation3], %s656
          %s658 = smul.u32 17, %s37
          %s660 = ssub.s32 2176, 2176
          %661 = vsyncadd %s654, %s660
          %s662 = smul.addr %s658, 128
          %s663 = scalar_lea.hbm %s0, %s662
          %s664 = sshll.u32 %s657, 4
          %s665 = int_to_ptr.vmem [resolvable:$true] %s664
          %670 = dma.hbm_to_vmem [thread:$0]  %s663, 2176, %s665, %s654, 128, 128, 8
        $region92: #{tpu_custom_call.1} parent=87 // pred_fallthru
          _
      $region88: #{tpu_custom_call.1} parent=5 // pred_fallthru
        _
      %p671 = scmp.le.s32.totalorder 1, %s37
      %p672 = scmp.lt.s32.totalorder %s37, 3
      %p673 = pnand %p671, %p672
      %p674 = pneg %p673
      // Predicated region
      $region93: #{tpu_custom_call.1} parent=5 // pred_check
        _
      $region94: #{tpu_custom_call.1} parent=5 // pred_check_branch
        %676 = sbr.rel (%p673) target = $region96
      $region95: #{tpu_custom_call.1} parent=5 // pred_region
        %s677 = ssub.s32 %s37, 1
        %s678 = sand.u32 %s50, 1
        %s679 = scalar_lea.sflag [#allocation4], %s678
        %s680 = sand.u32 %s50, 1
        %s681 = smul.addr %s680, 136
        %s682 = scalar_lea.vmem [#allocation3], %s681
        // Predicated region
        $region97: #{tpu_custom_call.1} parent=95 // pred_check
          %p683 = pneg %p63
        $region98: #{tpu_custom_call.1} parent=95 // pred_check_branch
          %685 = sbr.rel (%p683) target = $region100
        $region99: #{tpu_custom_call.1} parent=95 // pred_region
          %686 = dma.done %s679, 2176
        $region100: #{tpu_custom_call.1} parent=95 // pred_fallthru
          _
        // Predicated region
        $region101: #{tpu_custom_call.1} parent=95 // pred_check
          %p687 = pneg %p84
        $region102: #{tpu_custom_call.1} parent=95 // pred_check_branch
          %689 = sbr.rel (%p687) target = $region104
        $region103: #{tpu_custom_call.1} parent=95 // pred_region
          %690 = dma.done [#allocation7], 4352
        $region104: #{tpu_custom_call.1} parent=95 // pred_fallthru
          _
        // Predicated region
        $region105: #{tpu_custom_call.1} parent=95 // pred_check
          %p691 = pneg %p105
        $region106: #{tpu_custom_call.1} parent=95 // pred_check_branch
          %693 = sbr.rel (%p691) target = $region108
        $region107: #{tpu_custom_call.1} parent=95 // pred_region
          %694 = dma.done [#allocation7], 2048
        $region108: #{tpu_custom_call.1} parent=95 // pred_fallthru
          _
        // Predicated region
        $region109: #{tpu_custom_call.1} parent=95 // pred_check
          %p695 = pneg %p126
        $region110: #{tpu_custom_call.1} parent=95 // pred_check_branch
          %697 = sbr.rel (%p695) target = $region112
        $region111: #{tpu_custom_call.1} parent=95 // pred_region
          %698 = dma.done [#allocation10], 96
        $region112: #{tpu_custom_call.1} parent=95 // pred_fallthru
          _
        // Predicated region
        $region113: #{tpu_custom_call.1} parent=95 // pred_check
          %p699 = pneg %p168
        $region114: #{tpu_custom_call.1} parent=95 // pred_check_branch
          %701 = sbr.rel (%p699) target = $region116
        $region115: #{tpu_custom_call.1} parent=95 // pred_region
          %702 = dma.done [#allocation10], 18432
        $region116: #{tpu_custom_call.1} parent=95 // pred_fallthru
          _
        // Predicated region
        $region117: #{tpu_custom_call.1} parent=95 // pred_check
          %p703 = pneg %p189
        $region118: #{tpu_custom_call.1} parent=95 // pred_check_branch
          %705 = sbr.rel (%p703) target = $region120
        $region119: #{tpu_custom_call.1} parent=95 // pred_region
          %706 = dma.done [#allocation13], 288
        $region120: #{tpu_custom_call.1} parent=95 // pred_fallthru
          _
        // Predicated region
        $region121: #{tpu_custom_call.1} parent=95 // pred_check
          %p707 = pneg %p210
        $region122: #{tpu_custom_call.1} parent=95 // pred_check_branch
          %709 = sbr.rel (%p707) target = $region124
        $region123: #{tpu_custom_call.1} parent=95 // pred_region
          %710 = dma.done [#allocation13], 6144
        $region124: #{tpu_custom_call.1} parent=95 // pred_fallthru
          _
        // Predicated region
        $region125: #{tpu_custom_call.1} parent=95 // pred_check
          %p711 = pneg %p252
        $region126: #{tpu_custom_call.1} parent=95 // pred_check_branch
          %713 = sbr.rel (%p711) target = $region128
        $region127: #{tpu_custom_call.1} parent=95 // pred_region
          %714 = dma.done [#allocation16], 96
        $region128: #{tpu_custom_call.1} parent=95 // pred_fallthru
          _
        // Predicated region
        $region129: #{tpu_custom_call.1} parent=95 // pred_check
          %p715 = pneg %p294
        $region130: #{tpu_custom_call.1} parent=95 // pred_check_branch
          %717 = sbr.rel (%p715) target = $region132
        $region131: #{tpu_custom_call.1} parent=95 // pred_region
          %718 = dma.done [#allocation16], 24576
        $region132: #{tpu_custom_call.1} parent=95 // pred_fallthru
          _
        // Predicated region
        $region133: #{tpu_custom_call.1} parent=95 // pred_check
          %p719 = pneg %p315
        $region134: #{tpu_custom_call.1} parent=95 // pred_check_branch
          %721 = sbr.rel (%p719) target = $region136
        $region135: #{tpu_custom_call.1} parent=95 // pred_region
          %722 = dma.done [#allocation19], 384
        $region136: #{tpu_custom_call.1} parent=95 // pred_fallthru
          _
        // Predicated region
        $region137: #{tpu_custom_call.1} parent=95 // pred_check
          %p723 = pneg %p336
        $region138: #{tpu_custom_call.1} parent=95 // pred_check_branch
          %725 = sbr.rel (%p723) target = $region140
        $region139: #{tpu_custom_call.1} parent=95 // pred_region
          %726 = dma.done [#allocation19], 24576
        $region140: #{tpu_custom_call.1} parent=95 // pred_fallthru
          _
        // Predicated region
        $region141: #{tpu_custom_call.1} parent=95 // pred_check
          %p727 = pneg %p420
        $region142: #{tpu_custom_call.1} parent=95 // pred_check_branch
          %729 = sbr.rel (%p727) target = $region144
        $region143: #{tpu_custom_call.1} parent=95 // pred_region
          %730 = dma.done [#allocation22], 1024
        $region144: #{tpu_custom_call.1} parent=95 // pred_fallthru
          _
        %s731 = sand.u32 %s50, 1
        %s732 = scalar_lea.sflag [#allocation4], %s731
        %s733 = sand.u32 %s50, 1
        %s734 = smul.addr %s733, 136
        %s735 = scalar_lea.vmem [#allocation3], %s734
        %p736 = pneg %p63
        %p737 = pneg %p60
        %p738 = pneg %p84
        %p739 = pneg %p81
        %p740 = pneg %p105
        %p741 = pneg %p102
        %p742 = pneg %p126
        %p743 = pneg %p123
        %p744 = pneg %p147
        %p745 = pneg %p144
        %p746 = pneg %p168
        %p747 = pneg %p165
        %p748 = pneg %p189
        %p749 = pneg %p186
        %p750 = pneg %p210
        %p751 = pneg %p207
        %p752 = pneg %p231
        %p753 = pneg %p228
        %p754 = pneg %p252
        %p755 = pneg %p249
        %p756 = pneg %p273
        %p757 = pneg %p270
        %p758 = pneg %p294
        %p759 = pneg %p291
        %p760 = pneg %p315
        %p761 = pneg %p312
        %p762 = pneg %p336
        %p763 = pneg %p333
        %p764 = pneg %p357
        %p765 = pneg %p354
        %p766 = pneg %p378
        %p767 = pneg %p375
        %p768 = pneg %p399
        %p769 = pneg %p396
        %p770 = pneg %p420
        %p771 = pneg %p417
        %p772 = pneg %p441
        %p773 = pneg %p438
        %p774 = pneg %p467
        %p775 = pneg %p464
        %s776 = sand.u32 %s454, 1
        %s777 = scalar_lea.sflag [#allocation5], %s776
        %s778 = sand.u32 %s454, 1
        %s779 = smul.addr %s778, 8
        %s780 = scalar_lea.vmem [#allocation23], %s779
        %s781 = smul.u32 17, %s42
        %v783 = vld [vmem:[%s682] sm:$0xff]
        %v784 = vld [vmem:[%s682 + $0x8] sm:$0xff]
        %v785 = vld [vmem:[%s682 + $0x10] sm:$0xff]
        %v786 = vld [vmem:[%s682 + $0x18] sm:$0xff]
        %v787 = vld [vmem:[%s682 + $0x20] sm:$0xff]
        %v788 = vld [vmem:[%s682 + $0x28] sm:$0xff]
        %v789 = vld [vmem:[%s682 + $0x30] sm:$0xff]
        %v790 = vld [vmem:[%s682 + $0x38] sm:$0xff]
        %v791 = vld [vmem:[%s682 + $0x40] sm:$0xff]
        %v792 = vld [vmem:[%s682 + $0x48] sm:$0xff]
        %v793 = vld [vmem:[%s682 + $0x50] sm:$0xff]
        %v794 = vld [vmem:[%s682 + $0x58] sm:$0xff]
        %v795 = vld [vmem:[%s682 + $0x60] sm:$0xff]
        %v796 = vld [vmem:[%s682 + $0x68] sm:$0xff]
        %v797 = vld [vmem:[%s682 + $0x70] sm:$0xff]
        %v798 = vld [vmem:[%s682 + $0x78] sm:$0xff]
        %v799 = vld [vmem:[%s682 + $0x80] sm:$0xff]
        %v800 = vld [vmem:[#allocation8] sm:$0xff]
        %v801 = vld [vmem:[#allocation8 + $0x8] sm:$0xff]
        %v802 = vld [vmem:[#allocation8 + $0x10] sm:$0xff]
        %v803 = vld [vmem:[#allocation8 + $0x18] sm:$0xff]
        %v804 = vld [vmem:[#allocation8 + $0x20] sm:$0xff]
        %v805 = vld [vmem:[#allocation8 + $0x28] sm:$0xff]
        %v806 = vld [vmem:[#allocation8 + $0x30] sm:$0xff]
        %v807 = vld [vmem:[#allocation8 + $0x38] sm:$0xff]
        %v808 = vld [vmem:[#allocation8 + $0x40] sm:$0xff]
        %v809 = vld [vmem:[#allocation8 + $0x48] sm:$0xff]
        %v810 = vld [vmem:[#allocation8 + $0x50] sm:$0xff]
        %v811 = vld [vmem:[#allocation8 + $0x58] sm:$0xff]
        %v812 = vld [vmem:[#allocation8 + $0x60] sm:$0xff]
        %v813 = vld [vmem:[#allocation8 + $0x68] sm:$0xff]
        %v814 = vld [vmem:[#allocation8 + $0x70] sm:$0xff]
        %v815 = vld [vmem:[#allocation8 + $0x78] sm:$0xff]
        %816 = vmatprep.subr.mxu0 0.0
        %817 = vmatpush1.msra.mxu0 %v815
        %818 = vmatprep.subr.mxu0 0.0
        %819 = vmatpush1.msra.mxu0 %v814
        %820 = vmatprep.subr.mxu0 0.0
        %821 = vmatpush1.msra.mxu0 %v813
        %822 = vmatprep.subr.mxu0 0.0
        %823 = vmatpush1.msra.mxu0 %v812
        %824 = vmatprep.subr.mxu0 0.0
        %825 = vmatpush1.msra.mxu0 %v811
        %826 = vmatprep.subr.mxu0 0.0
        %827 = vmatpush1.msra.mxu0 %v810
        %828 = vmatprep.subr.mxu0 0.0
        %829 = vmatpush1.msra.mxu0 %v809
        %830 = vmatprep.subr.mxu0 0.0
        %831 = vmatpush1.msra.mxu0 %v808
        %832 = vmatprep.subr.mxu0 0.0
        %833 = vmatpush1.msra.mxu0 %v807
        %834 = vmatprep.subr.mxu0 0.0
        %835 = vmatpush1.msra.mxu0 %v806
        %836 = vmatprep.subr.mxu0 0.0
        %837 = vmatpush1.msra.mxu0 %v805
        %838 = vmatprep.subr.mxu0 0.0
        %839 = vmatpush1.msra.mxu0 %v804
        %840 = vmatprep.subr.mxu0 0.0
        %841 = vmatpush1.msra.mxu0 %v803
        %842 = vmatprep.subr.mxu0 0.0
        %843 = vmatpush1.msra.mxu0 %v802
        %844 = vmatprep.subr.mxu0 0.0
        %845 = vmatpush1.msra.mxu0 %v801
        %846 = vmatprep.subr.mxu0 0.0
        %847 = vmatpush1.msra.mxu0 %v800
        %848 = vmatprep.subr.mxu0 0.0
        %849 = vmatpush2.msra.mxu0 0.0
        %850 = vmatprep.subr.mxu0 0.0
        %851 = vmatpush2.msra.mxu0 0.0
        %852 = vmatprep.subr.mxu0 0.0
        %853 = vmatpush2.msra.mxu0 0.0
        %854 = vmatprep.subr.mxu0 0.0
        %855 = vmatpush2.msra.mxu0 0.0
        %856 = vmatprep.subr.mxu0 0.0
        %857 = vmatpush2.msra.mxu0 0.0
        %858 = vmatprep.subr.mxu0 0.0
        %859 = vmatpush2.msra.mxu0 0.0
        %860 = vmatprep.subr.mxu0 0.0
        %861 = vmatpush2.msra.mxu0 0.0
        %862 = vmatprep.subr.mxu0 0.0
        %863 = vmatpush2.msra.mxu0 0.0
        %864 = vmatprep.subr.mxu0 0.0
        %865 = vmatpush2.msra.mxu0 0.0
        %866 = vmatprep.subr.mxu0 0.0
        %867 = vmatpush2.msra.mxu0 0.0
        %868 = vmatprep.subr.mxu0 0.0
        %869 = vmatpush2.msra.mxu0 0.0
        %870 = vmatprep.subr.mxu0 0.0
        %871 = vmatpush2.msra.mxu0 0.0
        %872 = vmatprep.subr.mxu0 0.0
        %873 = vmatpush2.msra.mxu0 0.0
        %874 = vmatprep.subr.mxu0 0.0
        %875 = vmatpush2.msra.mxu0 0.0
        %876 = vmatprep.subr.mxu0 0.0
        %877 = vmatpush2.msra.mxu0 0.0
        %878 = vmatprep.subr.mxu0 0.0
        %879 = vmatpush2.msra.mxu0 0.0
        %880 = vmatprep.mubr.f32.mxu0 0.0
        %881 = vmatmul.mubr.f32.gmra.mxu0 %v783
        %v882 = vpop.f32.mrf.mxu0
        %v883 = vadd.f32 0.0, %v882
        %v884 = vpop.f32.mrf.mxu0
        %885 = vmatprep.mubr.f32.mxu0 0.0
        %886 = vmatmul.mubr.f32.gmra.mxu0 %v784
        %v887 = vpop.f32.mrf.mxu0
        %v888 = vadd.f32 0.0, %v887
        %v889 = vpop.f32.mrf.mxu0
        %890 = vmatprep.mubr.f32.mxu0 0.0
        %891 = vmatmul.mubr.f32.gmra.mxu0 %v785
        %v892 = vpop.f32.mrf.mxu0
        %v893 = vadd.f32 0.0, %v892
        %v894 = vpop.f32.mrf.mxu0
        %895 = vmatprep.mubr.f32.mxu0 0.0
        %896 = vmatmul.mubr.f32.gmra.mxu0 %v786
        %v897 = vpop.f32.mrf.mxu0
        %v898 = vadd.f32 0.0, %v897
        %v899 = vpop.f32.mrf.mxu0
        %900 = vmatprep.mubr.f32.mxu0 0.0
        %901 = vmatmul.mubr.f32.gmra.mxu0 %v787
        %v902 = vpop.f32.mrf.mxu0
        %v903 = vadd.f32 0.0, %v902
        %v904 = vpop.f32.mrf.mxu0
        %905 = vmatprep.mubr.f32.mxu0 0.0
        %906 = vmatmul.mubr.f32.gmra.mxu0 %v788
        %v907 = vpop.f32.mrf.mxu0
        %v908 = vadd.f32 0.0, %v907
        %v909 = vpop.f32.mrf.mxu0
        %910 = vmatprep.mubr.f32.mxu0 0.0
        %911 = vmatmul.mubr.f32.gmra.mxu0 %v789
        %v912 = vpop.f32.mrf.mxu0
        %v913 = vadd.f32 0.0, %v912
        %v914 = vpop.f32.mrf.mxu0
        %915 = vmatprep.mubr.f32.mxu0 0.0
        %916 = vmatmul.mubr.f32.gmra.mxu0 %v790
        %v917 = vpop.f32.mrf.mxu0
        %v918 = vadd.f32 0.0, %v917
        %v919 = vpop.f32.mrf.mxu0
        %920 = vmatprep.mubr.f32.mxu0 0.0
        %921 = vmatmul.mubr.f32.gmra.mxu0 %v791
        %v922 = vpop.f32.mrf.mxu0
        %v923 = vadd.f32 0.0, %v922
        %v924 = vpop.f32.mrf.mxu0
        %925 = vmatprep.mubr.f32.mxu0 0.0
        %926 = vmatmul.mubr.f32.gmra.mxu0 %v792
        %v927 = vpop.f32.mrf.mxu0
        %v928 = vadd.f32 0.0, %v927
        %v929 = vpop.f32.mrf.mxu0
        %930 = vmatprep.mubr.f32.mxu0 0.0
        %931 = vmatmul.mubr.f32.gmra.mxu0 %v793
        %v932 = vpop.f32.mrf.mxu0
        %v933 = vadd.f32 0.0, %v932
        %v934 = vpop.f32.mrf.mxu0
        %935 = vmatprep.mubr.f32.mxu0 0.0
        %936 = vmatmul.mubr.f32.gmra.mxu0 %v794
        %v937 = vpop.f32.mrf.mxu0
        %v938 = vadd.f32 0.0, %v937
        %v939 = vpop.f32.mrf.mxu0
        %940 = vmatprep.mubr.f32.mxu0 0.0
        %941 = vmatmul.mubr.f32.gmra.mxu0 %v795
        %v942 = vpop.f32.mrf.mxu0
        %v943 = vadd.f32 0.0, %v942
        %v944 = vpop.f32.mrf.mxu0
        %945 = vmatprep.mubr.f32.mxu0 0.0
        %946 = vmatmul.mubr.f32.gmra.mxu0 %v796
        %v947 = vpop.f32.mrf.mxu0
        %v948 = vadd.f32 0.0, %v947
        %v949 = vpop.f32.mrf.mxu0
        %950 = vmatprep.mubr.f32.mxu0 0.0
        %951 = vmatmul.mubr.f32.gmra.mxu0 %v797
        %v952 = vpop.f32.mrf.mxu0
        %v953 = vadd.f32 0.0, %v952
        %v954 = vpop.f32.mrf.mxu0
        %955 = vmatprep.mubr.f32.mxu0 0.0
        %956 = vmatmul.mubr.f32.gmra.mxu0 %v798
        %v957 = vpop.f32.mrf.mxu0
        %v958 = vadd.f32 0.0, %v957
        %v959 = vpop.f32.mrf.mxu0
        %960 = vmatprep.mubr.f32.mxu0 0.0
        %961 = vmatmul.mubr.f32.gmra.mxu0 %v799
        %v962 = vpop.f32.mrf.mxu0
        %v963 = vadd.f32 0.0, %v962
        %v964 = vpop.f32.mrf.mxu0
        %965 = vdwg.mxu0
        %v966 = vld [vmem:[#allocation6] sm:$0xff]
        %v967 = vld [vmem:[#allocation6 + $0x8] sm:$0xff]
        %v968 = vld [vmem:[#allocation6 + $0x10] sm:$0xff]
        %v969 = vld [vmem:[#allocation6 + $0x18] sm:$0xff]
        %v970 = vld [vmem:[#allocation6 + $0x20] sm:$0xff]
        %v971 = vld [vmem:[#allocation6 + $0x28] sm:$0xff]
        %v972 = vld [vmem:[#allocation6 + $0x30] sm:$0xff]
        %v973 = vld [vmem:[#allocation6 + $0x38] sm:$0xff]
        %v974 = vld [vmem:[#allocation6 + $0x40] sm:$0xff]
        %v975 = vld [vmem:[#allocation6 + $0x48] sm:$0xff]
        %v976 = vld [vmem:[#allocation6 + $0x50] sm:$0xff]
        %v977 = vld [vmem:[#allocation6 + $0x58] sm:$0xff]
        %v978 = vld [vmem:[#allocation6 + $0x60] sm:$0xff]
        %v979 = vld [vmem:[#allocation6 + $0x68] sm:$0xff]
        %v980 = vld [vmem:[#allocation6 + $0x70] sm:$0xff]
        %v981 = vld [vmem:[#allocation6 + $0x78] sm:$0xff]
        %v982 = vld [vmem:[#allocation6 + $0x80] sm:$0xff]
        %v983 = vld [vmem:[#allocation6 + $0x88] sm:$0xff]
        %v984 = vld [vmem:[#allocation6 + $0x90] sm:$0xff]
        %v985 = vld [vmem:[#allocation6 + $0x98] sm:$0xff]
        %v986 = vld [vmem:[#allocation6 + $0xa0] sm:$0xff]
        %v987 = vld [vmem:[#allocation6 + $0xa8] sm:$0xff]
        %v988 = vld [vmem:[#allocation6 + $0xb0] sm:$0xff]
        %v989 = vld [vmem:[#allocation6 + $0xb8] sm:$0xff]
        %v990 = vld [vmem:[#allocation6 + $0xc0] sm:$0xff]
        %v991 = vld [vmem:[#allocation6 + $0xc8] sm:$0xff]
        %v992 = vld [vmem:[#allocation6 + $0xd0] sm:$0xff]
        %v993 = vld [vmem:[#allocation6 + $0xd8] sm:$0xff]
        %v994 = vld [vmem:[#allocation6 + $0xe0] sm:$0xff]
        %v995 = vld [vmem:[#allocation6 + $0xe8] sm:$0xff]
        %v996 = vld [vmem:[#allocation6 + $0xf0] sm:$0xff]
        %v997 = vld [vmem:[#allocation6 + $0xf8] sm:$0xff]
        %v998 = vld [vmem:[#allocation6 + $0x100] sm:$0xff]
        %v999 = vld [vmem:[#allocation6 + $0x108] sm:$0xff]
        loop: start=0, step=1, limit=6
        $region145: #{tpu_custom_call.1} parent=95 // loop_pre_header
          _
        $region146: #{tpu_custom_call.1} parent=95 // loop_header
          %s1001 = sphi 0, %s1005
          %p1002 = scmp.ge.s32.totalorder %s1001, 6
          %v1006 = vphi %v883, %v7900
          %v1007 = vphi %v888, %v7901
          %v1008 = vphi %v893, %v7902
          %v1009 = vphi %v898, %v7903
          %v1010 = vphi %v903, %v7904
          %v1011 = vphi %v908, %v7905
          %v1012 = vphi %v913, %v7906
          %v1013 = vphi %v918, %v7907
          %v1014 = vphi %v923, %v7908
          %v1015 = vphi %v928, %v7909
          %v1016 = vphi %v933, %v7910
          %v1017 = vphi %v938, %v7911
          %v1018 = vphi %v943, %v7912
          %v1019 = vphi %v948, %v7913
          %v1020 = vphi %v953, %v7914
          %v1021 = vphi %v958, %v7915
          %v1022 = vphi %v963, %v7916
        $region147: #{tpu_custom_call.1} parent=95 // loop_header_branch
          %1004 = sbr.rel (%p1002) target = $region151
        $region148: #{tpu_custom_call.1} parent=95 // loop_body
          %s1023 = scalar_lea.vmem [#allocation9], %s1001
          %v1024 = vld [vmem:[%s1023] sm:$0x1]
          %s1025 = scalar_lea.vmem %s4, %s1001
          %v1026 = vld [vmem:[%s1025] sm:$0x1]
          %1027 = vadd.xlane.f32.xlu0 %v1006
          %v1028 = vpop.xlane.xlu0 %1027
          %1029 = vadd.xlane.f32.xlu0 %v1007
          %v1030 = vpop.xlane.xlu0 %1029
          %1031 = vadd.xlane.f32.xlu0 %v1008
          %v1032 = vpop.xlane.xlu0 %1031
          %1033 = vadd.xlane.f32.xlu0 %v1009
          %v1034 = vpop.xlane.xlu0 %1033
          %1035 = vadd.xlane.f32.xlu0 %v1010
          %v1036 = vpop.xlane.xlu0 %1035
          %1037 = vadd.xlane.f32.xlu0 %v1011
          %v1038 = vpop.xlane.xlu0 %1037
          %1039 = vadd.xlane.f32.xlu0 %v1012
          %v1040 = vpop.xlane.xlu0 %1039
          %1041 = vadd.xlane.f32.xlu0 %v1013
          %v1042 = vpop.xlane.xlu0 %1041
          %1043 = vadd.xlane.f32.xlu0 %v1014
          %v1044 = vpop.xlane.xlu0 %1043
          %1045 = vadd.xlane.f32.xlu0 %v1015
          %v1046 = vpop.xlane.xlu0 %1045
          %1047 = vadd.xlane.f32.xlu0 %v1016
          %v1048 = vpop.xlane.xlu0 %1047
          %1049 = vadd.xlane.f32.xlu0 %v1017
          %v1050 = vpop.xlane.xlu0 %1049
          %1051 = vadd.xlane.f32.xlu0 %v1018
          %v1052 = vpop.xlane.xlu0 %1051
          %1053 = vadd.xlane.f32.xlu0 %v1019
          %v1054 = vpop.xlane.xlu0 %1053
          %1055 = vadd.xlane.f32.xlu0 %v1020
          %v1056 = vpop.xlane.xlu0 %1055
          %1057 = vadd.xlane.f32.xlu0 %v1021
          %v1058 = vpop.xlane.xlu0 %1057
          %1059 = vadd.xlane.f32.xlu0 %v1022
          %v1060 = vpop.xlane.xlu0 %1059
          %v1061 = vrcp.pop 128.0
          %v1062 = vmul.f32 %v1028, %v1061
          %v1063 = vmul.f32 %v1030, %v1061
          %v1064 = vmul.f32 %v1032, %v1061
          %v1065 = vmul.f32 %v1034, %v1061
          %v1066 = vmul.f32 %v1036, %v1061
          %v1067 = vmul.f32 %v1038, %v1061
          %v1068 = vmul.f32 %v1040, %v1061
          %v1069 = vmul.f32 %v1042, %v1061
          %v1070 = vmul.f32 %v1044, %v1061
          %v1071 = vmul.f32 %v1046, %v1061
          %v1072 = vmul.f32 %v1048, %v1061
          %v1073 = vmul.f32 %v1050, %v1061
          %v1074 = vmul.f32 %v1052, %v1061
          %v1075 = vmul.f32 %v1054, %v1061
          %v1076 = vmul.f32 %v1056, %v1061
          %v1077 = vmul.f32 %v1058, %v1061
          %v1078 = vmul.f32 %v1060, %v1061
          %v1079 = vsub.f32 %v1006, %v1062
          %v1080 = vsub.f32 %v1007, %v1063
          %v1081 = vsub.f32 %v1008, %v1064
          %v1082 = vsub.f32 %v1009, %v1065
          %v1083 = vsub.f32 %v1010, %v1066
          %v1084 = vsub.f32 %v1011, %v1067
          %v1085 = vsub.f32 %v1012, %v1068
          %v1086 = vsub.f32 %v1013, %v1069
          %v1087 = vsub.f32 %v1014, %v1070
          %v1088 = vsub.f32 %v1015, %v1071
          %v1089 = vsub.f32 %v1016, %v1072
          %v1090 = vsub.f32 %v1017, %v1073
          %v1091 = vsub.f32 %v1018, %v1074
          %v1092 = vsub.f32 %v1019, %v1075
          %v1093 = vsub.f32 %v1020, %v1076
          %v1094 = vsub.f32 %v1021, %v1077
          %v1095 = vsub.f32 %v1022, %v1078
          %v1096 = vmul.f32 %v1079, %v1079
          %v1097 = vmul.f32 %v1080, %v1080
          %v1098 = vmul.f32 %v1081, %v1081
          %v1099 = vmul.f32 %v1082, %v1082
          %v1100 = vmul.f32 %v1083, %v1083
          %v1101 = vmul.f32 %v1084, %v1084
          %v1102 = vmul.f32 %v1085, %v1085
          %v1103 = vmul.f32 %v1086, %v1086
          %v1104 = vmul.f32 %v1087, %v1087
          %v1105 = vmul.f32 %v1088, %v1088
          %v1106 = vmul.f32 %v1089, %v1089
          %v1107 = vmul.f32 %v1090, %v1090
          %v1108 = vmul.f32 %v1091, %v1091
          %v1109 = vmul.f32 %v1092, %v1092
          %v1110 = vmul.f32 %v1093, %v1093
          %v1111 = vmul.f32 %v1094, %v1094
          %v1112 = vmul.f32 %v1095, %v1095
          %1113 = vadd.xlane.f32.xlu0 %v1096
          %v1114 = vpop.xlane.xlu0 %1113
          %1115 = vadd.xlane.f32.xlu0 %v1097
          %v1116 = vpop.xlane.xlu0 %1115
          %1117 = vadd.xlane.f32.xlu0 %v1098
          %v1118 = vpop.xlane.xlu0 %1117
          %1119 = vadd.xlane.f32.xlu0 %v1099
          %v1120 = vpop.xlane.xlu0 %1119
          %1121 = vadd.xlane.f32.xlu0 %v1100
          %v1122 = vpop.xlane.xlu0 %1121
          %1123 = vadd.xlane.f32.xlu0 %v1101
          %v1124 = vpop.xlane.xlu0 %1123
          %1125 = vadd.xlane.f32.xlu0 %v1102
          %v1126 = vpop.xlane.xlu0 %1125
          %1127 = vadd.xlane.f32.xlu0 %v1103
          %v1128 = vpop.xlane.xlu0 %1127
          %1129 = vadd.xlane.f32.xlu0 %v1104
          %v1130 = vpop.xlane.xlu0 %1129
          %1131 = vadd.xlane.f32.xlu0 %v1105
          %v1132 = vpop.xlane.xlu0 %1131
          %1133 = vadd.xlane.f32.xlu0 %v1106
          %v1134 = vpop.xlane.xlu0 %1133
          %1135 = vadd.xlane.f32.xlu0 %v1107
          %v1136 = vpop.xlane.xlu0 %1135
          %1137 = vadd.xlane.f32.xlu0 %v1108
          %v1138 = vpop.xlane.xlu0 %1137
          %1139 = vadd.xlane.f32.xlu0 %v1109
          %v1140 = vpop.xlane.xlu0 %1139
          %1141 = vadd.xlane.f32.xlu0 %v1110
          %v1142 = vpop.xlane.xlu0 %1141
          %1143 = vadd.xlane.f32.xlu0 %v1111
          %v1144 = vpop.xlane.xlu0 %1143
          %1145 = vadd.xlane.f32.xlu0 %v1112
          %v1146 = vpop.xlane.xlu0 %1145
          %v1147 = vmul.f32 %v1114, %v1061
          %v1148 = vmul.f32 %v1116, %v1061
          %v1149 = vmul.f32 %v1118, %v1061
          %v1150 = vmul.f32 %v1120, %v1061
          %v1151 = vmul.f32 %v1122, %v1061
          %v1152 = vmul.f32 %v1124, %v1061
          %v1153 = vmul.f32 %v1126, %v1061
          %v1154 = vmul.f32 %v1128, %v1061
          %v1155 = vmul.f32 %v1130, %v1061
          %v1156 = vmul.f32 %v1132, %v1061
          %v1157 = vmul.f32 %v1134, %v1061
          %v1158 = vmul.f32 %v1136, %v1061
          %v1159 = vmul.f32 %v1138, %v1061
          %v1160 = vmul.f32 %v1140, %v1061
          %v1161 = vmul.f32 %v1142, %v1061
          %v1162 = vmul.f32 %v1144, %v1061
          %v1163 = vmul.f32 %v1146, %v1061
          %v1164 = vadd.f32 %v1147, 1e-05
          %v1165 = vadd.f32 %v1148, 1e-05
          %v1166 = vadd.f32 %v1149, 1e-05
          %v1167 = vadd.f32 %v1150, 1e-05
          %v1168 = vadd.f32 %v1151, 1e-05
          %v1169 = vadd.f32 %v1152, 1e-05
          %v1170 = vadd.f32 %v1153, 1e-05
          %v1171 = vadd.f32 %v1154, 1e-05
          %v1172 = vadd.f32 %v1155, 1e-05
          %v1173 = vadd.f32 %v1156, 1e-05
          %v1174 = vadd.f32 %v1157, 1e-05
          %v1175 = vadd.f32 %v1158, 1e-05
          %v1176 = vadd.f32 %v1159, 1e-05
          %v1177 = vadd.f32 %v1160, 1e-05
          %v1178 = vadd.f32 %v1161, 1e-05
          %v1179 = vadd.f32 %v1162, 1e-05
          %v1180 = vadd.f32 %v1163, 1e-05
          %v1181 = vrsqrt.pop %v1164
          %v1182 = vrsqrt.pop %v1165
          %v1183 = vrsqrt.pop %v1166
          %v1184 = vrsqrt.pop %v1167
          %v1185 = vrsqrt.pop %v1168
          %v1186 = vrsqrt.pop %v1169
          %v1187 = vrsqrt.pop %v1170
          %v1188 = vrsqrt.pop %v1171
          %v1189 = vrsqrt.pop %v1172
          %v1190 = vrsqrt.pop %v1173
          %v1191 = vrsqrt.pop %v1174
          %v1192 = vrsqrt.pop %v1175
          %v1193 = vrsqrt.pop %v1176
          %v1194 = vrsqrt.pop %v1177
          %v1195 = vrsqrt.pop %v1178
          %v1196 = vrsqrt.pop %v1179
          %v1197 = vrsqrt.pop %v1180
          %v1198 = vmul.f32 %v1079, %v1181
          %v1199 = vmul.f32 %v1080, %v1182
          %v1200 = vmul.f32 %v1081, %v1183
          %v1201 = vmul.f32 %v1082, %v1184
          %v1202 = vmul.f32 %v1083, %v1185
          %v1203 = vmul.f32 %v1084, %v1186
          %v1204 = vmul.f32 %v1085, %v1187
          %v1205 = vmul.f32 %v1086, %v1188
          %v1206 = vmul.f32 %v1087, %v1189
          %v1207 = vmul.f32 %v1088, %v1190
          %v1208 = vmul.f32 %v1089, %v1191
          %v1209 = vmul.f32 %v1090, %v1192
          %v1210 = vmul.f32 %v1091, %v1193
          %v1211 = vmul.f32 %v1092, %v1194
          %v1212 = vmul.f32 %v1093, %v1195
          %v1213 = vmul.f32 %v1094, %v1196
          %v1214 = vmul.f32 %v1095, %v1197
          %v1216 = vlaneseq
          %v1217 = vshrl.u32 %v1216, 7
          %v1218 = vsub.s32 0, %v1217
          %v1219 = vrot.slane %v1024, %v1218
          %v1221 = vmul.f32 %v1198, %v1219
          %v1222 = vmul.f32 %v1199, %v1219
          %v1223 = vmul.f32 %v1200, %v1219
          %v1224 = vmul.f32 %v1201, %v1219
          %v1225 = vmul.f32 %v1202, %v1219
          %v1226 = vmul.f32 %v1203, %v1219
          %v1227 = vmul.f32 %v1204, %v1219
          %v1228 = vmul.f32 %v1205, %v1219
          %v1229 = vmul.f32 %v1206, %v1219
          %v1230 = vmul.f32 %v1207, %v1219
          %v1231 = vmul.f32 %v1208, %v1219
          %v1232 = vmul.f32 %v1209, %v1219
          %v1233 = vmul.f32 %v1210, %v1219
          %v1234 = vmul.f32 %v1211, %v1219
          %v1235 = vmul.f32 %v1212, %v1219
          %v1236 = vmul.f32 %v1213, %v1219
          %v1237 = vmul.f32 %v1214, %v1219
          %v1239 = vlaneseq
          %v1240 = vshrl.u32 %v1239, 7
          %v1241 = vsub.s32 0, %v1240
          %v1242 = vrot.slane %v1026, %v1241
          %v1244 = vadd.f32 %v1221, %v1242
          %v1245 = vadd.f32 %v1222, %v1242
          %v1246 = vadd.f32 %v1223, %v1242
          %v1247 = vadd.f32 %v1224, %v1242
          %v1248 = vadd.f32 %v1225, %v1242
          %v1249 = vadd.f32 %v1226, %v1242
          %v1250 = vadd.f32 %v1227, %v1242
          %v1251 = vadd.f32 %v1228, %v1242
          %v1252 = vadd.f32 %v1229, %v1242
          %v1253 = vadd.f32 %v1230, %v1242
          %v1254 = vadd.f32 %v1231, %v1242
          %v1255 = vadd.f32 %v1232, %v1242
          %v1256 = vadd.f32 %v1233, %v1242
          %v1257 = vadd.f32 %v1234, %v1242
          %v1258 = vadd.f32 %v1235, %v1242
          %v1259 = vadd.f32 %v1236, %v1242
          %v1260 = vadd.f32 %v1237, %v1242
          %v1261 = vpack.c.bf16 %v1245, %v1244
          %v1262 = vpack.c.bf16 %v1247, %v1246
          %v1263 = vpack.c.bf16 %v1249, %v1248
          %v1264 = vpack.c.bf16 %v1251, %v1250
          %v1265 = vpack.c.bf16 %v1253, %v1252
          %v1266 = vpack.c.bf16 %v1255, %v1254
          %v1267 = vpack.c.bf16 %v1257, %v1256
          %v1268 = vpack.c.bf16 %v1259, %v1258
          %v1269 = vpack.c.bf16 %v1260, %v1260
          %s1270 = smul.u32 %s1001, 48
          %s1271 = smul.addr %s1270, 4
          %s1272 = scalar_lea.vmem [#allocation11], %s1271
          %v1273 = vld [vmem:[%s1272] sm:$0xff]
          %v1274 = vld [vmem:[%s1272 + $0x8] sm:$0xf]
          %v1275 = vld [vmem:[%s1272 + $0xc] sm:$0xff]
          %v1276 = vld [vmem:[%s1272 + $0x14] sm:$0xf]
          %v1277 = vld [vmem:[%s1272 + $0x18] sm:$0xff]
          %v1278 = vld [vmem:[%s1272 + $0x20] sm:$0xf]
          %v1279 = vld [vmem:[%s1272 + $0x24] sm:$0xff]
          %v1280 = vld [vmem:[%s1272 + $0x2c] sm:$0xf]
          %v1281 = vld [vmem:[%s1272 + $0x30] sm:$0xff]
          %v1282 = vld [vmem:[%s1272 + $0x38] sm:$0xf]
          %v1283 = vld [vmem:[%s1272 + $0x3c] sm:$0xff]
          %v1284 = vld [vmem:[%s1272 + $0x44] sm:$0xf]
          %v1285 = vld [vmem:[%s1272 + $0x48] sm:$0xff]
          %v1286 = vld [vmem:[%s1272 + $0x50] sm:$0xf]
          %v1287 = vld [vmem:[%s1272 + $0x54] sm:$0xff]
          %v1288 = vld [vmem:[%s1272 + $0x5c] sm:$0xf]
          %v1289 = vld [vmem:[%s1272 + $0x60] sm:$0xff]
          %v1290 = vld [vmem:[%s1272 + $0x68] sm:$0xf]
          %v1291 = vld [vmem:[%s1272 + $0x6c] sm:$0xff]
          %v1292 = vld [vmem:[%s1272 + $0x74] sm:$0xf]
          %v1293 = vld [vmem:[%s1272 + $0x78] sm:$0xff]
          %v1294 = vld [vmem:[%s1272 + $0x80] sm:$0xf]
          %v1295 = vld [vmem:[%s1272 + $0x84] sm:$0xff]
          %v1296 = vld [vmem:[%s1272 + $0x8c] sm:$0xf]
          %v1297 = vld [vmem:[%s1272 + $0x90] sm:$0xff]
          %v1298 = vld [vmem:[%s1272 + $0x98] sm:$0xf]
          %v1299 = vld [vmem:[%s1272 + $0x9c] sm:$0xff]
          %v1300 = vld [vmem:[%s1272 + $0xa4] sm:$0xf]
          %v1301 = vld [vmem:[%s1272 + $0xa8] sm:$0xff]
          %v1302 = vld [vmem:[%s1272 + $0xb0] sm:$0xf]
          %v1303 = vld [vmem:[%s1272 + $0xb4] sm:$0xff]
          %v1304 = vld [vmem:[%s1272 + $0xbc] sm:$0xf]
          %s1305 = smul.u32 %s1001, 3
          %s1306 = scalar_lea.vmem [#allocation12], %s1305
          %v1307 = vld [vmem:[%s1306] sm:$0x7]
          %v1309 = vlaneseq
          %v1310 = vshrl.u32 %v1309, 7
          %v1311 = vsub.s32 0, %v1310
          %v1312 = vrot.slane %v1307, %v1311
          %v1313 = vlaneseq
          %v1314 = vshrl.u32 %v1313, 7
          %v1315 = vsub.s32 1, %v1314
          %v1316 = vrot.slane %v1307, %v1315
          %v1317 = vlaneseq
          %v1318 = vshrl.u32 %v1317, 7
          %v1319 = vsub.s32 2, %v1318
          %v1320 = vrot.slane %v1307, %v1319
          %v1356 = vunpack.c.l.b16 %v1273
          %v1357 = vunpack.c.h.b16 %v1273
          %v1358 = vunpack.c.l.b16 %v1274
          %v1359 = vunpack.c.l.b16 %v1275
          %v1360 = vunpack.c.h.b16 %v1275
          %v1361 = vunpack.c.l.b16 %v1276
          %v1362 = vunpack.c.l.b16 %v1277
          %v1363 = vunpack.c.h.b16 %v1277
          %v1364 = vunpack.c.l.b16 %v1278
          %v1365 = vunpack.c.l.b16 %v1279
          %v1366 = vunpack.c.h.b16 %v1279
          %v1367 = vunpack.c.l.b16 %v1280
          %v1368 = vunpack.c.l.b16 %v1281
          %v1369 = vunpack.c.h.b16 %v1281
          %v1370 = vunpack.c.l.b16 %v1282
          %v1371 = vunpack.c.l.b16 %v1283
          %v1372 = vunpack.c.h.b16 %v1283
          %v1373 = vunpack.c.l.b16 %v1284
          %v1374 = vunpack.c.l.b16 %v1285
          %v1375 = vunpack.c.h.b16 %v1285
          %v1376 = vunpack.c.l.b16 %v1286
          %v1377 = vunpack.c.l.b16 %v1287
          %v1378 = vunpack.c.h.b16 %v1287
          %v1379 = vunpack.c.l.b16 %v1288
          %v1380 = vunpack.c.l.b16 %v1289
          %v1381 = vunpack.c.h.b16 %v1289
          %v1382 = vunpack.c.l.b16 %v1290
          %v1383 = vunpack.c.l.b16 %v1291
          %v1384 = vunpack.c.h.b16 %v1291
          %v1385 = vunpack.c.l.b16 %v1292
          %v1386 = vunpack.c.l.b16 %v1293
          %v1387 = vunpack.c.h.b16 %v1293
          %v1388 = vunpack.c.l.b16 %v1294
          %v1389 = vunpack.c.l.b16 %v1295
          %v1390 = vunpack.c.h.b16 %v1295
          %v1391 = vunpack.c.l.b16 %v1296
          %v1392 = vunpack.c.l.b16 %v1297
          %v1393 = vunpack.c.h.b16 %v1297
          %v1394 = vunpack.c.l.b16 %v1298
          %v1395 = vunpack.c.l.b16 %v1299
          %v1396 = vunpack.c.h.b16 %v1299
          %v1397 = vunpack.c.l.b16 %v1300
          %v1398 = vunpack.c.l.b16 %v1301
          %v1399 = vunpack.c.h.b16 %v1301
          %v1400 = vunpack.c.l.b16 %v1302
          %v1401 = vunpack.c.l.b16 %v1303
          %v1402 = vunpack.c.h.b16 %v1303
          %v1403 = vunpack.c.l.b16 %v1304
          %v1404 = vpack.c.b16 %v1359, %v1356
          %v1405 = vpack.c.b16 %v1360, %v1357
          %v1406 = vpack.c.b16 %v1361, %v1358
          %v1407 = vpack.c.b16 %v1365, %v1362
          %v1408 = vpack.c.b16 %v1366, %v1363
          %v1409 = vpack.c.b16 %v1367, %v1364
          %v1410 = vpack.c.b16 %v1371, %v1368
          %v1411 = vpack.c.b16 %v1372, %v1369
          %v1412 = vpack.c.b16 %v1373, %v1370
          %v1413 = vpack.c.b16 %v1377, %v1374
          %v1414 = vpack.c.b16 %v1378, %v1375
          %v1415 = vpack.c.b16 %v1379, %v1376
          %v1416 = vpack.c.b16 %v1383, %v1380
          %v1417 = vpack.c.b16 %v1384, %v1381
          %v1418 = vpack.c.b16 %v1385, %v1382
          %v1419 = vpack.c.b16 %v1389, %v1386
          %v1420 = vpack.c.b16 %v1390, %v1387
          %v1421 = vpack.c.b16 %v1391, %v1388
          %v1422 = vpack.c.b16 %v1395, %v1392
          %v1423 = vpack.c.b16 %v1396, %v1393
          %v1424 = vpack.c.b16 %v1397, %v1394
          %v1425 = vpack.c.b16 %v1401, %v1398
          %v1426 = vpack.c.b16 %v1402, %v1399
          %v1427 = vpack.c.b16 %v1403, %v1400
          %1452 = vmatprep.subr.bf16.mxu0 %v1426
          %1453 = vmatpush1.bf16.msra.mxu0 %v1425
          %1454 = vmatprep.subr.bf16.mxu0 %v1423
          %1455 = vmatpush1.bf16.msra.mxu0 %v1422
          %1456 = vmatprep.subr.bf16.mxu0 %v1420
          %1457 = vmatpush1.bf16.msra.mxu0 %v1419
          %1458 = vmatprep.subr.bf16.mxu0 %v1417
          %1459 = vmatpush1.bf16.msra.mxu0 %v1416
          %1460 = vmatprep.subr.bf16.mxu0 %v1414
          %1461 = vmatpush1.bf16.msra.mxu0 %v1413
          %1462 = vmatprep.subr.bf16.mxu0 %v1411
          %1463 = vmatpush1.bf16.msra.mxu0 %v1410
          %1464 = vmatprep.subr.bf16.mxu0 %v1408
          %1465 = vmatpush1.bf16.msra.mxu0 %v1407
          %1466 = vmatprep.subr.bf16.mxu0 %v1405
          %1467 = vmatpush1.bf16.msra.mxu0 %v1404
          %1468 = vmatprep.subr.bf16.mxu0 0
          %1469 = vmatpush2.bf16.msra.mxu0 0
          %1470 = vmatprep.subr.bf16.mxu0 0
          %1471 = vmatpush2.bf16.msra.mxu0 0
          %1472 = vmatprep.subr.bf16.mxu0 0
          %1473 = vmatpush2.bf16.msra.mxu0 0
          %1474 = vmatprep.subr.bf16.mxu0 0
          %1475 = vmatpush2.bf16.msra.mxu0 0
          %1476 = vmatprep.subr.bf16.mxu0 0
          %1477 = vmatpush2.bf16.msra.mxu0 0
          %1478 = vmatprep.subr.bf16.mxu0 0
          %1479 = vmatpush2.bf16.msra.mxu0 0
          %1480 = vmatprep.subr.bf16.mxu0 0
          %1481 = vmatpush2.bf16.msra.mxu0 0
          %1482 = vmatprep.subr.bf16.mxu0 0
          %1483 = vmatpush2.bf16.msra.mxu0 0
          %1484 = vmatprep.mubr.bf16.mxu0 0
          %1485 = vmatmul.mubr.bf16.gmra.mxu0 %v1261
          %v1486 = vpop.f32.mrf.mxu0
          %v1487 = vadd.f32 %v1312, %v1486
          %v1488 = vpop.f32.mrf.mxu0
          %v1489 = vadd.f32 %v1316, %v1488
          %v1490 = vpop.f32.mrf.mxu0
          %v1491 = vadd.f32 %v1312, %v1490
          %v1492 = vpop.f32.mrf.mxu0
          %v1493 = vadd.f32 %v1316, %v1492
          %1494 = vmatprep.mubr.bf16.mxu0 0
          %1495 = vmatmul.mubr.bf16.gmra.mxu0 %v1262
          %v1496 = vpop.f32.mrf.mxu0
          %v1497 = vadd.f32 %v1312, %v1496
          %v1498 = vpop.f32.mrf.mxu0
          %v1499 = vadd.f32 %v1316, %v1498
          %v1500 = vpop.f32.mrf.mxu0
          %v1501 = vadd.f32 %v1312, %v1500
          %v1502 = vpop.f32.mrf.mxu0
          %v1503 = vadd.f32 %v1316, %v1502
          %1504 = vmatprep.mubr.bf16.mxu0 0
          %1505 = vmatmul.mubr.bf16.gmra.mxu0 %v1263
          %v1506 = vpop.f32.mrf.mxu0
          %v1507 = vadd.f32 %v1312, %v1506
          %v1508 = vpop.f32.mrf.mxu0
          %v1509 = vadd.f32 %v1316, %v1508
          %v1510 = vpop.f32.mrf.mxu0
          %v1511 = vadd.f32 %v1312, %v1510
          %v1512 = vpop.f32.mrf.mxu0
          %v1513 = vadd.f32 %v1316, %v1512
          %1514 = vmatprep.mubr.bf16.mxu0 0
          %1515 = vmatmul.mubr.bf16.gmra.mxu0 %v1264
          %v1516 = vpop.f32.mrf.mxu0
          %v1517 = vadd.f32 %v1312, %v1516
          %v1518 = vpop.f32.mrf.mxu0
          %v1519 = vadd.f32 %v1316, %v1518
          %v1520 = vpop.f32.mrf.mxu0
          %v1521 = vadd.f32 %v1312, %v1520
          %v1522 = vpop.f32.mrf.mxu0
          %v1523 = vadd.f32 %v1316, %v1522
          %1524 = vmatprep.mubr.bf16.mxu0 0
          %1525 = vmatmul.mubr.bf16.gmra.mxu0 %v1265
          %v1526 = vpop.f32.mrf.mxu0
          %v1527 = vadd.f32 %v1312, %v1526
          %v1528 = vpop.f32.mrf.mxu0
          %v1529 = vadd.f32 %v1316, %v1528
          %v1530 = vpop.f32.mrf.mxu0
          %v1531 = vadd.f32 %v1312, %v1530
          %v1532 = vpop.f32.mrf.mxu0
          %v1533 = vadd.f32 %v1316, %v1532
          %1534 = vmatprep.mubr.bf16.mxu0 0
          %1535 = vmatmul.mubr.bf16.gmra.mxu0 %v1266
          %v1536 = vpop.f32.mrf.mxu0
          %v1537 = vadd.f32 %v1312, %v1536
          %v1538 = vpop.f32.mrf.mxu0
          %v1539 = vadd.f32 %v1316, %v1538
          %v1540 = vpop.f32.mrf.mxu0
          %v1541 = vadd.f32 %v1312, %v1540
          %v1542 = vpop.f32.mrf.mxu0
          %v1543 = vadd.f32 %v1316, %v1542
          %1544 = vmatprep.mubr.bf16.mxu0 0
          %1545 = vmatmul.mubr.bf16.gmra.mxu0 %v1267
          %v1546 = vpop.f32.mrf.mxu0
          %v1547 = vadd.f32 %v1312, %v1546
          %v1548 = vpop.f32.mrf.mxu0
          %v1549 = vadd.f32 %v1316, %v1548
          %v1550 = vpop.f32.mrf.mxu0
          %v1551 = vadd.f32 %v1312, %v1550
          %v1552 = vpop.f32.mrf.mxu0
          %v1553 = vadd.f32 %v1316, %v1552
          %1554 = vmatprep.mubr.bf16.mxu0 0
          %1555 = vmatmul.mubr.bf16.gmra.mxu0 %v1268
          %v1556 = vpop.f32.mrf.mxu0
          %v1557 = vadd.f32 %v1312, %v1556
          %v1558 = vpop.f32.mrf.mxu0
          %v1559 = vadd.f32 %v1316, %v1558
          %v1560 = vpop.f32.mrf.mxu0
          %v1561 = vadd.f32 %v1312, %v1560
          %v1562 = vpop.f32.mrf.mxu0
          %v1563 = vadd.f32 %v1316, %v1562
          %1564 = vmatprep.mubr.bf16.mxu0 0
          %1565 = vmatmul.mubr.bf16.gmra.mxu0 %v1269
          %v1566 = vpop.f32.mrf.mxu0
          %v1567 = vadd.f32 %v1312, %v1566
          %v1568 = vpop.f32.mrf.mxu0
          %v1569 = vadd.f32 %v1316, %v1568
          %v1570 = vpop.f32.mrf.mxu0
          %v1571 = vpop.f32.mrf.mxu0
          %1572 = vdwg.mxu0
          %1573 = vmatprep.subr.bf16.mxu0 0
          %1574 = vmatpush1.bf16.msra.mxu0 %v1427
          %1575 = vmatprep.subr.bf16.mxu0 0
          %1576 = vmatpush1.bf16.msra.mxu0 %v1424
          %1577 = vmatprep.subr.bf16.mxu0 0
          %1578 = vmatpush1.bf16.msra.mxu0 %v1421
          %1579 = vmatprep.subr.bf16.mxu0 0
          %1580 = vmatpush1.bf16.msra.mxu0 %v1418
          %1581 = vmatprep.subr.bf16.mxu0 0
          %1582 = vmatpush1.bf16.msra.mxu0 %v1415
          %1583 = vmatprep.subr.bf16.mxu0 0
          %1584 = vmatpush1.bf16.msra.mxu0 %v1412
          %1585 = vmatprep.subr.bf16.mxu0 0
          %1586 = vmatpush1.bf16.msra.mxu0 %v1409
          %1587 = vmatprep.subr.bf16.mxu0 0
          %1588 = vmatpush1.bf16.msra.mxu0 %v1406
          %1589 = vmatprep.subr.bf16.mxu0 0
          %1590 = vmatpush2.bf16.msra.mxu0 0
          %1591 = vmatprep.subr.bf16.mxu0 0
          %1592 = vmatpush2.bf16.msra.mxu0 0
          %1593 = vmatprep.subr.bf16.mxu0 0
          %1594 = vmatpush2.bf16.msra.mxu0 0
          %1595 = vmatprep.subr.bf16.mxu0 0
          %1596 = vmatpush2.bf16.msra.mxu0 0
          %1597 = vmatprep.subr.bf16.mxu0 0
          %1598 = vmatpush2.bf16.msra.mxu0 0
          %1599 = vmatprep.subr.bf16.mxu0 0
          %1600 = vmatpush2.bf16.msra.mxu0 0
          %1601 = vmatprep.subr.bf16.mxu0 0
          %1602 = vmatpush2.bf16.msra.mxu0 0
          %1603 = vmatprep.subr.bf16.mxu0 0
          %1604 = vmatpush2.bf16.msra.mxu0 0
          %1605 = vmatprep.mubr.bf16.mxu0 0
          %1606 = vmatmul.mubr.bf16.gmra.mxu0 %v1261
          %v1607 = vpop.f32.mrf.mxu0
          %v1608 = vadd.f32 %v1320, %v1607
          %v1609 = vpop.f32.mrf.mxu0
          %v1610 = vpop.f32.mrf.mxu0
          %v1611 = vadd.f32 %v1320, %v1610
          %v1612 = vpop.f32.mrf.mxu0
          %1613 = vmatprep.mubr.bf16.mxu0 0
          %1614 = vmatmul.mubr.bf16.gmra.mxu0 %v1262
          %v1615 = vpop.f32.mrf.mxu0
          %v1616 = vadd.f32 %v1320, %v1615
          %v1617 = vpop.f32.mrf.mxu0
          %v1618 = vpop.f32.mrf.mxu0
          %v1619 = vadd.f32 %v1320, %v1618
          %v1620 = vpop.f32.mrf.mxu0
          %1621 = vmatprep.mubr.bf16.mxu0 0
          %1622 = vmatmul.mubr.bf16.gmra.mxu0 %v1263
          %v1623 = vpop.f32.mrf.mxu0
          %v1624 = vadd.f32 %v1320, %v1623
          %v1625 = vpop.f32.mrf.mxu0
          %v1626 = vpop.f32.mrf.mxu0
          %v1627 = vadd.f32 %v1320, %v1626
          %v1628 = vpop.f32.mrf.mxu0
          %1629 = vmatprep.mubr.bf16.mxu0 0
          %1630 = vmatmul.mubr.bf16.gmra.mxu0 %v1264
          %v1631 = vpop.f32.mrf.mxu0
          %v1632 = vadd.f32 %v1320, %v1631
          %v1633 = vpop.f32.mrf.mxu0
          %v1634 = vpop.f32.mrf.mxu0
          %v1635 = vadd.f32 %v1320, %v1634
          %v1636 = vpop.f32.mrf.mxu0
          %1637 = vmatprep.mubr.bf16.mxu0 0
          %1638 = vmatmul.mubr.bf16.gmra.mxu0 %v1265
          %v1639 = vpop.f32.mrf.mxu0
          %v1640 = vadd.f32 %v1320, %v1639
          %v1641 = vpop.f32.mrf.mxu0
          %v1642 = vpop.f32.mrf.mxu0
          %v1643 = vadd.f32 %v1320, %v1642
          %v1644 = vpop.f32.mrf.mxu0
          %1645 = vmatprep.mubr.bf16.mxu0 0
          %1646 = vmatmul.mubr.bf16.gmra.mxu0 %v1266
          %v1647 = vpop.f32.mrf.mxu0
          %v1648 = vadd.f32 %v1320, %v1647
          %v1649 = vpop.f32.mrf.mxu0
          %v1650 = vpop.f32.mrf.mxu0
          %v1651 = vadd.f32 %v1320, %v1650
          %v1652 = vpop.f32.mrf.mxu0
          %1653 = vmatprep.mubr.bf16.mxu0 0
          %1654 = vmatmul.mubr.bf16.gmra.mxu0 %v1267
          %v1655 = vpop.f32.mrf.mxu0
          %v1656 = vadd.f32 %v1320, %v1655
          %v1657 = vpop.f32.mrf.mxu0
          %v1658 = vpop.f32.mrf.mxu0
          %v1659 = vadd.f32 %v1320, %v1658
          %v1660 = vpop.f32.mrf.mxu0
          %1661 = vmatprep.mubr.bf16.mxu0 0
          %1662 = vmatmul.mubr.bf16.gmra.mxu0 %v1268
          %v1663 = vpop.f32.mrf.mxu0
          %v1664 = vadd.f32 %v1320, %v1663
          %v1665 = vpop.f32.mrf.mxu0
          %v1666 = vpop.f32.mrf.mxu0
          %v1667 = vadd.f32 %v1320, %v1666
          %v1668 = vpop.f32.mrf.mxu0
          %1669 = vmatprep.mubr.bf16.mxu0 0
          %1670 = vmatmul.mubr.bf16.gmra.mxu0 %v1269
          %v1671 = vpop.f32.mrf.mxu0
          %v1672 = vadd.f32 %v1320, %v1671
          %v1673 = vpop.f32.mrf.mxu0
          %v1674 = vpop.f32.mrf.mxu0
          %v1675 = vpop.f32.mrf.mxu0
          %1676 = vdwg.mxu0
          %v1677 = vpack.c.bf16 %v1491, %v1487
          %v1678 = vpack.c.bf16 %v1493, %v1489
          %v1679 = vpack.c.bf16 %v1611, %v1608
          %v1680 = vpack.c.bf16 %v1501, %v1497
          %v1681 = vpack.c.bf16 %v1503, %v1499
          %v1682 = vpack.c.bf16 %v1619, %v1616
          %v1683 = vpack.c.bf16 %v1511, %v1507
          %v1684 = vpack.c.bf16 %v1513, %v1509
          %v1685 = vpack.c.bf16 %v1627, %v1624
          %v1686 = vpack.c.bf16 %v1521, %v1517
          %v1687 = vpack.c.bf16 %v1523, %v1519
          %v1688 = vpack.c.bf16 %v1635, %v1632
          %v1689 = vpack.c.bf16 %v1531, %v1527
          %v1690 = vpack.c.bf16 %v1533, %v1529
          %v1691 = vpack.c.bf16 %v1643, %v1640
          %v1692 = vpack.c.bf16 %v1541, %v1537
          %v1693 = vpack.c.bf16 %v1543, %v1539
          %v1694 = vpack.c.bf16 %v1651, %v1648
          %v1695 = vpack.c.bf16 %v1551, %v1547
          %v1696 = vpack.c.bf16 %v1553, %v1549
          %v1697 = vpack.c.bf16 %v1659, %v1656
          %v1698 = vpack.c.bf16 %v1561, %v1557
          %v1699 = vpack.c.bf16 %v1563, %v1559
          %v1700 = vpack.c.bf16 %v1667, %v1664
          %v1701 = vpack.c.bf16 %v1567, %v1567
          %v1702 = vpack.c.bf16 %v1569, %v1569
          %v1703 = vpack.c.bf16 %v1672, %v1672
          %vm1704 = vcmask 261120
          %v1706 = vsel %vm1704, %v1677, 0
          %v1709 = vsel %vm1704, %v1680, 0
          %v1712 = vsel %vm1704, %v1683, 0
          %v1715 = vsel %vm1704, %v1686, 0
          %v1718 = vsel %vm1704, %v1689, 0
          %v1721 = vsel %vm1704, %v1692, 0
          %v1724 = vsel %vm1704, %v1695, 0
          %v1727 = vsel %vm1704, %v1698, 0
          %v1730 = vsel %vm1704, %v1701, 0
          %v1733 = vsel %vm1704, %v1678, 0
          %v1736 = vsel %vm1704, %v1681, 0
          %v1739 = vsel %vm1704, %v1684, 0
          %v1742 = vsel %vm1704, %v1687, 0
          %v1745 = vsel %vm1704, %v1690, 0
          %v1748 = vsel %vm1704, %v1693, 0
          %v1751 = vsel %vm1704, %v1696, 0
          %v1754 = vsel %vm1704, %v1699, 0
          %v1757 = vsel %vm1704, %v1702, 0
          %1759 = vmatprep.subr.bf16.mxu0 0
          %1760 = vmatpush1.bf16.xpose.msra.mxu0 %v1754
          %1761 = vmatprep.subr.bf16.mxu0 0
          %1762 = vmatpush1.bf16.xpose.msra.mxu0 %v1751
          %1763 = vmatprep.subr.bf16.mxu0 0
          %1764 = vmatpush1.bf16.xpose.msra.mxu0 %v1748
          %1765 = vmatprep.subr.bf16.mxu0 0
          %1766 = vmatpush1.bf16.xpose.msra.mxu0 %v1745
          %1767 = vmatprep.subr.bf16.mxu0 0
          %1768 = vmatpush1.bf16.xpose.msra.mxu0 %v1742
          %1769 = vmatprep.subr.bf16.mxu0 0
          %1770 = vmatpush1.bf16.xpose.msra.mxu0 %v1739
          %1771 = vmatprep.subr.bf16.mxu0 0
          %1772 = vmatpush1.bf16.xpose.msra.mxu0 %v1736
          %1773 = vmatprep.subr.bf16.mxu0 0
          %1774 = vmatpush1.bf16.xpose.msra.mxu0 %v1733
          %1775 = vmatprep.subr.bf16.mxu0 0
          %1776 = vmatpush2.bf16.xpose.msra.mxu0 0
          %1777 = vmatprep.subr.bf16.mxu0 0
          %1778 = vmatpush2.bf16.xpose.msra.mxu0 0
          %1779 = vmatprep.subr.bf16.mxu0 0
          %1780 = vmatpush2.bf16.xpose.msra.mxu0 0
          %1781 = vmatprep.subr.bf16.mxu0 0
          %1782 = vmatpush2.bf16.xpose.msra.mxu0 0
          %1783 = vmatprep.subr.bf16.mxu0 0
          %1784 = vmatpush2.bf16.xpose.msra.mxu0 0
          %1785 = vmatprep.subr.bf16.mxu0 0
          %1786 = vmatpush2.bf16.xpose.msra.mxu0 0
          %1787 = vmatprep.subr.bf16.mxu0 0
          %1788 = vmatpush2.bf16.xpose.msra.mxu0 0
          %1789 = vmatprep.subr.bf16.mxu0 0
          %1790 = vmatpush2.bf16.xpose.msra.mxu0 %v1757
          %1791 = vmatprep.mubr.bf16.mxu0 0
          %1792 = vmatmul.mubr.bf16.gmra.mxu0 %v1706
          %v1793 = vpop.f32.mrf.mxu0
          %v1794 = vadd.f32 %v966, %v1793
          %v1795 = vpop.f32.mrf.mxu0
          %v1796 = vadd.f32 %v967, %v1795
          %v1797 = vpop.f32.mrf.mxu0
          %v1798 = vadd.f32 %v968, %v1797
          %v1799 = vpop.f32.mrf.mxu0
          %v1800 = vadd.f32 %v969, %v1799
          %1801 = vmatprep.mubr.bf16.mxu0 0
          %1802 = vmatmul.mubr.bf16.gmra.mxu0 %v1709
          %v1803 = vpop.f32.mrf.mxu0
          %v1804 = vadd.f32 %v970, %v1803
          %v1805 = vpop.f32.mrf.mxu0
          %v1806 = vadd.f32 %v971, %v1805
          %v1807 = vpop.f32.mrf.mxu0
          %v1808 = vadd.f32 %v972, %v1807
          %v1809 = vpop.f32.mrf.mxu0
          %v1810 = vadd.f32 %v973, %v1809
          %1811 = vmatprep.mubr.bf16.mxu0 0
          %1812 = vmatmul.mubr.bf16.gmra.mxu0 %v1712
          %v1813 = vpop.f32.mrf.mxu0
          %v1814 = vadd.f32 %v974, %v1813
          %v1815 = vpop.f32.mrf.mxu0
          %v1816 = vadd.f32 %v975, %v1815
          %v1817 = vpop.f32.mrf.mxu0
          %v1818 = vadd.f32 %v976, %v1817
          %v1819 = vpop.f32.mrf.mxu0
          %v1820 = vadd.f32 %v977, %v1819
          %1821 = vmatprep.mubr.bf16.mxu0 0
          %1822 = vmatmul.mubr.bf16.gmra.mxu0 %v1715
          %v1823 = vpop.f32.mrf.mxu0
          %v1824 = vadd.f32 %v978, %v1823
          %v1825 = vpop.f32.mrf.mxu0
          %v1826 = vadd.f32 %v979, %v1825
          %v1827 = vpop.f32.mrf.mxu0
          %v1828 = vadd.f32 %v980, %v1827
          %v1829 = vpop.f32.mrf.mxu0
          %v1830 = vadd.f32 %v981, %v1829
          %1831 = vmatprep.mubr.bf16.mxu0 0
          %1832 = vmatmul.mubr.bf16.gmra.mxu0 %v1718
          %v1833 = vpop.f32.mrf.mxu0
          %v1834 = vadd.f32 %v982, %v1833
          %v1835 = vpop.f32.mrf.mxu0
          %v1836 = vadd.f32 %v983, %v1835
          %v1837 = vpop.f32.mrf.mxu0
          %v1838 = vadd.f32 %v984, %v1837
          %v1839 = vpop.f32.mrf.mxu0
          %v1840 = vadd.f32 %v985, %v1839
          %1841 = vmatprep.mubr.bf16.mxu0 0
          %1842 = vmatmul.mubr.bf16.gmra.mxu0 %v1721
          %v1843 = vpop.f32.mrf.mxu0
          %v1844 = vadd.f32 %v986, %v1843
          %v1845 = vpop.f32.mrf.mxu0
          %v1846 = vadd.f32 %v987, %v1845
          %v1847 = vpop.f32.mrf.mxu0
          %v1848 = vadd.f32 %v988, %v1847
          %v1849 = vpop.f32.mrf.mxu0
          %v1850 = vadd.f32 %v989, %v1849
          %1851 = vmatprep.mubr.bf16.mxu0 0
          %1852 = vmatmul.mubr.bf16.gmra.mxu0 %v1724
          %v1853 = vpop.f32.mrf.mxu0
          %v1854 = vadd.f32 %v990, %v1853
          %v1855 = vpop.f32.mrf.mxu0
          %v1856 = vadd.f32 %v991, %v1855
          %v1857 = vpop.f32.mrf.mxu0
          %v1858 = vadd.f32 %v992, %v1857
          %v1859 = vpop.f32.mrf.mxu0
          %v1860 = vadd.f32 %v993, %v1859
          %1861 = vmatprep.mubr.bf16.mxu0 0
          %1862 = vmatmul.mubr.bf16.gmra.mxu0 %v1727
          %v1863 = vpop.f32.mrf.mxu0
          %v1864 = vadd.f32 %v994, %v1863
          %v1865 = vpop.f32.mrf.mxu0
          %v1866 = vadd.f32 %v995, %v1865
          %v1867 = vpop.f32.mrf.mxu0
          %v1868 = vadd.f32 %v996, %v1867
          %v1869 = vpop.f32.mrf.mxu0
          %v1870 = vadd.f32 %v997, %v1869
          %1871 = vmatprep.mubr.bf16.mxu0 0
          %1872 = vmatmul.mubr.bf16.gmra.mxu0 %v1730
          %v1873 = vpop.f32.mrf.mxu0
          %v1874 = vadd.f32 %v998, %v1873
          %v1875 = vpop.f32.mrf.mxu0
          %v1876 = vadd.f32 %v999, %v1875
          %v1877 = vpop.f32.mrf.mxu0
          %v1878 = vpop.f32.mrf.mxu0
          %1879 = vdwg.mxu0
          %vm1880 = vcmask 64512
          %v1881 = vsel %vm1880, %v1796, -inf
          %v1882 = vmax.f32 %v1794, %v1881
          %1883 = vmax.xlane.f32.xlu0 %v1882
          %v1884 = vpop.xlane.xlu0 %1883
          %v1885 = vsel %vm1880, %v1800, -inf
          %v1886 = vmax.f32 %v1798, %v1885
          %1887 = vmax.xlane.f32.xlu0 %v1886
          %v1888 = vpop.xlane.xlu0 %1887
          %v1889 = vsel %vm1880, %v1806, -inf
          %v1890 = vmax.f32 %v1804, %v1889
          %1891 = vmax.xlane.f32.xlu0 %v1890
          %v1892 = vpop.xlane.xlu0 %1891
          %v1893 = vsel %vm1880, %v1810, -inf
          %v1894 = vmax.f32 %v1808, %v1893
          %1895 = vmax.xlane.f32.xlu0 %v1894
          %v1896 = vpop.xlane.xlu0 %1895
          %v1897 = vsel %vm1880, %v1816, -inf
          %v1898 = vmax.f32 %v1814, %v1897
          %1899 = vmax.xlane.f32.xlu0 %v1898
          %v1900 = vpop.xlane.xlu0 %1899
          %v1901 = vsel %vm1880, %v1820, -inf
          %v1902 = vmax.f32 %v1818, %v1901
          %1903 = vmax.xlane.f32.xlu0 %v1902
          %v1904 = vpop.xlane.xlu0 %1903
          %v1905 = vsel %vm1880, %v1826, -inf
          %v1906 = vmax.f32 %v1824, %v1905
          %1907 = vmax.xlane.f32.xlu0 %v1906
          %v1908 = vpop.xlane.xlu0 %1907
          %v1909 = vsel %vm1880, %v1830, -inf
          %v1910 = vmax.f32 %v1828, %v1909
          %1911 = vmax.xlane.f32.xlu0 %v1910
          %v1912 = vpop.xlane.xlu0 %1911
          %v1913 = vsel %vm1880, %v1836, -inf
          %v1914 = vmax.f32 %v1834, %v1913
          %1915 = vmax.xlane.f32.xlu0 %v1914
          %v1916 = vpop.xlane.xlu0 %1915
          %v1917 = vsel %vm1880, %v1840, -inf
          %v1918 = vmax.f32 %v1838, %v1917
          %1919 = vmax.xlane.f32.xlu0 %v1918
          %v1920 = vpop.xlane.xlu0 %1919
          %v1921 = vsel %vm1880, %v1846, -inf
          %v1922 = vmax.f32 %v1844, %v1921
          %1923 = vmax.xlane.f32.xlu0 %v1922
          %v1924 = vpop.xlane.xlu0 %1923
          %v1925 = vsel %vm1880, %v1850, -inf
          %v1926 = vmax.f32 %v1848, %v1925
          %1927 = vmax.xlane.f32.xlu0 %v1926
          %v1928 = vpop.xlane.xlu0 %1927
          %v1929 = vsel %vm1880, %v1856, -inf
          %v1930 = vmax.f32 %v1854, %v1929
          %1931 = vmax.xlane.f32.xlu0 %v1930
          %v1932 = vpop.xlane.xlu0 %1931
          %v1933 = vsel %vm1880, %v1860, -inf
          %v1934 = vmax.f32 %v1858, %v1933
          %1935 = vmax.xlane.f32.xlu0 %v1934
          %v1936 = vpop.xlane.xlu0 %1935
          %v1937 = vsel %vm1880, %v1866, -inf
          %v1938 = vmax.f32 %v1864, %v1937
          %1939 = vmax.xlane.f32.xlu0 %v1938
          %v1940 = vpop.xlane.xlu0 %1939
          %v1941 = vsel %vm1880, %v1870, -inf
          %v1942 = vmax.f32 %v1868, %v1941
          %1943 = vmax.xlane.f32.xlu0 %v1942
          %v1944 = vpop.xlane.xlu0 %1943
          %v1945 = vsel %vm1880, %v1876, -inf
          %v1946 = vmax.f32 %v1874, %v1945
          %1947 = vmax.xlane.f32.xlu0 %v1946
          %v1948 = vpop.xlane.xlu0 %1947
          %v1949 = vsub.f32 %v1794, %v1884
          %v1950 = vsub.f32 %v1796, %v1884
          %v1951 = vsub.f32 %v1798, %v1888
          %v1952 = vsub.f32 %v1800, %v1888
          %v1953 = vsub.f32 %v1804, %v1892
          %v1954 = vsub.f32 %v1806, %v1892
          %v1955 = vsub.f32 %v1808, %v1896
          %v1956 = vsub.f32 %v1810, %v1896
          %v1957 = vsub.f32 %v1814, %v1900
          %v1958 = vsub.f32 %v1816, %v1900
          %v1959 = vsub.f32 %v1818, %v1904
          %v1960 = vsub.f32 %v1820, %v1904
          %v1961 = vsub.f32 %v1824, %v1908
          %v1962 = vsub.f32 %v1826, %v1908
          %v1963 = vsub.f32 %v1828, %v1912
          %v1964 = vsub.f32 %v1830, %v1912
          %v1965 = vsub.f32 %v1834, %v1916
          %v1966 = vsub.f32 %v1836, %v1916
          %v1967 = vsub.f32 %v1838, %v1920
          %v1968 = vsub.f32 %v1840, %v1920
          %v1969 = vsub.f32 %v1844, %v1924
          %v1970 = vsub.f32 %v1846, %v1924
          %v1971 = vsub.f32 %v1848, %v1928
          %v1972 = vsub.f32 %v1850, %v1928
          %v1973 = vsub.f32 %v1854, %v1932
          %v1974 = vsub.f32 %v1856, %v1932
          %v1975 = vsub.f32 %v1858, %v1936
          %v1976 = vsub.f32 %v1860, %v1936
          %v1977 = vsub.f32 %v1864, %v1940
          %v1978 = vsub.f32 %v1866, %v1940
          %v1979 = vsub.f32 %v1868, %v1944
          %v1980 = vsub.f32 %v1870, %v1944
          %v1981 = vsub.f32 %v1874, %v1948
          %v1982 = vsub.f32 %v1876, %v1948
          %v1983 = vmul.f32 %v1949, 1.442695
          %v1984 = vpow.pop %v1983
          %v1985 = vmul.f32 %v1950, 1.442695
          %v1986 = vpow.pop %v1985
          %v1987 = vmul.f32 %v1951, 1.442695
          %v1988 = vpow.pop %v1987
          %v1989 = vmul.f32 %v1952, 1.442695
          %v1990 = vpow.pop %v1989
          %v1991 = vmul.f32 %v1953, 1.442695
          %v1992 = vpow.pop %v1991
          %v1993 = vmul.f32 %v1954, 1.442695
          %v1994 = vpow.pop %v1993
          %v1995 = vmul.f32 %v1955, 1.442695
          %v1996 = vpow.pop %v1995
          %v1997 = vmul.f32 %v1956, 1.442695
          %v1998 = vpow.pop %v1997
          %v1999 = vmul.f32 %v1957, 1.442695
          %v2000 = vpow.pop %v1999
          %v2001 = vmul.f32 %v1958, 1.442695
          %v2002 = vpow.pop %v2001
          %v2003 = vmul.f32 %v1959, 1.442695
          %v2004 = vpow.pop %v2003
          %v2005 = vmul.f32 %v1960, 1.442695
          %v2006 = vpow.pop %v2005
          %v2007 = vmul.f32 %v1961, 1.442695
          %v2008 = vpow.pop %v2007
          %v2009 = vmul.f32 %v1962, 1.442695
          %v2010 = vpow.pop %v2009
          %v2011 = vmul.f32 %v1963, 1.442695
          %v2012 = vpow.pop %v2011
          %v2013 = vmul.f32 %v1964, 1.442695
          %v2014 = vpow.pop %v2013
          %v2015 = vmul.f32 %v1965, 1.442695
          %v2016 = vpow.pop %v2015
          %v2017 = vmul.f32 %v1966, 1.442695
          %v2018 = vpow.pop %v2017
          %v2019 = vmul.f32 %v1967, 1.442695
          %v2020 = vpow.pop %v2019
          %v2021 = vmul.f32 %v1968, 1.442695
          %v2022 = vpow.pop %v2021
          %v2023 = vmul.f32 %v1969, 1.442695
          %v2024 = vpow.pop %v2023
          %v2025 = vmul.f32 %v1970, 1.442695
          %v2026 = vpow.pop %v2025
          %v2027 = vmul.f32 %v1971, 1.442695
          %v2028 = vpow.pop %v2027
          %v2029 = vmul.f32 %v1972, 1.442695
          %v2030 = vpow.pop %v2029
          %v2031 = vmul.f32 %v1973, 1.442695
          %v2032 = vpow.pop %v2031
          %v2033 = vmul.f32 %v1974, 1.442695
          %v2034 = vpow.pop %v2033
          %v2035 = vmul.f32 %v1975, 1.442695
          %v2036 = vpow.pop %v2035
          %v2037 = vmul.f32 %v1976, 1.442695
          %v2038 = vpow.pop %v2037
          %v2039 = vmul.f32 %v1977, 1.442695
          %v2040 = vpow.pop %v2039
          %v2041 = vmul.f32 %v1978, 1.442695
          %v2042 = vpow.pop %v2041
          %v2043 = vmul.f32 %v1979, 1.442695
          %v2044 = vpow.pop %v2043
          %v2045 = vmul.f32 %v1980, 1.442695
          %v2046 = vpow.pop %v2045
          %v2047 = vmul.f32 %v1981, 1.442695
          %v2048 = vpow.pop %v2047
          %v2049 = vmul.f32 %v1982, 1.442695
          %v2050 = vpow.pop %v2049
          %v2051 = vsel %vm1880, %v1986, 0.0
          %v2052 = vadd.f32 %v1984, %v2051
          %2053 = vadd.xlane.f32.xlu0 %v2052
          %v2054 = vpop.xlane.xlu0 %2053
          %v2055 = vsel %vm1880, %v1990, 0.0
          %v2056 = vadd.f32 %v1988, %v2055
          %2057 = vadd.xlane.f32.xlu0 %v2056
          %v2058 = vpop.xlane.xlu0 %2057
          %v2059 = vsel %vm1880, %v1994, 0.0
          %v2060 = vadd.f32 %v1992, %v2059
          %2061 = vadd.xlane.f32.xlu0 %v2060
          %v2062 = vpop.xlane.xlu0 %2061
          %v2063 = vsel %vm1880, %v1998, 0.0
          %v2064 = vadd.f32 %v1996, %v2063
          %2065 = vadd.xlane.f32.xlu0 %v2064
          %v2066 = vpop.xlane.xlu0 %2065
          %v2067 = vsel %vm1880, %v2002, 0.0
          %v2068 = vadd.f32 %v2000, %v2067
          %2069 = vadd.xlane.f32.xlu0 %v2068
          %v2070 = vpop.xlane.xlu0 %2069
          %v2071 = vsel %vm1880, %v2006, 0.0
          %v2072 = vadd.f32 %v2004, %v2071
          %2073 = vadd.xlane.f32.xlu0 %v2072
          %v2074 = vpop.xlane.xlu0 %2073
          %v2075 = vsel %vm1880, %v2010, 0.0
          %v2076 = vadd.f32 %v2008, %v2075
          %2077 = vadd.xlane.f32.xlu0 %v2076
          %v2078 = vpop.xlane.xlu0 %2077
          %v2079 = vsel %vm1880, %v2014, 0.0
          %v2080 = vadd.f32 %v2012, %v2079
          %2081 = vadd.xlane.f32.xlu0 %v2080
          %v2082 = vpop.xlane.xlu0 %2081
          %v2083 = vsel %vm1880, %v2018, 0.0
          %v2084 = vadd.f32 %v2016, %v2083
          %2085 = vadd.xlane.f32.xlu0 %v2084
          %v2086 = vpop.xlane.xlu0 %2085
          %v2087 = vsel %vm1880, %v2022, 0.0
          %v2088 = vadd.f32 %v2020, %v2087
          %2089 = vadd.xlane.f32.xlu0 %v2088
          %v2090 = vpop.xlane.xlu0 %2089
          %v2091 = vsel %vm1880, %v2026, 0.0
          %v2092 = vadd.f32 %v2024, %v2091
          %2093 = vadd.xlane.f32.xlu0 %v2092
          %v2094 = vpop.xlane.xlu0 %2093
          %v2095 = vsel %vm1880, %v2030, 0.0
          %v2096 = vadd.f32 %v2028, %v2095
          %2097 = vadd.xlane.f32.xlu0 %v2096
          %v2098 = vpop.xlane.xlu0 %2097
          %v2099 = vsel %vm1880, %v2034, 0.0
          %v2100 = vadd.f32 %v2032, %v2099
          %2101 = vadd.xlane.f32.xlu0 %v2100
          %v2102 = vpop.xlane.xlu0 %2101
          %v2103 = vsel %vm1880, %v2038, 0.0
          %v2104 = vadd.f32 %v2036, %v2103
          %2105 = vadd.xlane.f32.xlu0 %v2104
          %v2106 = vpop.xlane.xlu0 %2105
          %v2107 = vsel %vm1880, %v2042, 0.0
          %v2108 = vadd.f32 %v2040, %v2107
          %2109 = vadd.xlane.f32.xlu0 %v2108
          %v2110 = vpop.xlane.xlu0 %2109
          %v2111 = vsel %vm1880, %v2046, 0.0
          %v2112 = vadd.f32 %v2044, %v2111
          %2113 = vadd.xlane.f32.xlu0 %v2112
          %v2114 = vpop.xlane.xlu0 %2113
          %v2115 = vsel %vm1880, %v2050, 0.0
          %v2116 = vadd.f32 %v2048, %v2115
          %2117 = vadd.xlane.f32.xlu0 %v2116
          %v2118 = vpop.xlane.xlu0 %2117
          %v2119 = vrcp.pop %v2054
          %v2120 = vrcp.pop %v2058
          %v2121 = vrcp.pop %v2062
          %v2122 = vrcp.pop %v2066
          %v2123 = vrcp.pop %v2070
          %v2124 = vrcp.pop %v2074
          %v2125 = vrcp.pop %v2078
          %v2126 = vrcp.pop %v2082
          %v2127 = vrcp.pop %v2086
          %v2128 = vrcp.pop %v2090
          %v2129 = vrcp.pop %v2094
          %v2130 = vrcp.pop %v2098
          %v2131 = vrcp.pop %v2102
          %v2132 = vrcp.pop %v2106
          %v2133 = vrcp.pop %v2110
          %v2134 = vrcp.pop %v2114
          %v2135 = vrcp.pop %v2118
          %v2136 = vmul.f32 %v1984, %v2119
          %v2137 = vmul.f32 %v1986, %v2119
          %v2138 = vmul.f32 %v1988, %v2120
          %v2139 = vmul.f32 %v1990, %v2120
          %v2140 = vmul.f32 %v1992, %v2121
          %v2141 = vmul.f32 %v1994, %v2121
          %v2142 = vmul.f32 %v1996, %v2122
          %v2143 = vmul.f32 %v1998, %v2122
          %v2144 = vmul.f32 %v2000, %v2123
          %v2145 = vmul.f32 %v2002, %v2123
          %v2146 = vmul.f32 %v2004, %v2124
          %v2147 = vmul.f32 %v2006, %v2124
          %v2148 = vmul.f32 %v2008, %v2125
          %v2149 = vmul.f32 %v2010, %v2125
          %v2150 = vmul.f32 %v2012, %v2126
          %v2151 = vmul.f32 %v2014, %v2126
          %v2152 = vmul.f32 %v2016, %v2127
          %v2153 = vmul.f32 %v2018, %v2127
          %v2154 = vmul.f32 %v2020, %v2128
          %v2155 = vmul.f32 %v2022, %v2128
          %v2156 = vmul.f32 %v2024, %v2129
          %v2157 = vmul.f32 %v2026, %v2129
          %v2158 = vmul.f32 %v2028, %v2130
          %v2159 = vmul.f32 %v2030, %v2130
          %v2160 = vmul.f32 %v2032, %v2131
          %v2161 = vmul.f32 %v2034, %v2131
          %v2162 = vmul.f32 %v2036, %v2132
          %v2163 = vmul.f32 %v2038, %v2132
          %v2164 = vmul.f32 %v2040, %v2133
          %v2165 = vmul.f32 %v2042, %v2133
          %v2166 = vmul.f32 %v2044, %v2134
          %v2167 = vmul.f32 %v2046, %v2134
          %v2168 = vmul.f32 %v2048, %v2135
          %v2169 = vmul.f32 %v2050, %v2135
          %v2170 = vpack.c.bf16 %v2138, %v2136
          %v2171 = vpack.c.bf16 %v2139, %v2137
          %v2172 = vpack.c.bf16 %v2142, %v2140
          %v2173 = vpack.c.bf16 %v2143, %v2141
          %v2174 = vpack.c.bf16 %v2146, %v2144
          %v2175 = vpack.c.bf16 %v2147, %v2145
          %v2176 = vpack.c.bf16 %v2150, %v2148
          %v2177 = vpack.c.bf16 %v2151, %v2149
          %v2178 = vpack.c.bf16 %v2154, %v2152
          %v2179 = vpack.c.bf16 %v2155, %v2153
          %v2180 = vpack.c.bf16 %v2158, %v2156
          %v2181 = vpack.c.bf16 %v2159, %v2157
          %v2182 = vpack.c.bf16 %v2162, %v2160
          %v2183 = vpack.c.bf16 %v2163, %v2161
          %v2184 = vpack.c.bf16 %v2166, %v2164
          %v2185 = vpack.c.bf16 %v2167, %v2165
          %v2186 = vpack.c.bf16 %v2168, %v2168
          %v2187 = vpack.c.bf16 %v2169, %v2169
          %v2189 = vsel %vm1880, %v2171, 0
          %v2192 = vsel %vm1880, %v2173, 0
          %v2195 = vsel %vm1880, %v2175, 0
          %v2198 = vsel %vm1880, %v2177, 0
          %v2201 = vsel %vm1880, %v2179, 0
          %v2204 = vsel %vm1880, %v2181, 0
          %v2207 = vsel %vm1880, %v2183, 0
          %v2210 = vsel %vm1880, %v2185, 0
          %v2213 = vsel %vm1880, %v2187, 0
          %vm2215 = vcmask 1043456
          %v2217 = vsel %vm2215, %v1703, 0
          %2219 = vmatprep.subr.bf16.mxu0 0
          %2220 = vmatpush1.bf16.msra.mxu0 %v1700
          %2221 = vmatprep.subr.bf16.mxu0 0
          %2222 = vmatpush1.bf16.msra.mxu0 %v1697
          %2223 = vmatprep.subr.bf16.mxu0 0
          %2224 = vmatpush1.bf16.msra.mxu0 %v1694
          %2225 = vmatprep.subr.bf16.mxu0 0
          %2226 = vmatpush1.bf16.msra.mxu0 %v1691
          %2227 = vmatprep.subr.bf16.mxu0 0
          %2228 = vmatpush1.bf16.msra.mxu0 %v1688
          %2229 = vmatprep.subr.bf16.mxu0 0
          %2230 = vmatpush1.bf16.msra.mxu0 %v1685
          %2231 = vmatprep.subr.bf16.mxu0 0
          %2232 = vmatpush1.bf16.msra.mxu0 %v1682
          %2233 = vmatprep.subr.bf16.mxu0 0
          %2234 = vmatpush1.bf16.msra.mxu0 %v1679
          %2235 = vmatprep.subr.bf16.mxu0 0
          %2236 = vmatpush2.bf16.msra.mxu0 0
          %2237 = vmatprep.subr.bf16.mxu0 0
          %2238 = vmatpush2.bf16.msra.mxu0 0
          %2239 = vmatprep.subr.bf16.mxu0 0
          %2240 = vmatpush2.bf16.msra.mxu0 0
          %2241 = vmatprep.subr.bf16.mxu0 0
          %2242 = vmatpush2.bf16.msra.mxu0 0
          %2243 = vmatprep.subr.bf16.mxu0 0
          %2244 = vmatpush2.bf16.msra.mxu0 0
          %2245 = vmatprep.subr.bf16.mxu0 0
          %2246 = vmatpush2.bf16.msra.mxu0 0
          %2247 = vmatprep.subr.bf16.mxu0 0
          %2248 = vmatpush2.bf16.msra.mxu0 0
          %2249 = vmatprep.subr.bf16.mxu0 0
          %2250 = vmatpush2.bf16.msra.mxu0 %v2217
          %2251 = vmatprep.mubr.bf16.mxu0 %v2189
          %2252 = vmatmul.mubr.bf16.gmra.mxu0 %v2170
          %v2253 = vpop.f32.mrf.mxu0
          %v2254 = vadd.f32 0.0, %v2253
          %v2255 = vpop.f32.mrf.mxu0
          %v2256 = vpop.f32.mrf.mxu0
          %v2257 = vadd.f32 0.0, %v2256
          %v2258 = vpop.f32.mrf.mxu0
          %2259 = vmatprep.mubr.bf16.mxu0 %v2192
          %2260 = vmatmul.mubr.bf16.gmra.mxu0 %v2172
          %v2261 = vpop.f32.mrf.mxu0
          %v2262 = vadd.f32 0.0, %v2261
          %v2263 = vpop.f32.mrf.mxu0
          %v2264 = vpop.f32.mrf.mxu0
          %v2265 = vadd.f32 0.0, %v2264
          %v2266 = vpop.f32.mrf.mxu0
          %2267 = vmatprep.mubr.bf16.mxu0 %v2195
          %2268 = vmatmul.mubr.bf16.gmra.mxu0 %v2174
          %v2269 = vpop.f32.mrf.mxu0
          %v2270 = vadd.f32 0.0, %v2269
          %v2271 = vpop.f32.mrf.mxu0
          %v2272 = vpop.f32.mrf.mxu0
          %v2273 = vadd.f32 0.0, %v2272
          %v2274 = vpop.f32.mrf.mxu0
          %2275 = vmatprep.mubr.bf16.mxu0 %v2198
          %2276 = vmatmul.mubr.bf16.gmra.mxu0 %v2176
          %v2277 = vpop.f32.mrf.mxu0
          %v2278 = vadd.f32 0.0, %v2277
          %v2279 = vpop.f32.mrf.mxu0
          %v2280 = vpop.f32.mrf.mxu0
          %v2281 = vadd.f32 0.0, %v2280
          %v2282 = vpop.f32.mrf.mxu0
          %2283 = vmatprep.mubr.bf16.mxu0 %v2201
          %2284 = vmatmul.mubr.bf16.gmra.mxu0 %v2178
          %v2285 = vpop.f32.mrf.mxu0
          %v2286 = vadd.f32 0.0, %v2285
          %v2287 = vpop.f32.mrf.mxu0
          %v2288 = vpop.f32.mrf.mxu0
          %v2289 = vadd.f32 0.0, %v2288
          %v2290 = vpop.f32.mrf.mxu0
          %2291 = vmatprep.mubr.bf16.mxu0 %v2204
          %2292 = vmatmul.mubr.bf16.gmra.mxu0 %v2180
          %v2293 = vpop.f32.mrf.mxu0
          %v2294 = vadd.f32 0.0, %v2293
          %v2295 = vpop.f32.mrf.mxu0
          %v2296 = vpop.f32.mrf.mxu0
          %v2297 = vadd.f32 0.0, %v2296
          %v2298 = vpop.f32.mrf.mxu0
          %2299 = vmatprep.mubr.bf16.mxu0 %v2207
          %2300 = vmatmul.mubr.bf16.gmra.mxu0 %v2182
          %v2301 = vpop.f32.mrf.mxu0
          %v2302 = vadd.f32 0.0, %v2301
          %v2303 = vpop.f32.mrf.mxu0
          %v2304 = vpop.f32.mrf.mxu0
          %v2305 = vadd.f32 0.0, %v2304
          %v2306 = vpop.f32.mrf.mxu0
          %2307 = vmatprep.mubr.bf16.mxu0 %v2210
          %2308 = vmatmul.mubr.bf16.gmra.mxu0 %v2184
          %v2309 = vpop.f32.mrf.mxu0
          %v2310 = vadd.f32 0.0, %v2309
          %v2311 = vpop.f32.mrf.mxu0
          %v2312 = vpop.f32.mrf.mxu0
          %v2313 = vadd.f32 0.0, %v2312
          %v2314 = vpop.f32.mrf.mxu0
          %2315 = vmatprep.mubr.bf16.mxu0 %v2213
          %2316 = vmatmul.mubr.bf16.gmra.mxu0 %v2186
          %v2317 = vpop.f32.mrf.mxu0
          %v2318 = vadd.f32 0.0, %v2317
          %v2319 = vpop.f32.mrf.mxu0
          %v2320 = vpop.f32.mrf.mxu0
          %v2321 = vpop.f32.mrf.mxu0
          %2322 = vdwg.mxu0
          %2323 = vst.msk [vmem:[#allocation2] sm:$0xff] %vm1704, %v2254
          %2324 = vst.msk [vmem:[#allocation2 + $0x8] sm:$0xff] %vm1704, %v2257
          %2325 = vst.msk [vmem:[#allocation2 + $0x10] sm:$0xff] %vm1704, %v2262
          %2326 = vst.msk [vmem:[#allocation2 + $0x18] sm:$0xff] %vm1704, %v2265
          %2327 = vst.msk [vmem:[#allocation2 + $0x20] sm:$0xff] %vm1704, %v2270
          %2328 = vst.msk [vmem:[#allocation2 + $0x28] sm:$0xff] %vm1704, %v2273
          %2329 = vst.msk [vmem:[#allocation2 + $0x30] sm:$0xff] %vm1704, %v2278
          %2330 = vst.msk [vmem:[#allocation2 + $0x38] sm:$0xff] %vm1704, %v2281
          %2331 = vst.msk [vmem:[#allocation2 + $0x40] sm:$0xff] %vm1704, %v2286
          %2332 = vst.msk [vmem:[#allocation2 + $0x48] sm:$0xff] %vm1704, %v2289
          %2333 = vst.msk [vmem:[#allocation2 + $0x50] sm:$0xff] %vm1704, %v2294
          %2334 = vst.msk [vmem:[#allocation2 + $0x58] sm:$0xff] %vm1704, %v2297
          %2335 = vst.msk [vmem:[#allocation2 + $0x60] sm:$0xff] %vm1704, %v2302
          %2336 = vst.msk [vmem:[#allocation2 + $0x68] sm:$0xff] %vm1704, %v2305
          %2337 = vst.msk [vmem:[#allocation2 + $0x70] sm:$0xff] %vm1704, %v2310
          %2338 = vst.msk [vmem:[#allocation2 + $0x78] sm:$0xff] %vm1704, %v2313
          %2339 = vst.msk [vmem:[#allocation2 + $0x80] sm:$0xff] %vm1704, %v2318
          %2349 = vrot.lane.b32.xlu0 %v1677, 96
          %v2350 = vpop.permute.xlu0 %2349
          %2351 = vrot.lane.b32.xlu0 %v1680, 96
          %v2352 = vpop.permute.xlu0 %2351
          %2353 = vrot.lane.b32.xlu0 %v1683, 96
          %v2354 = vpop.permute.xlu0 %2353
          %2355 = vrot.lane.b32.xlu0 %v1686, 96
          %v2356 = vpop.permute.xlu0 %2355
          %2357 = vrot.lane.b32.xlu0 %v1689, 96
          %v2358 = vpop.permute.xlu0 %2357
          %2359 = vrot.lane.b32.xlu0 %v1692, 96
          %v2360 = vpop.permute.xlu0 %2359
          %2361 = vrot.lane.b32.xlu0 %v1695, 96
          %v2362 = vpop.permute.xlu0 %2361
          %2363 = vrot.lane.b32.xlu0 %v1698, 96
          %v2364 = vpop.permute.xlu0 %2363
          %2365 = vrot.lane.b32.xlu0 %v1701, 96
          %v2366 = vpop.permute.xlu0 %2365
          %2376 = vrot.lane.b32.xlu0 %v1678, 96
          %v2377 = vpop.permute.xlu0 %2376
          %2378 = vrot.lane.b32.xlu0 %v1681, 96
          %v2379 = vpop.permute.xlu0 %2378
          %2380 = vrot.lane.b32.xlu0 %v1684, 96
          %v2381 = vpop.permute.xlu0 %2380
          %2382 = vrot.lane.b32.xlu0 %v1687, 96
          %v2383 = vpop.permute.xlu0 %2382
          %2384 = vrot.lane.b32.xlu0 %v1690, 96
          %v2385 = vpop.permute.xlu0 %2384
          %2386 = vrot.lane.b32.xlu0 %v1693, 96
          %v2387 = vpop.permute.xlu0 %2386
          %2388 = vrot.lane.b32.xlu0 %v1696, 96
          %v2389 = vpop.permute.xlu0 %2388
          %2390 = vrot.lane.b32.xlu0 %v1699, 96
          %v2391 = vpop.permute.xlu0 %2390
          %2392 = vrot.lane.b32.xlu0 %v1702, 96
          %v2393 = vpop.permute.xlu0 %2392
          %v2395 = vsel %vm1704, %v2350, 0
          %v2398 = vsel %vm1704, %v2352, 0
          %v2401 = vsel %vm1704, %v2354, 0
          %v2404 = vsel %vm1704, %v2356, 0
          %v2407 = vsel %vm1704, %v2358, 0
          %v2410 = vsel %vm1704, %v2360, 0
          %v2413 = vsel %vm1704, %v2362, 0
          %v2416 = vsel %vm1704, %v2364, 0
          %v2419 = vsel %vm1704, %v2366, 0
          %v2422 = vsel %vm1704, %v2377, 0
          %v2425 = vsel %vm1704, %v2379, 0
          %v2428 = vsel %vm1704, %v2381, 0
          %v2431 = vsel %vm1704, %v2383, 0
          %v2434 = vsel %vm1704, %v2385, 0
          %v2437 = vsel %vm1704, %v2387, 0
          %v2440 = vsel %vm1704, %v2389, 0
          %v2443 = vsel %vm1704, %v2391, 0
          %v2446 = vsel %vm1704, %v2393, 0
          %2448 = vmatprep.subr.bf16.mxu0 0
          %2449 = vmatpush1.bf16.xpose.msra.mxu0 %v2443
          %2450 = vmatprep.subr.bf16.mxu0 0
          %2451 = vmatpush1.bf16.xpose.msra.mxu0 %v2440
          %2452 = vmatprep.subr.bf16.mxu0 0
          %2453 = vmatpush1.bf16.xpose.msra.mxu0 %v2437
          %2454 = vmatprep.subr.bf16.mxu0 0
          %2455 = vmatpush1.bf16.xpose.msra.mxu0 %v2434
          %2456 = vmatprep.subr.bf16.mxu0 0
          %2457 = vmatpush1.bf16.xpose.msra.mxu0 %v2431
          %2458 = vmatprep.subr.bf16.mxu0 0
          %2459 = vmatpush1.bf16.xpose.msra.mxu0 %v2428
          %2460 = vmatprep.subr.bf16.mxu0 0
          %2461 = vmatpush1.bf16.xpose.msra.mxu0 %v2425
          %2462 = vmatprep.subr.bf16.mxu0 0
          %2463 = vmatpush1.bf16.xpose.msra.mxu0 %v2422
          %2464 = vmatprep.subr.bf16.mxu0 0
          %2465 = vmatpush2.bf16.xpose.msra.mxu0 0
          %2466 = vmatprep.subr.bf16.mxu0 0
          %2467 = vmatpush2.bf16.xpose.msra.mxu0 0
          %2468 = vmatprep.subr.bf16.mxu0 0
          %2469 = vmatpush2.bf16.xpose.msra.mxu0 0
          %2470 = vmatprep.subr.bf16.mxu0 0
          %2471 = vmatpush2.bf16.xpose.msra.mxu0 0
          %2472 = vmatprep.subr.bf16.mxu0 0
          %2473 = vmatpush2.bf16.xpose.msra.mxu0 0
          %2474 = vmatprep.subr.bf16.mxu0 0
          %2475 = vmatpush2.bf16.xpose.msra.mxu0 0
          %2476 = vmatprep.subr.bf16.mxu0 0
          %2477 = vmatpush2.bf16.xpose.msra.mxu0 0
          %2478 = vmatprep.subr.bf16.mxu0 0
          %2479 = vmatpush2.bf16.xpose.msra.mxu0 %v2446
          %2480 = vmatprep.mubr.bf16.mxu0 0
          %2481 = vmatmul.mubr.bf16.gmra.mxu0 %v2395
          %v2482 = vpop.f32.mrf.mxu0
          %v2483 = vadd.f32 %v966, %v2482
          %v2484 = vpop.f32.mrf.mxu0
          %v2485 = vadd.f32 %v967, %v2484
          %v2486 = vpop.f32.mrf.mxu0
          %v2487 = vadd.f32 %v968, %v2486
          %v2488 = vpop.f32.mrf.mxu0
          %v2489 = vadd.f32 %v969, %v2488
          %2490 = vmatprep.mubr.bf16.mxu0 0
          %2491 = vmatmul.mubr.bf16.gmra.mxu0 %v2398
          %v2492 = vpop.f32.mrf.mxu0
          %v2493 = vadd.f32 %v970, %v2492
          %v2494 = vpop.f32.mrf.mxu0
          %v2495 = vadd.f32 %v971, %v2494
          %v2496 = vpop.f32.mrf.mxu0
          %v2497 = vadd.f32 %v972, %v2496
          %v2498 = vpop.f32.mrf.mxu0
          %v2499 = vadd.f32 %v973, %v2498
          %2500 = vmatprep.mubr.bf16.mxu0 0
          %2501 = vmatmul.mubr.bf16.gmra.mxu0 %v2401
          %v2502 = vpop.f32.mrf.mxu0
          %v2503 = vadd.f32 %v974, %v2502
          %v2504 = vpop.f32.mrf.mxu0
          %v2505 = vadd.f32 %v975, %v2504
          %v2506 = vpop.f32.mrf.mxu0
          %v2507 = vadd.f32 %v976, %v2506
          %v2508 = vpop.f32.mrf.mxu0
          %v2509 = vadd.f32 %v977, %v2508
          %2510 = vmatprep.mubr.bf16.mxu0 0
          %2511 = vmatmul.mubr.bf16.gmra.mxu0 %v2404
          %v2512 = vpop.f32.mrf.mxu0
          %v2513 = vadd.f32 %v978, %v2512
          %v2514 = vpop.f32.mrf.mxu0
          %v2515 = vadd.f32 %v979, %v2514
          %v2516 = vpop.f32.mrf.mxu0
          %v2517 = vadd.f32 %v980, %v2516
          %v2518 = vpop.f32.mrf.mxu0
          %v2519 = vadd.f32 %v981, %v2518
          %2520 = vmatprep.mubr.bf16.mxu0 0
          %2521 = vmatmul.mubr.bf16.gmra.mxu0 %v2407
          %v2522 = vpop.f32.mrf.mxu0
          %v2523 = vadd.f32 %v982, %v2522
          %v2524 = vpop.f32.mrf.mxu0
          %v2525 = vadd.f32 %v983, %v2524
          %v2526 = vpop.f32.mrf.mxu0
          %v2527 = vadd.f32 %v984, %v2526
          %v2528 = vpop.f32.mrf.mxu0
          %v2529 = vadd.f32 %v985, %v2528
          %2530 = vmatprep.mubr.bf16.mxu0 0
          %2531 = vmatmul.mubr.bf16.gmra.mxu0 %v2410
          %v2532 = vpop.f32.mrf.mxu0
          %v2533 = vadd.f32 %v986, %v2532
          %v2534 = vpop.f32.mrf.mxu0
          %v2535 = vadd.f32 %v987, %v2534
          %v2536 = vpop.f32.mrf.mxu0
          %v2537 = vadd.f32 %v988, %v2536
          %v2538 = vpop.f32.mrf.mxu0
          %v2539 = vadd.f32 %v989, %v2538
          %2540 = vmatprep.mubr.bf16.mxu0 0
          %2541 = vmatmul.mubr.bf16.gmra.mxu0 %v2413
          %v2542 = vpop.f32.mrf.mxu0
          %v2543 = vadd.f32 %v990, %v2542
          %v2544 = vpop.f32.mrf.mxu0
          %v2545 = vadd.f32 %v991, %v2544
          %v2546 = vpop.f32.mrf.mxu0
          %v2547 = vadd.f32 %v992, %v2546
          %v2548 = vpop.f32.mrf.mxu0
          %v2549 = vadd.f32 %v993, %v2548
          %2550 = vmatprep.mubr.bf16.mxu0 0
          %2551 = vmatmul.mubr.bf16.gmra.mxu0 %v2416
          %v2552 = vpop.f32.mrf.mxu0
          %v2553 = vadd.f32 %v994, %v2552
          %v2554 = vpop.f32.mrf.mxu0
          %v2555 = vadd.f32 %v995, %v2554
          %v2556 = vpop.f32.mrf.mxu0
          %v2557 = vadd.f32 %v996, %v2556
          %v2558 = vpop.f32.mrf.mxu0
          %v2559 = vadd.f32 %v997, %v2558
          %2560 = vmatprep.mubr.bf16.mxu0 0
          %2561 = vmatmul.mubr.bf16.gmra.mxu0 %v2419
          %v2562 = vpop.f32.mrf.mxu0
          %v2563 = vadd.f32 %v998, %v2562
          %v2564 = vpop.f32.mrf.mxu0
          %v2565 = vadd.f32 %v999, %v2564
          %v2566 = vpop.f32.mrf.mxu0
          %v2567 = vpop.f32.mrf.mxu0
          %2568 = vdwg.mxu0
          %v2569 = vsel %vm1880, %v2485, -inf
          %v2570 = vmax.f32 %v2483, %v2569
          %2571 = vmax.xlane.f32.xlu0 %v2570
          %v2572 = vpop.xlane.xlu0 %2571
          %v2573 = vsel %vm1880, %v2489, -inf
          %v2574 = vmax.f32 %v2487, %v2573
          %2575 = vmax.xlane.f32.xlu0 %v2574
          %v2576 = vpop.xlane.xlu0 %2575
          %v2577 = vsel %vm1880, %v2495, -inf
          %v2578 = vmax.f32 %v2493, %v2577
          %2579 = vmax.xlane.f32.xlu0 %v2578
          %v2580 = vpop.xlane.xlu0 %2579
          %v2581 = vsel %vm1880, %v2499, -inf
          %v2582 = vmax.f32 %v2497, %v2581
          %2583 = vmax.xlane.f32.xlu0 %v2582
          %v2584 = vpop.xlane.xlu0 %2583
          %v2585 = vsel %vm1880, %v2505, -inf
          %v2586 = vmax.f32 %v2503, %v2585
          %2587 = vmax.xlane.f32.xlu0 %v2586
          %v2588 = vpop.xlane.xlu0 %2587
          %v2589 = vsel %vm1880, %v2509, -inf
          %v2590 = vmax.f32 %v2507, %v2589
          %2591 = vmax.xlane.f32.xlu0 %v2590
          %v2592 = vpop.xlane.xlu0 %2591
          %v2593 = vsel %vm1880, %v2515, -inf
          %v2594 = vmax.f32 %v2513, %v2593
          %2595 = vmax.xlane.f32.xlu0 %v2594
          %v2596 = vpop.xlane.xlu0 %2595
          %v2597 = vsel %vm1880, %v2519, -inf
          %v2598 = vmax.f32 %v2517, %v2597
          %2599 = vmax.xlane.f32.xlu0 %v2598
          %v2600 = vpop.xlane.xlu0 %2599
          %v2601 = vsel %vm1880, %v2525, -inf
          %v2602 = vmax.f32 %v2523, %v2601
          %2603 = vmax.xlane.f32.xlu0 %v2602
          %v2604 = vpop.xlane.xlu0 %2603
          %v2605 = vsel %vm1880, %v2529, -inf
          %v2606 = vmax.f32 %v2527, %v2605
          %2607 = vmax.xlane.f32.xlu0 %v2606
          %v2608 = vpop.xlane.xlu0 %2607
          %v2609 = vsel %vm1880, %v2535, -inf
          %v2610 = vmax.f32 %v2533, %v2609
          %2611 = vmax.xlane.f32.xlu0 %v2610
          %v2612 = vpop.xlane.xlu0 %2611
          %v2613 = vsel %vm1880, %v2539, -inf
          %v2614 = vmax.f32 %v2537, %v2613
          %2615 = vmax.xlane.f32.xlu0 %v2614
          %v2616 = vpop.xlane.xlu0 %2615
          %v2617 = vsel %vm1880, %v2545, -inf
          %v2618 = vmax.f32 %v2543, %v2617
          %2619 = vmax.xlane.f32.xlu0 %v2618
          %v2620 = vpop.xlane.xlu0 %2619
          %v2621 = vsel %vm1880, %v2549, -inf
          %v2622 = vmax.f32 %v2547, %v2621
          %2623 = vmax.xlane.f32.xlu0 %v2622
          %v2624 = vpop.xlane.xlu0 %2623
          %v2625 = vsel %vm1880, %v2555, -inf
          %v2626 = vmax.f32 %v2553, %v2625
          %2627 = vmax.xlane.f32.xlu0 %v2626
          %v2628 = vpop.xlane.xlu0 %2627
          %v2629 = vsel %vm1880, %v2559, -inf
          %v2630 = vmax.f32 %v2557, %v2629
          %2631 = vmax.xlane.f32.xlu0 %v2630
          %v2632 = vpop.xlane.xlu0 %2631
          %v2633 = vsel %vm1880, %v2565, -inf
          %v2634 = vmax.f32 %v2563, %v2633
          %2635 = vmax.xlane.f32.xlu0 %v2634
          %v2636 = vpop.xlane.xlu0 %2635
          %v2637 = vsub.f32 %v2483, %v2572
          %v2638 = vsub.f32 %v2485, %v2572
          %v2639 = vsub.f32 %v2487, %v2576
          %v2640 = vsub.f32 %v2489, %v2576
          %v2641 = vsub.f32 %v2493, %v2580
          %v2642 = vsub.f32 %v2495, %v2580
          %v2643 = vsub.f32 %v2497, %v2584
          %v2644 = vsub.f32 %v2499, %v2584
          %v2645 = vsub.f32 %v2503, %v2588
          %v2646 = vsub.f32 %v2505, %v2588
          %v2647 = vsub.f32 %v2507, %v2592
          %v2648 = vsub.f32 %v2509, %v2592
          %v2649 = vsub.f32 %v2513, %v2596
          %v2650 = vsub.f32 %v2515, %v2596
          %v2651 = vsub.f32 %v2517, %v2600
          %v2652 = vsub.f32 %v2519, %v2600
          %v2653 = vsub.f32 %v2523, %v2604
          %v2654 = vsub.f32 %v2525, %v2604
          %v2655 = vsub.f32 %v2527, %v2608
          %v2656 = vsub.f32 %v2529, %v2608
          %v2657 = vsub.f32 %v2533, %v2612
          %v2658 = vsub.f32 %v2535, %v2612
          %v2659 = vsub.f32 %v2537, %v2616
          %v2660 = vsub.f32 %v2539, %v2616
          %v2661 = vsub.f32 %v2543, %v2620
          %v2662 = vsub.f32 %v2545, %v2620
          %v2663 = vsub.f32 %v2547, %v2624
          %v2664 = vsub.f32 %v2549, %v2624
          %v2665 = vsub.f32 %v2553, %v2628
          %v2666 = vsub.f32 %v2555, %v2628
          %v2667 = vsub.f32 %v2557, %v2632
          %v2668 = vsub.f32 %v2559, %v2632
          %v2669 = vsub.f32 %v2563, %v2636
          %v2670 = vsub.f32 %v2565, %v2636
          %v2671 = vmul.f32 %v2637, 1.442695
          %v2672 = vpow.pop %v2671
          %v2673 = vmul.f32 %v2638, 1.442695
          %v2674 = vpow.pop %v2673
          %v2675 = vmul.f32 %v2639, 1.442695
          %v2676 = vpow.pop %v2675
          %v2677 = vmul.f32 %v2640, 1.442695
          %v2678 = vpow.pop %v2677
          %v2679 = vmul.f32 %v2641, 1.442695
          %v2680 = vpow.pop %v2679
          %v2681 = vmul.f32 %v2642, 1.442695
          %v2682 = vpow.pop %v2681
          %v2683 = vmul.f32 %v2643, 1.442695
          %v2684 = vpow.pop %v2683
          %v2685 = vmul.f32 %v2644, 1.442695
          %v2686 = vpow.pop %v2685
          %v2687 = vmul.f32 %v2645, 1.442695
          %v2688 = vpow.pop %v2687
          %v2689 = vmul.f32 %v2646, 1.442695
          %v2690 = vpow.pop %v2689
          %v2691 = vmul.f32 %v2647, 1.442695
          %v2692 = vpow.pop %v2691
          %v2693 = vmul.f32 %v2648, 1.442695
          %v2694 = vpow.pop %v2693
          %v2695 = vmul.f32 %v2649, 1.442695
          %v2696 = vpow.pop %v2695
          %v2697 = vmul.f32 %v2650, 1.442695
          %v2698 = vpow.pop %v2697
          %v2699 = vmul.f32 %v2651, 1.442695
          %v2700 = vpow.pop %v2699
          %v2701 = vmul.f32 %v2652, 1.442695
          %v2702 = vpow.pop %v2701
          %v2703 = vmul.f32 %v2653, 1.442695
          %v2704 = vpow.pop %v2703
          %v2705 = vmul.f32 %v2654, 1.442695
          %v2706 = vpow.pop %v2705
          %v2707 = vmul.f32 %v2655, 1.442695
          %v2708 = vpow.pop %v2707
          %v2709 = vmul.f32 %v2656, 1.442695
          %v2710 = vpow.pop %v2709
          %v2711 = vmul.f32 %v2657, 1.442695
          %v2712 = vpow.pop %v2711
          %v2713 = vmul.f32 %v2658, 1.442695
          %v2714 = vpow.pop %v2713
          %v2715 = vmul.f32 %v2659, 1.442695
          %v2716 = vpow.pop %v2715
          %v2717 = vmul.f32 %v2660, 1.442695
          %v2718 = vpow.pop %v2717
          %v2719 = vmul.f32 %v2661, 1.442695
          %v2720 = vpow.pop %v2719
          %v2721 = vmul.f32 %v2662, 1.442695
          %v2722 = vpow.pop %v2721
          %v2723 = vmul.f32 %v2663, 1.442695
          %v2724 = vpow.pop %v2723
          %v2725 = vmul.f32 %v2664, 1.442695
          %v2726 = vpow.pop %v2725
          %v2727 = vmul.f32 %v2665, 1.442695
          %v2728 = vpow.pop %v2727
          %v2729 = vmul.f32 %v2666, 1.442695
          %v2730 = vpow.pop %v2729
          %v2731 = vmul.f32 %v2667, 1.442695
          %v2732 = vpow.pop %v2731
          %v2733 = vmul.f32 %v2668, 1.442695
          %v2734 = vpow.pop %v2733
          %v2735 = vmul.f32 %v2669, 1.442695
          %v2736 = vpow.pop %v2735
          %v2737 = vmul.f32 %v2670, 1.442695
          %v2738 = vpow.pop %v2737
          %v2739 = vsel %vm1880, %v2674, 0.0
          %v2740 = vadd.f32 %v2672, %v2739
          %2741 = vadd.xlane.f32.xlu0 %v2740
          %v2742 = vpop.xlane.xlu0 %2741
          %v2743 = vsel %vm1880, %v2678, 0.0
          %v2744 = vadd.f32 %v2676, %v2743
          %2745 = vadd.xlane.f32.xlu0 %v2744
          %v2746 = vpop.xlane.xlu0 %2745
          %v2747 = vsel %vm1880, %v2682, 0.0
          %v2748 = vadd.f32 %v2680, %v2747
          %2749 = vadd.xlane.f32.xlu0 %v2748
          %v2750 = vpop.xlane.xlu0 %2749
          %v2751 = vsel %vm1880, %v2686, 0.0
          %v2752 = vadd.f32 %v2684, %v2751
          %2753 = vadd.xlane.f32.xlu0 %v2752
          %v2754 = vpop.xlane.xlu0 %2753
          %v2755 = vsel %vm1880, %v2690, 0.0
          %v2756 = vadd.f32 %v2688, %v2755
          %2757 = vadd.xlane.f32.xlu0 %v2756
          %v2758 = vpop.xlane.xlu0 %2757
          %v2759 = vsel %vm1880, %v2694, 0.0
          %v2760 = vadd.f32 %v2692, %v2759
          %2761 = vadd.xlane.f32.xlu0 %v2760
          %v2762 = vpop.xlane.xlu0 %2761
          %v2763 = vsel %vm1880, %v2698, 0.0
          %v2764 = vadd.f32 %v2696, %v2763
          %2765 = vadd.xlane.f32.xlu0 %v2764
          %v2766 = vpop.xlane.xlu0 %2765
          %v2767 = vsel %vm1880, %v2702, 0.0
          %v2768 = vadd.f32 %v2700, %v2767
          %2769 = vadd.xlane.f32.xlu0 %v2768
          %v2770 = vpop.xlane.xlu0 %2769
          %v2771 = vsel %vm1880, %v2706, 0.0
          %v2772 = vadd.f32 %v2704, %v2771
          %2773 = vadd.xlane.f32.xlu0 %v2772
          %v2774 = vpop.xlane.xlu0 %2773
          %v2775 = vsel %vm1880, %v2710, 0.0
          %v2776 = vadd.f32 %v2708, %v2775
          %2777 = vadd.xlane.f32.xlu0 %v2776
          %v2778 = vpop.xlane.xlu0 %2777
          %v2779 = vsel %vm1880, %v2714, 0.0
          %v2780 = vadd.f32 %v2712, %v2779
          %2781 = vadd.xlane.f32.xlu0 %v2780
          %v2782 = vpop.xlane.xlu0 %2781
          %v2783 = vsel %vm1880, %v2718, 0.0
          %v2784 = vadd.f32 %v2716, %v2783
          %2785 = vadd.xlane.f32.xlu0 %v2784
          %v2786 = vpop.xlane.xlu0 %2785
          %v2787 = vsel %vm1880, %v2722, 0.0
          %v2788 = vadd.f32 %v2720, %v2787
          %2789 = vadd.xlane.f32.xlu0 %v2788
          %v2790 = vpop.xlane.xlu0 %2789
          %v2791 = vsel %vm1880, %v2726, 0.0
          %v2792 = vadd.f32 %v2724, %v2791
          %2793 = vadd.xlane.f32.xlu0 %v2792
          %v2794 = vpop.xlane.xlu0 %2793
          %v2795 = vsel %vm1880, %v2730, 0.0
          %v2796 = vadd.f32 %v2728, %v2795
          %2797 = vadd.xlane.f32.xlu0 %v2796
          %v2798 = vpop.xlane.xlu0 %2797
          %v2799 = vsel %vm1880, %v2734, 0.0
          %v2800 = vadd.f32 %v2732, %v2799
          %2801 = vadd.xlane.f32.xlu0 %v2800
          %v2802 = vpop.xlane.xlu0 %2801
          %v2803 = vsel %vm1880, %v2738, 0.0
          %v2804 = vadd.f32 %v2736, %v2803
          %2805 = vadd.xlane.f32.xlu0 %v2804
          %v2806 = vpop.xlane.xlu0 %2805
          %v2807 = vrcp.pop %v2742
          %v2808 = vrcp.pop %v2746
          %v2809 = vrcp.pop %v2750
          %v2810 = vrcp.pop %v2754
          %v2811 = vrcp.pop %v2758
          %v2812 = vrcp.pop %v2762
          %v2813 = vrcp.pop %v2766
          %v2814 = vrcp.pop %v2770
          %v2815 = vrcp.pop %v2774
          %v2816 = vrcp.pop %v2778
          %v2817 = vrcp.pop %v2782
          %v2818 = vrcp.pop %v2786
          %v2819 = vrcp.pop %v2790
          %v2820 = vrcp.pop %v2794
          %v2821 = vrcp.pop %v2798
          %v2822 = vrcp.pop %v2802
          %v2823 = vrcp.pop %v2806
          %v2824 = vmul.f32 %v2672, %v2807
          %v2825 = vmul.f32 %v2674, %v2807
          %v2826 = vmul.f32 %v2676, %v2808
          %v2827 = vmul.f32 %v2678, %v2808
          %v2828 = vmul.f32 %v2680, %v2809
          %v2829 = vmul.f32 %v2682, %v2809
          %v2830 = vmul.f32 %v2684, %v2810
          %v2831 = vmul.f32 %v2686, %v2810
          %v2832 = vmul.f32 %v2688, %v2811
          %v2833 = vmul.f32 %v2690, %v2811
          %v2834 = vmul.f32 %v2692, %v2812
          %v2835 = vmul.f32 %v2694, %v2812
          %v2836 = vmul.f32 %v2696, %v2813
          %v2837 = vmul.f32 %v2698, %v2813
          %v2838 = vmul.f32 %v2700, %v2814
          %v2839 = vmul.f32 %v2702, %v2814
          %v2840 = vmul.f32 %v2704, %v2815
          %v2841 = vmul.f32 %v2706, %v2815
          %v2842 = vmul.f32 %v2708, %v2816
          %v2843 = vmul.f32 %v2710, %v2816
          %v2844 = vmul.f32 %v2712, %v2817
          %v2845 = vmul.f32 %v2714, %v2817
          %v2846 = vmul.f32 %v2716, %v2818
          %v2847 = vmul.f32 %v2718, %v2818
          %v2848 = vmul.f32 %v2720, %v2819
          %v2849 = vmul.f32 %v2722, %v2819
          %v2850 = vmul.f32 %v2724, %v2820
          %v2851 = vmul.f32 %v2726, %v2820
          %v2852 = vmul.f32 %v2728, %v2821
          %v2853 = vmul.f32 %v2730, %v2821
          %v2854 = vmul.f32 %v2732, %v2822
          %v2855 = vmul.f32 %v2734, %v2822
          %v2856 = vmul.f32 %v2736, %v2823
          %v2857 = vmul.f32 %v2738, %v2823
          %v2858 = vpack.c.bf16 %v2826, %v2824
          %v2859 = vpack.c.bf16 %v2827, %v2825
          %v2860 = vpack.c.bf16 %v2830, %v2828
          %v2861 = vpack.c.bf16 %v2831, %v2829
          %v2862 = vpack.c.bf16 %v2834, %v2832
          %v2863 = vpack.c.bf16 %v2835, %v2833
          %v2864 = vpack.c.bf16 %v2838, %v2836
          %v2865 = vpack.c.bf16 %v2839, %v2837
          %v2866 = vpack.c.bf16 %v2842, %v2840
          %v2867 = vpack.c.bf16 %v2843, %v2841
          %v2868 = vpack.c.bf16 %v2846, %v2844
          %v2869 = vpack.c.bf16 %v2847, %v2845
          %v2870 = vpack.c.bf16 %v2850, %v2848
          %v2871 = vpack.c.bf16 %v2851, %v2849
          %v2872 = vpack.c.bf16 %v2854, %v2852
          %v2873 = vpack.c.bf16 %v2855, %v2853
          %v2874 = vpack.c.bf16 %v2856, %v2856
          %v2875 = vpack.c.bf16 %v2857, %v2857
          %2885 = vrot.lane.b32.xlu0 %v1679, 96
          %v2886 = vpop.permute.xlu0 %2885
          %2887 = vrot.lane.b32.xlu0 %v1682, 96
          %v2888 = vpop.permute.xlu0 %2887
          %2889 = vrot.lane.b32.xlu0 %v1685, 96
          %v2890 = vpop.permute.xlu0 %2889
          %2891 = vrot.lane.b32.xlu0 %v1688, 96
          %v2892 = vpop.permute.xlu0 %2891
          %2893 = vrot.lane.b32.xlu0 %v1691, 96
          %v2894 = vpop.permute.xlu0 %2893
          %2895 = vrot.lane.b32.xlu0 %v1694, 96
          %v2896 = vpop.permute.xlu0 %2895
          %2897 = vrot.lane.b32.xlu0 %v1697, 96
          %v2898 = vpop.permute.xlu0 %2897
          %2899 = vrot.lane.b32.xlu0 %v1700, 96
          %v2900 = vpop.permute.xlu0 %2899
          %2901 = vrot.lane.b32.xlu0 %v1703, 96
          %v2902 = vpop.permute.xlu0 %2901
          %v2912 = vsel %vm1880, %v2859, 0
          %v2915 = vsel %vm1880, %v2861, 0
          %v2918 = vsel %vm1880, %v2863, 0
          %v2921 = vsel %vm1880, %v2865, 0
          %v2924 = vsel %vm1880, %v2867, 0
          %v2927 = vsel %vm1880, %v2869, 0
          %v2930 = vsel %vm1880, %v2871, 0
          %v2933 = vsel %vm1880, %v2873, 0
          %v2936 = vsel %vm1880, %v2875, 0
          %v2939 = vsel %vm2215, %v2902, 0
          %2941 = vmatprep.subr.bf16.mxu0 0
          %2942 = vmatpush1.bf16.msra.mxu0 %v2900
          %2943 = vmatprep.subr.bf16.mxu0 0
          %2944 = vmatpush1.bf16.msra.mxu0 %v2898
          %2945 = vmatprep.subr.bf16.mxu0 0
          %2946 = vmatpush1.bf16.msra.mxu0 %v2896
          %2947 = vmatprep.subr.bf16.mxu0 0
          %2948 = vmatpush1.bf16.msra.mxu0 %v2894
          %2949 = vmatprep.subr.bf16.mxu0 0
          %2950 = vmatpush1.bf16.msra.mxu0 %v2892
          %2951 = vmatprep.subr.bf16.mxu0 0
          %2952 = vmatpush1.bf16.msra.mxu0 %v2890
          %2953 = vmatprep.subr.bf16.mxu0 0
          %2954 = vmatpush1.bf16.msra.mxu0 %v2888
          %2955 = vmatprep.subr.bf16.mxu0 0
          %2956 = vmatpush1.bf16.msra.mxu0 %v2886
          %2957 = vmatprep.subr.bf16.mxu0 0
          %2958 = vmatpush2.bf16.msra.mxu0 0
          %2959 = vmatprep.subr.bf16.mxu0 0
          %2960 = vmatpush2.bf16.msra.mxu0 0
          %2961 = vmatprep.subr.bf16.mxu0 0
          %2962 = vmatpush2.bf16.msra.mxu0 0
          %2963 = vmatprep.subr.bf16.mxu0 0
          %2964 = vmatpush2.bf16.msra.mxu0 0
          %2965 = vmatprep.subr.bf16.mxu0 0
          %2966 = vmatpush2.bf16.msra.mxu0 0
          %2967 = vmatprep.subr.bf16.mxu0 0
          %2968 = vmatpush2.bf16.msra.mxu0 0
          %2969 = vmatprep.subr.bf16.mxu0 0
          %2970 = vmatpush2.bf16.msra.mxu0 0
          %2971 = vmatprep.subr.bf16.mxu0 0
          %2972 = vmatpush2.bf16.msra.mxu0 %v2939
          %2973 = vmatprep.mubr.bf16.mxu0 %v2912
          %2974 = vmatmul.mubr.bf16.gmra.mxu0 %v2858
          %v2975 = vpop.f32.mrf.mxu0
          %v2976 = vadd.f32 0.0, %v2975
          %v2977 = vpop.f32.mrf.mxu0
          %v2978 = vpop.f32.mrf.mxu0
          %v2979 = vadd.f32 0.0, %v2978
          %v2980 = vpop.f32.mrf.mxu0
          %2981 = vmatprep.mubr.bf16.mxu0 %v2915
          %2982 = vmatmul.mubr.bf16.gmra.mxu0 %v2860
          %v2983 = vpop.f32.mrf.mxu0
          %v2984 = vadd.f32 0.0, %v2983
          %v2985 = vpop.f32.mrf.mxu0
          %v2986 = vpop.f32.mrf.mxu0
          %v2987 = vadd.f32 0.0, %v2986
          %v2988 = vpop.f32.mrf.mxu0
          %2989 = vmatprep.mubr.bf16.mxu0 %v2918
          %2990 = vmatmul.mubr.bf16.gmra.mxu0 %v2862
          %v2991 = vpop.f32.mrf.mxu0
          %v2992 = vadd.f32 0.0, %v2991
          %v2993 = vpop.f32.mrf.mxu0
          %v2994 = vpop.f32.mrf.mxu0
          %v2995 = vadd.f32 0.0, %v2994
          %v2996 = vpop.f32.mrf.mxu0
          %2997 = vmatprep.mubr.bf16.mxu0 %v2921
          %2998 = vmatmul.mubr.bf16.gmra.mxu0 %v2864
          %v2999 = vpop.f32.mrf.mxu0
          %v3000 = vadd.f32 0.0, %v2999
          %v3001 = vpop.f32.mrf.mxu0
          %v3002 = vpop.f32.mrf.mxu0
          %v3003 = vadd.f32 0.0, %v3002
          %v3004 = vpop.f32.mrf.mxu0
          %3005 = vmatprep.mubr.bf16.mxu0 %v2924
          %3006 = vmatmul.mubr.bf16.gmra.mxu0 %v2866
          %v3007 = vpop.f32.mrf.mxu0
          %v3008 = vadd.f32 0.0, %v3007
          %v3009 = vpop.f32.mrf.mxu0
          %v3010 = vpop.f32.mrf.mxu0
          %v3011 = vadd.f32 0.0, %v3010
          %v3012 = vpop.f32.mrf.mxu0
          %3013 = vmatprep.mubr.bf16.mxu0 %v2927
          %3014 = vmatmul.mubr.bf16.gmra.mxu0 %v2868
          %v3015 = vpop.f32.mrf.mxu0
          %v3016 = vadd.f32 0.0, %v3015
          %v3017 = vpop.f32.mrf.mxu0
          %v3018 = vpop.f32.mrf.mxu0
          %v3019 = vadd.f32 0.0, %v3018
          %v3020 = vpop.f32.mrf.mxu0
          %3021 = vmatprep.mubr.bf16.mxu0 %v2930
          %3022 = vmatmul.mubr.bf16.gmra.mxu0 %v2870
          %v3023 = vpop.f32.mrf.mxu0
          %v3024 = vadd.f32 0.0, %v3023
          %v3025 = vpop.f32.mrf.mxu0
          %v3026 = vpop.f32.mrf.mxu0
          %v3027 = vadd.f32 0.0, %v3026
          %v3028 = vpop.f32.mrf.mxu0
          %3029 = vmatprep.mubr.bf16.mxu0 %v2933
          %3030 = vmatmul.mubr.bf16.gmra.mxu0 %v2872
          %v3031 = vpop.f32.mrf.mxu0
          %v3032 = vadd.f32 0.0, %v3031
          %v3033 = vpop.f32.mrf.mxu0
          %v3034 = vpop.f32.mrf.mxu0
          %v3035 = vadd.f32 0.0, %v3034
          %v3036 = vpop.f32.mrf.mxu0
          %3037 = vmatprep.mubr.bf16.mxu0 %v2936
          %3038 = vmatmul.mubr.bf16.gmra.mxu0 %v2874
          %v3039 = vpop.f32.mrf.mxu0
          %v3040 = vadd.f32 0.0, %v3039
          %v3041 = vpop.f32.mrf.mxu0
          %v3042 = vpop.f32.mrf.mxu0
          %v3043 = vpop.f32.mrf.mxu0
          %3044 = vdwg.mxu0
          %3062 = vrot.lane.b32.xlu0 %v2976, 32
          %v3063 = vpop.permute.xlu0 %3062
          %3064 = vrot.lane.b32.xlu0 %v2979, 32
          %v3065 = vpop.permute.xlu0 %3064
          %3066 = vrot.lane.b32.xlu0 %v2984, 32
          %v3067 = vpop.permute.xlu0 %3066
          %3068 = vrot.lane.b32.xlu0 %v2987, 32
          %v3069 = vpop.permute.xlu0 %3068
          %3070 = vrot.lane.b32.xlu0 %v2992, 32
          %v3071 = vpop.permute.xlu0 %3070
          %3072 = vrot.lane.b32.xlu0 %v2995, 32
          %v3073 = vpop.permute.xlu0 %3072
          %3074 = vrot.lane.b32.xlu0 %v3000, 32
          %v3075 = vpop.permute.xlu0 %3074
          %3076 = vrot.lane.b32.xlu0 %v3003, 32
          %v3077 = vpop.permute.xlu0 %3076
          %3078 = vrot.lane.b32.xlu0 %v3008, 32
          %v3079 = vpop.permute.xlu0 %3078
          %3080 = vrot.lane.b32.xlu0 %v3011, 32
          %v3081 = vpop.permute.xlu0 %3080
          %3082 = vrot.lane.b32.xlu0 %v3016, 32
          %v3083 = vpop.permute.xlu0 %3082
          %3084 = vrot.lane.b32.xlu0 %v3019, 32
          %v3085 = vpop.permute.xlu0 %3084
          %3086 = vrot.lane.b32.xlu0 %v3024, 32
          %v3087 = vpop.permute.xlu0 %3086
          %3088 = vrot.lane.b32.xlu0 %v3027, 32
          %v3089 = vpop.permute.xlu0 %3088
          %3090 = vrot.lane.b32.xlu0 %v3032, 32
          %v3091 = vpop.permute.xlu0 %3090
          %3092 = vrot.lane.b32.xlu0 %v3035, 32
          %v3093 = vpop.permute.xlu0 %3092
          %3094 = vrot.lane.b32.xlu0 %v3040, 32
          %v3095 = vpop.permute.xlu0 %3094
          %vm3113 = vcmask 523520
          %3114 = vst.msk [vmem:[#allocation2] sm:$0xff] %vm3113, %v3063
          %3115 = vst.msk [vmem:[#allocation2 + $0x8] sm:$0xff] %vm3113, %v3065
          %3116 = vst.msk [vmem:[#allocation2 + $0x10] sm:$0xff] %vm3113, %v3067
          %3117 = vst.msk [vmem:[#allocation2 + $0x18] sm:$0xff] %vm3113, %v3069
          %3118 = vst.msk [vmem:[#allocation2 + $0x20] sm:$0xff] %vm3113, %v3071
          %3119 = vst.msk [vmem:[#allocation2 + $0x28] sm:$0xff] %vm3113, %v3073
          %3120 = vst.msk [vmem:[#allocation2 + $0x30] sm:$0xff] %vm3113, %v3075
          %3121 = vst.msk [vmem:[#allocation2 + $0x38] sm:$0xff] %vm3113, %v3077
          %3122 = vst.msk [vmem:[#allocation2 + $0x40] sm:$0xff] %vm3113, %v3079
          %3123 = vst.msk [vmem:[#allocation2 + $0x48] sm:$0xff] %vm3113, %v3081
          %3124 = vst.msk [vmem:[#allocation2 + $0x50] sm:$0xff] %vm3113, %v3083
          %3125 = vst.msk [vmem:[#allocation2 + $0x58] sm:$0xff] %vm3113, %v3085
          %3126 = vst.msk [vmem:[#allocation2 + $0x60] sm:$0xff] %vm3113, %v3087
          %3127 = vst.msk [vmem:[#allocation2 + $0x68] sm:$0xff] %vm3113, %v3089
          %3128 = vst.msk [vmem:[#allocation2 + $0x70] sm:$0xff] %vm3113, %v3091
          %3129 = vst.msk [vmem:[#allocation2 + $0x78] sm:$0xff] %vm3113, %v3093
          %3130 = vst.msk [vmem:[#allocation2 + $0x80] sm:$0xff] %vm3113, %v3095
          %3131 = vrot.lane.b32.xlu0 %v1677, 64
          %v3132 = vpop.permute.xlu0 %3131
          %3133 = vrot.lane.b32.xlu0 %v1680, 64
          %v3134 = vpop.permute.xlu0 %3133
          %3135 = vrot.lane.b32.xlu0 %v1683, 64
          %v3136 = vpop.permute.xlu0 %3135
          %3137 = vrot.lane.b32.xlu0 %v1686, 64
          %v3138 = vpop.permute.xlu0 %3137
          %3139 = vrot.lane.b32.xlu0 %v1689, 64
          %v3140 = vpop.permute.xlu0 %3139
          %3141 = vrot.lane.b32.xlu0 %v1692, 64
          %v3142 = vpop.permute.xlu0 %3141
          %3143 = vrot.lane.b32.xlu0 %v1695, 64
          %v3144 = vpop.permute.xlu0 %3143
          %3145 = vrot.lane.b32.xlu0 %v1698, 64
          %v3146 = vpop.permute.xlu0 %3145
          %3147 = vrot.lane.b32.xlu0 %v1701, 64
          %v3148 = vpop.permute.xlu0 %3147
          %3149 = vrot.lane.b32.xlu0 %v1678, 64
          %v3150 = vpop.permute.xlu0 %3149
          %3151 = vrot.lane.b32.xlu0 %v1681, 64
          %v3152 = vpop.permute.xlu0 %3151
          %3153 = vrot.lane.b32.xlu0 %v1684, 64
          %v3154 = vpop.permute.xlu0 %3153
          %3155 = vrot.lane.b32.xlu0 %v1687, 64
          %v3156 = vpop.permute.xlu0 %3155
          %3157 = vrot.lane.b32.xlu0 %v1690, 64
          %v3158 = vpop.permute.xlu0 %3157
          %3159 = vrot.lane.b32.xlu0 %v1693, 64
          %v3160 = vpop.permute.xlu0 %3159
          %3161 = vrot.lane.b32.xlu0 %v1696, 64
          %v3162 = vpop.permute.xlu0 %3161
          %3163 = vrot.lane.b32.xlu0 %v1699, 64
          %v3164 = vpop.permute.xlu0 %3163
          %3165 = vrot.lane.b32.xlu0 %v1702, 64
          %v3166 = vpop.permute.xlu0 %3165
          %v3168 = vsel %vm1704, %v3132, 0
          %v3171 = vsel %vm1704, %v3134, 0
          %v3174 = vsel %vm1704, %v3136, 0
          %v3177 = vsel %vm1704, %v3138, 0
          %v3180 = vsel %vm1704, %v3140, 0
          %v3183 = vsel %vm1704, %v3142, 0
          %v3186 = vsel %vm1704, %v3144, 0
          %v3189 = vsel %vm1704, %v3146, 0
          %v3192 = vsel %vm1704, %v3148, 0
          %v3195 = vsel %vm1704, %v3150, 0
          %v3198 = vsel %vm1704, %v3152, 0
          %v3201 = vsel %vm1704, %v3154, 0
          %v3204 = vsel %vm1704, %v3156, 0
          %v3207 = vsel %vm1704, %v3158, 0
          %v3210 = vsel %vm1704, %v3160, 0
          %v3213 = vsel %vm1704, %v3162, 0
          %v3216 = vsel %vm1704, %v3164, 0
          %v3219 = vsel %vm1704, %v3166, 0
          %3221 = vmatprep.subr.bf16.mxu0 0
          %3222 = vmatpush1.bf16.xpose.msra.mxu0 %v3216
          %3223 = vmatprep.subr.bf16.mxu0 0
          %3224 = vmatpush1.bf16.xpose.msra.mxu0 %v3213
          %3225 = vmatprep.subr.bf16.mxu0 0
          %3226 = vmatpush1.bf16.xpose.msra.mxu0 %v3210
          %3227 = vmatprep.subr.bf16.mxu0 0
          %3228 = vmatpush1.bf16.xpose.msra.mxu0 %v3207
          %3229 = vmatprep.subr.bf16.mxu0 0
          %3230 = vmatpush1.bf16.xpose.msra.mxu0 %v3204
          %3231 = vmatprep.subr.bf16.mxu0 0
          %3232 = vmatpush1.bf16.xpose.msra.mxu0 %v3201
          %3233 = vmatprep.subr.bf16.mxu0 0
          %3234 = vmatpush1.bf16.xpose.msra.mxu0 %v3198
          %3235 = vmatprep.subr.bf16.mxu0 0
          %3236 = vmatpush1.bf16.xpose.msra.mxu0 %v3195
          %3237 = vmatprep.subr.bf16.mxu0 0
          %3238 = vmatpush2.bf16.xpose.msra.mxu0 0
          %3239 = vmatprep.subr.bf16.mxu0 0
          %3240 = vmatpush2.bf16.xpose.msra.mxu0 0
          %3241 = vmatprep.subr.bf16.mxu0 0
          %3242 = vmatpush2.bf16.xpose.msra.mxu0 0
          %3243 = vmatprep.subr.bf16.mxu0 0
          %3244 = vmatpush2.bf16.xpose.msra.mxu0 0
          %3245 = vmatprep.subr.bf16.mxu0 0
          %3246 = vmatpush2.bf16.xpose.msra.mxu0 0
          %3247 = vmatprep.subr.bf16.mxu0 0
          %3248 = vmatpush2.bf16.xpose.msra.mxu0 0
          %3249 = vmatprep.subr.bf16.mxu0 0
          %3250 = vmatpush2.bf16.xpose.msra.mxu0 0
          %3251 = vmatprep.subr.bf16.mxu0 0
          %3252 = vmatpush2.bf16.xpose.msra.mxu0 %v3219
          %3253 = vmatprep.mubr.bf16.mxu0 0
          %3254 = vmatmul.mubr.bf16.gmra.mxu0 %v3168
          %v3255 = vpop.f32.mrf.mxu0
          %v3256 = vadd.f32 %v966, %v3255
          %v3257 = vpop.f32.mrf.mxu0
          %v3258 = vadd.f32 %v967, %v3257
          %v3259 = vpop.f32.mrf.mxu0
          %v3260 = vadd.f32 %v968, %v3259
          %v3261 = vpop.f32.mrf.mxu0
          %v3262 = vadd.f32 %v969, %v3261
          %3263 = vmatprep.mubr.bf16.mxu0 0
          %3264 = vmatmul.mubr.bf16.gmra.mxu0 %v3171
          %v3265 = vpop.f32.mrf.mxu0
          %v3266 = vadd.f32 %v970, %v3265
          %v3267 = vpop.f32.mrf.mxu0
          %v3268 = vadd.f32 %v971, %v3267
          %v3269 = vpop.f32.mrf.mxu0
          %v3270 = vadd.f32 %v972, %v3269
          %v3271 = vpop.f32.mrf.mxu0
          %v3272 = vadd.f32 %v973, %v3271
          %3273 = vmatprep.mubr.bf16.mxu0 0
          %3274 = vmatmul.mubr.bf16.gmra.mxu0 %v3174
          %v3275 = vpop.f32.mrf.mxu0
          %v3276 = vadd.f32 %v974, %v3275
          %v3277 = vpop.f32.mrf.mxu0
          %v3278 = vadd.f32 %v975, %v3277
          %v3279 = vpop.f32.mrf.mxu0
          %v3280 = vadd.f32 %v976, %v3279
          %v3281 = vpop.f32.mrf.mxu0
          %v3282 = vadd.f32 %v977, %v3281
          %3283 = vmatprep.mubr.bf16.mxu0 0
          %3284 = vmatmul.mubr.bf16.gmra.mxu0 %v3177
          %v3285 = vpop.f32.mrf.mxu0
          %v3286 = vadd.f32 %v978, %v3285
          %v3287 = vpop.f32.mrf.mxu0
          %v3288 = vadd.f32 %v979, %v3287
          %v3289 = vpop.f32.mrf.mxu0
          %v3290 = vadd.f32 %v980, %v3289
          %v3291 = vpop.f32.mrf.mxu0
          %v3292 = vadd.f32 %v981, %v3291
          %3293 = vmatprep.mubr.bf16.mxu0 0
          %3294 = vmatmul.mubr.bf16.gmra.mxu0 %v3180
          %v3295 = vpop.f32.mrf.mxu0
          %v3296 = vadd.f32 %v982, %v3295
          %v3297 = vpop.f32.mrf.mxu0
          %v3298 = vadd.f32 %v983, %v3297
          %v3299 = vpop.f32.mrf.mxu0
          %v3300 = vadd.f32 %v984, %v3299
          %v3301 = vpop.f32.mrf.mxu0
          %v3302 = vadd.f32 %v985, %v3301
          %3303 = vmatprep.mubr.bf16.mxu0 0
          %3304 = vmatmul.mubr.bf16.gmra.mxu0 %v3183
          %v3305 = vpop.f32.mrf.mxu0
          %v3306 = vadd.f32 %v986, %v3305
          %v3307 = vpop.f32.mrf.mxu0
          %v3308 = vadd.f32 %v987, %v3307
          %v3309 = vpop.f32.mrf.mxu0
          %v3310 = vadd.f32 %v988, %v3309
          %v3311 = vpop.f32.mrf.mxu0
          %v3312 = vadd.f32 %v989, %v3311
          %3313 = vmatprep.mubr.bf16.mxu0 0
          %3314 = vmatmul.mubr.bf16.gmra.mxu0 %v3186
          %v3315 = vpop.f32.mrf.mxu0
          %v3316 = vadd.f32 %v990, %v3315
          %v3317 = vpop.f32.mrf.mxu0
          %v3318 = vadd.f32 %v991, %v3317
          %v3319 = vpop.f32.mrf.mxu0
          %v3320 = vadd.f32 %v992, %v3319
          %v3321 = vpop.f32.mrf.mxu0
          %v3322 = vadd.f32 %v993, %v3321
          %3323 = vmatprep.mubr.bf16.mxu0 0
          %3324 = vmatmul.mubr.bf16.gmra.mxu0 %v3189
          %v3325 = vpop.f32.mrf.mxu0
          %v3326 = vadd.f32 %v994, %v3325
          %v3327 = vpop.f32.mrf.mxu0
          %v3328 = vadd.f32 %v995, %v3327
          %v3329 = vpop.f32.mrf.mxu0
          %v3330 = vadd.f32 %v996, %v3329
          %v3331 = vpop.f32.mrf.mxu0
          %v3332 = vadd.f32 %v997, %v3331
          %3333 = vmatprep.mubr.bf16.mxu0 0
          %3334 = vmatmul.mubr.bf16.gmra.mxu0 %v3192
          %v3335 = vpop.f32.mrf.mxu0
          %v3336 = vadd.f32 %v998, %v3335
          %v3337 = vpop.f32.mrf.mxu0
          %v3338 = vadd.f32 %v999, %v3337
          %v3339 = vpop.f32.mrf.mxu0
          %v3340 = vpop.f32.mrf.mxu0
          %3341 = vdwg.mxu0
          %v3342 = vsel %vm1880, %v3258, -inf
          %v3343 = vmax.f32 %v3256, %v3342
          %3344 = vmax.xlane.f32.xlu0 %v3343
          %v3345 = vpop.xlane.xlu0 %3344
          %v3346 = vsel %vm1880, %v3262, -inf
          %v3347 = vmax.f32 %v3260, %v3346
          %3348 = vmax.xlane.f32.xlu0 %v3347
          %v3349 = vpop.xlane.xlu0 %3348
          %v3350 = vsel %vm1880, %v3268, -inf
          %v3351 = vmax.f32 %v3266, %v3350
          %3352 = vmax.xlane.f32.xlu0 %v3351
          %v3353 = vpop.xlane.xlu0 %3352
          %v3354 = vsel %vm1880, %v3272, -inf
          %v3355 = vmax.f32 %v3270, %v3354
          %3356 = vmax.xlane.f32.xlu0 %v3355
          %v3357 = vpop.xlane.xlu0 %3356
          %v3358 = vsel %vm1880, %v3278, -inf
          %v3359 = vmax.f32 %v3276, %v3358
          %3360 = vmax.xlane.f32.xlu0 %v3359
          %v3361 = vpop.xlane.xlu0 %3360
          %v3362 = vsel %vm1880, %v3282, -inf
          %v3363 = vmax.f32 %v3280, %v3362
          %3364 = vmax.xlane.f32.xlu0 %v3363
          %v3365 = vpop.xlane.xlu0 %3364
          %v3366 = vsel %vm1880, %v3288, -inf
          %v3367 = vmax.f32 %v3286, %v3366
          %3368 = vmax.xlane.f32.xlu0 %v3367
          %v3369 = vpop.xlane.xlu0 %3368
          %v3370 = vsel %vm1880, %v3292, -inf
          %v3371 = vmax.f32 %v3290, %v3370
          %3372 = vmax.xlane.f32.xlu0 %v3371
          %v3373 = vpop.xlane.xlu0 %3372
          %v3374 = vsel %vm1880, %v3298, -inf
          %v3375 = vmax.f32 %v3296, %v3374
          %3376 = vmax.xlane.f32.xlu0 %v3375
          %v3377 = vpop.xlane.xlu0 %3376
          %v3378 = vsel %vm1880, %v3302, -inf
          %v3379 = vmax.f32 %v3300, %v3378
          %3380 = vmax.xlane.f32.xlu0 %v3379
          %v3381 = vpop.xlane.xlu0 %3380
          %v3382 = vsel %vm1880, %v3308, -inf
          %v3383 = vmax.f32 %v3306, %v3382
          %3384 = vmax.xlane.f32.xlu0 %v3383
          %v3385 = vpop.xlane.xlu0 %3384
          %v3386 = vsel %vm1880, %v3312, -inf
          %v3387 = vmax.f32 %v3310, %v3386
          %3388 = vmax.xlane.f32.xlu0 %v3387
          %v3389 = vpop.xlane.xlu0 %3388
          %v3390 = vsel %vm1880, %v3318, -inf
          %v3391 = vmax.f32 %v3316, %v3390
          %3392 = vmax.xlane.f32.xlu0 %v3391
          %v3393 = vpop.xlane.xlu0 %3392
          %v3394 = vsel %vm1880, %v3322, -inf
          %v3395 = vmax.f32 %v3320, %v3394
          %3396 = vmax.xlane.f32.xlu0 %v3395
          %v3397 = vpop.xlane.xlu0 %3396
          %v3398 = vsel %vm1880, %v3328, -inf
          %v3399 = vmax.f32 %v3326, %v3398
          %3400 = vmax.xlane.f32.xlu0 %v3399
          %v3401 = vpop.xlane.xlu0 %3400
          %v3402 = vsel %vm1880, %v3332, -inf
          %v3403 = vmax.f32 %v3330, %v3402
          %3404 = vmax.xlane.f32.xlu0 %v3403
          %v3405 = vpop.xlane.xlu0 %3404
          %v3406 = vsel %vm1880, %v3338, -inf
          %v3407 = vmax.f32 %v3336, %v3406
          %3408 = vmax.xlane.f32.xlu0 %v3407
          %v3409 = vpop.xlane.xlu0 %3408
          %v3410 = vsub.f32 %v3256, %v3345
          %v3411 = vsub.f32 %v3258, %v3345
          %v3412 = vsub.f32 %v3260, %v3349
          %v3413 = vsub.f32 %v3262, %v3349
          %v3414 = vsub.f32 %v3266, %v3353
          %v3415 = vsub.f32 %v3268, %v3353
          %v3416 = vsub.f32 %v3270, %v3357
          %v3417 = vsub.f32 %v3272, %v3357
          %v3418 = vsub.f32 %v3276, %v3361
          %v3419 = vsub.f32 %v3278, %v3361
          %v3420 = vsub.f32 %v3280, %v3365
          %v3421 = vsub.f32 %v3282, %v3365
          %v3422 = vsub.f32 %v3286, %v3369
          %v3423 = vsub.f32 %v3288, %v3369
          %v3424 = vsub.f32 %v3290, %v3373
          %v3425 = vsub.f32 %v3292, %v3373
          %v3426 = vsub.f32 %v3296, %v3377
          %v3427 = vsub.f32 %v3298, %v3377
          %v3428 = vsub.f32 %v3300, %v3381
          %v3429 = vsub.f32 %v3302, %v3381
          %v3430 = vsub.f32 %v3306, %v3385
          %v3431 = vsub.f32 %v3308, %v3385
          %v3432 = vsub.f32 %v3310, %v3389
          %v3433 = vsub.f32 %v3312, %v3389
          %v3434 = vsub.f32 %v3316, %v3393
          %v3435 = vsub.f32 %v3318, %v3393
          %v3436 = vsub.f32 %v3320, %v3397
          %v3437 = vsub.f32 %v3322, %v3397
          %v3438 = vsub.f32 %v3326, %v3401
          %v3439 = vsub.f32 %v3328, %v3401
          %v3440 = vsub.f32 %v3330, %v3405
          %v3441 = vsub.f32 %v3332, %v3405
          %v3442 = vsub.f32 %v3336, %v3409
          %v3443 = vsub.f32 %v3338, %v3409
          %v3444 = vmul.f32 %v3410, 1.442695
          %v3445 = vpow.pop %v3444
          %v3446 = vmul.f32 %v3411, 1.442695
          %v3447 = vpow.pop %v3446
          %v3448 = vmul.f32 %v3412, 1.442695
          %v3449 = vpow.pop %v3448
          %v3450 = vmul.f32 %v3413, 1.442695
          %v3451 = vpow.pop %v3450
          %v3452 = vmul.f32 %v3414, 1.442695
          %v3453 = vpow.pop %v3452
          %v3454 = vmul.f32 %v3415, 1.442695
          %v3455 = vpow.pop %v3454
          %v3456 = vmul.f32 %v3416, 1.442695
          %v3457 = vpow.pop %v3456
          %v3458 = vmul.f32 %v3417, 1.442695
          %v3459 = vpow.pop %v3458
          %v3460 = vmul.f32 %v3418, 1.442695
          %v3461 = vpow.pop %v3460
          %v3462 = vmul.f32 %v3419, 1.442695
          %v3463 = vpow.pop %v3462
          %v3464 = vmul.f32 %v3420, 1.442695
          %v3465 = vpow.pop %v3464
          %v3466 = vmul.f32 %v3421, 1.442695
          %v3467 = vpow.pop %v3466
          %v3468 = vmul.f32 %v3422, 1.442695
          %v3469 = vpow.pop %v3468
          %v3470 = vmul.f32 %v3423, 1.442695
          %v3471 = vpow.pop %v3470
          %v3472 = vmul.f32 %v3424, 1.442695
          %v3473 = vpow.pop %v3472
          %v3474 = vmul.f32 %v3425, 1.442695
          %v3475 = vpow.pop %v3474
          %v3476 = vmul.f32 %v3426, 1.442695
          %v3477 = vpow.pop %v3476
          %v3478 = vmul.f32 %v3427, 1.442695
          %v3479 = vpow.pop %v3478
          %v3480 = vmul.f32 %v3428, 1.442695
          %v3481 = vpow.pop %v3480
          %v3482 = vmul.f32 %v3429, 1.442695
          %v3483 = vpow.pop %v3482
          %v3484 = vmul.f32 %v3430, 1.442695
          %v3485 = vpow.pop %v3484
          %v3486 = vmul.f32 %v3431, 1.442695
          %v3487 = vpow.pop %v3486
          %v3488 = vmul.f32 %v3432, 1.442695
          %v3489 = vpow.pop %v3488
          %v3490 = vmul.f32 %v3433, 1.442695
          %v3491 = vpow.pop %v3490
          %v3492 = vmul.f32 %v3434, 1.442695
          %v3493 = vpow.pop %v3492
          %v3494 = vmul.f32 %v3435, 1.442695
          %v3495 = vpow.pop %v3494
          %v3496 = vmul.f32 %v3436, 1.442695
          %v3497 = vpow.pop %v3496
          %v3498 = vmul.f32 %v3437, 1.442695
          %v3499 = vpow.pop %v3498
          %v3500 = vmul.f32 %v3438, 1.442695
          %v3501 = vpow.pop %v3500
          %v3502 = vmul.f32 %v3439, 1.442695
          %v3503 = vpow.pop %v3502
          %v3504 = vmul.f32 %v3440, 1.442695
          %v3505 = vpow.pop %v3504
          %v3506 = vmul.f32 %v3441, 1.442695
          %v3507 = vpow.pop %v3506
          %v3508 = vmul.f32 %v3442, 1.442695
          %v3509 = vpow.pop %v3508
          %v3510 = vmul.f32 %v3443, 1.442695
          %v3511 = vpow.pop %v3510
          %v3512 = vsel %vm1880, %v3447, 0.0
          %v3513 = vadd.f32 %v3445, %v3512
          %3514 = vadd.xlane.f32.xlu0 %v3513
          %v3515 = vpop.xlane.xlu0 %3514
          %v3516 = vsel %vm1880, %v3451, 0.0
          %v3517 = vadd.f32 %v3449, %v3516
          %3518 = vadd.xlane.f32.xlu0 %v3517
          %v3519 = vpop.xlane.xlu0 %3518
          %v3520 = vsel %vm1880, %v3455, 0.0
          %v3521 = vadd.f32 %v3453, %v3520
          %3522 = vadd.xlane.f32.xlu0 %v3521
          %v3523 = vpop.xlane.xlu0 %3522
          %v3524 = vsel %vm1880, %v3459, 0.0
          %v3525 = vadd.f32 %v3457, %v3524
          %3526 = vadd.xlane.f32.xlu0 %v3525
          %v3527 = vpop.xlane.xlu0 %3526
          %v3528 = vsel %vm1880, %v3463, 0.0
          %v3529 = vadd.f32 %v3461, %v3528
          %3530 = vadd.xlane.f32.xlu0 %v3529
          %v3531 = vpop.xlane.xlu0 %3530
          %v3532 = vsel %vm1880, %v3467, 0.0
          %v3533 = vadd.f32 %v3465, %v3532
          %3534 = vadd.xlane.f32.xlu0 %v3533
          %v3535 = vpop.xlane.xlu0 %3534
          %v3536 = vsel %vm1880, %v3471, 0.0
          %v3537 = vadd.f32 %v3469, %v3536
          %3538 = vadd.xlane.f32.xlu0 %v3537
          %v3539 = vpop.xlane.xlu0 %3538
          %v3540 = vsel %vm1880, %v3475, 0.0
          %v3541 = vadd.f32 %v3473, %v3540
          %3542 = vadd.xlane.f32.xlu0 %v3541
          %v3543 = vpop.xlane.xlu0 %3542
          %v3544 = vsel %vm1880, %v3479, 0.0
          %v3545 = vadd.f32 %v3477, %v3544
          %3546 = vadd.xlane.f32.xlu0 %v3545
          %v3547 = vpop.xlane.xlu0 %3546
          %v3548 = vsel %vm1880, %v3483, 0.0
          %v3549 = vadd.f32 %v3481, %v3548
          %3550 = vadd.xlane.f32.xlu0 %v3549
          %v3551 = vpop.xlane.xlu0 %3550
          %v3552 = vsel %vm1880, %v3487, 0.0
          %v3553 = vadd.f32 %v3485, %v3552
          %3554 = vadd.xlane.f32.xlu0 %v3553
          %v3555 = vpop.xlane.xlu0 %3554
          %v3556 = vsel %vm1880, %v3491, 0.0
          %v3557 = vadd.f32 %v3489, %v3556
          %3558 = vadd.xlane.f32.xlu0 %v3557
          %v3559 = vpop.xlane.xlu0 %3558
          %v3560 = vsel %vm1880, %v3495, 0.0
          %v3561 = vadd.f32 %v3493, %v3560
          %3562 = vadd.xlane.f32.xlu0 %v3561
          %v3563 = vpop.xlane.xlu0 %3562
          %v3564 = vsel %vm1880, %v3499, 0.0
          %v3565 = vadd.f32 %v3497, %v3564
          %3566 = vadd.xlane.f32.xlu0 %v3565
          %v3567 = vpop.xlane.xlu0 %3566
          %v3568 = vsel %vm1880, %v3503, 0.0
          %v3569 = vadd.f32 %v3501, %v3568
          %3570 = vadd.xlane.f32.xlu0 %v3569
          %v3571 = vpop.xlane.xlu0 %3570
          %v3572 = vsel %vm1880, %v3507, 0.0
          %v3573 = vadd.f32 %v3505, %v3572
          %3574 = vadd.xlane.f32.xlu0 %v3573
          %v3575 = vpop.xlane.xlu0 %3574
          %v3576 = vsel %vm1880, %v3511, 0.0
          %v3577 = vadd.f32 %v3509, %v3576
          %3578 = vadd.xlane.f32.xlu0 %v3577
          %v3579 = vpop.xlane.xlu0 %3578
          %v3580 = vrcp.pop %v3515
          %v3581 = vrcp.pop %v3519
          %v3582 = vrcp.pop %v3523
          %v3583 = vrcp.pop %v3527
          %v3584 = vrcp.pop %v3531
          %v3585 = vrcp.pop %v3535
          %v3586 = vrcp.pop %v3539
          %v3587 = vrcp.pop %v3543
          %v3588 = vrcp.pop %v3547
          %v3589 = vrcp.pop %v3551
          %v3590 = vrcp.pop %v3555
          %v3591 = vrcp.pop %v3559
          %v3592 = vrcp.pop %v3563
          %v3593 = vrcp.pop %v3567
          %v3594 = vrcp.pop %v3571
          %v3595 = vrcp.pop %v3575
          %v3596 = vrcp.pop %v3579
          %v3597 = vmul.f32 %v3445, %v3580
          %v3598 = vmul.f32 %v3447, %v3580
          %v3599 = vmul.f32 %v3449, %v3581
          %v3600 = vmul.f32 %v3451, %v3581
          %v3601 = vmul.f32 %v3453, %v3582
          %v3602 = vmul.f32 %v3455, %v3582
          %v3603 = vmul.f32 %v3457, %v3583
          %v3604 = vmul.f32 %v3459, %v3583
          %v3605 = vmul.f32 %v3461, %v3584
          %v3606 = vmul.f32 %v3463, %v3584
          %v3607 = vmul.f32 %v3465, %v3585
          %v3608 = vmul.f32 %v3467, %v3585
          %v3609 = vmul.f32 %v3469, %v3586
          %v3610 = vmul.f32 %v3471, %v3586
          %v3611 = vmul.f32 %v3473, %v3587
          %v3612 = vmul.f32 %v3475, %v3587
          %v3613 = vmul.f32 %v3477, %v3588
          %v3614 = vmul.f32 %v3479, %v3588
          %v3615 = vmul.f32 %v3481, %v3589
          %v3616 = vmul.f32 %v3483, %v3589
          %v3617 = vmul.f32 %v3485, %v3590
          %v3618 = vmul.f32 %v3487, %v3590
          %v3619 = vmul.f32 %v3489, %v3591
          %v3620 = vmul.f32 %v3491, %v3591
          %v3621 = vmul.f32 %v3493, %v3592
          %v3622 = vmul.f32 %v3495, %v3592
          %v3623 = vmul.f32 %v3497, %v3593
          %v3624 = vmul.f32 %v3499, %v3593
          %v3625 = vmul.f32 %v3501, %v3594
          %v3626 = vmul.f32 %v3503, %v3594
          %v3627 = vmul.f32 %v3505, %v3595
          %v3628 = vmul.f32 %v3507, %v3595
          %v3629 = vmul.f32 %v3509, %v3596
          %v3630 = vmul.f32 %v3511, %v3596
          %v3631 = vpack.c.bf16 %v3599, %v3597
          %v3632 = vpack.c.bf16 %v3600, %v3598
          %v3633 = vpack.c.bf16 %v3603, %v3601
          %v3634 = vpack.c.bf16 %v3604, %v3602
          %v3635 = vpack.c.bf16 %v3607, %v3605
          %v3636 = vpack.c.bf16 %v3608, %v3606
          %v3637 = vpack.c.bf16 %v3611, %v3609
          %v3638 = vpack.c.bf16 %v3612, %v3610
          %v3639 = vpack.c.bf16 %v3615, %v3613
          %v3640 = vpack.c.bf16 %v3616, %v3614
          %v3641 = vpack.c.bf16 %v3619, %v3617
          %v3642 = vpack.c.bf16 %v3620, %v3618
          %v3643 = vpack.c.bf16 %v3623, %v3621
          %v3644 = vpack.c.bf16 %v3624, %v3622
          %v3645 = vpack.c.bf16 %v3627, %v3625
          %v3646 = vpack.c.bf16 %v3628, %v3626
          %v3647 = vpack.c.bf16 %v3629, %v3629
          %v3648 = vpack.c.bf16 %v3630, %v3630
          %3649 = vrot.lane.b32.xlu0 %v1679, 64
          %v3650 = vpop.permute.xlu0 %3649
          %3651 = vrot.lane.b32.xlu0 %v1682, 64
          %v3652 = vpop.permute.xlu0 %3651
          %3653 = vrot.lane.b32.xlu0 %v1685, 64
          %v3654 = vpop.permute.xlu0 %3653
          %3655 = vrot.lane.b32.xlu0 %v1688, 64
          %v3656 = vpop.permute.xlu0 %3655
          %3657 = vrot.lane.b32.xlu0 %v1691, 64
          %v3658 = vpop.permute.xlu0 %3657
          %3659 = vrot.lane.b32.xlu0 %v1694, 64
          %v3660 = vpop.permute.xlu0 %3659
          %3661 = vrot.lane.b32.xlu0 %v1697, 64
          %v3662 = vpop.permute.xlu0 %3661
          %3663 = vrot.lane.b32.xlu0 %v1700, 64
          %v3664 = vpop.permute.xlu0 %3663
          %3665 = vrot.lane.b32.xlu0 %v1703, 64
          %v3666 = vpop.permute.xlu0 %3665
          %v3676 = vsel %vm1880, %v3632, 0
          %v3679 = vsel %vm1880, %v3634, 0
          %v3682 = vsel %vm1880, %v3636, 0
          %v3685 = vsel %vm1880, %v3638, 0
          %v3688 = vsel %vm1880, %v3640, 0
          %v3691 = vsel %vm1880, %v3642, 0
          %v3694 = vsel %vm1880, %v3644, 0
          %v3697 = vsel %vm1880, %v3646, 0
          %v3700 = vsel %vm1880, %v3648, 0
          %v3703 = vsel %vm2215, %v3666, 0
          %3705 = vmatprep.subr.bf16.mxu0 0
          %3706 = vmatpush1.bf16.msra.mxu0 %v3664
          %3707 = vmatprep.subr.bf16.mxu0 0
          %3708 = vmatpush1.bf16.msra.mxu0 %v3662
          %3709 = vmatprep.subr.bf16.mxu0 0
          %3710 = vmatpush1.bf16.msra.mxu0 %v3660
          %3711 = vmatprep.subr.bf16.mxu0 0
          %3712 = vmatpush1.bf16.msra.mxu0 %v3658
          %3713 = vmatprep.subr.bf16.mxu0 0
          %3714 = vmatpush1.bf16.msra.mxu0 %v3656
          %3715 = vmatprep.subr.bf16.mxu0 0
          %3716 = vmatpush1.bf16.msra.mxu0 %v3654
          %3717 = vmatprep.subr.bf16.mxu0 0
          %3718 = vmatpush1.bf16.msra.mxu0 %v3652
          %3719 = vmatprep.subr.bf16.mxu0 0
          %3720 = vmatpush1.bf16.msra.mxu0 %v3650
          %3721 = vmatprep.subr.bf16.mxu0 0
          %3722 = vmatpush2.bf16.msra.mxu0 0
          %3723 = vmatprep.subr.bf16.mxu0 0
          %3724 = vmatpush2.bf16.msra.mxu0 0
          %3725 = vmatprep.subr.bf16.mxu0 0
          %3726 = vmatpush2.bf16.msra.mxu0 0
          %3727 = vmatprep.subr.bf16.mxu0 0
          %3728 = vmatpush2.bf16.msra.mxu0 0
          %3729 = vmatprep.subr.bf16.mxu0 0
          %3730 = vmatpush2.bf16.msra.mxu0 0
          %3731 = vmatprep.subr.bf16.mxu0 0
          %3732 = vmatpush2.bf16.msra.mxu0 0
          %3733 = vmatprep.subr.bf16.mxu0 0
          %3734 = vmatpush2.bf16.msra.mxu0 0
          %3735 = vmatprep.subr.bf16.mxu0 0
          %3736 = vmatpush2.bf16.msra.mxu0 %v3703
          %3737 = vmatprep.mubr.bf16.mxu0 %v3676
          %3738 = vmatmul.mubr.bf16.gmra.mxu0 %v3631
          %v3739 = vpop.f32.mrf.mxu0
          %v3740 = vadd.f32 0.0, %v3739
          %v3741 = vpop.f32.mrf.mxu0
          %v3742 = vpop.f32.mrf.mxu0
          %v3743 = vadd.f32 0.0, %v3742
          %v3744 = vpop.f32.mrf.mxu0
          %3745 = vmatprep.mubr.bf16.mxu0 %v3679
          %3746 = vmatmul.mubr.bf16.gmra.mxu0 %v3633
          %v3747 = vpop.f32.mrf.mxu0
          %v3748 = vadd.f32 0.0, %v3747
          %v3749 = vpop.f32.mrf.mxu0
          %v3750 = vpop.f32.mrf.mxu0
          %v3751 = vadd.f32 0.0, %v3750
          %v3752 = vpop.f32.mrf.mxu0
          %3753 = vmatprep.mubr.bf16.mxu0 %v3682
          %3754 = vmatmul.mubr.bf16.gmra.mxu0 %v3635
          %v3755 = vpop.f32.mrf.mxu0
          %v3756 = vadd.f32 0.0, %v3755
          %v3757 = vpop.f32.mrf.mxu0
          %v3758 = vpop.f32.mrf.mxu0
          %v3759 = vadd.f32 0.0, %v3758
          %v3760 = vpop.f32.mrf.mxu0
          %3761 = vmatprep.mubr.bf16.mxu0 %v3685
          %3762 = vmatmul.mubr.bf16.gmra.mxu0 %v3637
          %v3763 = vpop.f32.mrf.mxu0
          %v3764 = vadd.f32 0.0, %v3763
          %v3765 = vpop.f32.mrf.mxu0
          %v3766 = vpop.f32.mrf.mxu0
          %v3767 = vadd.f32 0.0, %v3766
          %v3768 = vpop.f32.mrf.mxu0
          %3769 = vmatprep.mubr.bf16.mxu0 %v3688
          %3770 = vmatmul.mubr.bf16.gmra.mxu0 %v3639
          %v3771 = vpop.f32.mrf.mxu0
          %v3772 = vadd.f32 0.0, %v3771
          %v3773 = vpop.f32.mrf.mxu0
          %v3774 = vpop.f32.mrf.mxu0
          %v3775 = vadd.f32 0.0, %v3774
          %v3776 = vpop.f32.mrf.mxu0
          %3777 = vmatprep.mubr.bf16.mxu0 %v3691
          %3778 = vmatmul.mubr.bf16.gmra.mxu0 %v3641
          %v3779 = vpop.f32.mrf.mxu0
          %v3780 = vadd.f32 0.0, %v3779
          %v3781 = vpop.f32.mrf.mxu0
          %v3782 = vpop.f32.mrf.mxu0
          %v3783 = vadd.f32 0.0, %v3782
          %v3784 = vpop.f32.mrf.mxu0
          %3785 = vmatprep.mubr.bf16.mxu0 %v3694
          %3786 = vmatmul.mubr.bf16.gmra.mxu0 %v3643
          %v3787 = vpop.f32.mrf.mxu0
          %v3788 = vadd.f32 0.0, %v3787
          %v3789 = vpop.f32.mrf.mxu0
          %v3790 = vpop.f32.mrf.mxu0
          %v3791 = vadd.f32 0.0, %v3790
          %v3792 = vpop.f32.mrf.mxu0
          %3793 = vmatprep.mubr.bf16.mxu0 %v3697
          %3794 = vmatmul.mubr.bf16.gmra.mxu0 %v3645
          %v3795 = vpop.f32.mrf.mxu0
          %v3796 = vadd.f32 0.0, %v3795
          %v3797 = vpop.f32.mrf.mxu0
          %v3798 = vpop.f32.mrf.mxu0
          %v3799 = vadd.f32 0.0, %v3798
          %v3800 = vpop.f32.mrf.mxu0
          %3801 = vmatprep.mubr.bf16.mxu0 %v3700
          %3802 = vmatmul.mubr.bf16.gmra.mxu0 %v3647
          %v3803 = vpop.f32.mrf.mxu0
          %v3804 = vadd.f32 0.0, %v3803
          %v3805 = vpop.f32.mrf.mxu0
          %v3806 = vpop.f32.mrf.mxu0
          %v3807 = vpop.f32.mrf.mxu0
          %3808 = vdwg.mxu0
          %3826 = vrot.lane.b32.xlu0 %v3740, 64
          %v3827 = vpop.permute.xlu0 %3826
          %3828 = vrot.lane.b32.xlu0 %v3743, 64
          %v3829 = vpop.permute.xlu0 %3828
          %3830 = vrot.lane.b32.xlu0 %v3748, 64
          %v3831 = vpop.permute.xlu0 %3830
          %3832 = vrot.lane.b32.xlu0 %v3751, 64
          %v3833 = vpop.permute.xlu0 %3832
          %3834 = vrot.lane.b32.xlu0 %v3756, 64
          %v3835 = vpop.permute.xlu0 %3834
          %3836 = vrot.lane.b32.xlu0 %v3759, 64
          %v3837 = vpop.permute.xlu0 %3836
          %3838 = vrot.lane.b32.xlu0 %v3764, 64
          %v3839 = vpop.permute.xlu0 %3838
          %3840 = vrot.lane.b32.xlu0 %v3767, 64
          %v3841 = vpop.permute.xlu0 %3840
          %3842 = vrot.lane.b32.xlu0 %v3772, 64
          %v3843 = vpop.permute.xlu0 %3842
          %3844 = vrot.lane.b32.xlu0 %v3775, 64
          %v3845 = vpop.permute.xlu0 %3844
          %3846 = vrot.lane.b32.xlu0 %v3780, 64
          %v3847 = vpop.permute.xlu0 %3846
          %3848 = vrot.lane.b32.xlu0 %v3783, 64
          %v3849 = vpop.permute.xlu0 %3848
          %3850 = vrot.lane.b32.xlu0 %v3788, 64
          %v3851 = vpop.permute.xlu0 %3850
          %3852 = vrot.lane.b32.xlu0 %v3791, 64
          %v3853 = vpop.permute.xlu0 %3852
          %3854 = vrot.lane.b32.xlu0 %v3796, 64
          %v3855 = vpop.permute.xlu0 %3854
          %3856 = vrot.lane.b32.xlu0 %v3799, 64
          %v3857 = vpop.permute.xlu0 %3856
          %3858 = vrot.lane.b32.xlu0 %v3804, 64
          %v3859 = vpop.permute.xlu0 %3858
          %vm3877 = vcmask 785920
          %3878 = vst.msk [vmem:[#allocation2] sm:$0xff] %vm3877, %v3827
          %3879 = vst.msk [vmem:[#allocation2 + $0x8] sm:$0xff] %vm3877, %v3829
          %3880 = vst.msk [vmem:[#allocation2 + $0x10] sm:$0xff] %vm3877, %v3831
          %3881 = vst.msk [vmem:[#allocation2 + $0x18] sm:$0xff] %vm3877, %v3833
          %3882 = vst.msk [vmem:[#allocation2 + $0x20] sm:$0xff] %vm3877, %v3835
          %3883 = vst.msk [vmem:[#allocation2 + $0x28] sm:$0xff] %vm3877, %v3837
          %3884 = vst.msk [vmem:[#allocation2 + $0x30] sm:$0xff] %vm3877, %v3839
          %3885 = vst.msk [vmem:[#allocation2 + $0x38] sm:$0xff] %vm3877, %v3841
          %3886 = vst.msk [vmem:[#allocation2 + $0x40] sm:$0xff] %vm3877, %v3843
          %3887 = vst.msk [vmem:[#allocation2 + $0x48] sm:$0xff] %vm3877, %v3845
          %3888 = vst.msk [vmem:[#allocation2 + $0x50] sm:$0xff] %vm3877, %v3847
          %3889 = vst.msk [vmem:[#allocation2 + $0x58] sm:$0xff] %vm3877, %v3849
          %3890 = vst.msk [vmem:[#allocation2 + $0x60] sm:$0xff] %vm3877, %v3851
          %3891 = vst.msk [vmem:[#allocation2 + $0x68] sm:$0xff] %vm3877, %v3853
          %3892 = vst.msk [vmem:[#allocation2 + $0x70] sm:$0xff] %vm3877, %v3855
          %3893 = vst.msk [vmem:[#allocation2 + $0x78] sm:$0xff] %vm3877, %v3857
          %3894 = vst.msk [vmem:[#allocation2 + $0x80] sm:$0xff] %vm3877, %v3859
          %3895 = vrot.lane.b32.xlu0 %v1677, 32
          %v3896 = vpop.permute.xlu0 %3895
          %3897 = vrot.lane.b32.xlu0 %v1680, 32
          %v3898 = vpop.permute.xlu0 %3897
          %3899 = vrot.lane.b32.xlu0 %v1683, 32
          %v3900 = vpop.permute.xlu0 %3899
          %3901 = vrot.lane.b32.xlu0 %v1686, 32
          %v3902 = vpop.permute.xlu0 %3901
          %3903 = vrot.lane.b32.xlu0 %v1689, 32
          %v3904 = vpop.permute.xlu0 %3903
          %3905 = vrot.lane.b32.xlu0 %v1692, 32
          %v3906 = vpop.permute.xlu0 %3905
          %3907 = vrot.lane.b32.xlu0 %v1695, 32
          %v3908 = vpop.permute.xlu0 %3907
          %3909 = vrot.lane.b32.xlu0 %v1698, 32
          %v3910 = vpop.permute.xlu0 %3909
          %3911 = vrot.lane.b32.xlu0 %v1701, 32
          %v3912 = vpop.permute.xlu0 %3911
          %3913 = vrot.lane.b32.xlu0 %v1678, 32
          %v3914 = vpop.permute.xlu0 %3913
          %3915 = vrot.lane.b32.xlu0 %v1681, 32
          %v3916 = vpop.permute.xlu0 %3915
          %3917 = vrot.lane.b32.xlu0 %v1684, 32
          %v3918 = vpop.permute.xlu0 %3917
          %3919 = vrot.lane.b32.xlu0 %v1687, 32
          %v3920 = vpop.permute.xlu0 %3919
          %3921 = vrot.lane.b32.xlu0 %v1690, 32
          %v3922 = vpop.permute.xlu0 %3921
          %3923 = vrot.lane.b32.xlu0 %v1693, 32
          %v3924 = vpop.permute.xlu0 %3923
          %3925 = vrot.lane.b32.xlu0 %v1696, 32
          %v3926 = vpop.permute.xlu0 %3925
          %3927 = vrot.lane.b32.xlu0 %v1699, 32
          %v3928 = vpop.permute.xlu0 %3927
          %3929 = vrot.lane.b32.xlu0 %v1702, 32
          %v3930 = vpop.permute.xlu0 %3929
          %v3932 = vsel %vm1704, %v3896, 0
          %v3935 = vsel %vm1704, %v3898, 0
          %v3938 = vsel %vm1704, %v3900, 0
          %v3941 = vsel %vm1704, %v3902, 0
          %v3944 = vsel %vm1704, %v3904, 0
          %v3947 = vsel %vm1704, %v3906, 0
          %v3950 = vsel %vm1704, %v3908, 0
          %v3953 = vsel %vm1704, %v3910, 0
          %v3956 = vsel %vm1704, %v3912, 0
          %v3959 = vsel %vm1704, %v3914, 0
          %v3962 = vsel %vm1704, %v3916, 0
          %v3965 = vsel %vm1704, %v3918, 0
          %v3968 = vsel %vm1704, %v3920, 0
          %v3971 = vsel %vm1704, %v3922, 0
          %v3974 = vsel %vm1704, %v3924, 0
          %v3977 = vsel %vm1704, %v3926, 0
          %v3980 = vsel %vm1704, %v3928, 0
          %v3983 = vsel %vm1704, %v3930, 0
          %3985 = vmatprep.subr.bf16.mxu0 0
          %3986 = vmatpush1.bf16.xpose.msra.mxu0 %v3980
          %3987 = vmatprep.subr.bf16.mxu0 0
          %3988 = vmatpush1.bf16.xpose.msra.mxu0 %v3977
          %3989 = vmatprep.subr.bf16.mxu0 0
          %3990 = vmatpush1.bf16.xpose.msra.mxu0 %v3974
          %3991 = vmatprep.subr.bf16.mxu0 0
          %3992 = vmatpush1.bf16.xpose.msra.mxu0 %v3971
          %3993 = vmatprep.subr.bf16.mxu0 0
          %3994 = vmatpush1.bf16.xpose.msra.mxu0 %v3968
          %3995 = vmatprep.subr.bf16.mxu0 0
          %3996 = vmatpush1.bf16.xpose.msra.mxu0 %v3965
          %3997 = vmatprep.subr.bf16.mxu0 0
          %3998 = vmatpush1.bf16.xpose.msra.mxu0 %v3962
          %3999 = vmatprep.subr.bf16.mxu0 0
          %4000 = vmatpush1.bf16.xpose.msra.mxu0 %v3959
          %4001 = vmatprep.subr.bf16.mxu0 0
          %4002 = vmatpush2.bf16.xpose.msra.mxu0 0
          %4003 = vmatprep.subr.bf16.mxu0 0
          %4004 = vmatpush2.bf16.xpose.msra.mxu0 0
          %4005 = vmatprep.subr.bf16.mxu0 0
          %4006 = vmatpush2.bf16.xpose.msra.mxu0 0
          %4007 = vmatprep.subr.bf16.mxu0 0
          %4008 = vmatpush2.bf16.xpose.msra.mxu0 0
          %4009 = vmatprep.subr.bf16.mxu0 0
          %4010 = vmatpush2.bf16.xpose.msra.mxu0 0
          %4011 = vmatprep.subr.bf16.mxu0 0
          %4012 = vmatpush2.bf16.xpose.msra.mxu0 0
          %4013 = vmatprep.subr.bf16.mxu0 0
          %4014 = vmatpush2.bf16.xpose.msra.mxu0 0
          %4015 = vmatprep.subr.bf16.mxu0 0
          %4016 = vmatpush2.bf16.xpose.msra.mxu0 %v3983
          %4017 = vmatprep.mubr.bf16.mxu0 0
          %4018 = vmatmul.mubr.bf16.gmra.mxu0 %v3932
          %v4019 = vpop.f32.mrf.mxu0
          %v4020 = vadd.f32 %v966, %v4019
          %v4021 = vpop.f32.mrf.mxu0
          %v4022 = vadd.f32 %v967, %v4021
          %v4023 = vpop.f32.mrf.mxu0
          %v4024 = vadd.f32 %v968, %v4023
          %v4025 = vpop.f32.mrf.mxu0
          %v4026 = vadd.f32 %v969, %v4025
          %4027 = vmatprep.mubr.bf16.mxu0 0
          %4028 = vmatmul.mubr.bf16.gmra.mxu0 %v3935
          %v4029 = vpop.f32.mrf.mxu0
          %v4030 = vadd.f32 %v970, %v4029
          %v4031 = vpop.f32.mrf.mxu0
          %v4032 = vadd.f32 %v971, %v4031
          %v4033 = vpop.f32.mrf.mxu0
          %v4034 = vadd.f32 %v972, %v4033
          %v4035 = vpop.f32.mrf.mxu0
          %v4036 = vadd.f32 %v973, %v4035
          %4037 = vmatprep.mubr.bf16.mxu0 0
          %4038 = vmatmul.mubr.bf16.gmra.mxu0 %v3938
          %v4039 = vpop.f32.mrf.mxu0
          %v4040 = vadd.f32 %v974, %v4039
          %v4041 = vpop.f32.mrf.mxu0
          %v4042 = vadd.f32 %v975, %v4041
          %v4043 = vpop.f32.mrf.mxu0
          %v4044 = vadd.f32 %v976, %v4043
          %v4045 = vpop.f32.mrf.mxu0
          %v4046 = vadd.f32 %v977, %v4045
          %4047 = vmatprep.mubr.bf16.mxu0 0
          %4048 = vmatmul.mubr.bf16.gmra.mxu0 %v3941
          %v4049 = vpop.f32.mrf.mxu0
          %v4050 = vadd.f32 %v978, %v4049
          %v4051 = vpop.f32.mrf.mxu0
          %v4052 = vadd.f32 %v979, %v4051
          %v4053 = vpop.f32.mrf.mxu0
          %v4054 = vadd.f32 %v980, %v4053
          %v4055 = vpop.f32.mrf.mxu0
          %v4056 = vadd.f32 %v981, %v4055
          %4057 = vmatprep.mubr.bf16.mxu0 0
          %4058 = vmatmul.mubr.bf16.gmra.mxu0 %v3944
          %v4059 = vpop.f32.mrf.mxu0
          %v4060 = vadd.f32 %v982, %v4059
          %v4061 = vpop.f32.mrf.mxu0
          %v4062 = vadd.f32 %v983, %v4061
          %v4063 = vpop.f32.mrf.mxu0
          %v4064 = vadd.f32 %v984, %v4063
          %v4065 = vpop.f32.mrf.mxu0
          %v4066 = vadd.f32 %v985, %v4065
          %4067 = vmatprep.mubr.bf16.mxu0 0
          %4068 = vmatmul.mubr.bf16.gmra.mxu0 %v3947
          %v4069 = vpop.f32.mrf.mxu0
          %v4070 = vadd.f32 %v986, %v4069
          %v4071 = vpop.f32.mrf.mxu0
          %v4072 = vadd.f32 %v987, %v4071
          %v4073 = vpop.f32.mrf.mxu0
          %v4074 = vadd.f32 %v988, %v4073
          %v4075 = vpop.f32.mrf.mxu0
          %v4076 = vadd.f32 %v989, %v4075
          %4077 = vmatprep.mubr.bf16.mxu0 0
          %4078 = vmatmul.mubr.bf16.gmra.mxu0 %v3950
          %v4079 = vpop.f32.mrf.mxu0
          %v4080 = vadd.f32 %v990, %v4079
          %v4081 = vpop.f32.mrf.mxu0
          %v4082 = vadd.f32 %v991, %v4081
          %v4083 = vpop.f32.mrf.mxu0
          %v4084 = vadd.f32 %v992, %v4083
          %v4085 = vpop.f32.mrf.mxu0
          %v4086 = vadd.f32 %v993, %v4085
          %4087 = vmatprep.mubr.bf16.mxu0 0
          %4088 = vmatmul.mubr.bf16.gmra.mxu0 %v3953
          %v4089 = vpop.f32.mrf.mxu0
          %v4090 = vadd.f32 %v994, %v4089
          %v4091 = vpop.f32.mrf.mxu0
          %v4092 = vadd.f32 %v995, %v4091
          %v4093 = vpop.f32.mrf.mxu0
          %v4094 = vadd.f32 %v996, %v4093
          %v4095 = vpop.f32.mrf.mxu0
          %v4096 = vadd.f32 %v997, %v4095
          %4097 = vmatprep.mubr.bf16.mxu0 0
          %4098 = vmatmul.mubr.bf16.gmra.mxu0 %v3956
          %v4099 = vpop.f32.mrf.mxu0
          %v4100 = vadd.f32 %v998, %v4099
          %v4101 = vpop.f32.mrf.mxu0
          %v4102 = vadd.f32 %v999, %v4101
          %v4103 = vpop.f32.mrf.mxu0
          %v4104 = vpop.f32.mrf.mxu0
          %4105 = vdwg.mxu0
          %v4106 = vsel %vm1880, %v4022, -inf
          %v4107 = vmax.f32 %v4020, %v4106
          %4108 = vmax.xlane.f32.xlu0 %v4107
          %v4109 = vpop.xlane.xlu0 %4108
          %v4110 = vsel %vm1880, %v4026, -inf
          %v4111 = vmax.f32 %v4024, %v4110
          %4112 = vmax.xlane.f32.xlu0 %v4111
          %v4113 = vpop.xlane.xlu0 %4112
          %v4114 = vsel %vm1880, %v4032, -inf
          %v4115 = vmax.f32 %v4030, %v4114
          %4116 = vmax.xlane.f32.xlu0 %v4115
          %v4117 = vpop.xlane.xlu0 %4116
          %v4118 = vsel %vm1880, %v4036, -inf
          %v4119 = vmax.f32 %v4034, %v4118
          %4120 = vmax.xlane.f32.xlu0 %v4119
          %v4121 = vpop.xlane.xlu0 %4120
          %v4122 = vsel %vm1880, %v4042, -inf
          %v4123 = vmax.f32 %v4040, %v4122
          %4124 = vmax.xlane.f32.xlu0 %v4123
          %v4125 = vpop.xlane.xlu0 %4124
          %v4126 = vsel %vm1880, %v4046, -inf
          %v4127 = vmax.f32 %v4044, %v4126
          %4128 = vmax.xlane.f32.xlu0 %v4127
          %v4129 = vpop.xlane.xlu0 %4128
          %v4130 = vsel %vm1880, %v4052, -inf
          %v4131 = vmax.f32 %v4050, %v4130
          %4132 = vmax.xlane.f32.xlu0 %v4131
          %v4133 = vpop.xlane.xlu0 %4132
          %v4134 = vsel %vm1880, %v4056, -inf
          %v4135 = vmax.f32 %v4054, %v4134
          %4136 = vmax.xlane.f32.xlu0 %v4135
          %v4137 = vpop.xlane.xlu0 %4136
          %v4138 = vsel %vm1880, %v4062, -inf
          %v4139 = vmax.f32 %v4060, %v4138
          %4140 = vmax.xlane.f32.xlu0 %v4139
          %v4141 = vpop.xlane.xlu0 %4140
          %v4142 = vsel %vm1880, %v4066, -inf
          %v4143 = vmax.f32 %v4064, %v4142
          %4144 = vmax.xlane.f32.xlu0 %v4143
          %v4145 = vpop.xlane.xlu0 %4144
          %v4146 = vsel %vm1880, %v4072, -inf
          %v4147 = vmax.f32 %v4070, %v4146
          %4148 = vmax.xlane.f32.xlu0 %v4147
          %v4149 = vpop.xlane.xlu0 %4148
          %v4150 = vsel %vm1880, %v4076, -inf
          %v4151 = vmax.f32 %v4074, %v4150
          %4152 = vmax.xlane.f32.xlu0 %v4151
          %v4153 = vpop.xlane.xlu0 %4152
          %v4154 = vsel %vm1880, %v4082, -inf
          %v4155 = vmax.f32 %v4080, %v4154
          %4156 = vmax.xlane.f32.xlu0 %v4155
          %v4157 = vpop.xlane.xlu0 %4156
          %v4158 = vsel %vm1880, %v4086, -inf
          %v4159 = vmax.f32 %v4084, %v4158
          %4160 = vmax.xlane.f32.xlu0 %v4159
          %v4161 = vpop.xlane.xlu0 %4160
          %v4162 = vsel %vm1880, %v4092, -inf
          %v4163 = vmax.f32 %v4090, %v4162
          %4164 = vmax.xlane.f32.xlu0 %v4163
          %v4165 = vpop.xlane.xlu0 %4164
          %v4166 = vsel %vm1880, %v4096, -inf
          %v4167 = vmax.f32 %v4094, %v4166
          %4168 = vmax.xlane.f32.xlu0 %v4167
          %v4169 = vpop.xlane.xlu0 %4168
          %v4170 = vsel %vm1880, %v4102, -inf
          %v4171 = vmax.f32 %v4100, %v4170
          %4172 = vmax.xlane.f32.xlu0 %v4171
          %v4173 = vpop.xlane.xlu0 %4172
          %v4174 = vsub.f32 %v4020, %v4109
          %v4175 = vsub.f32 %v4022, %v4109
          %v4176 = vsub.f32 %v4024, %v4113
          %v4177 = vsub.f32 %v4026, %v4113
          %v4178 = vsub.f32 %v4030, %v4117
          %v4179 = vsub.f32 %v4032, %v4117
          %v4180 = vsub.f32 %v4034, %v4121
          %v4181 = vsub.f32 %v4036, %v4121
          %v4182 = vsub.f32 %v4040, %v4125
          %v4183 = vsub.f32 %v4042, %v4125
          %v4184 = vsub.f32 %v4044, %v4129
          %v4185 = vsub.f32 %v4046, %v4129
          %v4186 = vsub.f32 %v4050, %v4133
          %v4187 = vsub.f32 %v4052, %v4133
          %v4188 = vsub.f32 %v4054, %v4137
          %v4189 = vsub.f32 %v4056, %v4137
          %v4190 = vsub.f32 %v4060, %v4141
          %v4191 = vsub.f32 %v4062, %v4141
          %v4192 = vsub.f32 %v4064, %v4145
          %v4193 = vsub.f32 %v4066, %v4145
          %v4194 = vsub.f32 %v4070, %v4149
          %v4195 = vsub.f32 %v4072, %v4149
          %v4196 = vsub.f32 %v4074, %v4153
          %v4197 = vsub.f32 %v4076, %v4153
          %v4198 = vsub.f32 %v4080, %v4157
          %v4199 = vsub.f32 %v4082, %v4157
          %v4200 = vsub.f32 %v4084, %v4161
          %v4201 = vsub.f32 %v4086, %v4161
          %v4202 = vsub.f32 %v4090, %v4165
          %v4203 = vsub.f32 %v4092, %v4165
          %v4204 = vsub.f32 %v4094, %v4169
          %v4205 = vsub.f32 %v4096, %v4169
          %v4206 = vsub.f32 %v4100, %v4173
          %v4207 = vsub.f32 %v4102, %v4173
          %v4208 = vmul.f32 %v4174, 1.442695
          %v4209 = vpow.pop %v4208
          %v4210 = vmul.f32 %v4175, 1.442695
          %v4211 = vpow.pop %v4210
          %v4212 = vmul.f32 %v4176, 1.442695
          %v4213 = vpow.pop %v4212
          %v4214 = vmul.f32 %v4177, 1.442695
          %v4215 = vpow.pop %v4214
          %v4216 = vmul.f32 %v4178, 1.442695
          %v4217 = vpow.pop %v4216
          %v4218 = vmul.f32 %v4179, 1.442695
          %v4219 = vpow.pop %v4218
          %v4220 = vmul.f32 %v4180, 1.442695
          %v4221 = vpow.pop %v4220
          %v4222 = vmul.f32 %v4181, 1.442695
          %v4223 = vpow.pop %v4222
          %v4224 = vmul.f32 %v4182, 1.442695
          %v4225 = vpow.pop %v4224
          %v4226 = vmul.f32 %v4183, 1.442695
          %v4227 = vpow.pop %v4226
          %v4228 = vmul.f32 %v4184, 1.442695
          %v4229 = vpow.pop %v4228
          %v4230 = vmul.f32 %v4185, 1.442695
          %v4231 = vpow.pop %v4230
          %v4232 = vmul.f32 %v4186, 1.442695
          %v4233 = vpow.pop %v4232
          %v4234 = vmul.f32 %v4187, 1.442695
          %v4235 = vpow.pop %v4234
          %v4236 = vmul.f32 %v4188, 1.442695
          %v4237 = vpow.pop %v4236
          %v4238 = vmul.f32 %v4189, 1.442695
          %v4239 = vpow.pop %v4238
          %v4240 = vmul.f32 %v4190, 1.442695
          %v4241 = vpow.pop %v4240
          %v4242 = vmul.f32 %v4191, 1.442695
          %v4243 = vpow.pop %v4242
          %v4244 = vmul.f32 %v4192, 1.442695
          %v4245 = vpow.pop %v4244
          %v4246 = vmul.f32 %v4193, 1.442695
          %v4247 = vpow.pop %v4246
          %v4248 = vmul.f32 %v4194, 1.442695
          %v4249 = vpow.pop %v4248
          %v4250 = vmul.f32 %v4195, 1.442695
          %v4251 = vpow.pop %v4250
          %v4252 = vmul.f32 %v4196, 1.442695
          %v4253 = vpow.pop %v4252
          %v4254 = vmul.f32 %v4197, 1.442695
          %v4255 = vpow.pop %v4254
          %v4256 = vmul.f32 %v4198, 1.442695
          %v4257 = vpow.pop %v4256
          %v4258 = vmul.f32 %v4199, 1.442695
          %v4259 = vpow.pop %v4258
          %v4260 = vmul.f32 %v4200, 1.442695
          %v4261 = vpow.pop %v4260
          %v4262 = vmul.f32 %v4201, 1.442695
          %v4263 = vpow.pop %v4262
          %v4264 = vmul.f32 %v4202, 1.442695
          %v4265 = vpow.pop %v4264
          %v4266 = vmul.f32 %v4203, 1.442695
          %v4267 = vpow.pop %v4266
          %v4268 = vmul.f32 %v4204, 1.442695
          %v4269 = vpow.pop %v4268
          %v4270 = vmul.f32 %v4205, 1.442695
          %v4271 = vpow.pop %v4270
          %v4272 = vmul.f32 %v4206, 1.442695
          %v4273 = vpow.pop %v4272
          %v4274 = vmul.f32 %v4207, 1.442695
          %v4275 = vpow.pop %v4274
          %v4276 = vsel %vm1880, %v4211, 0.0
          %v4277 = vadd.f32 %v4209, %v4276
          %4278 = vadd.xlane.f32.xlu0 %v4277
          %v4279 = vpop.xlane.xlu0 %4278
          %v4280 = vsel %vm1880, %v4215, 0.0
          %v4281 = vadd.f32 %v4213, %v4280
          %4282 = vadd.xlane.f32.xlu0 %v4281
          %v4283 = vpop.xlane.xlu0 %4282
          %v4284 = vsel %vm1880, %v4219, 0.0
          %v4285 = vadd.f32 %v4217, %v4284
          %4286 = vadd.xlane.f32.xlu0 %v4285
          %v4287 = vpop.xlane.xlu0 %4286
          %v4288 = vsel %vm1880, %v4223, 0.0
          %v4289 = vadd.f32 %v4221, %v4288
          %4290 = vadd.xlane.f32.xlu0 %v4289
          %v4291 = vpop.xlane.xlu0 %4290
          %v4292 = vsel %vm1880, %v4227, 0.0
          %v4293 = vadd.f32 %v4225, %v4292
          %4294 = vadd.xlane.f32.xlu0 %v4293
          %v4295 = vpop.xlane.xlu0 %4294
          %v4296 = vsel %vm1880, %v4231, 0.0
          %v4297 = vadd.f32 %v4229, %v4296
          %4298 = vadd.xlane.f32.xlu0 %v4297
          %v4299 = vpop.xlane.xlu0 %4298
          %v4300 = vsel %vm1880, %v4235, 0.0
          %v4301 = vadd.f32 %v4233, %v4300
          %4302 = vadd.xlane.f32.xlu0 %v4301
          %v4303 = vpop.xlane.xlu0 %4302
          %v4304 = vsel %vm1880, %v4239, 0.0
          %v4305 = vadd.f32 %v4237, %v4304
          %4306 = vadd.xlane.f32.xlu0 %v4305
          %v4307 = vpop.xlane.xlu0 %4306
          %v4308 = vsel %vm1880, %v4243, 0.0
          %v4309 = vadd.f32 %v4241, %v4308
          %4310 = vadd.xlane.f32.xlu0 %v4309
          %v4311 = vpop.xlane.xlu0 %4310
          %v4312 = vsel %vm1880, %v4247, 0.0
          %v4313 = vadd.f32 %v4245, %v4312
          %4314 = vadd.xlane.f32.xlu0 %v4313
          %v4315 = vpop.xlane.xlu0 %4314
          %v4316 = vsel %vm1880, %v4251, 0.0
          %v4317 = vadd.f32 %v4249, %v4316
          %4318 = vadd.xlane.f32.xlu0 %v4317
          %v4319 = vpop.xlane.xlu0 %4318
          %v4320 = vsel %vm1880, %v4255, 0.0
          %v4321 = vadd.f32 %v4253, %v4320
          %4322 = vadd.xlane.f32.xlu0 %v4321
          %v4323 = vpop.xlane.xlu0 %4322
          %v4324 = vsel %vm1880, %v4259, 0.0
          %v4325 = vadd.f32 %v4257, %v4324
          %4326 = vadd.xlane.f32.xlu0 %v4325
          %v4327 = vpop.xlane.xlu0 %4326
          %v4328 = vsel %vm1880, %v4263, 0.0
          %v4329 = vadd.f32 %v4261, %v4328
          %4330 = vadd.xlane.f32.xlu0 %v4329
          %v4331 = vpop.xlane.xlu0 %4330
          %v4332 = vsel %vm1880, %v4267, 0.0
          %v4333 = vadd.f32 %v4265, %v4332
          %4334 = vadd.xlane.f32.xlu0 %v4333
          %v4335 = vpop.xlane.xlu0 %4334
          %v4336 = vsel %vm1880, %v4271, 0.0
          %v4337 = vadd.f32 %v4269, %v4336
          %4338 = vadd.xlane.f32.xlu0 %v4337
          %v4339 = vpop.xlane.xlu0 %4338
          %v4340 = vsel %vm1880, %v4275, 0.0
          %v4341 = vadd.f32 %v4273, %v4340
          %4342 = vadd.xlane.f32.xlu0 %v4341
          %v4343 = vpop.xlane.xlu0 %4342
          %v4344 = vrcp.pop %v4279
          %v4345 = vrcp.pop %v4283
          %v4346 = vrcp.pop %v4287
          %v4347 = vrcp.pop %v4291
          %v4348 = vrcp.pop %v4295
          %v4349 = vrcp.pop %v4299
          %v4350 = vrcp.pop %v4303
          %v4351 = vrcp.pop %v4307
          %v4352 = vrcp.pop %v4311
          %v4353 = vrcp.pop %v4315
          %v4354 = vrcp.pop %v4319
          %v4355 = vrcp.pop %v4323
          %v4356 = vrcp.pop %v4327
          %v4357 = vrcp.pop %v4331
          %v4358 = vrcp.pop %v4335
          %v4359 = vrcp.pop %v4339
          %v4360 = vrcp.pop %v4343
          %v4361 = vmul.f32 %v4209, %v4344
          %v4362 = vmul.f32 %v4211, %v4344
          %v4363 = vmul.f32 %v4213, %v4345
          %v4364 = vmul.f32 %v4215, %v4345
          %v4365 = vmul.f32 %v4217, %v4346
          %v4366 = vmul.f32 %v4219, %v4346
          %v4367 = vmul.f32 %v4221, %v4347
          %v4368 = vmul.f32 %v4223, %v4347
          %v4369 = vmul.f32 %v4225, %v4348
          %v4370 = vmul.f32 %v4227, %v4348
          %v4371 = vmul.f32 %v4229, %v4349
          %v4372 = vmul.f32 %v4231, %v4349
          %v4373 = vmul.f32 %v4233, %v4350
          %v4374 = vmul.f32 %v4235, %v4350
          %v4375 = vmul.f32 %v4237, %v4351
          %v4376 = vmul.f32 %v4239, %v4351
          %v4377 = vmul.f32 %v4241, %v4352
          %v4378 = vmul.f32 %v4243, %v4352
          %v4379 = vmul.f32 %v4245, %v4353
          %v4380 = vmul.f32 %v4247, %v4353
          %v4381 = vmul.f32 %v4249, %v4354
          %v4382 = vmul.f32 %v4251, %v4354
          %v4383 = vmul.f32 %v4253, %v4355
          %v4384 = vmul.f32 %v4255, %v4355
          %v4385 = vmul.f32 %v4257, %v4356
          %v4386 = vmul.f32 %v4259, %v4356
          %v4387 = vmul.f32 %v4261, %v4357
          %v4388 = vmul.f32 %v4263, %v4357
          %v4389 = vmul.f32 %v4265, %v4358
          %v4390 = vmul.f32 %v4267, %v4358
          %v4391 = vmul.f32 %v4269, %v4359
          %v4392 = vmul.f32 %v4271, %v4359
          %v4393 = vmul.f32 %v4273, %v4360
          %v4394 = vmul.f32 %v4275, %v4360
          %v4395 = vpack.c.bf16 %v4363, %v4361
          %v4396 = vpack.c.bf16 %v4364, %v4362
          %v4397 = vpack.c.bf16 %v4367, %v4365
          %v4398 = vpack.c.bf16 %v4368, %v4366
          %v4399 = vpack.c.bf16 %v4371, %v4369
          %v4400 = vpack.c.bf16 %v4372, %v4370
          %v4401 = vpack.c.bf16 %v4375, %v4373
          %v4402 = vpack.c.bf16 %v4376, %v4374
          %v4403 = vpack.c.bf16 %v4379, %v4377
          %v4404 = vpack.c.bf16 %v4380, %v4378
          %v4405 = vpack.c.bf16 %v4383, %v4381
          %v4406 = vpack.c.bf16 %v4384, %v4382
          %v4407 = vpack.c.bf16 %v4387, %v4385
          %v4408 = vpack.c.bf16 %v4388, %v4386
          %v4409 = vpack.c.bf16 %v4391, %v4389
          %v4410 = vpack.c.bf16 %v4392, %v4390
          %v4411 = vpack.c.bf16 %v4393, %v4393
          %v4412 = vpack.c.bf16 %v4394, %v4394
          %4413 = vrot.lane.b32.xlu0 %v1679, 32
          %v4414 = vpop.permute.xlu0 %4413
          %4415 = vrot.lane.b32.xlu0 %v1682, 32
          %v4416 = vpop.permute.xlu0 %4415
          %4417 = vrot.lane.b32.xlu0 %v1685, 32
          %v4418 = vpop.permute.xlu0 %4417
          %4419 = vrot.lane.b32.xlu0 %v1688, 32
          %v4420 = vpop.permute.xlu0 %4419
          %4421 = vrot.lane.b32.xlu0 %v1691, 32
          %v4422 = vpop.permute.xlu0 %4421
          %4423 = vrot.lane.b32.xlu0 %v1694, 32
          %v4424 = vpop.permute.xlu0 %4423
          %4425 = vrot.lane.b32.xlu0 %v1697, 32
          %v4426 = vpop.permute.xlu0 %4425
          %4427 = vrot.lane.b32.xlu0 %v1700, 32
          %v4428 = vpop.permute.xlu0 %4427
          %4429 = vrot.lane.b32.xlu0 %v1703, 32
          %v4430 = vpop.permute.xlu0 %4429
          %v4440 = vsel %vm1880, %v4396, 0
          %v4443 = vsel %vm1880, %v4398, 0
          %v4446 = vsel %vm1880, %v4400, 0
          %v4449 = vsel %vm1880, %v4402, 0
          %v4452 = vsel %vm1880, %v4404, 0
          %v4455 = vsel %vm1880, %v4406, 0
          %v4458 = vsel %vm1880, %v4408, 0
          %v4461 = vsel %vm1880, %v4410, 0
          %v4464 = vsel %vm1880, %v4412, 0
          %v4467 = vsel %vm2215, %v4430, 0
          %4469 = vmatprep.subr.bf16.mxu0 0
          %4470 = vmatpush1.bf16.msra.mxu0 %v4428
          %4471 = vmatprep.subr.bf16.mxu0 0
          %4472 = vmatpush1.bf16.msra.mxu0 %v4426
          %4473 = vmatprep.subr.bf16.mxu0 0
          %4474 = vmatpush1.bf16.msra.mxu0 %v4424
          %4475 = vmatprep.subr.bf16.mxu0 0
          %4476 = vmatpush1.bf16.msra.mxu0 %v4422
          %4477 = vmatprep.subr.bf16.mxu0 0
          %4478 = vmatpush1.bf16.msra.mxu0 %v4420
          %4479 = vmatprep.subr.bf16.mxu0 0
          %4480 = vmatpush1.bf16.msra.mxu0 %v4418
          %4481 = vmatprep.subr.bf16.mxu0 0
          %4482 = vmatpush1.bf16.msra.mxu0 %v4416
          %4483 = vmatprep.subr.bf16.mxu0 0
          %4484 = vmatpush1.bf16.msra.mxu0 %v4414
          %4485 = vmatprep.subr.bf16.mxu0 0
          %4486 = vmatpush2.bf16.msra.mxu0 0
          %4487 = vmatprep.subr.bf16.mxu0 0
          %4488 = vmatpush2.bf16.msra.mxu0 0
          %4489 = vmatprep.subr.bf16.mxu0 0
          %4490 = vmatpush2.bf16.msra.mxu0 0
          %4491 = vmatprep.subr.bf16.mxu0 0
          %4492 = vmatpush2.bf16.msra.mxu0 0
          %4493 = vmatprep.subr.bf16.mxu0 0
          %4494 = vmatpush2.bf16.msra.mxu0 0
          %4495 = vmatprep.subr.bf16.mxu0 0
          %4496 = vmatpush2.bf16.msra.mxu0 0
          %4497 = vmatprep.subr.bf16.mxu0 0
          %4498 = vmatpush2.bf16.msra.mxu0 0
          %4499 = vmatprep.subr.bf16.mxu0 0
          %4500 = vmatpush2.bf16.msra.mxu0 %v4467
          %4501 = vmatprep.mubr.bf16.mxu0 %v4440
          %4502 = vmatmul.mubr.bf16.gmra.mxu0 %v4395
          %v4503 = vpop.f32.mrf.mxu0
          %v4504 = vadd.f32 0.0, %v4503
          %v4505 = vpop.f32.mrf.mxu0
          %v4506 = vpop.f32.mrf.mxu0
          %v4507 = vadd.f32 0.0, %v4506
          %v4508 = vpop.f32.mrf.mxu0
          %4509 = vmatprep.mubr.bf16.mxu0 %v4443
          %4510 = vmatmul.mubr.bf16.gmra.mxu0 %v4397
          %v4511 = vpop.f32.mrf.mxu0
          %v4512 = vadd.f32 0.0, %v4511
          %v4513 = vpop.f32.mrf.mxu0
          %v4514 = vpop.f32.mrf.mxu0
          %v4515 = vadd.f32 0.0, %v4514
          %v4516 = vpop.f32.mrf.mxu0
          %4517 = vmatprep.mubr.bf16.mxu0 %v4446
          %4518 = vmatmul.mubr.bf16.gmra.mxu0 %v4399
          %v4519 = vpop.f32.mrf.mxu0
          %v4520 = vadd.f32 0.0, %v4519
          %v4521 = vpop.f32.mrf.mxu0
          %v4522 = vpop.f32.mrf.mxu0
          %v4523 = vadd.f32 0.0, %v4522
          %v4524 = vpop.f32.mrf.mxu0
          %4525 = vmatprep.mubr.bf16.mxu0 %v4449
          %4526 = vmatmul.mubr.bf16.gmra.mxu0 %v4401
          %v4527 = vpop.f32.mrf.mxu0
          %v4528 = vadd.f32 0.0, %v4527
          %v4529 = vpop.f32.mrf.mxu0
          %v4530 = vpop.f32.mrf.mxu0
          %v4531 = vadd.f32 0.0, %v4530
          %v4532 = vpop.f32.mrf.mxu0
          %4533 = vmatprep.mubr.bf16.mxu0 %v4452
          %4534 = vmatmul.mubr.bf16.gmra.mxu0 %v4403
          %v4535 = vpop.f32.mrf.mxu0
          %v4536 = vadd.f32 0.0, %v4535
          %v4537 = vpop.f32.mrf.mxu0
          %v4538 = vpop.f32.mrf.mxu0
          %v4539 = vadd.f32 0.0, %v4538
          %v4540 = vpop.f32.mrf.mxu0
          %4541 = vmatprep.mubr.bf16.mxu0 %v4455
          %4542 = vmatmul.mubr.bf16.gmra.mxu0 %v4405
          %v4543 = vpop.f32.mrf.mxu0
          %v4544 = vadd.f32 0.0, %v4543
          %v4545 = vpop.f32.mrf.mxu0
          %v4546 = vpop.f32.mrf.mxu0
          %v4547 = vadd.f32 0.0, %v4546
          %v4548 = vpop.f32.mrf.mxu0
          %4549 = vmatprep.mubr.bf16.mxu0 %v4458
          %4550 = vmatmul.mubr.bf16.gmra.mxu0 %v4407
          %v4551 = vpop.f32.mrf.mxu0
          %v4552 = vadd.f32 0.0, %v4551
          %v4553 = vpop.f32.mrf.mxu0
          %v4554 = vpop.f32.mrf.mxu0
          %v4555 = vadd.f32 0.0, %v4554
          %v4556 = vpop.f32.mrf.mxu0
          %4557 = vmatprep.mubr.bf16.mxu0 %v4461
          %4558 = vmatmul.mubr.bf16.gmra.mxu0 %v4409
          %v4559 = vpop.f32.mrf.mxu0
          %v4560 = vadd.f32 0.0, %v4559
          %v4561 = vpop.f32.mrf.mxu0
          %v4562 = vpop.f32.mrf.mxu0
          %v4563 = vadd.f32 0.0, %v4562
          %v4564 = vpop.f32.mrf.mxu0
          %4565 = vmatprep.mubr.bf16.mxu0 %v4464
          %4566 = vmatmul.mubr.bf16.gmra.mxu0 %v4411
          %v4567 = vpop.f32.mrf.mxu0
          %v4568 = vadd.f32 0.0, %v4567
          %v4569 = vpop.f32.mrf.mxu0
          %v4570 = vpop.f32.mrf.mxu0
          %v4571 = vpop.f32.mrf.mxu0
          %4572 = vdwg.mxu0
          %4590 = vrot.lane.b32.xlu0 %v4504, 96
          %v4591 = vpop.permute.xlu0 %4590
          %4592 = vrot.lane.b32.xlu0 %v4507, 96
          %v4593 = vpop.permute.xlu0 %4592
          %4594 = vrot.lane.b32.xlu0 %v4512, 96
          %v4595 = vpop.permute.xlu0 %4594
          %4596 = vrot.lane.b32.xlu0 %v4515, 96
          %v4597 = vpop.permute.xlu0 %4596
          %4598 = vrot.lane.b32.xlu0 %v4520, 96
          %v4599 = vpop.permute.xlu0 %4598
          %4600 = vrot.lane.b32.xlu0 %v4523, 96
          %v4601 = vpop.permute.xlu0 %4600
          %4602 = vrot.lane.b32.xlu0 %v4528, 96
          %v4603 = vpop.permute.xlu0 %4602
          %4604 = vrot.lane.b32.xlu0 %v4531, 96
          %v4605 = vpop.permute.xlu0 %4604
          %4606 = vrot.lane.b32.xlu0 %v4536, 96
          %v4607 = vpop.permute.xlu0 %4606
          %4608 = vrot.lane.b32.xlu0 %v4539, 96
          %v4609 = vpop.permute.xlu0 %4608
          %4610 = vrot.lane.b32.xlu0 %v4544, 96
          %v4611 = vpop.permute.xlu0 %4610
          %4612 = vrot.lane.b32.xlu0 %v4547, 96
          %v4613 = vpop.permute.xlu0 %4612
          %4614 = vrot.lane.b32.xlu0 %v4552, 96
          %v4615 = vpop.permute.xlu0 %4614
          %4616 = vrot.lane.b32.xlu0 %v4555, 96
          %v4617 = vpop.permute.xlu0 %4616
          %4618 = vrot.lane.b32.xlu0 %v4560, 96
          %v4619 = vpop.permute.xlu0 %4618
          %4620 = vrot.lane.b32.xlu0 %v4563, 96
          %v4621 = vpop.permute.xlu0 %4620
          %4622 = vrot.lane.b32.xlu0 %v4568, 96
          %v4623 = vpop.permute.xlu0 %4622
          %vm4641 = vcmask 1048320
          %4642 = vst.msk [vmem:[#allocation2] sm:$0xff] %vm4641, %v4591
          %4643 = vst.msk [vmem:[#allocation2 + $0x8] sm:$0xff] %vm4641, %v4593
          %4644 = vst.msk [vmem:[#allocation2 + $0x10] sm:$0xff] %vm4641, %v4595
          %4645 = vst.msk [vmem:[#allocation2 + $0x18] sm:$0xff] %vm4641, %v4597
          %4646 = vst.msk [vmem:[#allocation2 + $0x20] sm:$0xff] %vm4641, %v4599
          %4647 = vst.msk [vmem:[#allocation2 + $0x28] sm:$0xff] %vm4641, %v4601
          %4648 = vst.msk [vmem:[#allocation2 + $0x30] sm:$0xff] %vm4641, %v4603
          %4649 = vst.msk [vmem:[#allocation2 + $0x38] sm:$0xff] %vm4641, %v4605
          %4650 = vst.msk [vmem:[#allocation2 + $0x40] sm:$0xff] %vm4641, %v4607
          %4651 = vst.msk [vmem:[#allocation2 + $0x48] sm:$0xff] %vm4641, %v4609
          %4652 = vst.msk [vmem:[#allocation2 + $0x50] sm:$0xff] %vm4641, %v4611
          %4653 = vst.msk [vmem:[#allocation2 + $0x58] sm:$0xff] %vm4641, %v4613
          %4654 = vst.msk [vmem:[#allocation2 + $0x60] sm:$0xff] %vm4641, %v4615
          %4655 = vst.msk [vmem:[#allocation2 + $0x68] sm:$0xff] %vm4641, %v4617
          %4656 = vst.msk [vmem:[#allocation2 + $0x70] sm:$0xff] %vm4641, %v4619
          %4657 = vst.msk [vmem:[#allocation2 + $0x78] sm:$0xff] %vm4641, %v4621
          %4658 = vst.msk [vmem:[#allocation2 + $0x80] sm:$0xff] %vm4641, %v4623
          %v4659 = vld [vmem:[#allocation2] sm:$0xff]
          %v4660 = vld [vmem:[#allocation2 + $0x8] sm:$0xff]
          %v4661 = vld [vmem:[#allocation2 + $0x10] sm:$0xff]
          %v4662 = vld [vmem:[#allocation2 + $0x18] sm:$0xff]
          %v4663 = vld [vmem:[#allocation2 + $0x20] sm:$0xff]
          %v4664 = vld [vmem:[#allocation2 + $0x28] sm:$0xff]
          %v4665 = vld [vmem:[#allocation2 + $0x30] sm:$0xff]
          %v4666 = vld [vmem:[#allocation2 + $0x38] sm:$0xff]
          %v4667 = vld [vmem:[#allocation2 + $0x40] sm:$0xff]
          %v4668 = vld [vmem:[#allocation2 + $0x48] sm:$0xff]
          %v4669 = vld [vmem:[#allocation2 + $0x50] sm:$0xff]
          %v4670 = vld [vmem:[#allocation2 + $0x58] sm:$0xff]
          %v4671 = vld [vmem:[#allocation2 + $0x60] sm:$0xff]
          %v4672 = vld [vmem:[#allocation2 + $0x68] sm:$0xff]
          %v4673 = vld [vmem:[#allocation2 + $0x70] sm:$0xff]
          %v4674 = vld [vmem:[#allocation2 + $0x78] sm:$0xff]
          %v4675 = vld [vmem:[#allocation2 + $0x80] sm:$0xff]
          %v4676 = vpack.c.bf16 %v4660, %v4659
          %v4677 = vpack.c.bf16 %v4662, %v4661
          %v4678 = vpack.c.bf16 %v4664, %v4663
          %v4679 = vpack.c.bf16 %v4666, %v4665
          %v4680 = vpack.c.bf16 %v4668, %v4667
          %v4681 = vpack.c.bf16 %v4670, %v4669
          %v4682 = vpack.c.bf16 %v4672, %v4671
          %v4683 = vpack.c.bf16 %v4674, %v4673
          %v4684 = vpack.c.bf16 %v4675, %v4675
          %s4685 = smul.u32 %s1001, 16
          %s4686 = smul.addr %s4685, 4
          %s4687 = scalar_lea.vmem [#allocation14], %s4686
          %v4688 = vld [vmem:[%s4687] sm:$0xf]
          %v4689 = vld [vmem:[%s4687 + $0x4] sm:$0xf]
          %v4690 = vld [vmem:[%s4687 + $0x8] sm:$0xf]
          %v4691 = vld [vmem:[%s4687 + $0xc] sm:$0xf]
          %v4692 = vld [vmem:[%s4687 + $0x10] sm:$0xf]
          %v4693 = vld [vmem:[%s4687 + $0x14] sm:$0xf]
          %v4694 = vld [vmem:[%s4687 + $0x18] sm:$0xf]
          %v4695 = vld [vmem:[%s4687 + $0x1c] sm:$0xf]
          %v4696 = vld [vmem:[%s4687 + $0x20] sm:$0xf]
          %v4697 = vld [vmem:[%s4687 + $0x24] sm:$0xf]
          %v4698 = vld [vmem:[%s4687 + $0x28] sm:$0xf]
          %v4699 = vld [vmem:[%s4687 + $0x2c] sm:$0xf]
          %v4700 = vld [vmem:[%s4687 + $0x30] sm:$0xf]
          %v4701 = vld [vmem:[%s4687 + $0x34] sm:$0xf]
          %v4702 = vld [vmem:[%s4687 + $0x38] sm:$0xf]
          %v4703 = vld [vmem:[%s4687 + $0x3c] sm:$0xf]
          %v4720 = vunpack.c.l.b16 %v4688
          %v4721 = vunpack.c.l.b16 %v4689
          %v4722 = vunpack.c.l.b16 %v4690
          %v4723 = vunpack.c.l.b16 %v4691
          %v4724 = vunpack.c.l.b16 %v4692
          %v4725 = vunpack.c.l.b16 %v4693
          %v4726 = vunpack.c.l.b16 %v4694
          %v4727 = vunpack.c.l.b16 %v4695
          %v4728 = vunpack.c.l.b16 %v4696
          %v4729 = vunpack.c.l.b16 %v4697
          %v4730 = vunpack.c.l.b16 %v4698
          %v4731 = vunpack.c.l.b16 %v4699
          %v4732 = vunpack.c.l.b16 %v4700
          %v4733 = vunpack.c.l.b16 %v4701
          %v4734 = vunpack.c.l.b16 %v4702
          %v4735 = vunpack.c.l.b16 %v4703
          %v4736 = vpack.c.b16 %v4721, %v4720
          %v4737 = vpack.c.b16 %v4723, %v4722
          %v4738 = vpack.c.b16 %v4725, %v4724
          %v4739 = vpack.c.b16 %v4727, %v4726
          %v4740 = vpack.c.b16 %v4729, %v4728
          %v4741 = vpack.c.b16 %v4731, %v4730
          %v4742 = vpack.c.b16 %v4733, %v4732
          %v4743 = vpack.c.b16 %v4735, %v4734
          %4752 = vmatprep.subr.bf16.mxu0 0
          %4753 = vmatpush1.bf16.msra.mxu0 %v4743
          %4754 = vmatprep.subr.bf16.mxu0 0
          %4755 = vmatpush1.bf16.msra.mxu0 %v4742
          %4756 = vmatprep.subr.bf16.mxu0 0
          %4757 = vmatpush1.bf16.msra.mxu0 %v4741
          %4758 = vmatprep.subr.bf16.mxu0 0
          %4759 = vmatpush1.bf16.msra.mxu0 %v4740
          %4760 = vmatprep.subr.bf16.mxu0 0
          %4761 = vmatpush1.bf16.msra.mxu0 %v4739
          %4762 = vmatprep.subr.bf16.mxu0 0
          %4763 = vmatpush1.bf16.msra.mxu0 %v4738
          %4764 = vmatprep.subr.bf16.mxu0 0
          %4765 = vmatpush1.bf16.msra.mxu0 %v4737
          %4766 = vmatprep.subr.bf16.mxu0 0
          %4767 = vmatpush1.bf16.msra.mxu0 %v4736
          %4768 = vmatprep.subr.bf16.mxu0 0
          %4769 = vmatpush2.bf16.msra.mxu0 0
          %4770 = vmatprep.subr.bf16.mxu0 0
          %4771 = vmatpush2.bf16.msra.mxu0 0
          %4772 = vmatprep.subr.bf16.mxu0 0
          %4773 = vmatpush2.bf16.msra.mxu0 0
          %4774 = vmatprep.subr.bf16.mxu0 0
          %4775 = vmatpush2.bf16.msra.mxu0 0
          %4776 = vmatprep.subr.bf16.mxu0 0
          %4777 = vmatpush2.bf16.msra.mxu0 0
          %4778 = vmatprep.subr.bf16.mxu0 0
          %4779 = vmatpush2.bf16.msra.mxu0 0
          %4780 = vmatprep.subr.bf16.mxu0 0
          %4781 = vmatpush2.bf16.msra.mxu0 0
          %4782 = vmatprep.subr.bf16.mxu0 0
          %4783 = vmatpush2.bf16.msra.mxu0 0
          %4784 = vmatprep.mubr.bf16.mxu0 0
          %4785 = vmatmul.mubr.bf16.gmra.mxu0 %v4676
          %v4786 = vpop.f32.mrf.mxu0
          %v4787 = vadd.f32 0.0, %v4786
          %v4788 = vpop.f32.mrf.mxu0
          %v4789 = vpop.f32.mrf.mxu0
          %v4790 = vadd.f32 0.0, %v4789
          %v4791 = vpop.f32.mrf.mxu0
          %4792 = vmatprep.mubr.bf16.mxu0 0
          %4793 = vmatmul.mubr.bf16.gmra.mxu0 %v4677
          %v4794 = vpop.f32.mrf.mxu0
          %v4795 = vadd.f32 0.0, %v4794
          %v4796 = vpop.f32.mrf.mxu0
          %v4797 = vpop.f32.mrf.mxu0
          %v4798 = vadd.f32 0.0, %v4797
          %v4799 = vpop.f32.mrf.mxu0
          %4800 = vmatprep.mubr.bf16.mxu0 0
          %4801 = vmatmul.mubr.bf16.gmra.mxu0 %v4678
          %v4802 = vpop.f32.mrf.mxu0
          %v4803 = vadd.f32 0.0, %v4802
          %v4804 = vpop.f32.mrf.mxu0
          %v4805 = vpop.f32.mrf.mxu0
          %v4806 = vadd.f32 0.0, %v4805
          %v4807 = vpop.f32.mrf.mxu0
          %4808 = vmatprep.mubr.bf16.mxu0 0
          %4809 = vmatmul.mubr.bf16.gmra.mxu0 %v4679
          %v4810 = vpop.f32.mrf.mxu0
          %v4811 = vadd.f32 0.0, %v4810
          %v4812 = vpop.f32.mrf.mxu0
          %v4813 = vpop.f32.mrf.mxu0
          %v4814 = vadd.f32 0.0, %v4813
          %v4815 = vpop.f32.mrf.mxu0
          %4816 = vmatprep.mubr.bf16.mxu0 0
          %4817 = vmatmul.mubr.bf16.gmra.mxu0 %v4680
          %v4818 = vpop.f32.mrf.mxu0
          %v4819 = vadd.f32 0.0, %v4818
          %v4820 = vpop.f32.mrf.mxu0
          %v4821 = vpop.f32.mrf.mxu0
          %v4822 = vadd.f32 0.0, %v4821
          %v4823 = vpop.f32.mrf.mxu0
          %4824 = vmatprep.mubr.bf16.mxu0 0
          %4825 = vmatmul.mubr.bf16.gmra.mxu0 %v4681
          %v4826 = vpop.f32.mrf.mxu0
          %v4827 = vadd.f32 0.0, %v4826
          %v4828 = vpop.f32.mrf.mxu0
          %v4829 = vpop.f32.mrf.mxu0
          %v4830 = vadd.f32 0.0, %v4829
          %v4831 = vpop.f32.mrf.mxu0
          %4832 = vmatprep.mubr.bf16.mxu0 0
          %4833 = vmatmul.mubr.bf16.gmra.mxu0 %v4682
          %v4834 = vpop.f32.mrf.mxu0
          %v4835 = vadd.f32 0.0, %v4834
          %v4836 = vpop.f32.mrf.mxu0
          %v4837 = vpop.f32.mrf.mxu0
          %v4838 = vadd.f32 0.0, %v4837
          %v4839 = vpop.f32.mrf.mxu0
          %4840 = vmatprep.mubr.bf16.mxu0 0
          %4841 = vmatmul.mubr.bf16.gmra.mxu0 %v4683
          %v4842 = vpop.f32.mrf.mxu0
          %v4843 = vadd.f32 0.0, %v4842
          %v4844 = vpop.f32.mrf.mxu0
          %v4845 = vpop.f32.mrf.mxu0
          %v4846 = vadd.f32 0.0, %v4845
          %v4847 = vpop.f32.mrf.mxu0
          %4848 = vmatprep.mubr.bf16.mxu0 0
          %4849 = vmatmul.mubr.bf16.gmra.mxu0 %v4684
          %v4850 = vpop.f32.mrf.mxu0
          %v4851 = vadd.f32 0.0, %v4850
          %v4852 = vpop.f32.mrf.mxu0
          %v4853 = vpop.f32.mrf.mxu0
          %v4854 = vpop.f32.mrf.mxu0
          %4855 = vdwg.mxu0
          %v4856 = vadd.f32 %v1006, %v4787
          %v4857 = vadd.f32 %v1007, %v4790
          %v4858 = vadd.f32 %v1008, %v4795
          %v4859 = vadd.f32 %v1009, %v4798
          %v4860 = vadd.f32 %v1010, %v4803
          %v4861 = vadd.f32 %v1011, %v4806
          %v4862 = vadd.f32 %v1012, %v4811
          %v4863 = vadd.f32 %v1013, %v4814
          %v4864 = vadd.f32 %v1014, %v4819
          %v4865 = vadd.f32 %v1015, %v4822
          %v4866 = vadd.f32 %v1016, %v4827
          %v4867 = vadd.f32 %v1017, %v4830
          %v4868 = vadd.f32 %v1018, %v4835
          %v4869 = vadd.f32 %v1019, %v4838
          %v4870 = vadd.f32 %v1020, %v4843
          %v4871 = vadd.f32 %v1021, %v4846
          %v4872 = vadd.f32 %v1022, %v4851
          %s4873 = scalar_lea.vmem %s8, %s1001
          %v4874 = vld [vmem:[%s4873] sm:$0x1]
          %v4876 = vlaneseq
          %v4877 = vshrl.u32 %v4876, 7
          %v4878 = vsub.s32 0, %v4877
          %v4879 = vrot.slane %v4874, %v4878
          %v4881 = vadd.f32 %v4856, %v4879
          %v4882 = vadd.f32 %v4857, %v4879
          %v4883 = vadd.f32 %v4858, %v4879
          %v4884 = vadd.f32 %v4859, %v4879
          %v4885 = vadd.f32 %v4860, %v4879
          %v4886 = vadd.f32 %v4861, %v4879
          %v4887 = vadd.f32 %v4862, %v4879
          %v4888 = vadd.f32 %v4863, %v4879
          %v4889 = vadd.f32 %v4864, %v4879
          %v4890 = vadd.f32 %v4865, %v4879
          %v4891 = vadd.f32 %v4866, %v4879
          %v4892 = vadd.f32 %v4867, %v4879
          %v4893 = vadd.f32 %v4868, %v4879
          %v4894 = vadd.f32 %v4869, %v4879
          %v4895 = vadd.f32 %v4870, %v4879
          %v4896 = vadd.f32 %v4871, %v4879
          %v4897 = vadd.f32 %v4872, %v4879
          %s4898 = scalar_lea.vmem [#allocation15], %s1001
          %v4899 = vld [vmem:[%s4898] sm:$0x1]
          %s4900 = scalar_lea.vmem %s10, %s1001
          %v4901 = vld [vmem:[%s4900] sm:$0x1]
          %4902 = vadd.xlane.f32.xlu0 %v4881
          %v4903 = vpop.xlane.xlu0 %4902
          %4904 = vadd.xlane.f32.xlu0 %v4882
          %v4905 = vpop.xlane.xlu0 %4904
          %4906 = vadd.xlane.f32.xlu0 %v4883
          %v4907 = vpop.xlane.xlu0 %4906
          %4908 = vadd.xlane.f32.xlu0 %v4884
          %v4909 = vpop.xlane.xlu0 %4908
          %4910 = vadd.xlane.f32.xlu0 %v4885
          %v4911 = vpop.xlane.xlu0 %4910
          %4912 = vadd.xlane.f32.xlu0 %v4886
          %v4913 = vpop.xlane.xlu0 %4912
          %4914 = vadd.xlane.f32.xlu0 %v4887
          %v4915 = vpop.xlane.xlu0 %4914
          %4916 = vadd.xlane.f32.xlu0 %v4888
          %v4917 = vpop.xlane.xlu0 %4916
          %4918 = vadd.xlane.f32.xlu0 %v4889
          %v4919 = vpop.xlane.xlu0 %4918
          %4920 = vadd.xlane.f32.xlu0 %v4890
          %v4921 = vpop.xlane.xlu0 %4920
          %4922 = vadd.xlane.f32.xlu0 %v4891
          %v4923 = vpop.xlane.xlu0 %4922
          %4924 = vadd.xlane.f32.xlu0 %v4892
          %v4925 = vpop.xlane.xlu0 %4924
          %4926 = vadd.xlane.f32.xlu0 %v4893
          %v4927 = vpop.xlane.xlu0 %4926
          %4928 = vadd.xlane.f32.xlu0 %v4894
          %v4929 = vpop.xlane.xlu0 %4928
          %4930 = vadd.xlane.f32.xlu0 %v4895
          %v4931 = vpop.xlane.xlu0 %4930
          %4932 = vadd.xlane.f32.xlu0 %v4896
          %v4933 = vpop.xlane.xlu0 %4932
          %4934 = vadd.xlane.f32.xlu0 %v4897
          %v4935 = vpop.xlane.xlu0 %4934
          %v4936 = vmul.f32 %v4903, %v1061
          %v4937 = vmul.f32 %v4905, %v1061
          %v4938 = vmul.f32 %v4907, %v1061
          %v4939 = vmul.f32 %v4909, %v1061
          %v4940 = vmul.f32 %v4911, %v1061
          %v4941 = vmul.f32 %v4913, %v1061
          %v4942 = vmul.f32 %v4915, %v1061
          %v4943 = vmul.f32 %v4917, %v1061
          %v4944 = vmul.f32 %v4919, %v1061
          %v4945 = vmul.f32 %v4921, %v1061
          %v4946 = vmul.f32 %v4923, %v1061
          %v4947 = vmul.f32 %v4925, %v1061
          %v4948 = vmul.f32 %v4927, %v1061
          %v4949 = vmul.f32 %v4929, %v1061
          %v4950 = vmul.f32 %v4931, %v1061
          %v4951 = vmul.f32 %v4933, %v1061
          %v4952 = vmul.f32 %v4935, %v1061
          %v4953 = vsub.f32 %v4881, %v4936
          %v4954 = vsub.f32 %v4882, %v4937
          %v4955 = vsub.f32 %v4883, %v4938
          %v4956 = vsub.f32 %v4884, %v4939
          %v4957 = vsub.f32 %v4885, %v4940
          %v4958 = vsub.f32 %v4886, %v4941
          %v4959 = vsub.f32 %v4887, %v4942
          %v4960 = vsub.f32 %v4888, %v4943
          %v4961 = vsub.f32 %v4889, %v4944
          %v4962 = vsub.f32 %v4890, %v4945
          %v4963 = vsub.f32 %v4891, %v4946
          %v4964 = vsub.f32 %v4892, %v4947
          %v4965 = vsub.f32 %v4893, %v4948
          %v4966 = vsub.f32 %v4894, %v4949
          %v4967 = vsub.f32 %v4895, %v4950
          %v4968 = vsub.f32 %v4896, %v4951
          %v4969 = vsub.f32 %v4897, %v4952
          %v4970 = vmul.f32 %v4953, %v4953
          %v4971 = vmul.f32 %v4954, %v4954
          %v4972 = vmul.f32 %v4955, %v4955
          %v4973 = vmul.f32 %v4956, %v4956
          %v4974 = vmul.f32 %v4957, %v4957
          %v4975 = vmul.f32 %v4958, %v4958
          %v4976 = vmul.f32 %v4959, %v4959
          %v4977 = vmul.f32 %v4960, %v4960
          %v4978 = vmul.f32 %v4961, %v4961
          %v4979 = vmul.f32 %v4962, %v4962
          %v4980 = vmul.f32 %v4963, %v4963
          %v4981 = vmul.f32 %v4964, %v4964
          %v4982 = vmul.f32 %v4965, %v4965
          %v4983 = vmul.f32 %v4966, %v4966
          %v4984 = vmul.f32 %v4967, %v4967
          %v4985 = vmul.f32 %v4968, %v4968
          %v4986 = vmul.f32 %v4969, %v4969
          %4987 = vadd.xlane.f32.xlu0 %v4970
          %v4988 = vpop.xlane.xlu0 %4987
          %4989 = vadd.xlane.f32.xlu0 %v4971
          %v4990 = vpop.xlane.xlu0 %4989
          %4991 = vadd.xlane.f32.xlu0 %v4972
          %v4992 = vpop.xlane.xlu0 %4991
          %4993 = vadd.xlane.f32.xlu0 %v4973
          %v4994 = vpop.xlane.xlu0 %4993
          %4995 = vadd.xlane.f32.xlu0 %v4974
          %v4996 = vpop.xlane.xlu0 %4995
          %4997 = vadd.xlane.f32.xlu0 %v4975
          %v4998 = vpop.xlane.xlu0 %4997
          %4999 = vadd.xlane.f32.xlu0 %v4976
          %v5000 = vpop.xlane.xlu0 %4999
          %5001 = vadd.xlane.f32.xlu0 %v4977
          %v5002 = vpop.xlane.xlu0 %5001
          %5003 = vadd.xlane.f32.xlu0 %v4978
          %v5004 = vpop.xlane.xlu0 %5003
          %5005 = vadd.xlane.f32.xlu0 %v4979
          %v5006 = vpop.xlane.xlu0 %5005
          %5007 = vadd.xlane.f32.xlu0 %v4980
          %v5008 = vpop.xlane.xlu0 %5007
          %5009 = vadd.xlane.f32.xlu0 %v4981
          %v5010 = vpop.xlane.xlu0 %5009
          %5011 = vadd.xlane.f32.xlu0 %v4982
          %v5012 = vpop.xlane.xlu0 %5011
          %5013 = vadd.xlane.f32.xlu0 %v4983
          %v5014 = vpop.xlane.xlu0 %5013
          %5015 = vadd.xlane.f32.xlu0 %v4984
          %v5016 = vpop.xlane.xlu0 %5015
          %5017 = vadd.xlane.f32.xlu0 %v4985
          %v5018 = vpop.xlane.xlu0 %5017
          %5019 = vadd.xlane.f32.xlu0 %v4986
          %v5020 = vpop.xlane.xlu0 %5019
          %v5021 = vmul.f32 %v4988, %v1061
          %v5022 = vmul.f32 %v4990, %v1061
          %v5023 = vmul.f32 %v4992, %v1061
          %v5024 = vmul.f32 %v4994, %v1061
          %v5025 = vmul.f32 %v4996, %v1061
          %v5026 = vmul.f32 %v4998, %v1061
          %v5027 = vmul.f32 %v5000, %v1061
          %v5028 = vmul.f32 %v5002, %v1061
          %v5029 = vmul.f32 %v5004, %v1061
          %v5030 = vmul.f32 %v5006, %v1061
          %v5031 = vmul.f32 %v5008, %v1061
          %v5032 = vmul.f32 %v5010, %v1061
          %v5033 = vmul.f32 %v5012, %v1061
          %v5034 = vmul.f32 %v5014, %v1061
          %v5035 = vmul.f32 %v5016, %v1061
          %v5036 = vmul.f32 %v5018, %v1061
          %v5037 = vmul.f32 %v5020, %v1061
          %v5038 = vadd.f32 %v5021, 1e-05
          %v5039 = vadd.f32 %v5022, 1e-05
          %v5040 = vadd.f32 %v5023, 1e-05
          %v5041 = vadd.f32 %v5024, 1e-05
          %v5042 = vadd.f32 %v5025, 1e-05
          %v5043 = vadd.f32 %v5026, 1e-05
          %v5044 = vadd.f32 %v5027, 1e-05
          %v5045 = vadd.f32 %v5028, 1e-05
          %v5046 = vadd.f32 %v5029, 1e-05
          %v5047 = vadd.f32 %v5030, 1e-05
          %v5048 = vadd.f32 %v5031, 1e-05
          %v5049 = vadd.f32 %v5032, 1e-05
          %v5050 = vadd.f32 %v5033, 1e-05
          %v5051 = vadd.f32 %v5034, 1e-05
          %v5052 = vadd.f32 %v5035, 1e-05
          %v5053 = vadd.f32 %v5036, 1e-05
          %v5054 = vadd.f32 %v5037, 1e-05
          %v5055 = vrsqrt.pop %v5038
          %v5056 = vrsqrt.pop %v5039
          %v5057 = vrsqrt.pop %v5040
          %v5058 = vrsqrt.pop %v5041
          %v5059 = vrsqrt.pop %v5042
          %v5060 = vrsqrt.pop %v5043
          %v5061 = vrsqrt.pop %v5044
          %v5062 = vrsqrt.pop %v5045
          %v5063 = vrsqrt.pop %v5046
          %v5064 = vrsqrt.pop %v5047
          %v5065 = vrsqrt.pop %v5048
          %v5066 = vrsqrt.pop %v5049
          %v5067 = vrsqrt.pop %v5050
          %v5068 = vrsqrt.pop %v5051
          %v5069 = vrsqrt.pop %v5052
          %v5070 = vrsqrt.pop %v5053
          %v5071 = vrsqrt.pop %v5054
          %v5072 = vmul.f32 %v4953, %v5055
          %v5073 = vmul.f32 %v4954, %v5056
          %v5074 = vmul.f32 %v4955, %v5057
          %v5075 = vmul.f32 %v4956, %v5058
          %v5076 = vmul.f32 %v4957, %v5059
          %v5077 = vmul.f32 %v4958, %v5060
          %v5078 = vmul.f32 %v4959, %v5061
          %v5079 = vmul.f32 %v4960, %v5062
          %v5080 = vmul.f32 %v4961, %v5063
          %v5081 = vmul.f32 %v4962, %v5064
          %v5082 = vmul.f32 %v4963, %v5065
          %v5083 = vmul.f32 %v4964, %v5066
          %v5084 = vmul.f32 %v4965, %v5067
          %v5085 = vmul.f32 %v4966, %v5068
          %v5086 = vmul.f32 %v4967, %v5069
          %v5087 = vmul.f32 %v4968, %v5070
          %v5088 = vmul.f32 %v4969, %v5071
          %v5090 = vlaneseq
          %v5091 = vshrl.u32 %v5090, 7
          %v5092 = vsub.s32 0, %v5091
          %v5093 = vrot.slane %v4899, %v5092
          %v5095 = vmul.f32 %v5072, %v5093
          %v5096 = vmul.f32 %v5073, %v5093
          %v5097 = vmul.f32 %v5074, %v5093
          %v5098 = vmul.f32 %v5075, %v5093
          %v5099 = vmul.f32 %v5076, %v5093
          %v5100 = vmul.f32 %v5077, %v5093
          %v5101 = vmul.f32 %v5078, %v5093
          %v5102 = vmul.f32 %v5079, %v5093
          %v5103 = vmul.f32 %v5080, %v5093
          %v5104 = vmul.f32 %v5081, %v5093
          %v5105 = vmul.f32 %v5082, %v5093
          %v5106 = vmul.f32 %v5083, %v5093
          %v5107 = vmul.f32 %v5084, %v5093
          %v5108 = vmul.f32 %v5085, %v5093
          %v5109 = vmul.f32 %v5086, %v5093
          %v5110 = vmul.f32 %v5087, %v5093
          %v5111 = vmul.f32 %v5088, %v5093
          %v5113 = vlaneseq
          %v5114 = vshrl.u32 %v5113, 7
          %v5115 = vsub.s32 0, %v5114
          %v5116 = vrot.slane %v4901, %v5115
          %v5118 = vadd.f32 %v5095, %v5116
          %v5119 = vadd.f32 %v5096, %v5116
          %v5120 = vadd.f32 %v5097, %v5116
          %v5121 = vadd.f32 %v5098, %v5116
          %v5122 = vadd.f32 %v5099, %v5116
          %v5123 = vadd.f32 %v5100, %v5116
          %v5124 = vadd.f32 %v5101, %v5116
          %v5125 = vadd.f32 %v5102, %v5116
          %v5126 = vadd.f32 %v5103, %v5116
          %v5127 = vadd.f32 %v5104, %v5116
          %v5128 = vadd.f32 %v5105, %v5116
          %v5129 = vadd.f32 %v5106, %v5116
          %v5130 = vadd.f32 %v5107, %v5116
          %v5131 = vadd.f32 %v5108, %v5116
          %v5132 = vadd.f32 %v5109, %v5116
          %v5133 = vadd.f32 %v5110, %v5116
          %v5134 = vadd.f32 %v5111, %v5116
          %v5135 = vpack.c.bf16 %v5119, %v5118
          %v5136 = vpack.c.bf16 %v5121, %v5120
          %v5137 = vpack.c.bf16 %v5123, %v5122
          %v5138 = vpack.c.bf16 %v5125, %v5124
          %v5139 = vpack.c.bf16 %v5127, %v5126
          %v5140 = vpack.c.bf16 %v5129, %v5128
          %v5141 = vpack.c.bf16 %v5131, %v5130
          %v5142 = vpack.c.bf16 %v5133, %v5132
          %v5143 = vpack.c.bf16 %v5134, %v5134
          %s5144 = smul.u32 %s1001, 64
          %s5145 = smul.addr %s5144, 4
          %s5146 = scalar_lea.vmem [#allocation17], %s5145
          %v5147 = vld [vmem:[%s5146] sm:$0xff]
          %v5148 = vld [vmem:[%s5146 + $0x8] sm:$0xff]
          %v5149 = vld [vmem:[%s5146 + $0x10] sm:$0xff]
          %v5150 = vld [vmem:[%s5146 + $0x18] sm:$0xff]
          %v5151 = vld [vmem:[%s5146 + $0x20] sm:$0xff]
          %v5152 = vld [vmem:[%s5146 + $0x28] sm:$0xff]
          %v5153 = vld [vmem:[%s5146 + $0x30] sm:$0xff]
          %v5154 = vld [vmem:[%s5146 + $0x38] sm:$0xff]
          %v5155 = vld [vmem:[%s5146 + $0x40] sm:$0xff]
          %v5156 = vld [vmem:[%s5146 + $0x48] sm:$0xff]
          %v5157 = vld [vmem:[%s5146 + $0x50] sm:$0xff]
          %v5158 = vld [vmem:[%s5146 + $0x58] sm:$0xff]
          %v5159 = vld [vmem:[%s5146 + $0x60] sm:$0xff]
          %v5160 = vld [vmem:[%s5146 + $0x68] sm:$0xff]
          %v5161 = vld [vmem:[%s5146 + $0x70] sm:$0xff]
          %v5162 = vld [vmem:[%s5146 + $0x78] sm:$0xff]
          %v5163 = vld [vmem:[%s5146 + $0x80] sm:$0xff]
          %v5164 = vld [vmem:[%s5146 + $0x88] sm:$0xff]
          %v5165 = vld [vmem:[%s5146 + $0x90] sm:$0xff]
          %v5166 = vld [vmem:[%s5146 + $0x98] sm:$0xff]
          %v5167 = vld [vmem:[%s5146 + $0xa0] sm:$0xff]
          %v5168 = vld [vmem:[%s5146 + $0xa8] sm:$0xff]
          %v5169 = vld [vmem:[%s5146 + $0xb0] sm:$0xff]
          %v5170 = vld [vmem:[%s5146 + $0xb8] sm:$0xff]
          %v5171 = vld [vmem:[%s5146 + $0xc0] sm:$0xff]
          %v5172 = vld [vmem:[%s5146 + $0xc8] sm:$0xff]
          %v5173 = vld [vmem:[%s5146 + $0xd0] sm:$0xff]
          %v5174 = vld [vmem:[%s5146 + $0xd8] sm:$0xff]
          %v5175 = vld [vmem:[%s5146 + $0xe0] sm:$0xff]
          %v5176 = vld [vmem:[%s5146 + $0xe8] sm:$0xff]
          %v5177 = vld [vmem:[%s5146 + $0xf0] sm:$0xff]
          %v5178 = vld [vmem:[%s5146 + $0xf8] sm:$0xff]
          %s5179 = smul.u32 %s1001, 4
          %s5180 = scalar_lea.vmem [#allocation18], %s5179
          %v5181 = vld [vmem:[%s5180] sm:$0xf]
          %v5183 = vlaneseq
          %v5184 = vshrl.u32 %v5183, 7
          %v5185 = vsub.s32 0, %v5184
          %v5186 = vrot.slane %v5181, %v5185
          %v5187 = vlaneseq
          %v5188 = vshrl.u32 %v5187, 7
          %v5189 = vsub.s32 1, %v5188
          %v5190 = vrot.slane %v5181, %v5189
          %v5191 = vlaneseq
          %v5192 = vshrl.u32 %v5191, 7
          %v5193 = vsub.s32 2, %v5192
          %v5194 = vrot.slane %v5181, %v5193
          %v5195 = vlaneseq
          %v5196 = vshrl.u32 %v5195, 7
          %v5197 = vsub.s32 3, %v5196
          %v5198 = vrot.slane %v5181, %v5197
          %v5235 = vunpack.c.l.b16 %v5147
          %v5236 = vunpack.c.h.b16 %v5147
          %v5237 = vunpack.c.l.b16 %v5148
          %v5238 = vunpack.c.h.b16 %v5148
          %v5239 = vunpack.c.l.b16 %v5149
          %v5240 = vunpack.c.h.b16 %v5149
          %v5241 = vunpack.c.l.b16 %v5150
          %v5242 = vunpack.c.h.b16 %v5150
          %v5243 = vunpack.c.l.b16 %v5151
          %v5244 = vunpack.c.h.b16 %v5151
          %v5245 = vunpack.c.l.b16 %v5152
          %v5246 = vunpack.c.h.b16 %v5152
          %v5247 = vunpack.c.l.b16 %v5153
          %v5248 = vunpack.c.h.b16 %v5153
          %v5249 = vunpack.c.l.b16 %v5154
          %v5250 = vunpack.c.h.b16 %v5154
          %v5251 = vunpack.c.l.b16 %v5155
          %v5252 = vunpack.c.h.b16 %v5155
          %v5253 = vunpack.c.l.b16 %v5156
          %v5254 = vunpack.c.h.b16 %v5156
          %v5255 = vunpack.c.l.b16 %v5157
          %v5256 = vunpack.c.h.b16 %v5157
          %v5257 = vunpack.c.l.b16 %v5158
          %v5258 = vunpack.c.h.b16 %v5158
          %v5259 = vunpack.c.l.b16 %v5159
          %v5260 = vunpack.c.h.b16 %v5159
          %v5261 = vunpack.c.l.b16 %v5160
          %v5262 = vunpack.c.h.b16 %v5160
          %v5263 = vunpack.c.l.b16 %v5161
          %v5264 = vunpack.c.h.b16 %v5161
          %v5265 = vunpack.c.l.b16 %v5162
          %v5266 = vunpack.c.h.b16 %v5162
          %v5267 = vunpack.c.l.b16 %v5163
          %v5268 = vunpack.c.h.b16 %v5163
          %v5269 = vunpack.c.l.b16 %v5164
          %v5270 = vunpack.c.h.b16 %v5164
          %v5271 = vunpack.c.l.b16 %v5165
          %v5272 = vunpack.c.h.b16 %v5165
          %v5273 = vunpack.c.l.b16 %v5166
          %v5274 = vunpack.c.h.b16 %v5166
          %v5275 = vunpack.c.l.b16 %v5167
          %v5276 = vunpack.c.h.b16 %v5167
          %v5277 = vunpack.c.l.b16 %v5168
          %v5278 = vunpack.c.h.b16 %v5168
          %v5279 = vunpack.c.l.b16 %v5169
          %v5280 = vunpack.c.h.b16 %v5169
          %v5281 = vunpack.c.l.b16 %v5170
          %v5282 = vunpack.c.h.b16 %v5170
          %v5283 = vunpack.c.l.b16 %v5171
          %v5284 = vunpack.c.h.b16 %v5171
          %v5285 = vunpack.c.l.b16 %v5172
          %v5286 = vunpack.c.h.b16 %v5172
          %v5287 = vunpack.c.l.b16 %v5173
          %v5288 = vunpack.c.h.b16 %v5173
          %v5289 = vunpack.c.l.b16 %v5174
          %v5290 = vunpack.c.h.b16 %v5174
          %v5291 = vunpack.c.l.b16 %v5175
          %v5292 = vunpack.c.h.b16 %v5175
          %v5293 = vunpack.c.l.b16 %v5176
          %v5294 = vunpack.c.h.b16 %v5176
          %v5295 = vunpack.c.l.b16 %v5177
          %v5296 = vunpack.c.h.b16 %v5177
          %v5297 = vunpack.c.l.b16 %v5178
          %v5298 = vunpack.c.h.b16 %v5178
          %v5299 = vpack.c.b16 %v5239, %v5235
          %v5300 = vpack.c.b16 %v5240, %v5236
          %v5301 = vpack.c.b16 %v5241, %v5237
          %v5302 = vpack.c.b16 %v5242, %v5238
          %v5303 = vpack.c.b16 %v5247, %v5243
          %v5304 = vpack.c.b16 %v5248, %v5244
          %v5305 = vpack.c.b16 %v5249, %v5245
          %v5306 = vpack.c.b16 %v5250, %v5246
          %v5307 = vpack.c.b16 %v5255, %v5251
          %v5308 = vpack.c.b16 %v5256, %v5252
          %v5309 = vpack.c.b16 %v5257, %v5253
          %v5310 = vpack.c.b16 %v5258, %v5254
          %v5311 = vpack.c.b16 %v5263, %v5259
          %v5312 = vpack.c.b16 %v5264, %v5260
          %v5313 = vpack.c.b16 %v5265, %v5261
          %v5314 = vpack.c.b16 %v5266, %v5262
          %v5315 = vpack.c.b16 %v5271, %v5267
          %v5316 = vpack.c.b16 %v5272, %v5268
          %v5317 = vpack.c.b16 %v5273, %v5269
          %v5318 = vpack.c.b16 %v5274, %v5270
          %v5319 = vpack.c.b16 %v5279, %v5275
          %v5320 = vpack.c.b16 %v5280, %v5276
          %v5321 = vpack.c.b16 %v5281, %v5277
          %v5322 = vpack.c.b16 %v5282, %v5278
          %v5323 = vpack.c.b16 %v5287, %v5283
          %v5324 = vpack.c.b16 %v5288, %v5284
          %v5325 = vpack.c.b16 %v5289, %v5285
          %v5326 = vpack.c.b16 %v5290, %v5286
          %v5327 = vpack.c.b16 %v5295, %v5291
          %v5328 = vpack.c.b16 %v5296, %v5292
          %v5329 = vpack.c.b16 %v5297, %v5293
          %v5330 = vpack.c.b16 %v5298, %v5294
          %5363 = vmatprep.subr.bf16.mxu0 %v5328
          %5364 = vmatpush1.bf16.msra.mxu0 %v5327
          %5365 = vmatprep.subr.bf16.mxu0 %v5324
          %5366 = vmatpush1.bf16.msra.mxu0 %v5323
          %5367 = vmatprep.subr.bf16.mxu0 %v5320
          %5368 = vmatpush1.bf16.msra.mxu0 %v5319
          %5369 = vmatprep.subr.bf16.mxu0 %v5316
          %5370 = vmatpush1.bf16.msra.mxu0 %v5315
          %5371 = vmatprep.subr.bf16.mxu0 %v5312
          %5372 = vmatpush1.bf16.msra.mxu0 %v5311
          %5373 = vmatprep.subr.bf16.mxu0 %v5308
          %5374 = vmatpush1.bf16.msra.mxu0 %v5307
          %5375 = vmatprep.subr.bf16.mxu0 %v5304
          %5376 = vmatpush1.bf16.msra.mxu0 %v5303
          %5377 = vmatprep.subr.bf16.mxu0 %v5300
          %5378 = vmatpush1.bf16.msra.mxu0 %v5299
          %5379 = vmatprep.subr.bf16.mxu0 0
          %5380 = vmatpush2.bf16.msra.mxu0 0
          %5381 = vmatprep.subr.bf16.mxu0 0
          %5382 = vmatpush2.bf16.msra.mxu0 0
          %5383 = vmatprep.subr.bf16.mxu0 0
          %5384 = vmatpush2.bf16.msra.mxu0 0
          %5385 = vmatprep.subr.bf16.mxu0 0
          %5386 = vmatpush2.bf16.msra.mxu0 0
          %5387 = vmatprep.subr.bf16.mxu0 0
          %5388 = vmatpush2.bf16.msra.mxu0 0
          %5389 = vmatprep.subr.bf16.mxu0 0
          %5390 = vmatpush2.bf16.msra.mxu0 0
          %5391 = vmatprep.subr.bf16.mxu0 0
          %5392 = vmatpush2.bf16.msra.mxu0 0
          %5393 = vmatprep.subr.bf16.mxu0 0
          %5394 = vmatpush2.bf16.msra.mxu0 0
          %5395 = vmatprep.mubr.bf16.mxu0 0
          %5396 = vmatmul.mubr.bf16.gmra.mxu0 %v5135
          %v5397 = vpop.f32.mrf.mxu0
          %v5398 = vadd.f32 %v5186, %v5397
          %v5399 = vpop.f32.mrf.mxu0
          %v5400 = vadd.f32 %v5190, %v5399
          %v5401 = vpop.f32.mrf.mxu0
          %v5402 = vadd.f32 %v5186, %v5401
          %v5403 = vpop.f32.mrf.mxu0
          %v5404 = vadd.f32 %v5190, %v5403
          %5405 = vmatprep.mubr.bf16.mxu0 0
          %5406 = vmatmul.mubr.bf16.gmra.mxu0 %v5136
          %v5407 = vpop.f32.mrf.mxu0
          %v5408 = vadd.f32 %v5186, %v5407
          %v5409 = vpop.f32.mrf.mxu0
          %v5410 = vadd.f32 %v5190, %v5409
          %v5411 = vpop.f32.mrf.mxu0
          %v5412 = vadd.f32 %v5186, %v5411
          %v5413 = vpop.f32.mrf.mxu0
          %v5414 = vadd.f32 %v5190, %v5413
          %5415 = vmatprep.mubr.bf16.mxu0 0
          %5416 = vmatmul.mubr.bf16.gmra.mxu0 %v5137
          %v5417 = vpop.f32.mrf.mxu0
          %v5418 = vadd.f32 %v5186, %v5417
          %v5419 = vpop.f32.mrf.mxu0
          %v5420 = vadd.f32 %v5190, %v5419
          %v5421 = vpop.f32.mrf.mxu0
          %v5422 = vadd.f32 %v5186, %v5421
          %v5423 = vpop.f32.mrf.mxu0
          %v5424 = vadd.f32 %v5190, %v5423
          %5425 = vmatprep.mubr.bf16.mxu0 0
          %5426 = vmatmul.mubr.bf16.gmra.mxu0 %v5138
          %v5427 = vpop.f32.mrf.mxu0
          %v5428 = vadd.f32 %v5186, %v5427
          %v5429 = vpop.f32.mrf.mxu0
          %v5430 = vadd.f32 %v5190, %v5429
          %v5431 = vpop.f32.mrf.mxu0
          %v5432 = vadd.f32 %v5186, %v5431
          %v5433 = vpop.f32.mrf.mxu0
          %v5434 = vadd.f32 %v5190, %v5433
          %5435 = vmatprep.mubr.bf16.mxu0 0
          %5436 = vmatmul.mubr.bf16.gmra.mxu0 %v5139
          %v5437 = vpop.f32.mrf.mxu0
          %v5438 = vadd.f32 %v5186, %v5437
          %v5439 = vpop.f32.mrf.mxu0
          %v5440 = vadd.f32 %v5190, %v5439
          %v5441 = vpop.f32.mrf.mxu0
          %v5442 = vadd.f32 %v5186, %v5441
          %v5443 = vpop.f32.mrf.mxu0
          %v5444 = vadd.f32 %v5190, %v5443
          %5445 = vmatprep.mubr.bf16.mxu0 0
          %5446 = vmatmul.mubr.bf16.gmra.mxu0 %v5140
          %v5447 = vpop.f32.mrf.mxu0
          %v5448 = vadd.f32 %v5186, %v5447
          %v5449 = vpop.f32.mrf.mxu0
          %v5450 = vadd.f32 %v5190, %v5449
          %v5451 = vpop.f32.mrf.mxu0
          %v5452 = vadd.f32 %v5186, %v5451
          %v5453 = vpop.f32.mrf.mxu0
          %v5454 = vadd.f32 %v5190, %v5453
          %5455 = vmatprep.mubr.bf16.mxu0 0
          %5456 = vmatmul.mubr.bf16.gmra.mxu0 %v5141
          %v5457 = vpop.f32.mrf.mxu0
          %v5458 = vadd.f32 %v5186, %v5457
          %v5459 = vpop.f32.mrf.mxu0
          %v5460 = vadd.f32 %v5190, %v5459
          %v5461 = vpop.f32.mrf.mxu0
          %v5462 = vadd.f32 %v5186, %v5461
          %v5463 = vpop.f32.mrf.mxu0
          %v5464 = vadd.f32 %v5190, %v5463
          %5465 = vmatprep.mubr.bf16.mxu0 0
          %5466 = vmatmul.mubr.bf16.gmra.mxu0 %v5142
          %v5467 = vpop.f32.mrf.mxu0
          %v5468 = vadd.f32 %v5186, %v5467
          %v5469 = vpop.f32.mrf.mxu0
          %v5470 = vadd.f32 %v5190, %v5469
          %v5471 = vpop.f32.mrf.mxu0
          %v5472 = vadd.f32 %v5186, %v5471
          %v5473 = vpop.f32.mrf.mxu0
          %v5474 = vadd.f32 %v5190, %v5473
          %5475 = vmatprep.mubr.bf16.mxu0 0
          %5476 = vmatmul.mubr.bf16.gmra.mxu0 %v5143
          %v5477 = vpop.f32.mrf.mxu0
          %v5478 = vadd.f32 %v5186, %v5477
          %v5479 = vpop.f32.mrf.mxu0
          %v5480 = vadd.f32 %v5190, %v5479
          %v5481 = vpop.f32.mrf.mxu0
          %v5482 = vpop.f32.mrf.mxu0
          %5483 = vdwg.mxu0
          %5484 = vmatprep.subr.bf16.mxu0 %v5330
          %5485 = vmatpush1.bf16.msra.mxu0 %v5329
          %5486 = vmatprep.subr.bf16.mxu0 %v5326
          %5487 = vmatpush1.bf16.msra.mxu0 %v5325
          %5488 = vmatprep.subr.bf16.mxu0 %v5322
          %5489 = vmatpush1.bf16.msra.mxu0 %v5321
          %5490 = vmatprep.subr.bf16.mxu0 %v5318
          %5491 = vmatpush1.bf16.msra.mxu0 %v5317
          %5492 = vmatprep.subr.bf16.mxu0 %v5314
          %5493 = vmatpush1.bf16.msra.mxu0 %v5313
          %5494 = vmatprep.subr.bf16.mxu0 %v5310
          %5495 = vmatpush1.bf16.msra.mxu0 %v5309
          %5496 = vmatprep.subr.bf16.mxu0 %v5306
          %5497 = vmatpush1.bf16.msra.mxu0 %v5305
          %5498 = vmatprep.subr.bf16.mxu0 %v5302
          %5499 = vmatpush1.bf16.msra.mxu0 %v5301
          %5500 = vmatprep.subr.bf16.mxu0 0
          %5501 = vmatpush2.bf16.msra.mxu0 0
          %5502 = vmatprep.subr.bf16.mxu0 0
          %5503 = vmatpush2.bf16.msra.mxu0 0
          %5504 = vmatprep.subr.bf16.mxu0 0
          %5505 = vmatpush2.bf16.msra.mxu0 0
          %5506 = vmatprep.subr.bf16.mxu0 0
          %5507 = vmatpush2.bf16.msra.mxu0 0
          %5508 = vmatprep.subr.bf16.mxu0 0
          %5509 = vmatpush2.bf16.msra.mxu0 0
          %5510 = vmatprep.subr.bf16.mxu0 0
          %5511 = vmatpush2.bf16.msra.mxu0 0
          %5512 = vmatprep.subr.bf16.mxu0 0
          %5513 = vmatpush2.bf16.msra.mxu0 0
          %5514 = vmatprep.subr.bf16.mxu0 0
          %5515 = vmatpush2.bf16.msra.mxu0 0
          %5516 = vmatprep.mubr.bf16.mxu0 0
          %5517 = vmatmul.mubr.bf16.gmra.mxu0 %v5135
          %v5518 = vpop.f32.mrf.mxu0
          %v5519 = vadd.f32 %v5194, %v5518
          %v5520 = vpop.f32.mrf.mxu0
          %v5521 = vadd.f32 %v5198, %v5520
          %v5522 = vpop.f32.mrf.mxu0
          %v5523 = vadd.f32 %v5194, %v5522
          %v5524 = vpop.f32.mrf.mxu0
          %v5525 = vadd.f32 %v5198, %v5524
          %5526 = vmatprep.mubr.bf16.mxu0 0
          %5527 = vmatmul.mubr.bf16.gmra.mxu0 %v5136
          %v5528 = vpop.f32.mrf.mxu0
          %v5529 = vadd.f32 %v5194, %v5528
          %v5530 = vpop.f32.mrf.mxu0
          %v5531 = vadd.f32 %v5198, %v5530
          %v5532 = vpop.f32.mrf.mxu0
          %v5533 = vadd.f32 %v5194, %v5532
          %v5534 = vpop.f32.mrf.mxu0
          %v5535 = vadd.f32 %v5198, %v5534
          %5536 = vmatprep.mubr.bf16.mxu0 0
          %5537 = vmatmul.mubr.bf16.gmra.mxu0 %v5137
          %v5538 = vpop.f32.mrf.mxu0
          %v5539 = vadd.f32 %v5194, %v5538
          %v5540 = vpop.f32.mrf.mxu0
          %v5541 = vadd.f32 %v5198, %v5540
          %v5542 = vpop.f32.mrf.mxu0
          %v5543 = vadd.f32 %v5194, %v5542
          %v5544 = vpop.f32.mrf.mxu0
          %v5545 = vadd.f32 %v5198, %v5544
          %5546 = vmatprep.mubr.bf16.mxu0 0
          %5547 = vmatmul.mubr.bf16.gmra.mxu0 %v5138
          %v5548 = vpop.f32.mrf.mxu0
          %v5549 = vadd.f32 %v5194, %v5548
          %v5550 = vpop.f32.mrf.mxu0
          %v5551 = vadd.f32 %v5198, %v5550
          %v5552 = vpop.f32.mrf.mxu0
          %v5553 = vadd.f32 %v5194, %v5552
          %v5554 = vpop.f32.mrf.mxu0
          %v5555 = vadd.f32 %v5198, %v5554
          %5556 = vmatprep.mubr.bf16.mxu0 0
          %5557 = vmatmul.mubr.bf16.gmra.mxu0 %v5139
          %v5558 = vpop.f32.mrf.mxu0
          %v5559 = vadd.f32 %v5194, %v5558
          %v5560 = vpop.f32.mrf.mxu0
          %v5561 = vadd.f32 %v5198, %v5560
          %v5562 = vpop.f32.mrf.mxu0
          %v5563 = vadd.f32 %v5194, %v5562
          %v5564 = vpop.f32.mrf.mxu0
          %v5565 = vadd.f32 %v5198, %v5564
          %5566 = vmatprep.mubr.bf16.mxu0 0
          %5567 = vmatmul.mubr.bf16.gmra.mxu0 %v5140
          %v5568 = vpop.f32.mrf.mxu0
          %v5569 = vadd.f32 %v5194, %v5568
          %v5570 = vpop.f32.mrf.mxu0
          %v5571 = vadd.f32 %v5198, %v5570
          %v5572 = vpop.f32.mrf.mxu0
          %v5573 = vadd.f32 %v5194, %v5572
          %v5574 = vpop.f32.mrf.mxu0
          %v5575 = vadd.f32 %v5198, %v5574
          %5576 = vmatprep.mubr.bf16.mxu0 0
          %5577 = vmatmul.mubr.bf16.gmra.mxu0 %v5141
          %v5578 = vpop.f32.mrf.mxu0
          %v5579 = vadd.f32 %v5194, %v5578
          %v5580 = vpop.f32.mrf.mxu0
          %v5581 = vadd.f32 %v5198, %v5580
          %v5582 = vpop.f32.mrf.mxu0
          %v5583 = vadd.f32 %v5194, %v5582
          %v5584 = vpop.f32.mrf.mxu0
          %v5585 = vadd.f32 %v5198, %v5584
          %5586 = vmatprep.mubr.bf16.mxu0 0
          %5587 = vmatmul.mubr.bf16.gmra.mxu0 %v5142
          %v5588 = vpop.f32.mrf.mxu0
          %v5589 = vadd.f32 %v5194, %v5588
          %v5590 = vpop.f32.mrf.mxu0
          %v5591 = vadd.f32 %v5198, %v5590
          %v5592 = vpop.f32.mrf.mxu0
          %v5593 = vadd.f32 %v5194, %v5592
          %v5594 = vpop.f32.mrf.mxu0
          %v5595 = vadd.f32 %v5198, %v5594
          %5596 = vmatprep.mubr.bf16.mxu0 0
          %5597 = vmatmul.mubr.bf16.gmra.mxu0 %v5143
          %v5598 = vpop.f32.mrf.mxu0
          %v5599 = vadd.f32 %v5194, %v5598
          %v5600 = vpop.f32.mrf.mxu0
          %v5601 = vadd.f32 %v5198, %v5600
          %v5602 = vpop.f32.mrf.mxu0
          %v5603 = vpop.f32.mrf.mxu0
          %5604 = vdwg.mxu0
          %v5605 = vmul.f32 %v5398, 0.5
          %v5606 = vmul.f32 %v5400, 0.5
          %v5607 = vmul.f32 %v5519, 0.5
          %v5608 = vmul.f32 %v5521, 0.5
          %v5609 = vmul.f32 %v5402, 0.5
          %v5610 = vmul.f32 %v5404, 0.5
          %v5611 = vmul.f32 %v5523, 0.5
          %v5612 = vmul.f32 %v5525, 0.5
          %v5613 = vmul.f32 %v5408, 0.5
          %v5614 = vmul.f32 %v5410, 0.5
          %v5615 = vmul.f32 %v5529, 0.5
          %v5616 = vmul.f32 %v5531, 0.5
          %v5617 = vmul.f32 %v5412, 0.5
          %v5618 = vmul.f32 %v5414, 0.5
          %v5619 = vmul.f32 %v5533, 0.5
          %v5620 = vmul.f32 %v5535, 0.5
          %v5621 = vmul.f32 %v5418, 0.5
          %v5622 = vmul.f32 %v5420, 0.5
          %v5623 = vmul.f32 %v5539, 0.5
          %v5624 = vmul.f32 %v5541, 0.5
          %v5625 = vmul.f32 %v5422, 0.5
          %v5626 = vmul.f32 %v5424, 0.5
          %v5627 = vmul.f32 %v5543, 0.5
          %v5628 = vmul.f32 %v5545, 0.5
          %v5629 = vmul.f32 %v5428, 0.5
          %v5630 = vmul.f32 %v5430, 0.5
          %v5631 = vmul.f32 %v5549, 0.5
          %v5632 = vmul.f32 %v5551, 0.5
          %v5633 = vmul.f32 %v5432, 0.5
          %v5634 = vmul.f32 %v5434, 0.5
          %v5635 = vmul.f32 %v5553, 0.5
          %v5636 = vmul.f32 %v5555, 0.5
          %v5637 = vmul.f32 %v5438, 0.5
          %v5638 = vmul.f32 %v5440, 0.5
          %v5639 = vmul.f32 %v5559, 0.5
          %v5640 = vmul.f32 %v5561, 0.5
          %v5641 = vmul.f32 %v5442, 0.5
          %v5642 = vmul.f32 %v5444, 0.5
          %v5643 = vmul.f32 %v5563, 0.5
          %v5644 = vmul.f32 %v5565, 0.5
          %v5645 = vmul.f32 %v5448, 0.5
          %v5646 = vmul.f32 %v5450, 0.5
          %v5647 = vmul.f32 %v5569, 0.5
          %v5648 = vmul.f32 %v5571, 0.5
          %v5649 = vmul.f32 %v5452, 0.5
          %v5650 = vmul.f32 %v5454, 0.5
          %v5651 = vmul.f32 %v5573, 0.5
          %v5652 = vmul.f32 %v5575, 0.5
          %v5653 = vmul.f32 %v5458, 0.5
          %v5654 = vmul.f32 %v5460, 0.5
          %v5655 = vmul.f32 %v5579, 0.5
          %v5656 = vmul.f32 %v5581, 0.5
          %v5657 = vmul.f32 %v5462, 0.5
          %v5658 = vmul.f32 %v5464, 0.5
          %v5659 = vmul.f32 %v5583, 0.5
          %v5660 = vmul.f32 %v5585, 0.5
          %v5661 = vmul.f32 %v5468, 0.5
          %v5662 = vmul.f32 %v5470, 0.5
          %v5663 = vmul.f32 %v5589, 0.5
          %v5664 = vmul.f32 %v5591, 0.5
          %v5665 = vmul.f32 %v5472, 0.5
          %v5666 = vmul.f32 %v5474, 0.5
          %v5667 = vmul.f32 %v5593, 0.5
          %v5668 = vmul.f32 %v5595, 0.5
          %v5669 = vmul.f32 %v5478, 0.5
          %v5670 = vmul.f32 %v5480, 0.5
          %v5671 = vmul.f32 %v5599, 0.5
          %v5672 = vmul.f32 %v5601, 0.5
          %v5673 = vmul.f32 %v5398, 0.70710677
          %v5674 = vmul.f32 %v5400, 0.70710677
          %v5675 = vmul.f32 %v5519, 0.70710677
          %v5676 = vmul.f32 %v5521, 0.70710677
          %v5677 = vmul.f32 %v5402, 0.70710677
          %v5678 = vmul.f32 %v5404, 0.70710677
          %v5679 = vmul.f32 %v5523, 0.70710677
          %v5680 = vmul.f32 %v5525, 0.70710677
          %v5681 = vmul.f32 %v5408, 0.70710677
          %v5682 = vmul.f32 %v5410, 0.70710677
          %v5683 = vmul.f32 %v5529, 0.70710677
          %v5684 = vmul.f32 %v5531, 0.70710677
          %v5685 = vmul.f32 %v5412, 0.70710677
          %v5686 = vmul.f32 %v5414, 0.70710677
          %v5687 = vmul.f32 %v5533, 0.70710677
          %v5688 = vmul.f32 %v5535, 0.70710677
          %v5689 = vmul.f32 %v5418, 0.70710677
          %v5690 = vmul.f32 %v5420, 0.70710677
          %v5691 = vmul.f32 %v5539, 0.70710677
          %v5692 = vmul.f32 %v5541, 0.70710677
          %v5693 = vmul.f32 %v5422, 0.70710677
          %v5694 = vmul.f32 %v5424, 0.70710677
          %v5695 = vmul.f32 %v5543, 0.70710677
          %v5696 = vmul.f32 %v5545, 0.70710677
          %v5697 = vmul.f32 %v5428, 0.70710677
          %v5698 = vmul.f32 %v5430, 0.70710677
          %v5699 = vmul.f32 %v5549, 0.70710677
          %v5700 = vmul.f32 %v5551, 0.70710677
          %v5701 = vmul.f32 %v5432, 0.70710677
          %v5702 = vmul.f32 %v5434, 0.70710677
          %v5703 = vmul.f32 %v5553, 0.70710677
          %v5704 = vmul.f32 %v5555, 0.70710677
          %v5705 = vmul.f32 %v5438, 0.70710677
          %v5706 = vmul.f32 %v5440, 0.70710677
          %v5707 = vmul.f32 %v5559, 0.70710677
          %v5708 = vmul.f32 %v5561, 0.70710677
          %v5709 = vmul.f32 %v5442, 0.70710677
          %v5710 = vmul.f32 %v5444, 0.70710677
          %v5711 = vmul.f32 %v5563, 0.70710677
          %v5712 = vmul.f32 %v5565, 0.70710677
          %v5713 = vmul.f32 %v5448, 0.70710677
          %v5714 = vmul.f32 %v5450, 0.70710677
          %v5715 = vmul.f32 %v5569, 0.70710677
          %v5716 = vmul.f32 %v5571, 0.70710677
          %v5717 = vmul.f32 %v5452, 0.70710677
          %v5718 = vmul.f32 %v5454, 0.70710677
          %v5719 = vmul.f32 %v5573, 0.70710677
          %v5720 = vmul.f32 %v5575, 0.70710677
          %v5721 = vmul.f32 %v5458, 0.70710677
          %v5722 = vmul.f32 %v5460, 0.70710677
          %v5723 = vmul.f32 %v5579, 0.70710677
          %v5724 = vmul.f32 %v5581, 0.70710677
          %v5725 = vmul.f32 %v5462, 0.70710677
          %v5726 = vmul.f32 %v5464, 0.70710677
          %v5727 = vmul.f32 %v5583, 0.70710677
          %v5728 = vmul.f32 %v5585, 0.70710677
          %v5729 = vmul.f32 %v5468, 0.70710677
          %v5730 = vmul.f32 %v5470, 0.70710677
          %v5731 = vmul.f32 %v5589, 0.70710677
          %v5732 = vmul.f32 %v5591, 0.70710677
          %v5733 = vmul.f32 %v5472, 0.70710677
          %v5734 = vmul.f32 %v5474, 0.70710677
          %v5735 = vmul.f32 %v5593, 0.70710677
          %v5736 = vmul.f32 %v5595, 0.70710677
          %v5737 = vmul.f32 %v5478, 0.70710677
          %v5738 = vmul.f32 %v5480, 0.70710677
          %v5739 = vmul.f32 %v5599, 0.70710677
          %v5740 = vmul.f32 %v5601, 0.70710677
          %v5741 = vand.u32 2147483647, %v5673
          %v5742 = vand.u32 2147483647, %v5674
          %v5743 = vand.u32 2147483647, %v5675
          %v5744 = vand.u32 2147483647, %v5676
          %v5745 = vand.u32 2147483647, %v5677
          %v5746 = vand.u32 2147483647, %v5678
          %v5747 = vand.u32 2147483647, %v5679
          %v5748 = vand.u32 2147483647, %v5680
          %v5749 = vand.u32 2147483647, %v5681
          %v5750 = vand.u32 2147483647, %v5682
          %v5751 = vand.u32 2147483647, %v5683
          %v5752 = vand.u32 2147483647, %v5684
          %v5753 = vand.u32 2147483647, %v5685
          %v5754 = vand.u32 2147483647, %v5686
          %v5755 = vand.u32 2147483647, %v5687
          %v5756 = vand.u32 2147483647, %v5688
          %v5757 = vand.u32 2147483647, %v5689
          %v5758 = vand.u32 2147483647, %v5690
          %v5759 = vand.u32 2147483647, %v5691
          %v5760 = vand.u32 2147483647, %v5692
          %v5761 = vand.u32 2147483647, %v5693
          %v5762 = vand.u32 2147483647, %v5694
          %v5763 = vand.u32 2147483647, %v5695
          %v5764 = vand.u32 2147483647, %v5696
          %v5765 = vand.u32 2147483647, %v5697
          %v5766 = vand.u32 2147483647, %v5698
          %v5767 = vand.u32 2147483647, %v5699
          %v5768 = vand.u32 2147483647, %v5700
          %v5769 = vand.u32 2147483647, %v5701
          %v5770 = vand.u32 2147483647, %v5702
          %v5771 = vand.u32 2147483647, %v5703
          %v5772 = vand.u32 2147483647, %v5704
          %v5773 = vand.u32 2147483647, %v5705
          %v5774 = vand.u32 2147483647, %v5706
          %v5775 = vand.u32 2147483647, %v5707
          %v5776 = vand.u32 2147483647, %v5708
          %v5777 = vand.u32 2147483647, %v5709
          %v5778 = vand.u32 2147483647, %v5710
          %v5779 = vand.u32 2147483647, %v5711
          %v5780 = vand.u32 2147483647, %v5712
          %v5781 = vand.u32 2147483647, %v5713
          %v5782 = vand.u32 2147483647, %v5714
          %v5783 = vand.u32 2147483647, %v5715
          %v5784 = vand.u32 2147483647, %v5716
          %v5785 = vand.u32 2147483647, %v5717
          %v5786 = vand.u32 2147483647, %v5718
          %v5787 = vand.u32 2147483647, %v5719
          %v5788 = vand.u32 2147483647, %v5720
          %v5789 = vand.u32 2147483647, %v5721
          %v5790 = vand.u32 2147483647, %v5722
          %v5791 = vand.u32 2147483647, %v5723
          %v5792 = vand.u32 2147483647, %v5724
          %v5793 = vand.u32 2147483647, %v5725
          %v5794 = vand.u32 2147483647, %v5726
          %v5795 = vand.u32 2147483647, %v5727
          %v5796 = vand.u32 2147483647, %v5728
          %v5797 = vand.u32 2147483647, %v5729
          %v5798 = vand.u32 2147483647, %v5730
          %v5799 = vand.u32 2147483647, %v5731
          %v5800 = vand.u32 2147483647, %v5732
          %v5801 = vand.u32 2147483647, %v5733
          %v5802 = vand.u32 2147483647, %v5734
          %v5803 = vand.u32 2147483647, %v5735
          %v5804 = vand.u32 2147483647, %v5736
          %v5805 = vand.u32 2147483647, %v5737
          %v5806 = vand.u32 2147483647, %v5738
          %v5807 = vand.u32 2147483647, %v5739
          %v5808 = vand.u32 2147483647, %v5740
          %v5809 = vmul.f32 %v5741, 0.3275911
          %v5810 = vmul.f32 %v5742, 0.3275911
          %v5811 = vmul.f32 %v5743, 0.3275911
          %v5812 = vmul.f32 %v5744, 0.3275911
          %v5813 = vmul.f32 %v5745, 0.3275911
          %v5814 = vmul.f32 %v5746, 0.3275911
          %v5815 = vmul.f32 %v5747, 0.3275911
          %v5816 = vmul.f32 %v5748, 0.3275911
          %v5817 = vmul.f32 %v5749, 0.3275911
          %v5818 = vmul.f32 %v5750, 0.3275911
          %v5819 = vmul.f32 %v5751, 0.3275911
          %v5820 = vmul.f32 %v5752, 0.3275911
          %v5821 = vmul.f32 %v5753, 0.3275911
          %v5822 = vmul.f32 %v5754, 0.3275911
          %v5823 = vmul.f32 %v5755, 0.3275911
          %v5824 = vmul.f32 %v5756, 0.3275911
          %v5825 = vmul.f32 %v5757, 0.3275911
          %v5826 = vmul.f32 %v5758, 0.3275911
          %v5827 = vmul.f32 %v5759, 0.3275911
          %v5828 = vmul.f32 %v5760, 0.3275911
          %v5829 = vmul.f32 %v5761, 0.3275911
          %v5830 = vmul.f32 %v5762, 0.3275911
          %v5831 = vmul.f32 %v5763, 0.3275911
          %v5832 = vmul.f32 %v5764, 0.3275911
          %v5833 = vmul.f32 %v5765, 0.3275911
          %v5834 = vmul.f32 %v5766, 0.3275911
          %v5835 = vmul.f32 %v5767, 0.3275911
          %v5836 = vmul.f32 %v5768, 0.3275911
          %v5837 = vmul.f32 %v5769, 0.3275911
          %v5838 = vmul.f32 %v5770, 0.3275911
          %v5839 = vmul.f32 %v5771, 0.3275911
          %v5840 = vmul.f32 %v5772, 0.3275911
          %v5841 = vmul.f32 %v5773, 0.3275911
          %v5842 = vmul.f32 %v5774, 0.3275911
          %v5843 = vmul.f32 %v5775, 0.3275911
          %v5844 = vmul.f32 %v5776, 0.3275911
          %v5845 = vmul.f32 %v5777, 0.3275911
          %v5846 = vmul.f32 %v5778, 0.3275911
          %v5847 = vmul.f32 %v5779, 0.3275911
          %v5848 = vmul.f32 %v5780, 0.3275911
          %v5849 = vmul.f32 %v5781, 0.3275911
          %v5850 = vmul.f32 %v5782, 0.3275911
          %v5851 = vmul.f32 %v5783, 0.3275911
          %v5852 = vmul.f32 %v5784, 0.3275911
          %v5853 = vmul.f32 %v5785, 0.3275911
          %v5854 = vmul.f32 %v5786, 0.3275911
          %v5855 = vmul.f32 %v5787, 0.3275911
          %v5856 = vmul.f32 %v5788, 0.3275911
          %v5857 = vmul.f32 %v5789, 0.3275911
          %v5858 = vmul.f32 %v5790, 0.3275911
          %v5859 = vmul.f32 %v5791, 0.3275911
          %v5860 = vmul.f32 %v5792, 0.3275911
          %v5861 = vmul.f32 %v5793, 0.3275911
          %v5862 = vmul.f32 %v5794, 0.3275911
          %v5863 = vmul.f32 %v5795, 0.3275911
          %v5864 = vmul.f32 %v5796, 0.3275911
          %v5865 = vmul.f32 %v5797, 0.3275911
          %v5866 = vmul.f32 %v5798, 0.3275911
          %v5867 = vmul.f32 %v5799, 0.3275911
          %v5868 = vmul.f32 %v5800, 0.3275911
          %v5869 = vmul.f32 %v5801, 0.3275911
          %v5870 = vmul.f32 %v5802, 0.3275911
          %v5871 = vmul.f32 %v5803, 0.3275911
          %v5872 = vmul.f32 %v5804, 0.3275911
          %v5873 = vmul.f32 %v5805, 0.3275911
          %v5874 = vmul.f32 %v5806, 0.3275911
          %v5875 = vmul.f32 %v5807, 0.3275911
          %v5876 = vmul.f32 %v5808, 0.3275911
          %v5877 = vadd.f32 %v5809, 1.0
          %v5878 = vadd.f32 %v5810, 1.0
          %v5879 = vadd.f32 %v5811, 1.0
          %v5880 = vadd.f32 %v5812, 1.0
          %v5881 = vadd.f32 %v5813, 1.0
          %v5882 = vadd.f32 %v5814, 1.0
          %v5883 = vadd.f32 %v5815, 1.0
          %v5884 = vadd.f32 %v5816, 1.0
          %v5885 = vadd.f32 %v5817, 1.0
          %v5886 = vadd.f32 %v5818, 1.0
          %v5887 = vadd.f32 %v5819, 1.0
          %v5888 = vadd.f32 %v5820, 1.0
          %v5889 = vadd.f32 %v5821, 1.0
          %v5890 = vadd.f32 %v5822, 1.0
          %v5891 = vadd.f32 %v5823, 1.0
          %v5892 = vadd.f32 %v5824, 1.0
          %v5893 = vadd.f32 %v5825, 1.0
          %v5894 = vadd.f32 %v5826, 1.0
          %v5895 = vadd.f32 %v5827, 1.0
          %v5896 = vadd.f32 %v5828, 1.0
          %v5897 = vadd.f32 %v5829, 1.0
          %v5898 = vadd.f32 %v5830, 1.0
          %v5899 = vadd.f32 %v5831, 1.0
          %v5900 = vadd.f32 %v5832, 1.0
          %v5901 = vadd.f32 %v5833, 1.0
          %v5902 = vadd.f32 %v5834, 1.0
          %v5903 = vadd.f32 %v5835, 1.0
          %v5904 = vadd.f32 %v5836, 1.0
          %v5905 = vadd.f32 %v5837, 1.0
          %v5906 = vadd.f32 %v5838, 1.0
          %v5907 = vadd.f32 %v5839, 1.0
          %v5908 = vadd.f32 %v5840, 1.0
          %v5909 = vadd.f32 %v5841, 1.0
          %v5910 = vadd.f32 %v5842, 1.0
          %v5911 = vadd.f32 %v5843, 1.0
          %v5912 = vadd.f32 %v5844, 1.0
          %v5913 = vadd.f32 %v5845, 1.0
          %v5914 = vadd.f32 %v5846, 1.0
          %v5915 = vadd.f32 %v5847, 1.0
          %v5916 = vadd.f32 %v5848, 1.0
          %v5917 = vadd.f32 %v5849, 1.0
          %v5918 = vadd.f32 %v5850, 1.0
          %v5919 = vadd.f32 %v5851, 1.0
          %v5920 = vadd.f32 %v5852, 1.0
          %v5921 = vadd.f32 %v5853, 1.0
          %v5922 = vadd.f32 %v5854, 1.0
          %v5923 = vadd.f32 %v5855, 1.0
          %v5924 = vadd.f32 %v5856, 1.0
          %v5925 = vadd.f32 %v5857, 1.0
          %v5926 = vadd.f32 %v5858, 1.0
          %v5927 = vadd.f32 %v5859, 1.0
          %v5928 = vadd.f32 %v5860, 1.0
          %v5929 = vadd.f32 %v5861, 1.0
          %v5930 = vadd.f32 %v5862, 1.0
          %v5931 = vadd.f32 %v5863, 1.0
          %v5932 = vadd.f32 %v5864, 1.0
          %v5933 = vadd.f32 %v5865, 1.0
          %v5934 = vadd.f32 %v5866, 1.0
          %v5935 = vadd.f32 %v5867, 1.0
          %v5936 = vadd.f32 %v5868, 1.0
          %v5937 = vadd.f32 %v5869, 1.0
          %v5938 = vadd.f32 %v5870, 1.0
          %v5939 = vadd.f32 %v5871, 1.0
          %v5940 = vadd.f32 %v5872, 1.0
          %v5941 = vadd.f32 %v5873, 1.0
          %v5942 = vadd.f32 %v5874, 1.0
          %v5943 = vadd.f32 %v5875, 1.0
          %v5944 = vadd.f32 %v5876, 1.0
          %v5945 = vrcp.pop %v5877
          %v5946 = vrcp.pop %v5878
          %v5947 = vrcp.pop %v5879
          %v5948 = vrcp.pop %v5880
          %v5949 = vrcp.pop %v5881
          %v5950 = vrcp.pop %v5882
          %v5951 = vrcp.pop %v5883
          %v5952 = vrcp.pop %v5884
          %v5953 = vrcp.pop %v5885
          %v5954 = vrcp.pop %v5886
          %v5955 = vrcp.pop %v5887
          %v5956 = vrcp.pop %v5888
          %v5957 = vrcp.pop %v5889
          %v5958 = vrcp.pop %v5890
          %v5959 = vrcp.pop %v5891
          %v5960 = vrcp.pop %v5892
          %v5961 = vrcp.pop %v5893
          %v5962 = vrcp.pop %v5894
          %v5963 = vrcp.pop %v5895
          %v5964 = vrcp.pop %v5896
          %v5965 = vrcp.pop %v5897
          %v5966 = vrcp.pop %v5898
          %v5967 = vrcp.pop %v5899
          %v5968 = vrcp.pop %v5900
          %v5969 = vrcp.pop %v5901
          %v5970 = vrcp.pop %v5902
          %v5971 = vrcp.pop %v5903
          %v5972 = vrcp.pop %v5904
          %v5973 = vrcp.pop %v5905
          %v5974 = vrcp.pop %v5906
          %v5975 = vrcp.pop %v5907
          %v5976 = vrcp.pop %v5908
          %v5977 = vrcp.pop %v5909
          %v5978 = vrcp.pop %v5910
          %v5979 = vrcp.pop %v5911
          %v5980 = vrcp.pop %v5912
          %v5981 = vrcp.pop %v5913
          %v5982 = vrcp.pop %v5914
          %v5983 = vrcp.pop %v5915
          %v5984 = vrcp.pop %v5916
          %v5985 = vrcp.pop %v5917
          %v5986 = vrcp.pop %v5918
          %v5987 = vrcp.pop %v5919
          %v5988 = vrcp.pop %v5920
          %v5989 = vrcp.pop %v5921
          %v5990 = vrcp.pop %v5922
          %v5991 = vrcp.pop %v5923
          %v5992 = vrcp.pop %v5924
          %v5993 = vrcp.pop %v5925
          %v5994 = vrcp.pop %v5926
          %v5995 = vrcp.pop %v5927
          %v5996 = vrcp.pop %v5928
          %v5997 = vrcp.pop %v5929
          %v5998 = vrcp.pop %v5930
          %v5999 = vrcp.pop %v5931
          %v6000 = vrcp.pop %v5932
          %v6001 = vrcp.pop %v5933
          %v6002 = vrcp.pop %v5934
          %v6003 = vrcp.pop %v5935
          %v6004 = vrcp.pop %v5936
          %v6005 = vrcp.pop %v5937
          %v6006 = vrcp.pop %v5938
          %v6007 = vrcp.pop %v5939
          %v6008 = vrcp.pop %v5940
          %v6009 = vrcp.pop %v5941
          %v6010 = vrcp.pop %v5942
          %v6011 = vrcp.pop %v5943
          %v6012 = vrcp.pop %v5944
          %v6013 = vmul.f32 %v5945, 1.0614054
          %v6014 = vmul.f32 %v5946, 1.0614054
          %v6015 = vmul.f32 %v5947, 1.0614054
          %v6016 = vmul.f32 %v5948, 1.0614054
          %v6017 = vmul.f32 %v5949, 1.0614054
          %v6018 = vmul.f32 %v5950, 1.0614054
          %v6019 = vmul.f32 %v5951, 1.0614054
          %v6020 = vmul.f32 %v5952, 1.0614054
          %v6021 = vmul.f32 %v5953, 1.0614054
          %v6022 = vmul.f32 %v5954, 1.0614054
          %v6023 = vmul.f32 %v5955, 1.0614054
          %v6024 = vmul.f32 %v5956, 1.0614054
          %v6025 = vmul.f32 %v5957, 1.0614054
          %v6026 = vmul.f32 %v5958, 1.0614054
          %v6027 = vmul.f32 %v5959, 1.0614054
          %v6028 = vmul.f32 %v5960, 1.0614054
          %v6029 = vmul.f32 %v5961, 1.0614054
          %v6030 = vmul.f32 %v5962, 1.0614054
          %v6031 = vmul.f32 %v5963, 1.0614054
          %v6032 = vmul.f32 %v5964, 1.0614054
          %v6033 = vmul.f32 %v5965, 1.0614054
          %v6034 = vmul.f32 %v5966, 1.0614054
          %v6035 = vmul.f32 %v5967, 1.0614054
          %v6036 = vmul.f32 %v5968, 1.0614054
          %v6037 = vmul.f32 %v5969, 1.0614054
          %v6038 = vmul.f32 %v5970, 1.0614054
          %v6039 = vmul.f32 %v5971, 1.0614054
          %v6040 = vmul.f32 %v5972, 1.0614054
          %v6041 = vmul.f32 %v5973, 1.0614054
          %v6042 = vmul.f32 %v5974, 1.0614054
          %v6043 = vmul.f32 %v5975, 1.0614054
          %v6044 = vmul.f32 %v5976, 1.0614054
          %v6045 = vmul.f32 %v5977, 1.0614054
          %v6046 = vmul.f32 %v5978, 1.0614054
          %v6047 = vmul.f32 %v5979, 1.0614054
          %v6048 = vmul.f32 %v5980, 1.0614054
          %v6049 = vmul.f32 %v5981, 1.0614054
          %v6050 = vmul.f32 %v5982, 1.0614054
          %v6051 = vmul.f32 %v5983, 1.0614054
          %v6052 = vmul.f32 %v5984, 1.0614054
          %v6053 = vmul.f32 %v5985, 1.0614054
          %v6054 = vmul.f32 %v5986, 1.0614054
          %v6055 = vmul.f32 %v5987, 1.0614054
          %v6056 = vmul.f32 %v5988, 1.0614054
          %v6057 = vmul.f32 %v5989, 1.0614054
          %v6058 = vmul.f32 %v5990, 1.0614054
          %v6059 = vmul.f32 %v5991, 1.0614054
          %v6060 = vmul.f32 %v5992, 1.0614054
          %v6061 = vmul.f32 %v5993, 1.0614054
          %v6062 = vmul.f32 %v5994, 1.0614054
          %v6063 = vmul.f32 %v5995, 1.0614054
          %v6064 = vmul.f32 %v5996, 1.0614054
          %v6065 = vmul.f32 %v5997, 1.0614054
          %v6066 = vmul.f32 %v5998, 1.0614054
          %v6067 = vmul.f32 %v5999, 1.0614054
          %v6068 = vmul.f32 %v6000, 1.0614054
          %v6069 = vmul.f32 %v6001, 1.0614054
          %v6070 = vmul.f32 %v6002, 1.0614054
          %v6071 = vmul.f32 %v6003, 1.0614054
          %v6072 = vmul.f32 %v6004, 1.0614054
          %v6073 = vmul.f32 %v6005, 1.0614054
          %v6074 = vmul.f32 %v6006, 1.0614054
          %v6075 = vmul.f32 %v6007, 1.0614054
          %v6076 = vmul.f32 %v6008, 1.0614054
          %v6077 = vmul.f32 %v6009, 1.0614054
          %v6078 = vmul.f32 %v6010, 1.0614054
          %v6079 = vmul.f32 %v6011, 1.0614054
          %v6080 = vmul.f32 %v6012, 1.0614054
          %v6081 = vadd.f32 %v6013, -1.4531521
          %v6082 = vadd.f32 %v6014, -1.4531521
          %v6083 = vadd.f32 %v6015, -1.4531521
          %v6084 = vadd.f32 %v6016, -1.4531521
          %v6085 = vadd.f32 %v6017, -1.4531521
          %v6086 = vadd.f32 %v6018, -1.4531521
          %v6087 = vadd.f32 %v6019, -1.4531521
          %v6088 = vadd.f32 %v6020, -1.4531521
          %v6089 = vadd.f32 %v6021, -1.4531521
          %v6090 = vadd.f32 %v6022, -1.4531521
          %v6091 = vadd.f32 %v6023, -1.4531521
          %v6092 = vadd.f32 %v6024, -1.4531521
          %v6093 = vadd.f32 %v6025, -1.4531521
          %v6094 = vadd.f32 %v6026, -1.4531521
          %v6095 = vadd.f32 %v6027, -1.4531521
          %v6096 = vadd.f32 %v6028, -1.4531521
          %v6097 = vadd.f32 %v6029, -1.4531521
          %v6098 = vadd.f32 %v6030, -1.4531521
          %v6099 = vadd.f32 %v6031, -1.4531521
          %v6100 = vadd.f32 %v6032, -1.4531521
          %v6101 = vadd.f32 %v6033, -1.4531521
          %v6102 = vadd.f32 %v6034, -1.4531521
          %v6103 = vadd.f32 %v6035, -1.4531521
          %v6104 = vadd.f32 %v6036, -1.4531521
          %v6105 = vadd.f32 %v6037, -1.4531521
          %v6106 = vadd.f32 %v6038, -1.4531521
          %v6107 = vadd.f32 %v6039, -1.4531521
          %v6108 = vadd.f32 %v6040, -1.4531521
          %v6109 = vadd.f32 %v6041, -1.4531521
          %v6110 = vadd.f32 %v6042, -1.4531521
          %v6111 = vadd.f32 %v6043, -1.4531521
          %v6112 = vadd.f32 %v6044, -1.4531521
          %v6113 = vadd.f32 %v6045, -1.4531521
          %v6114 = vadd.f32 %v6046, -1.4531521
          %v6115 = vadd.f32 %v6047, -1.4531521
          %v6116 = vadd.f32 %v6048, -1.4531521
          %v6117 = vadd.f32 %v6049, -1.4531521
          %v6118 = vadd.f32 %v6050, -1.4531521
          %v6119 = vadd.f32 %v6051, -1.4531521
          %v6120 = vadd.f32 %v6052, -1.4531521
          %v6121 = vadd.f32 %v6053, -1.4531521
          %v6122 = vadd.f32 %v6054, -1.4531521
          %v6123 = vadd.f32 %v6055, -1.4531521
          %v6124 = vadd.f32 %v6056, -1.4531521
          %v6125 = vadd.f32 %v6057, -1.4531521
          %v6126 = vadd.f32 %v6058, -1.4531521
          %v6127 = vadd.f32 %v6059, -1.4531521
          %v6128 = vadd.f32 %v6060, -1.4531521
          %v6129 = vadd.f32 %v6061, -1.4531521
          %v6130 = vadd.f32 %v6062, -1.4531521
          %v6131 = vadd.f32 %v6063, -1.4531521
          %v6132 = vadd.f32 %v6064, -1.4531521
          %v6133 = vadd.f32 %v6065, -1.4531521
          %v6134 = vadd.f32 %v6066, -1.4531521
          %v6135 = vadd.f32 %v6067, -1.4531521
          %v6136 = vadd.f32 %v6068, -1.4531521
          %v6137 = vadd.f32 %v6069, -1.4531521
          %v6138 = vadd.f32 %v6070, -1.4531521
          %v6139 = vadd.f32 %v6071, -1.4531521
          %v6140 = vadd.f32 %v6072, -1.4531521
          %v6141 = vadd.f32 %v6073, -1.4531521
          %v6142 = vadd.f32 %v6074, -1.4531521
          %v6143 = vadd.f32 %v6075, -1.4531521
          %v6144 = vadd.f32 %v6076, -1.4531521
          %v6145 = vadd.f32 %v6077, -1.4531521
          %v6146 = vadd.f32 %v6078, -1.4531521
          %v6147 = vadd.f32 %v6079, -1.4531521
          %v6148 = vadd.f32 %v6080, -1.4531521
          %v6149 = vmul.f32 %v6081, %v5945
          %v6150 = vmul.f32 %v6082, %v5946
          %v6151 = vmul.f32 %v6083, %v5947
          %v6152 = vmul.f32 %v6084, %v5948
          %v6153 = vmul.f32 %v6085, %v5949
          %v6154 = vmul.f32 %v6086, %v5950
          %v6155 = vmul.f32 %v6087, %v5951
          %v6156 = vmul.f32 %v6088, %v5952
          %v6157 = vmul.f32 %v6089, %v5953
          %v6158 = vmul.f32 %v6090, %v5954
          %v6159 = vmul.f32 %v6091, %v5955
          %v6160 = vmul.f32 %v6092, %v5956
          %v6161 = vmul.f32 %v6093, %v5957
          %v6162 = vmul.f32 %v6094, %v5958
          %v6163 = vmul.f32 %v6095, %v5959
          %v6164 = vmul.f32 %v6096, %v5960
          %v6165 = vmul.f32 %v6097, %v5961
          %v6166 = vmul.f32 %v6098, %v5962
          %v6167 = vmul.f32 %v6099, %v5963
          %v6168 = vmul.f32 %v6100, %v5964
          %v6169 = vmul.f32 %v6101, %v5965
          %v6170 = vmul.f32 %v6102, %v5966
          %v6171 = vmul.f32 %v6103, %v5967
          %v6172 = vmul.f32 %v6104, %v5968
          %v6173 = vmul.f32 %v6105, %v5969
          %v6174 = vmul.f32 %v6106, %v5970
          %v6175 = vmul.f32 %v6107, %v5971
          %v6176 = vmul.f32 %v6108, %v5972
          %v6177 = vmul.f32 %v6109, %v5973
          %v6178 = vmul.f32 %v6110, %v5974
          %v6179 = vmul.f32 %v6111, %v5975
          %v6180 = vmul.f32 %v6112, %v5976
          %v6181 = vmul.f32 %v6113, %v5977
          %v6182 = vmul.f32 %v6114, %v5978
          %v6183 = vmul.f32 %v6115, %v5979
          %v6184 = vmul.f32 %v6116, %v5980
          %v6185 = vmul.f32 %v6117, %v5981
          %v6186 = vmul.f32 %v6118, %v5982
          %v6187 = vmul.f32 %v6119, %v5983
          %v6188 = vmul.f32 %v6120, %v5984
          %v6189 = vmul.f32 %v6121, %v5985
          %v6190 = vmul.f32 %v6122, %v5986
          %v6191 = vmul.f32 %v6123, %v5987
          %v6192 = vmul.f32 %v6124, %v5988
          %v6193 = vmul.f32 %v6125, %v5989
          %v6194 = vmul.f32 %v6126, %v5990
          %v6195 = vmul.f32 %v6127, %v5991
          %v6196 = vmul.f32 %v6128, %v5992
          %v6197 = vmul.f32 %v6129, %v5993
          %v6198 = vmul.f32 %v6130, %v5994
          %v6199 = vmul.f32 %v6131, %v5995
          %v6200 = vmul.f32 %v6132, %v5996
          %v6201 = vmul.f32 %v6133, %v5997
          %v6202 = vmul.f32 %v6134, %v5998
          %v6203 = vmul.f32 %v6135, %v5999
          %v6204 = vmul.f32 %v6136, %v6000
          %v6205 = vmul.f32 %v6137, %v6001
          %v6206 = vmul.f32 %v6138, %v6002
          %v6207 = vmul.f32 %v6139, %v6003
          %v6208 = vmul.f32 %v6140, %v6004
          %v6209 = vmul.f32 %v6141, %v6005
          %v6210 = vmul.f32 %v6142, %v6006
          %v6211 = vmul.f32 %v6143, %v6007
          %v6212 = vmul.f32 %v6144, %v6008
          %v6213 = vmul.f32 %v6145, %v6009
          %v6214 = vmul.f32 %v6146, %v6010
          %v6215 = vmul.f32 %v6147, %v6011
          %v6216 = vmul.f32 %v6148, %v6012
          %v6217 = vadd.f32 %v6149, 1.4214138
          %v6218 = vadd.f32 %v6150, 1.4214138
          %v6219 = vadd.f32 %v6151, 1.4214138
          %v6220 = vadd.f32 %v6152, 1.4214138
          %v6221 = vadd.f32 %v6153, 1.4214138
          %v6222 = vadd.f32 %v6154, 1.4214138
          %v6223 = vadd.f32 %v6155, 1.4214138
          %v6224 = vadd.f32 %v6156, 1.4214138
          %v6225 = vadd.f32 %v6157, 1.4214138
          %v6226 = vadd.f32 %v6158, 1.4214138
          %v6227 = vadd.f32 %v6159, 1.4214138
          %v6228 = vadd.f32 %v6160, 1.4214138
          %v6229 = vadd.f32 %v6161, 1.4214138
          %v6230 = vadd.f32 %v6162, 1.4214138
          %v6231 = vadd.f32 %v6163, 1.4214138
          %v6232 = vadd.f32 %v6164, 1.4214138
          %v6233 = vadd.f32 %v6165, 1.4214138
          %v6234 = vadd.f32 %v6166, 1.4214138
          %v6235 = vadd.f32 %v6167, 1.4214138
          %v6236 = vadd.f32 %v6168, 1.4214138
          %v6237 = vadd.f32 %v6169, 1.4214138
          %v6238 = vadd.f32 %v6170, 1.4214138
          %v6239 = vadd.f32 %v6171, 1.4214138
          %v6240 = vadd.f32 %v6172, 1.4214138
          %v6241 = vadd.f32 %v6173, 1.4214138
          %v6242 = vadd.f32 %v6174, 1.4214138
          %v6243 = vadd.f32 %v6175, 1.4214138
          %v6244 = vadd.f32 %v6176, 1.4214138
          %v6245 = vadd.f32 %v6177, 1.4214138
          %v6246 = vadd.f32 %v6178, 1.4214138
          %v6247 = vadd.f32 %v6179, 1.4214138
          %v6248 = vadd.f32 %v6180, 1.4214138
          %v6249 = vadd.f32 %v6181, 1.4214138
          %v6250 = vadd.f32 %v6182, 1.4214138
          %v6251 = vadd.f32 %v6183, 1.4214138
          %v6252 = vadd.f32 %v6184, 1.4214138
          %v6253 = vadd.f32 %v6185, 1.4214138
          %v6254 = vadd.f32 %v6186, 1.4214138
          %v6255 = vadd.f32 %v6187, 1.4214138
          %v6256 = vadd.f32 %v6188, 1.4214138
          %v6257 = vadd.f32 %v6189, 1.4214138
          %v6258 = vadd.f32 %v6190, 1.4214138
          %v6259 = vadd.f32 %v6191, 1.4214138
          %v6260 = vadd.f32 %v6192, 1.4214138
          %v6261 = vadd.f32 %v6193, 1.4214138
          %v6262 = vadd.f32 %v6194, 1.4214138
          %v6263 = vadd.f32 %v6195, 1.4214138
          %v6264 = vadd.f32 %v6196, 1.4214138
          %v6265 = vadd.f32 %v6197, 1.4214138
          %v6266 = vadd.f32 %v6198, 1.4214138
          %v6267 = vadd.f32 %v6199, 1.4214138
          %v6268 = vadd.f32 %v6200, 1.4214138
          %v6269 = vadd.f32 %v6201, 1.4214138
          %v6270 = vadd.f32 %v6202, 1.4214138
          %v6271 = vadd.f32 %v6203, 1.4214138
          %v6272 = vadd.f32 %v6204, 1.4214138
          %v6273 = vadd.f32 %v6205, 1.4214138
          %v6274 = vadd.f32 %v6206, 1.4214138
          %v6275 = vadd.f32 %v6207, 1.4214138
          %v6276 = vadd.f32 %v6208, 1.4214138
          %v6277 = vadd.f32 %v6209, 1.4214138
          %v6278 = vadd.f32 %v6210, 1.4214138
          %v6279 = vadd.f32 %v6211, 1.4214138
          %v6280 = vadd.f32 %v6212, 1.4214138
          %v6281 = vadd.f32 %v6213, 1.4214138
          %v6282 = vadd.f32 %v6214, 1.4214138
          %v6283 = vadd.f32 %v6215, 1.4214138
          %v6284 = vadd.f32 %v6216, 1.4214138
          %v6285 = vmul.f32 %v6217, %v5945
          %v6286 = vmul.f32 %v6218, %v5946
          %v6287 = vmul.f32 %v6219, %v5947
          %v6288 = vmul.f32 %v6220, %v5948
          %v6289 = vmul.f32 %v6221, %v5949
          %v6290 = vmul.f32 %v6222, %v5950
          %v6291 = vmul.f32 %v6223, %v5951
          %v6292 = vmul.f32 %v6224, %v5952
          %v6293 = vmul.f32 %v6225, %v5953
          %v6294 = vmul.f32 %v6226, %v5954
          %v6295 = vmul.f32 %v6227, %v5955
          %v6296 = vmul.f32 %v6228, %v5956
          %v6297 = vmul.f32 %v6229, %v5957
          %v6298 = vmul.f32 %v6230, %v5958
          %v6299 = vmul.f32 %v6231, %v5959
          %v6300 = vmul.f32 %v6232, %v5960
          %v6301 = vmul.f32 %v6233, %v5961
          %v6302 = vmul.f32 %v6234, %v5962
          %v6303 = vmul.f32 %v6235, %v5963
          %v6304 = vmul.f32 %v6236, %v5964
          %v6305 = vmul.f32 %v6237, %v5965
          %v6306 = vmul.f32 %v6238, %v5966
          %v6307 = vmul.f32 %v6239, %v5967
          %v6308 = vmul.f32 %v6240, %v5968
          %v6309 = vmul.f32 %v6241, %v5969
          %v6310 = vmul.f32 %v6242, %v5970
          %v6311 = vmul.f32 %v6243, %v5971
          %v6312 = vmul.f32 %v6244, %v5972
          %v6313 = vmul.f32 %v6245, %v5973
          %v6314 = vmul.f32 %v6246, %v5974
          %v6315 = vmul.f32 %v6247, %v5975
          %v6316 = vmul.f32 %v6248, %v5976
          %v6317 = vmul.f32 %v6249, %v5977
          %v6318 = vmul.f32 %v6250, %v5978
          %v6319 = vmul.f32 %v6251, %v5979
          %v6320 = vmul.f32 %v6252, %v5980
          %v6321 = vmul.f32 %v6253, %v5981
          %v6322 = vmul.f32 %v6254, %v5982
          %v6323 = vmul.f32 %v6255, %v5983
          %v6324 = vmul.f32 %v6256, %v5984
          %v6325 = vmul.f32 %v6257, %v5985
          %v6326 = vmul.f32 %v6258, %v5986
          %v6327 = vmul.f32 %v6259, %v5987
          %v6328 = vmul.f32 %v6260, %v5988
          %v6329 = vmul.f32 %v6261, %v5989
          %v6330 = vmul.f32 %v6262, %v5990
          %v6331 = vmul.f32 %v6263, %v5991
          %v6332 = vmul.f32 %v6264, %v5992
          %v6333 = vmul.f32 %v6265, %v5993
          %v6334 = vmul.f32 %v6266, %v5994
          %v6335 = vmul.f32 %v6267, %v5995
          %v6336 = vmul.f32 %v6268, %v5996
          %v6337 = vmul.f32 %v6269, %v5997
          %v6338 = vmul.f32 %v6270, %v5998
          %v6339 = vmul.f32 %v6271, %v5999
          %v6340 = vmul.f32 %v6272, %v6000
          %v6341 = vmul.f32 %v6273, %v6001
          %v6342 = vmul.f32 %v6274, %v6002
          %v6343 = vmul.f32 %v6275, %v6003
          %v6344 = vmul.f32 %v6276, %v6004
          %v6345 = vmul.f32 %v6277, %v6005
          %v6346 = vmul.f32 %v6278, %v6006
          %v6347 = vmul.f32 %v6279, %v6007
          %v6348 = vmul.f32 %v6280, %v6008
          %v6349 = vmul.f32 %v6281, %v6009
          %v6350 = vmul.f32 %v6282, %v6010
          %v6351 = vmul.f32 %v6283, %v6011
          %v6352 = vmul.f32 %v6284, %v6012
          %v6353 = vadd.f32 %v6285, -0.28449672
          %v6354 = vadd.f32 %v6286, -0.28449672
          %v6355 = vadd.f32 %v6287, -0.28449672
          %v6356 = vadd.f32 %v6288, -0.28449672
          %v6357 = vadd.f32 %v6289, -0.28449672
          %v6358 = vadd.f32 %v6290, -0.28449672
          %v6359 = vadd.f32 %v6291, -0.28449672
          %v6360 = vadd.f32 %v6292, -0.28449672
          %v6361 = vadd.f32 %v6293, -0.28449672
          %v6362 = vadd.f32 %v6294, -0.28449672
          %v6363 = vadd.f32 %v6295, -0.28449672
          %v6364 = vadd.f32 %v6296, -0.28449672
          %v6365 = vadd.f32 %v6297, -0.28449672
          %v6366 = vadd.f32 %v6298, -0.28449672
          %v6367 = vadd.f32 %v6299, -0.28449672
          %v6368 = vadd.f32 %v6300, -0.28449672
          %v6369 = vadd.f32 %v6301, -0.28449672
          %v6370 = vadd.f32 %v6302, -0.28449672
          %v6371 = vadd.f32 %v6303, -0.28449672
          %v6372 = vadd.f32 %v6304, -0.28449672
          %v6373 = vadd.f32 %v6305, -0.28449672
          %v6374 = vadd.f32 %v6306, -0.28449672
          %v6375 = vadd.f32 %v6307, -0.28449672
          %v6376 = vadd.f32 %v6308, -0.28449672
          %v6377 = vadd.f32 %v6309, -0.28449672
          %v6378 = vadd.f32 %v6310, -0.28449672
          %v6379 = vadd.f32 %v6311, -0.28449672
          %v6380 = vadd.f32 %v6312, -0.28449672
          %v6381 = vadd.f32 %v6313, -0.28449672
          %v6382 = vadd.f32 %v6314, -0.28449672
          %v6383 = vadd.f32 %v6315, -0.28449672
          %v6384 = vadd.f32 %v6316, -0.28449672
          %v6385 = vadd.f32 %v6317, -0.28449672
          %v6386 = vadd.f32 %v6318, -0.28449672
          %v6387 = vadd.f32 %v6319, -0.28449672
          %v6388 = vadd.f32 %v6320, -0.28449672
          %v6389 = vadd.f32 %v6321, -0.28449672
          %v6390 = vadd.f32 %v6322, -0.28449672
          %v6391 = vadd.f32 %v6323, -0.28449672
          %v6392 = vadd.f32 %v6324, -0.28449672
          %v6393 = vadd.f32 %v6325, -0.28449672
          %v6394 = vadd.f32 %v6326, -0.28449672
          %v6395 = vadd.f32 %v6327, -0.28449672
          %v6396 = vadd.f32 %v6328, -0.28449672
          %v6397 = vadd.f32 %v6329, -0.28449672
          %v6398 = vadd.f32 %v6330, -0.28449672
          %v6399 = vadd.f32 %v6331, -0.28449672
          %v6400 = vadd.f32 %v6332, -0.28449672
          %v6401 = vadd.f32 %v6333, -0.28449672
          %v6402 = vadd.f32 %v6334, -0.28449672
          %v6403 = vadd.f32 %v6335, -0.28449672
          %v6404 = vadd.f32 %v6336, -0.28449672
          %v6405 = vadd.f32 %v6337, -0.28449672
          %v6406 = vadd.f32 %v6338, -0.28449672
          %v6407 = vadd.f32 %v6339, -0.28449672
          %v6408 = vadd.f32 %v6340, -0.28449672
          %v6409 = vadd.f32 %v6341, -0.28449672
          %v6410 = vadd.f32 %v6342, -0.28449672
          %v6411 = vadd.f32 %v6343, -0.28449672
          %v6412 = vadd.f32 %v6344, -0.28449672
          %v6413 = vadd.f32 %v6345, -0.28449672
          %v6414 = vadd.f32 %v6346, -0.28449672
          %v6415 = vadd.f32 %v6347, -0.28449672
          %v6416 = vadd.f32 %v6348, -0.28449672
          %v6417 = vadd.f32 %v6349, -0.28449672
          %v6418 = vadd.f32 %v6350, -0.28449672
          %v6419 = vadd.f32 %v6351, -0.28449672
          %v6420 = vadd.f32 %v6352, -0.28449672
          %v6421 = vmul.f32 %v6353, %v5945
          %v6422 = vmul.f32 %v6354, %v5946
          %v6423 = vmul.f32 %v6355, %v5947
          %v6424 = vmul.f32 %v6356, %v5948
          %v6425 = vmul.f32 %v6357, %v5949
          %v6426 = vmul.f32 %v6358, %v5950
          %v6427 = vmul.f32 %v6359, %v5951
          %v6428 = vmul.f32 %v6360, %v5952
          %v6429 = vmul.f32 %v6361, %v5953
          %v6430 = vmul.f32 %v6362, %v5954
          %v6431 = vmul.f32 %v6363, %v5955
          %v6432 = vmul.f32 %v6364, %v5956
          %v6433 = vmul.f32 %v6365, %v5957
          %v6434 = vmul.f32 %v6366, %v5958
          %v6435 = vmul.f32 %v6367, %v5959
          %v6436 = vmul.f32 %v6368, %v5960
          %v6437 = vmul.f32 %v6369, %v5961
          %v6438 = vmul.f32 %v6370, %v5962
          %v6439 = vmul.f32 %v6371, %v5963
          %v6440 = vmul.f32 %v6372, %v5964
          %v6441 = vmul.f32 %v6373, %v5965
          %v6442 = vmul.f32 %v6374, %v5966
          %v6443 = vmul.f32 %v6375, %v5967
          %v6444 = vmul.f32 %v6376, %v5968
          %v6445 = vmul.f32 %v6377, %v5969
          %v6446 = vmul.f32 %v6378, %v5970
          %v6447 = vmul.f32 %v6379, %v5971
          %v6448 = vmul.f32 %v6380, %v5972
          %v6449 = vmul.f32 %v6381, %v5973
          %v6450 = vmul.f32 %v6382, %v5974
          %v6451 = vmul.f32 %v6383, %v5975
          %v6452 = vmul.f32 %v6384, %v5976
          %v6453 = vmul.f32 %v6385, %v5977
          %v6454 = vmul.f32 %v6386, %v5978
          %v6455 = vmul.f32 %v6387, %v5979
          %v6456 = vmul.f32 %v6388, %v5980
          %v6457 = vmul.f32 %v6389, %v5981
          %v6458 = vmul.f32 %v6390, %v5982
          %v6459 = vmul.f32 %v6391, %v5983
          %v6460 = vmul.f32 %v6392, %v5984
          %v6461 = vmul.f32 %v6393, %v5985
          %v6462 = vmul.f32 %v6394, %v5986
          %v6463 = vmul.f32 %v6395, %v5987
          %v6464 = vmul.f32 %v6396, %v5988
          %v6465 = vmul.f32 %v6397, %v5989
          %v6466 = vmul.f32 %v6398, %v5990
          %v6467 = vmul.f32 %v6399, %v5991
          %v6468 = vmul.f32 %v6400, %v5992
          %v6469 = vmul.f32 %v6401, %v5993
          %v6470 = vmul.f32 %v6402, %v5994
          %v6471 = vmul.f32 %v6403, %v5995
          %v6472 = vmul.f32 %v6404, %v5996
          %v6473 = vmul.f32 %v6405, %v5997
          %v6474 = vmul.f32 %v6406, %v5998
          %v6475 = vmul.f32 %v6407, %v5999
          %v6476 = vmul.f32 %v6408, %v6000
          %v6477 = vmul.f32 %v6409, %v6001
          %v6478 = vmul.f32 %v6410, %v6002
          %v6479 = vmul.f32 %v6411, %v6003
          %v6480 = vmul.f32 %v6412, %v6004
          %v6481 = vmul.f32 %v6413, %v6005
          %v6482 = vmul.f32 %v6414, %v6006
          %v6483 = vmul.f32 %v6415, %v6007
          %v6484 = vmul.f32 %v6416, %v6008
          %v6485 = vmul.f32 %v6417, %v6009
          %v6486 = vmul.f32 %v6418, %v6010
          %v6487 = vmul.f32 %v6419, %v6011
          %v6488 = vmul.f32 %v6420, %v6012
          %v6489 = vadd.f32 %v6421, 0.2548296
          %v6490 = vadd.f32 %v6422, 0.2548296
          %v6491 = vadd.f32 %v6423, 0.2548296
          %v6492 = vadd.f32 %v6424, 0.2548296
          %v6493 = vadd.f32 %v6425, 0.2548296
          %v6494 = vadd.f32 %v6426, 0.2548296
          %v6495 = vadd.f32 %v6427, 0.2548296
          %v6496 = vadd.f32 %v6428, 0.2548296
          %v6497 = vadd.f32 %v6429, 0.2548296
          %v6498 = vadd.f32 %v6430, 0.2548296
          %v6499 = vadd.f32 %v6431, 0.2548296
          %v6500 = vadd.f32 %v6432, 0.2548296
          %v6501 = vadd.f32 %v6433, 0.2548296
          %v6502 = vadd.f32 %v6434, 0.2548296
          %v6503 = vadd.f32 %v6435, 0.2548296
          %v6504 = vadd.f32 %v6436, 0.2548296
          %v6505 = vadd.f32 %v6437, 0.2548296
          %v6506 = vadd.f32 %v6438, 0.2548296
          %v6507 = vadd.f32 %v6439, 0.2548296
          %v6508 = vadd.f32 %v6440, 0.2548296
          %v6509 = vadd.f32 %v6441, 0.2548296
          %v6510 = vadd.f32 %v6442, 0.2548296
          %v6511 = vadd.f32 %v6443, 0.2548296
          %v6512 = vadd.f32 %v6444, 0.2548296
          %v6513 = vadd.f32 %v6445, 0.2548296
          %v6514 = vadd.f32 %v6446, 0.2548296
          %v6515 = vadd.f32 %v6447, 0.2548296
          %v6516 = vadd.f32 %v6448, 0.2548296
          %v6517 = vadd.f32 %v6449, 0.2548296
          %v6518 = vadd.f32 %v6450, 0.2548296
          %v6519 = vadd.f32 %v6451, 0.2548296
          %v6520 = vadd.f32 %v6452, 0.2548296
          %v6521 = vadd.f32 %v6453, 0.2548296
          %v6522 = vadd.f32 %v6454, 0.2548296
          %v6523 = vadd.f32 %v6455, 0.2548296
          %v6524 = vadd.f32 %v6456, 0.2548296
          %v6525 = vadd.f32 %v6457, 0.2548296
          %v6526 = vadd.f32 %v6458, 0.2548296
          %v6527 = vadd.f32 %v6459, 0.2548296
          %v6528 = vadd.f32 %v6460, 0.2548296
          %v6529 = vadd.f32 %v6461, 0.2548296
          %v6530 = vadd.f32 %v6462, 0.2548296
          %v6531 = vadd.f32 %v6463, 0.2548296
          %v6532 = vadd.f32 %v6464, 0.2548296
          %v6533 = vadd.f32 %v6465, 0.2548296
          %v6534 = vadd.f32 %v6466, 0.2548296
          %v6535 = vadd.f32 %v6467, 0.2548296
          %v6536 = vadd.f32 %v6468, 0.2548296
          %v6537 = vadd.f32 %v6469, 0.2548296
          %v6538 = vadd.f32 %v6470, 0.2548296
          %v6539 = vadd.f32 %v6471, 0.2548296
          %v6540 = vadd.f32 %v6472, 0.2548296
          %v6541 = vadd.f32 %v6473, 0.2548296
          %v6542 = vadd.f32 %v6474, 0.2548296
          %v6543 = vadd.f32 %v6475, 0.2548296
          %v6544 = vadd.f32 %v6476, 0.2548296
          %v6545 = vadd.f32 %v6477, 0.2548296
          %v6546 = vadd.f32 %v6478, 0.2548296
          %v6547 = vadd.f32 %v6479, 0.2548296
          %v6548 = vadd.f32 %v6480, 0.2548296
          %v6549 = vadd.f32 %v6481, 0.2548296
          %v6550 = vadd.f32 %v6482, 0.2548296
          %v6551 = vadd.f32 %v6483, 0.2548296
          %v6552 = vadd.f32 %v6484, 0.2548296
          %v6553 = vadd.f32 %v6485, 0.2548296
          %v6554 = vadd.f32 %v6486, 0.2548296
          %v6555 = vadd.f32 %v6487, 0.2548296
          %v6556 = vadd.f32 %v6488, 0.2548296
          %v6557 = vmul.f32 %v6489, %v5945
          %v6558 = vmul.f32 %v6490, %v5946
          %v6559 = vmul.f32 %v6491, %v5947
          %v6560 = vmul.f32 %v6492, %v5948
          %v6561 = vmul.f32 %v6493, %v5949
          %v6562 = vmul.f32 %v6494, %v5950
          %v6563 = vmul.f32 %v6495, %v5951
          %v6564 = vmul.f32 %v6496, %v5952
          %v6565 = vmul.f32 %v6497, %v5953
          %v6566 = vmul.f32 %v6498, %v5954
          %v6567 = vmul.f32 %v6499, %v5955
          %v6568 = vmul.f32 %v6500, %v5956
          %v6569 = vmul.f32 %v6501, %v5957
          %v6570 = vmul.f32 %v6502, %v5958
          %v6571 = vmul.f32 %v6503, %v5959
          %v6572 = vmul.f32 %v6504, %v5960
          %v6573 = vmul.f32 %v6505, %v5961
          %v6574 = vmul.f32 %v6506, %v5962
          %v6575 = vmul.f32 %v6507, %v5963
          %v6576 = vmul.f32 %v6508, %v5964
          %v6577 = vmul.f32 %v6509, %v5965
          %v6578 = vmul.f32 %v6510, %v5966
          %v6579 = vmul.f32 %v6511, %v5967
          %v6580 = vmul.f32 %v6512, %v5968
          %v6581 = vmul.f32 %v6513, %v5969
          %v6582 = vmul.f32 %v6514, %v5970
          %v6583 = vmul.f32 %v6515, %v5971
          %v6584 = vmul.f32 %v6516, %v5972
          %v6585 = vmul.f32 %v6517, %v5973
          %v6586 = vmul.f32 %v6518, %v5974
          %v6587 = vmul.f32 %v6519, %v5975
          %v6588 = vmul.f32 %v6520, %v5976
          %v6589 = vmul.f32 %v6521, %v5977
          %v6590 = vmul.f32 %v6522, %v5978
          %v6591 = vmul.f32 %v6523, %v5979
          %v6592 = vmul.f32 %v6524, %v5980
          %v6593 = vmul.f32 %v6525, %v5981
          %v6594 = vmul.f32 %v6526, %v5982
          %v6595 = vmul.f32 %v6527, %v5983
          %v6596 = vmul.f32 %v6528, %v5984
          %v6597 = vmul.f32 %v6529, %v5985
          %v6598 = vmul.f32 %v6530, %v5986
          %v6599 = vmul.f32 %v6531, %v5987
          %v6600 = vmul.f32 %v6532, %v5988
          %v6601 = vmul.f32 %v6533, %v5989
          %v6602 = vmul.f32 %v6534, %v5990
          %v6603 = vmul.f32 %v6535, %v5991
          %v6604 = vmul.f32 %v6536, %v5992
          %v6605 = vmul.f32 %v6537, %v5993
          %v6606 = vmul.f32 %v6538, %v5994
          %v6607 = vmul.f32 %v6539, %v5995
          %v6608 = vmul.f32 %v6540, %v5996
          %v6609 = vmul.f32 %v6541, %v5997
          %v6610 = vmul.f32 %v6542, %v5998
          %v6611 = vmul.f32 %v6543, %v5999
          %v6612 = vmul.f32 %v6544, %v6000
          %v6613 = vmul.f32 %v6545, %v6001
          %v6614 = vmul.f32 %v6546, %v6002
          %v6615 = vmul.f32 %v6547, %v6003
          %v6616 = vmul.f32 %v6548, %v6004
          %v6617 = vmul.f32 %v6549, %v6005
          %v6618 = vmul.f32 %v6550, %v6006
          %v6619 = vmul.f32 %v6551, %v6007
          %v6620 = vmul.f32 %v6552, %v6008
          %v6621 = vmul.f32 %v6553, %v6009
          %v6622 = vmul.f32 %v6554, %v6010
          %v6623 = vmul.f32 %v6555, %v6011
          %v6624 = vmul.f32 %v6556, %v6012
          %v6625 = vsub.f32 0.0, %v5741
          %v6626 = vsub.f32 0.0, %v5742
          %v6627 = vsub.f32 0.0, %v5743
          %v6628 = vsub.f32 0.0, %v5744
          %v6629 = vsub.f32 0.0, %v5745
          %v6630 = vsub.f32 0.0, %v5746
          %v6631 = vsub.f32 0.0, %v5747
          %v6632 = vsub.f32 0.0, %v5748
          %v6633 = vsub.f32 0.0, %v5749
          %v6634 = vsub.f32 0.0, %v5750
          %v6635 = vsub.f32 0.0, %v5751
          %v6636 = vsub.f32 0.0, %v5752
          %v6637 = vsub.f32 0.0, %v5753
          %v6638 = vsub.f32 0.0, %v5754
          %v6639 = vsub.f32 0.0, %v5755
          %v6640 = vsub.f32 0.0, %v5756
          %v6641 = vsub.f32 0.0, %v5757
          %v6642 = vsub.f32 0.0, %v5758
          %v6643 = vsub.f32 0.0, %v5759
          %v6644 = vsub.f32 0.0, %v5760
          %v6645 = vsub.f32 0.0, %v5761
          %v6646 = vsub.f32 0.0, %v5762
          %v6647 = vsub.f32 0.0, %v5763
          %v6648 = vsub.f32 0.0, %v5764
          %v6649 = vsub.f32 0.0, %v5765
          %v6650 = vsub.f32 0.0, %v5766
          %v6651 = vsub.f32 0.0, %v5767
          %v6652 = vsub.f32 0.0, %v5768
          %v6653 = vsub.f32 0.0, %v5769
          %v6654 = vsub.f32 0.0, %v5770
          %v6655 = vsub.f32 0.0, %v5771
          %v6656 = vsub.f32 0.0, %v5772
          %v6657 = vsub.f32 0.0, %v5773
          %v6658 = vsub.f32 0.0, %v5774
          %v6659 = vsub.f32 0.0, %v5775
          %v6660 = vsub.f32 0.0, %v5776
          %v6661 = vsub.f32 0.0, %v5777
          %v6662 = vsub.f32 0.0, %v5778
          %v6663 = vsub.f32 0.0, %v5779
          %v6664 = vsub.f32 0.0, %v5780
          %v6665 = vsub.f32 0.0, %v5781
          %v6666 = vsub.f32 0.0, %v5782
          %v6667 = vsub.f32 0.0, %v5783
          %v6668 = vsub.f32 0.0, %v5784
          %v6669 = vsub.f32 0.0, %v5785
          %v6670 = vsub.f32 0.0, %v5786
          %v6671 = vsub.f32 0.0, %v5787
          %v6672 = vsub.f32 0.0, %v5788
          %v6673 = vsub.f32 0.0, %v5789
          %v6674 = vsub.f32 0.0, %v5790
          %v6675 = vsub.f32 0.0, %v5791
          %v6676 = vsub.f32 0.0, %v5792
          %v6677 = vsub.f32 0.0, %v5793
          %v6678 = vsub.f32 0.0, %v5794
          %v6679 = vsub.f32 0.0, %v5795
          %v6680 = vsub.f32 0.0, %v5796
          %v6681 = vsub.f32 0.0, %v5797
          %v6682 = vsub.f32 0.0, %v5798
          %v6683 = vsub.f32 0.0, %v5799
          %v6684 = vsub.f32 0.0, %v5800
          %v6685 = vsub.f32 0.0, %v5801
          %v6686 = vsub.f32 0.0, %v5802
          %v6687 = vsub.f32 0.0, %v5803
          %v6688 = vsub.f32 0.0, %v5804
          %v6689 = vsub.f32 0.0, %v5805
          %v6690 = vsub.f32 0.0, %v5806
          %v6691 = vsub.f32 0.0, %v5807
          %v6692 = vsub.f32 0.0, %v5808
          %v6693 = vmul.f32 %v6625, %v5741
          %v6694 = vmul.f32 %v6626, %v5742
          %v6695 = vmul.f32 %v6627, %v5743
          %v6696 = vmul.f32 %v6628, %v5744
          %v6697 = vmul.f32 %v6629, %v5745
          %v6698 = vmul.f32 %v6630, %v5746
          %v6699 = vmul.f32 %v6631, %v5747
          %v6700 = vmul.f32 %v6632, %v5748
          %v6701 = vmul.f32 %v6633, %v5749
          %v6702 = vmul.f32 %v6634, %v5750
          %v6703 = vmul.f32 %v6635, %v5751
          %v6704 = vmul.f32 %v6636, %v5752
          %v6705 = vmul.f32 %v6637, %v5753
          %v6706 = vmul.f32 %v6638, %v5754
          %v6707 = vmul.f32 %v6639, %v5755
          %v6708 = vmul.f32 %v6640, %v5756
          %v6709 = vmul.f32 %v6641, %v5757
          %v6710 = vmul.f32 %v6642, %v5758
          %v6711 = vmul.f32 %v6643, %v5759
          %v6712 = vmul.f32 %v6644, %v5760
          %v6713 = vmul.f32 %v6645, %v5761
          %v6714 = vmul.f32 %v6646, %v5762
          %v6715 = vmul.f32 %v6647, %v5763
          %v6716 = vmul.f32 %v6648, %v5764
          %v6717 = vmul.f32 %v6649, %v5765
          %v6718 = vmul.f32 %v6650, %v5766
          %v6719 = vmul.f32 %v6651, %v5767
          %v6720 = vmul.f32 %v6652, %v5768
          %v6721 = vmul.f32 %v6653, %v5769
          %v6722 = vmul.f32 %v6654, %v5770
          %v6723 = vmul.f32 %v6655, %v5771
          %v6724 = vmul.f32 %v6656, %v5772
          %v6725 = vmul.f32 %v6657, %v5773
          %v6726 = vmul.f32 %v6658, %v5774
          %v6727 = vmul.f32 %v6659, %v5775
          %v6728 = vmul.f32 %v6660, %v5776
          %v6729 = vmul.f32 %v6661, %v5777
          %v6730 = vmul.f32 %v6662, %v5778
          %v6731 = vmul.f32 %v6663, %v5779
          %v6732 = vmul.f32 %v6664, %v5780
          %v6733 = vmul.f32 %v6665, %v5781
          %v6734 = vmul.f32 %v6666, %v5782
          %v6735 = vmul.f32 %v6667, %v5783
          %v6736 = vmul.f32 %v6668, %v5784
          %v6737 = vmul.f32 %v6669, %v5785
          %v6738 = vmul.f32 %v6670, %v5786
          %v6739 = vmul.f32 %v6671, %v5787
          %v6740 = vmul.f32 %v6672, %v5788
          %v6741 = vmul.f32 %v6673, %v5789
          %v6742 = vmul.f32 %v6674, %v5790
          %v6743 = vmul.f32 %v6675, %v5791
          %v6744 = vmul.f32 %v6676, %v5792
          %v6745 = vmul.f32 %v6677, %v5793
          %v6746 = vmul.f32 %v6678, %v5794
          %v6747 = vmul.f32 %v6679, %v5795
          %v6748 = vmul.f32 %v6680, %v5796
          %v6749 = vmul.f32 %v6681, %v5797
          %v6750 = vmul.f32 %v6682, %v5798
          %v6751 = vmul.f32 %v6683, %v5799
          %v6752 = vmul.f32 %v6684, %v5800
          %v6753 = vmul.f32 %v6685, %v5801
          %v6754 = vmul.f32 %v6686, %v5802
          %v6755 = vmul.f32 %v6687, %v5803
          %v6756 = vmul.f32 %v6688, %v5804
          %v6757 = vmul.f32 %v6689, %v5805
          %v6758 = vmul.f32 %v6690, %v5806
          %v6759 = vmul.f32 %v6691, %v5807
          %v6760 = vmul.f32 %v6692, %v5808
          %v6761 = vmul.f32 %v6693, 1.442695
          %v6762 = vpow.pop %v6761
          %v6763 = vmul.f32 %v6694, 1.442695
          %v6764 = vpow.pop %v6763
          %v6765 = vmul.f32 %v6695, 1.442695
          %v6766 = vpow.pop %v6765
          %v6767 = vmul.f32 %v6696, 1.442695
          %v6768 = vpow.pop %v6767
          %v6769 = vmul.f32 %v6697, 1.442695
          %v6770 = vpow.pop %v6769
          %v6771 = vmul.f32 %v6698, 1.442695
          %v6772 = vpow.pop %v6771
          %v6773 = vmul.f32 %v6699, 1.442695
          %v6774 = vpow.pop %v6773
          %v6775 = vmul.f32 %v6700, 1.442695
          %v6776 = vpow.pop %v6775
          %v6777 = vmul.f32 %v6701, 1.442695
          %v6778 = vpow.pop %v6777
          %v6779 = vmul.f32 %v6702, 1.442695
          %v6780 = vpow.pop %v6779
          %v6781 = vmul.f32 %v6703, 1.442695
          %v6782 = vpow.pop %v6781
          %v6783 = vmul.f32 %v6704, 1.442695
          %v6784 = vpow.pop %v6783
          %v6785 = vmul.f32 %v6705, 1.442695
          %v6786 = vpow.pop %v6785
          %v6787 = vmul.f32 %v6706, 1.442695
          %v6788 = vpow.pop %v6787
          %v6789 = vmul.f32 %v6707, 1.442695
          %v6790 = vpow.pop %v6789
          %v6791 = vmul.f32 %v6708, 1.442695
          %v6792 = vpow.pop %v6791
          %v6793 = vmul.f32 %v6709, 1.442695
          %v6794 = vpow.pop %v6793
          %v6795 = vmul.f32 %v6710, 1.442695
          %v6796 = vpow.pop %v6795
          %v6797 = vmul.f32 %v6711, 1.442695
          %v6798 = vpow.pop %v6797
          %v6799 = vmul.f32 %v6712, 1.442695
          %v6800 = vpow.pop %v6799
          %v6801 = vmul.f32 %v6713, 1.442695
          %v6802 = vpow.pop %v6801
          %v6803 = vmul.f32 %v6714, 1.442695
          %v6804 = vpow.pop %v6803
          %v6805 = vmul.f32 %v6715, 1.442695
          %v6806 = vpow.pop %v6805
          %v6807 = vmul.f32 %v6716, 1.442695
          %v6808 = vpow.pop %v6807
          %v6809 = vmul.f32 %v6717, 1.442695
          %v6810 = vpow.pop %v6809
          %v6811 = vmul.f32 %v6718, 1.442695
          %v6812 = vpow.pop %v6811
          %v6813 = vmul.f32 %v6719, 1.442695
          %v6814 = vpow.pop %v6813
          %v6815 = vmul.f32 %v6720, 1.442695
          %v6816 = vpow.pop %v6815
          %v6817 = vmul.f32 %v6721, 1.442695
          %v6818 = vpow.pop %v6817
          %v6819 = vmul.f32 %v6722, 1.442695
          %v6820 = vpow.pop %v6819
          %v6821 = vmul.f32 %v6723, 1.442695
          %v6822 = vpow.pop %v6821
          %v6823 = vmul.f32 %v6724, 1.442695
          %v6824 = vpow.pop %v6823
          %v6825 = vmul.f32 %v6725, 1.442695
          %v6826 = vpow.pop %v6825
          %v6827 = vmul.f32 %v6726, 1.442695
          %v6828 = vpow.pop %v6827
          %v6829 = vmul.f32 %v6727, 1.442695
          %v6830 = vpow.pop %v6829
          %v6831 = vmul.f32 %v6728, 1.442695
          %v6832 = vpow.pop %v6831
          %v6833 = vmul.f32 %v6729, 1.442695
          %v6834 = vpow.pop %v6833
          %v6835 = vmul.f32 %v6730, 1.442695
          %v6836 = vpow.pop %v6835
          %v6837 = vmul.f32 %v6731, 1.442695
          %v6838 = vpow.pop %v6837
          %v6839 = vmul.f32 %v6732, 1.442695
          %v6840 = vpow.pop %v6839
          %v6841 = vmul.f32 %v6733, 1.442695
          %v6842 = vpow.pop %v6841
          %v6843 = vmul.f32 %v6734, 1.442695
          %v6844 = vpow.pop %v6843
          %v6845 = vmul.f32 %v6735, 1.442695
          %v6846 = vpow.pop %v6845
          %v6847 = vmul.f32 %v6736, 1.442695
          %v6848 = vpow.pop %v6847
          %v6849 = vmul.f32 %v6737, 1.442695
          %v6850 = vpow.pop %v6849
          %v6851 = vmul.f32 %v6738, 1.442695
          %v6852 = vpow.pop %v6851
          %v6853 = vmul.f32 %v6739, 1.442695
          %v6854 = vpow.pop %v6853
          %v6855 = vmul.f32 %v6740, 1.442695
          %v6856 = vpow.pop %v6855
          %v6857 = vmul.f32 %v6741, 1.442695
          %v6858 = vpow.pop %v6857
          %v6859 = vmul.f32 %v6742, 1.442695
          %v6860 = vpow.pop %v6859
          %v6861 = vmul.f32 %v6743, 1.442695
          %v6862 = vpow.pop %v6861
          %v6863 = vmul.f32 %v6744, 1.442695
          %v6864 = vpow.pop %v6863
          %v6865 = vmul.f32 %v6745, 1.442695
          %v6866 = vpow.pop %v6865
          %v6867 = vmul.f32 %v6746, 1.442695
          %v6868 = vpow.pop %v6867
          %v6869 = vmul.f32 %v6747, 1.442695
          %v6870 = vpow.pop %v6869
          %v6871 = vmul.f32 %v6748, 1.442695
          %v6872 = vpow.pop %v6871
          %v6873 = vmul.f32 %v6749, 1.442695
          %v6874 = vpow.pop %v6873
          %v6875 = vmul.f32 %v6750, 1.442695
          %v6876 = vpow.pop %v6875
          %v6877 = vmul.f32 %v6751, 1.442695
          %v6878 = vpow.pop %v6877
          %v6879 = vmul.f32 %v6752, 1.442695
          %v6880 = vpow.pop %v6879
          %v6881 = vmul.f32 %v6753, 1.442695
          %v6882 = vpow.pop %v6881
          %v6883 = vmul.f32 %v6754, 1.442695
          %v6884 = vpow.pop %v6883
          %v6885 = vmul.f32 %v6755, 1.442695
          %v6886 = vpow.pop %v6885
          %v6887 = vmul.f32 %v6756, 1.442695
          %v6888 = vpow.pop %v6887
          %v6889 = vmul.f32 %v6757, 1.442695
          %v6890 = vpow.pop %v6889
          %v6891 = vmul.f32 %v6758, 1.442695
          %v6892 = vpow.pop %v6891
          %v6893 = vmul.f32 %v6759, 1.442695
          %v6894 = vpow.pop %v6893
          %v6895 = vmul.f32 %v6760, 1.442695
          %v6896 = vpow.pop %v6895
          %v6897 = vmul.f32 %v6557, %v6762
          %v6898 = vmul.f32 %v6558, %v6764
          %v6899 = vmul.f32 %v6559, %v6766
          %v6900 = vmul.f32 %v6560, %v6768
          %v6901 = vmul.f32 %v6561, %v6770
          %v6902 = vmul.f32 %v6562, %v6772
          %v6903 = vmul.f32 %v6563, %v6774
          %v6904 = vmul.f32 %v6564, %v6776
          %v6905 = vmul.f32 %v6565, %v6778
          %v6906 = vmul.f32 %v6566, %v6780
          %v6907 = vmul.f32 %v6567, %v6782
          %v6908 = vmul.f32 %v6568, %v6784
          %v6909 = vmul.f32 %v6569, %v6786
          %v6910 = vmul.f32 %v6570, %v6788
          %v6911 = vmul.f32 %v6571, %v6790
          %v6912 = vmul.f32 %v6572, %v6792
          %v6913 = vmul.f32 %v6573, %v6794
          %v6914 = vmul.f32 %v6574, %v6796
          %v6915 = vmul.f32 %v6575, %v6798
          %v6916 = vmul.f32 %v6576, %v6800
          %v6917 = vmul.f32 %v6577, %v6802
          %v6918 = vmul.f32 %v6578, %v6804
          %v6919 = vmul.f32 %v6579, %v6806
          %v6920 = vmul.f32 %v6580, %v6808
          %v6921 = vmul.f32 %v6581, %v6810
          %v6922 = vmul.f32 %v6582, %v6812
          %v6923 = vmul.f32 %v6583, %v6814
          %v6924 = vmul.f32 %v6584, %v6816
          %v6925 = vmul.f32 %v6585, %v6818
          %v6926 = vmul.f32 %v6586, %v6820
          %v6927 = vmul.f32 %v6587, %v6822
          %v6928 = vmul.f32 %v6588, %v6824
          %v6929 = vmul.f32 %v6589, %v6826
          %v6930 = vmul.f32 %v6590, %v6828
          %v6931 = vmul.f32 %v6591, %v6830
          %v6932 = vmul.f32 %v6592, %v6832
          %v6933 = vmul.f32 %v6593, %v6834
          %v6934 = vmul.f32 %v6594, %v6836
          %v6935 = vmul.f32 %v6595, %v6838
          %v6936 = vmul.f32 %v6596, %v6840
          %v6937 = vmul.f32 %v6597, %v6842
          %v6938 = vmul.f32 %v6598, %v6844
          %v6939 = vmul.f32 %v6599, %v6846
          %v6940 = vmul.f32 %v6600, %v6848
          %v6941 = vmul.f32 %v6601, %v6850
          %v6942 = vmul.f32 %v6602, %v6852
          %v6943 = vmul.f32 %v6603, %v6854
          %v6944 = vmul.f32 %v6604, %v6856
          %v6945 = vmul.f32 %v6605, %v6858
          %v6946 = vmul.f32 %v6606, %v6860
          %v6947 = vmul.f32 %v6607, %v6862
          %v6948 = vmul.f32 %v6608, %v6864
          %v6949 = vmul.f32 %v6609, %v6866
          %v6950 = vmul.f32 %v6610, %v6868
          %v6951 = vmul.f32 %v6611, %v6870
          %v6952 = vmul.f32 %v6612, %v6872
          %v6953 = vmul.f32 %v6613, %v6874
          %v6954 = vmul.f32 %v6614, %v6876
          %v6955 = vmul.f32 %v6615, %v6878
          %v6956 = vmul.f32 %v6616, %v6880
          %v6957 = vmul.f32 %v6617, %v6882
          %v6958 = vmul.f32 %v6618, %v6884
          %v6959 = vmul.f32 %v6619, %v6886
          %v6960 = vmul.f32 %v6620, %v6888
          %v6961 = vmul.f32 %v6621, %v6890
          %v6962 = vmul.f32 %v6622, %v6892
          %v6963 = vmul.f32 %v6623, %v6894
          %v6964 = vmul.f32 %v6624, %v6896
          %v6965 = vsub.f32 1.0, %v6897
          %v6966 = vsub.f32 1.0, %v6898
          %v6967 = vsub.f32 1.0, %v6899
          %v6968 = vsub.f32 1.0, %v6900
          %v6969 = vsub.f32 1.0, %v6901
          %v6970 = vsub.f32 1.0, %v6902
          %v6971 = vsub.f32 1.0, %v6903
          %v6972 = vsub.f32 1.0, %v6904
          %v6973 = vsub.f32 1.0, %v6905
          %v6974 = vsub.f32 1.0, %v6906
          %v6975 = vsub.f32 1.0, %v6907
          %v6976 = vsub.f32 1.0, %v6908
          %v6977 = vsub.f32 1.0, %v6909
          %v6978 = vsub.f32 1.0, %v6910
          %v6979 = vsub.f32 1.0, %v6911
          %v6980 = vsub.f32 1.0, %v6912
          %v6981 = vsub.f32 1.0, %v6913
          %v6982 = vsub.f32 1.0, %v6914
          %v6983 = vsub.f32 1.0, %v6915
          %v6984 = vsub.f32 1.0, %v6916
          %v6985 = vsub.f32 1.0, %v6917
          %v6986 = vsub.f32 1.0, %v6918
          %v6987 = vsub.f32 1.0, %v6919
          %v6988 = vsub.f32 1.0, %v6920
          %v6989 = vsub.f32 1.0, %v6921
          %v6990 = vsub.f32 1.0, %v6922
          %v6991 = vsub.f32 1.0, %v6923
          %v6992 = vsub.f32 1.0, %v6924
          %v6993 = vsub.f32 1.0, %v6925
          %v6994 = vsub.f32 1.0, %v6926
          %v6995 = vsub.f32 1.0, %v6927
          %v6996 = vsub.f32 1.0, %v6928
          %v6997 = vsub.f32 1.0, %v6929
          %v6998 = vsub.f32 1.0, %v6930
          %v6999 = vsub.f32 1.0, %v6931
          %v7000 = vsub.f32 1.0, %v6932
          %v7001 = vsub.f32 1.0, %v6933
          %v7002 = vsub.f32 1.0, %v6934
          %v7003 = vsub.f32 1.0, %v6935
          %v7004 = vsub.f32 1.0, %v6936
          %v7005 = vsub.f32 1.0, %v6937
          %v7006 = vsub.f32 1.0, %v6938
          %v7007 = vsub.f32 1.0, %v6939
          %v7008 = vsub.f32 1.0, %v6940
          %v7009 = vsub.f32 1.0, %v6941
          %v7010 = vsub.f32 1.0, %v6942
          %v7011 = vsub.f32 1.0, %v6943
          %v7012 = vsub.f32 1.0, %v6944
          %v7013 = vsub.f32 1.0, %v6945
          %v7014 = vsub.f32 1.0, %v6946
          %v7015 = vsub.f32 1.0, %v6947
          %v7016 = vsub.f32 1.0, %v6948
          %v7017 = vsub.f32 1.0, %v6949
          %v7018 = vsub.f32 1.0, %v6950
          %v7019 = vsub.f32 1.0, %v6951
          %v7020 = vsub.f32 1.0, %v6952
          %v7021 = vsub.f32 1.0, %v6953
          %v7022 = vsub.f32 1.0, %v6954
          %v7023 = vsub.f32 1.0, %v6955
          %v7024 = vsub.f32 1.0, %v6956
          %v7025 = vsub.f32 1.0, %v6957
          %v7026 = vsub.f32 1.0, %v6958
          %v7027 = vsub.f32 1.0, %v6959
          %v7028 = vsub.f32 1.0, %v6960
          %v7029 = vsub.f32 1.0, %v6961
          %v7030 = vsub.f32 1.0, %v6962
          %v7031 = vsub.f32 1.0, %v6963
          %v7032 = vsub.f32 1.0, %v6964
          %vm7033 = vcmp.ge.f32.partialorder %v5673, 0.0
          %vm7034 = vcmp.ge.f32.partialorder %v5674, 0.0
          %vm7035 = vcmp.ge.f32.partialorder %v5675, 0.0
          %vm7036 = vcmp.ge.f32.partialorder %v5676, 0.0
          %vm7037 = vcmp.ge.f32.partialorder %v5677, 0.0
          %vm7038 = vcmp.ge.f32.partialorder %v5678, 0.0
          %vm7039 = vcmp.ge.f32.partialorder %v5679, 0.0
          %vm7040 = vcmp.ge.f32.partialorder %v5680, 0.0
          %vm7041 = vcmp.ge.f32.partialorder %v5681, 0.0
          %vm7042 = vcmp.ge.f32.partialorder %v5682, 0.0
          %vm7043 = vcmp.ge.f32.partialorder %v5683, 0.0
          %vm7044 = vcmp.ge.f32.partialorder %v5684, 0.0
          %vm7045 = vcmp.ge.f32.partialorder %v5685, 0.0
          %vm7046 = vcmp.ge.f32.partialorder %v5686, 0.0
          %vm7047 = vcmp.ge.f32.partialorder %v5687, 0.0
          %vm7048 = vcmp.ge.f32.partialorder %v5688, 0.0
          %vm7049 = vcmp.ge.f32.partialorder %v5689, 0.0
          %vm7050 = vcmp.ge.f32.partialorder %v5690, 0.0
          %vm7051 = vcmp.ge.f32.partialorder %v5691, 0.0
          %vm7052 = vcmp.ge.f32.partialorder %v5692, 0.0
          %vm7053 = vcmp.ge.f32.partialorder %v5693, 0.0
          %vm7054 = vcmp.ge.f32.partialorder %v5694, 0.0
          %vm7055 = vcmp.ge.f32.partialorder %v5695, 0.0
          %vm7056 = vcmp.ge.f32.partialorder %v5696, 0.0
          %vm7057 = vcmp.ge.f32.partialorder %v5697, 0.0
          %vm7058 = vcmp.ge.f32.partialorder %v5698, 0.0
          %vm7059 = vcmp.ge.f32.partialorder %v5699, 0.0
          %vm7060 = vcmp.ge.f32.partialorder %v5700, 0.0
          %vm7061 = vcmp.ge.f32.partialorder %v5701, 0.0
          %vm7062 = vcmp.ge.f32.partialorder %v5702, 0.0
          %vm7063 = vcmp.ge.f32.partialorder %v5703, 0.0
          %vm7064 = vcmp.ge.f32.partialorder %v5704, 0.0
          %vm7065 = vcmp.ge.f32.partialorder %v5705, 0.0
          %vm7066 = vcmp.ge.f32.partialorder %v5706, 0.0
          %vm7067 = vcmp.ge.f32.partialorder %v5707, 0.0
          %vm7068 = vcmp.ge.f32.partialorder %v5708, 0.0
          %vm7069 = vcmp.ge.f32.partialorder %v5709, 0.0
          %vm7070 = vcmp.ge.f32.partialorder %v5710, 0.0
          %vm7071 = vcmp.ge.f32.partialorder %v5711, 0.0
          %vm7072 = vcmp.ge.f32.partialorder %v5712, 0.0
          %vm7073 = vcmp.ge.f32.partialorder %v5713, 0.0
          %vm7074 = vcmp.ge.f32.partialorder %v5714, 0.0
          %vm7075 = vcmp.ge.f32.partialorder %v5715, 0.0
          %vm7076 = vcmp.ge.f32.partialorder %v5716, 0.0
          %vm7077 = vcmp.ge.f32.partialorder %v5717, 0.0
          %vm7078 = vcmp.ge.f32.partialorder %v5718, 0.0
          %vm7079 = vcmp.ge.f32.partialorder %v5719, 0.0
          %vm7080 = vcmp.ge.f32.partialorder %v5720, 0.0
          %vm7081 = vcmp.ge.f32.partialorder %v5721, 0.0
          %vm7082 = vcmp.ge.f32.partialorder %v5722, 0.0
          %vm7083 = vcmp.ge.f32.partialorder %v5723, 0.0
          %vm7084 = vcmp.ge.f32.partialorder %v5724, 0.0
          %vm7085 = vcmp.ge.f32.partialorder %v5725, 0.0
          %vm7086 = vcmp.ge.f32.partialorder %v5726, 0.0
          %vm7087 = vcmp.ge.f32.partialorder %v5727, 0.0
          %vm7088 = vcmp.ge.f32.partialorder %v5728, 0.0
          %vm7089 = vcmp.ge.f32.partialorder %v5729, 0.0
          %vm7090 = vcmp.ge.f32.partialorder %v5730, 0.0
          %vm7091 = vcmp.ge.f32.partialorder %v5731, 0.0
          %vm7092 = vcmp.ge.f32.partialorder %v5732, 0.0
          %vm7093 = vcmp.ge.f32.partialorder %v5733, 0.0
          %vm7094 = vcmp.ge.f32.partialorder %v5734, 0.0
          %vm7095 = vcmp.ge.f32.partialorder %v5735, 0.0
          %vm7096 = vcmp.ge.f32.partialorder %v5736, 0.0
          %vm7097 = vcmp.ge.f32.partialorder %v5737, 0.0
          %vm7098 = vcmp.ge.f32.partialorder %v5738, 0.0
          %vm7099 = vcmp.ge.f32.partialorder %v5739, 0.0
          %vm7100 = vcmp.ge.f32.partialorder %v5740, 0.0
          %v7101 = vsub.f32 0.0, %v6965
          %v7102 = vsub.f32 0.0, %v6966
          %v7103 = vsub.f32 0.0, %v6967
          %v7104 = vsub.f32 0.0, %v6968
          %v7105 = vsub.f32 0.0, %v6969
          %v7106 = vsub.f32 0.0, %v6970
          %v7107 = vsub.f32 0.0, %v6971
          %v7108 = vsub.f32 0.0, %v6972
          %v7109 = vsub.f32 0.0, %v6973
          %v7110 = vsub.f32 0.0, %v6974
          %v7111 = vsub.f32 0.0, %v6975
          %v7112 = vsub.f32 0.0, %v6976
          %v7113 = vsub.f32 0.0, %v6977
          %v7114 = vsub.f32 0.0, %v6978
          %v7115 = vsub.f32 0.0, %v6979
          %v7116 = vsub.f32 0.0, %v6980
          %v7117 = vsub.f32 0.0, %v6981
          %v7118 = vsub.f32 0.0, %v6982
          %v7119 = vsub.f32 0.0, %v6983
          %v7120 = vsub.f32 0.0, %v6984
          %v7121 = vsub.f32 0.0, %v6985
          %v7122 = vsub.f32 0.0, %v6986
          %v7123 = vsub.f32 0.0, %v6987
          %v7124 = vsub.f32 0.0, %v6988
          %v7125 = vsub.f32 0.0, %v6989
          %v7126 = vsub.f32 0.0, %v6990
          %v7127 = vsub.f32 0.0, %v6991
          %v7128 = vsub.f32 0.0, %v6992
          %v7129 = vsub.f32 0.0, %v6993
          %v7130 = vsub.f32 0.0, %v6994
          %v7131 = vsub.f32 0.0, %v6995
          %v7132 = vsub.f32 0.0, %v6996
          %v7133 = vsub.f32 0.0, %v6997
          %v7134 = vsub.f32 0.0, %v6998
          %v7135 = vsub.f32 0.0, %v6999
          %v7136 = vsub.f32 0.0, %v7000
          %v7137 = vsub.f32 0.0, %v7001
          %v7138 = vsub.f32 0.0, %v7002
          %v7139 = vsub.f32 0.0, %v7003
          %v7140 = vsub.f32 0.0, %v7004
          %v7141 = vsub.f32 0.0, %v7005
          %v7142 = vsub.f32 0.0, %v7006
          %v7143 = vsub.f32 0.0, %v7007
          %v7144 = vsub.f32 0.0, %v7008
          %v7145 = vsub.f32 0.0, %v7009
          %v7146 = vsub.f32 0.0, %v7010
          %v7147 = vsub.f32 0.0, %v7011
          %v7148 = vsub.f32 0.0, %v7012
          %v7149 = vsub.f32 0.0, %v7013
          %v7150 = vsub.f32 0.0, %v7014
          %v7151 = vsub.f32 0.0, %v7015
          %v7152 = vsub.f32 0.0, %v7016
          %v7153 = vsub.f32 0.0, %v7017
          %v7154 = vsub.f32 0.0, %v7018
          %v7155 = vsub.f32 0.0, %v7019
          %v7156 = vsub.f32 0.0, %v7020
          %v7157 = vsub.f32 0.0, %v7021
          %v7158 = vsub.f32 0.0, %v7022
          %v7159 = vsub.f32 0.0, %v7023
          %v7160 = vsub.f32 0.0, %v7024
          %v7161 = vsub.f32 0.0, %v7025
          %v7162 = vsub.f32 0.0, %v7026
          %v7163 = vsub.f32 0.0, %v7027
          %v7164 = vsub.f32 0.0, %v7028
          %v7165 = vsub.f32 0.0, %v7029
          %v7166 = vsub.f32 0.0, %v7030
          %v7167 = vsub.f32 0.0, %v7031
          %v7168 = vsub.f32 0.0, %v7032
          %v7169 = vsel %vm7033, %v6965, %v7101
          %v7170 = vsel %vm7034, %v6966, %v7102
          %v7171 = vsel %vm7035, %v6967, %v7103
          %v7172 = vsel %vm7036, %v6968, %v7104
          %v7173 = vsel %vm7037, %v6969, %v7105
          %v7174 = vsel %vm7038, %v6970, %v7106
          %v7175 = vsel %vm7039, %v6971, %v7107
          %v7176 = vsel %vm7040, %v6972, %v7108
          %v7177 = vsel %vm7041, %v6973, %v7109
          %v7178 = vsel %vm7042, %v6974, %v7110
          %v7179 = vsel %vm7043, %v6975, %v7111
          %v7180 = vsel %vm7044, %v6976, %v7112
          %v7181 = vsel %vm7045, %v6977, %v7113
          %v7182 = vsel %vm7046, %v6978, %v7114
          %v7183 = vsel %vm7047, %v6979, %v7115
          %v7184 = vsel %vm7048, %v6980, %v7116
          %v7185 = vsel %vm7049, %v6981, %v7117
          %v7186 = vsel %vm7050, %v6982, %v7118
          %v7187 = vsel %vm7051, %v6983, %v7119
          %v7188 = vsel %vm7052, %v6984, %v7120
          %v7189 = vsel %vm7053, %v6985, %v7121
          %v7190 = vsel %vm7054, %v6986, %v7122
          %v7191 = vsel %vm7055, %v6987, %v7123
          %v7192 = vsel %vm7056, %v6988, %v7124
          %v7193 = vsel %vm7057, %v6989, %v7125
          %v7194 = vsel %vm7058, %v6990, %v7126
          %v7195 = vsel %vm7059, %v6991, %v7127
          %v7196 = vsel %vm7060, %v6992, %v7128
          %v7197 = vsel %vm7061, %v6993, %v7129
          %v7198 = vsel %vm7062, %v6994, %v7130
          %v7199 = vsel %vm7063, %v6995, %v7131
          %v7200 = vsel %vm7064, %v6996, %v7132
          %v7201 = vsel %vm7065, %v6997, %v7133
          %v7202 = vsel %vm7066, %v6998, %v7134
          %v7203 = vsel %vm7067, %v6999, %v7135
          %v7204 = vsel %vm7068, %v7000, %v7136
          %v7205 = vsel %vm7069, %v7001, %v7137
          %v7206 = vsel %vm7070, %v7002, %v7138
          %v7207 = vsel %vm7071, %v7003, %v7139
          %v7208 = vsel %vm7072, %v7004, %v7140
          %v7209 = vsel %vm7073, %v7005, %v7141
          %v7210 = vsel %vm7074, %v7006, %v7142
          %v7211 = vsel %vm7075, %v7007, %v7143
          %v7212 = vsel %vm7076, %v7008, %v7144
          %v7213 = vsel %vm7077, %v7009, %v7145
          %v7214 = vsel %vm7078, %v7010, %v7146
          %v7215 = vsel %vm7079, %v7011, %v7147
          %v7216 = vsel %vm7080, %v7012, %v7148
          %v7217 = vsel %vm7081, %v7013, %v7149
          %v7218 = vsel %vm7082, %v7014, %v7150
          %v7219 = vsel %vm7083, %v7015, %v7151
          %v7220 = vsel %vm7084, %v7016, %v7152
          %v7221 = vsel %vm7085, %v7017, %v7153
          %v7222 = vsel %vm7086, %v7018, %v7154
          %v7223 = vsel %vm7087, %v7019, %v7155
          %v7224 = vsel %vm7088, %v7020, %v7156
          %v7225 = vsel %vm7089, %v7021, %v7157
          %v7226 = vsel %vm7090, %v7022, %v7158
          %v7227 = vsel %vm7091, %v7023, %v7159
          %v7228 = vsel %vm7092, %v7024, %v7160
          %v7229 = vsel %vm7093, %v7025, %v7161
          %v7230 = vsel %vm7094, %v7026, %v7162
          %v7231 = vsel %vm7095, %v7027, %v7163
          %v7232 = vsel %vm7096, %v7028, %v7164
          %v7233 = vsel %vm7097, %v7029, %v7165
          %v7234 = vsel %vm7098, %v7030, %v7166
          %v7235 = vsel %vm7099, %v7031, %v7167
          %v7236 = vsel %vm7100, %v7032, %v7168
          %v7237 = vadd.f32 %v7169, 1.0
          %v7238 = vadd.f32 %v7170, 1.0
          %v7239 = vadd.f32 %v7171, 1.0
          %v7240 = vadd.f32 %v7172, 1.0
          %v7241 = vadd.f32 %v7173, 1.0
          %v7242 = vadd.f32 %v7174, 1.0
          %v7243 = vadd.f32 %v7175, 1.0
          %v7244 = vadd.f32 %v7176, 1.0
          %v7245 = vadd.f32 %v7177, 1.0
          %v7246 = vadd.f32 %v7178, 1.0
          %v7247 = vadd.f32 %v7179, 1.0
          %v7248 = vadd.f32 %v7180, 1.0
          %v7249 = vadd.f32 %v7181, 1.0
          %v7250 = vadd.f32 %v7182, 1.0
          %v7251 = vadd.f32 %v7183, 1.0
          %v7252 = vadd.f32 %v7184, 1.0
          %v7253 = vadd.f32 %v7185, 1.0
          %v7254 = vadd.f32 %v7186, 1.0
          %v7255 = vadd.f32 %v7187, 1.0
          %v7256 = vadd.f32 %v7188, 1.0
          %v7257 = vadd.f32 %v7189, 1.0
          %v7258 = vadd.f32 %v7190, 1.0
          %v7259 = vadd.f32 %v7191, 1.0
          %v7260 = vadd.f32 %v7192, 1.0
          %v7261 = vadd.f32 %v7193, 1.0
          %v7262 = vadd.f32 %v7194, 1.0
          %v7263 = vadd.f32 %v7195, 1.0
          %v7264 = vadd.f32 %v7196, 1.0
          %v7265 = vadd.f32 %v7197, 1.0
          %v7266 = vadd.f32 %v7198, 1.0
          %v7267 = vadd.f32 %v7199, 1.0
          %v7268 = vadd.f32 %v7200, 1.0
          %v7269 = vadd.f32 %v7201, 1.0
          %v7270 = vadd.f32 %v7202, 1.0
          %v7271 = vadd.f32 %v7203, 1.0
          %v7272 = vadd.f32 %v7204, 1.0
          %v7273 = vadd.f32 %v7205, 1.0
          %v7274 = vadd.f32 %v7206, 1.0
          %v7275 = vadd.f32 %v7207, 1.0
          %v7276 = vadd.f32 %v7208, 1.0
          %v7277 = vadd.f32 %v7209, 1.0
          %v7278 = vadd.f32 %v7210, 1.0
          %v7279 = vadd.f32 %v7211, 1.0
          %v7280 = vadd.f32 %v7212, 1.0
          %v7281 = vadd.f32 %v7213, 1.0
          %v7282 = vadd.f32 %v7214, 1.0
          %v7283 = vadd.f32 %v7215, 1.0
          %v7284 = vadd.f32 %v7216, 1.0
          %v7285 = vadd.f32 %v7217, 1.0
          %v7286 = vadd.f32 %v7218, 1.0
          %v7287 = vadd.f32 %v7219, 1.0
          %v7288 = vadd.f32 %v7220, 1.0
          %v7289 = vadd.f32 %v7221, 1.0
          %v7290 = vadd.f32 %v7222, 1.0
          %v7291 = vadd.f32 %v7223, 1.0
          %v7292 = vadd.f32 %v7224, 1.0
          %v7293 = vadd.f32 %v7225, 1.0
          %v7294 = vadd.f32 %v7226, 1.0
          %v7295 = vadd.f32 %v7227, 1.0
          %v7296 = vadd.f32 %v7228, 1.0
          %v7297 = vadd.f32 %v7229, 1.0
          %v7298 = vadd.f32 %v7230, 1.0
          %v7299 = vadd.f32 %v7231, 1.0
          %v7300 = vadd.f32 %v7232, 1.0
          %v7301 = vadd.f32 %v7233, 1.0
          %v7302 = vadd.f32 %v7234, 1.0
          %v7303 = vadd.f32 %v7235, 1.0
          %v7304 = vadd.f32 %v7236, 1.0
          %v7305 = vmul.f32 %v5605, %v7237
          %v7306 = vmul.f32 %v5606, %v7238
          %v7307 = vmul.f32 %v5607, %v7239
          %v7308 = vmul.f32 %v5608, %v7240
          %v7309 = vmul.f32 %v5609, %v7241
          %v7310 = vmul.f32 %v5610, %v7242
          %v7311 = vmul.f32 %v5611, %v7243
          %v7312 = vmul.f32 %v5612, %v7244
          %v7313 = vmul.f32 %v5613, %v7245
          %v7314 = vmul.f32 %v5614, %v7246
          %v7315 = vmul.f32 %v5615, %v7247
          %v7316 = vmul.f32 %v5616, %v7248
          %v7317 = vmul.f32 %v5617, %v7249
          %v7318 = vmul.f32 %v5618, %v7250
          %v7319 = vmul.f32 %v5619, %v7251
          %v7320 = vmul.f32 %v5620, %v7252
          %v7321 = vmul.f32 %v5621, %v7253
          %v7322 = vmul.f32 %v5622, %v7254
          %v7323 = vmul.f32 %v5623, %v7255
          %v7324 = vmul.f32 %v5624, %v7256
          %v7325 = vmul.f32 %v5625, %v7257
          %v7326 = vmul.f32 %v5626, %v7258
          %v7327 = vmul.f32 %v5627, %v7259
          %v7328 = vmul.f32 %v5628, %v7260
          %v7329 = vmul.f32 %v5629, %v7261
          %v7330 = vmul.f32 %v5630, %v7262
          %v7331 = vmul.f32 %v5631, %v7263
          %v7332 = vmul.f32 %v5632, %v7264
          %v7333 = vmul.f32 %v5633, %v7265
          %v7334 = vmul.f32 %v5634, %v7266
          %v7335 = vmul.f32 %v5635, %v7267
          %v7336 = vmul.f32 %v5636, %v7268
          %v7337 = vmul.f32 %v5637, %v7269
          %v7338 = vmul.f32 %v5638, %v7270
          %v7339 = vmul.f32 %v5639, %v7271
          %v7340 = vmul.f32 %v5640, %v7272
          %v7341 = vmul.f32 %v5641, %v7273
          %v7342 = vmul.f32 %v5642, %v7274
          %v7343 = vmul.f32 %v5643, %v7275
          %v7344 = vmul.f32 %v5644, %v7276
          %v7345 = vmul.f32 %v5645, %v7277
          %v7346 = vmul.f32 %v5646, %v7278
          %v7347 = vmul.f32 %v5647, %v7279
          %v7348 = vmul.f32 %v5648, %v7280
          %v7349 = vmul.f32 %v5649, %v7281
          %v7350 = vmul.f32 %v5650, %v7282
          %v7351 = vmul.f32 %v5651, %v7283
          %v7352 = vmul.f32 %v5652, %v7284
          %v7353 = vmul.f32 %v5653, %v7285
          %v7354 = vmul.f32 %v5654, %v7286
          %v7355 = vmul.f32 %v5655, %v7287
          %v7356 = vmul.f32 %v5656, %v7288
          %v7357 = vmul.f32 %v5657, %v7289
          %v7358 = vmul.f32 %v5658, %v7290
          %v7359 = vmul.f32 %v5659, %v7291
          %v7360 = vmul.f32 %v5660, %v7292
          %v7361 = vmul.f32 %v5661, %v7293
          %v7362 = vmul.f32 %v5662, %v7294
          %v7363 = vmul.f32 %v5663, %v7295
          %v7364 = vmul.f32 %v5664, %v7296
          %v7365 = vmul.f32 %v5665, %v7297
          %v7366 = vmul.f32 %v5666, %v7298
          %v7367 = vmul.f32 %v5667, %v7299
          %v7368 = vmul.f32 %v5668, %v7300
          %v7369 = vmul.f32 %v5669, %v7301
          %v7370 = vmul.f32 %v5670, %v7302
          %v7371 = vmul.f32 %v5671, %v7303
          %v7372 = vmul.f32 %v5672, %v7304
          %v7373 = vpack.c.bf16 %v7309, %v7305
          %v7374 = vpack.c.bf16 %v7310, %v7306
          %v7375 = vpack.c.bf16 %v7311, %v7307
          %v7376 = vpack.c.bf16 %v7312, %v7308
          %v7377 = vpack.c.bf16 %v7317, %v7313
          %v7378 = vpack.c.bf16 %v7318, %v7314
          %v7379 = vpack.c.bf16 %v7319, %v7315
          %v7380 = vpack.c.bf16 %v7320, %v7316
          %v7381 = vpack.c.bf16 %v7325, %v7321
          %v7382 = vpack.c.bf16 %v7326, %v7322
          %v7383 = vpack.c.bf16 %v7327, %v7323
          %v7384 = vpack.c.bf16 %v7328, %v7324
          %v7385 = vpack.c.bf16 %v7333, %v7329
          %v7386 = vpack.c.bf16 %v7334, %v7330
          %v7387 = vpack.c.bf16 %v7335, %v7331
          %v7388 = vpack.c.bf16 %v7336, %v7332
          %v7389 = vpack.c.bf16 %v7341, %v7337
          %v7390 = vpack.c.bf16 %v7342, %v7338
          %v7391 = vpack.c.bf16 %v7343, %v7339
          %v7392 = vpack.c.bf16 %v7344, %v7340
          %v7393 = vpack.c.bf16 %v7349, %v7345
          %v7394 = vpack.c.bf16 %v7350, %v7346
          %v7395 = vpack.c.bf16 %v7351, %v7347
          %v7396 = vpack.c.bf16 %v7352, %v7348
          %v7397 = vpack.c.bf16 %v7357, %v7353
          %v7398 = vpack.c.bf16 %v7358, %v7354
          %v7399 = vpack.c.bf16 %v7359, %v7355
          %v7400 = vpack.c.bf16 %v7360, %v7356
          %v7401 = vpack.c.bf16 %v7365, %v7361
          %v7402 = vpack.c.bf16 %v7366, %v7362
          %v7403 = vpack.c.bf16 %v7367, %v7363
          %v7404 = vpack.c.bf16 %v7368, %v7364
          %v7405 = vpack.c.bf16 %v7369, %v7369
          %v7406 = vpack.c.bf16 %v7370, %v7370
          %v7407 = vpack.c.bf16 %v7371, %v7371
          %v7408 = vpack.c.bf16 %v7372, %v7372
          %s7409 = smul.addr %s5144, 4
          %s7410 = scalar_lea.vmem [#allocation20], %s7409
          %v7411 = vld [vmem:[%s7410] sm:$0xf]
          %v7412 = vld [vmem:[%s7410 + $0x4] sm:$0xf]
          %v7413 = vld [vmem:[%s7410 + $0x8] sm:$0xf]
          %v7414 = vld [vmem:[%s7410 + $0xc] sm:$0xf]
          %v7415 = vld [vmem:[%s7410 + $0x10] sm:$0xf]
          %v7416 = vld [vmem:[%s7410 + $0x14] sm:$0xf]
          %v7417 = vld [vmem:[%s7410 + $0x18] sm:$0xf]
          %v7418 = vld [vmem:[%s7410 + $0x1c] sm:$0xf]
          %v7419 = vld [vmem:[%s7410 + $0x20] sm:$0xf]
          %v7420 = vld [vmem:[%s7410 + $0x24] sm:$0xf]
          %v7421 = vld [vmem:[%s7410 + $0x28] sm:$0xf]
          %v7422 = vld [vmem:[%s7410 + $0x2c] sm:$0xf]
          %v7423 = vld [vmem:[%s7410 + $0x30] sm:$0xf]
          %v7424 = vld [vmem:[%s7410 + $0x34] sm:$0xf]
          %v7425 = vld [vmem:[%s7410 + $0x38] sm:$0xf]
          %v7426 = vld [vmem:[%s7410 + $0x3c] sm:$0xf]
          %v7427 = vld [vmem:[%s7410 + $0x40] sm:$0xf]
          %v7428 = vld [vmem:[%s7410 + $0x44] sm:$0xf]
          %v7429 = vld [vmem:[%s7410 + $0x48] sm:$0xf]
          %v7430 = vld [vmem:[%s7410 + $0x4c] sm:$0xf]
          %v7431 = vld [vmem:[%s7410 + $0x50] sm:$0xf]
          %v7432 = vld [vmem:[%s7410 + $0x54] sm:$0xf]
          %v7433 = vld [vmem:[%s7410 + $0x58] sm:$0xf]
          %v7434 = vld [vmem:[%s7410 + $0x5c] sm:$0xf]
          %v7435 = vld [vmem:[%s7410 + $0x60] sm:$0xf]
          %v7436 = vld [vmem:[%s7410 + $0x64] sm:$0xf]
          %v7437 = vld [vmem:[%s7410 + $0x68] sm:$0xf]
          %v7438 = vld [vmem:[%s7410 + $0x6c] sm:$0xf]
          %v7439 = vld [vmem:[%s7410 + $0x70] sm:$0xf]
          %v7440 = vld [vmem:[%s7410 + $0x74] sm:$0xf]
          %v7441 = vld [vmem:[%s7410 + $0x78] sm:$0xf]
          %v7442 = vld [vmem:[%s7410 + $0x7c] sm:$0xf]
          %v7443 = vld [vmem:[%s7410 + $0x80] sm:$0xf]
          %v7444 = vld [vmem:[%s7410 + $0x84] sm:$0xf]
          %v7445 = vld [vmem:[%s7410 + $0x88] sm:$0xf]
          %v7446 = vld [vmem:[%s7410 + $0x8c] sm:$0xf]
          %v7447 = vld [vmem:[%s7410 + $0x90] sm:$0xf]
          %v7448 = vld [vmem:[%s7410 + $0x94] sm:$0xf]
          %v7449 = vld [vmem:[%s7410 + $0x98] sm:$0xf]
          %v7450 = vld [vmem:[%s7410 + $0x9c] sm:$0xf]
          %v7451 = vld [vmem:[%s7410 + $0xa0] sm:$0xf]
          %v7452 = vld [vmem:[%s7410 + $0xa4] sm:$0xf]
          %v7453 = vld [vmem:[%s7410 + $0xa8] sm:$0xf]
          %v7454 = vld [vmem:[%s7410 + $0xac] sm:$0xf]
          %v7455 = vld [vmem:[%s7410 + $0xb0] sm:$0xf]
          %v7456 = vld [vmem:[%s7410 + $0xb4] sm:$0xf]
          %v7457 = vld [vmem:[%s7410 + $0xb8] sm:$0xf]
          %v7458 = vld [vmem:[%s7410 + $0xbc] sm:$0xf]
          %v7459 = vld [vmem:[%s7410 + $0xc0] sm:$0xf]
          %v7460 = vld [vmem:[%s7410 + $0xc4] sm:$0xf]
          %v7461 = vld [vmem:[%s7410 + $0xc8] sm:$0xf]
          %v7462 = vld [vmem:[%s7410 + $0xcc] sm:$0xf]
          %v7463 = vld [vmem:[%s7410 + $0xd0] sm:$0xf]
          %v7464 = vld [vmem:[%s7410 + $0xd4] sm:$0xf]
          %v7465 = vld [vmem:[%s7410 + $0xd8] sm:$0xf]
          %v7466 = vld [vmem:[%s7410 + $0xdc] sm:$0xf]
          %v7467 = vld [vmem:[%s7410 + $0xe0] sm:$0xf]
          %v7468 = vld [vmem:[%s7410 + $0xe4] sm:$0xf]
          %v7469 = vld [vmem:[%s7410 + $0xe8] sm:$0xf]
          %v7470 = vld [vmem:[%s7410 + $0xec] sm:$0xf]
          %v7471 = vld [vmem:[%s7410 + $0xf0] sm:$0xf]
          %v7472 = vld [vmem:[%s7410 + $0xf4] sm:$0xf]
          %v7473 = vld [vmem:[%s7410 + $0xf8] sm:$0xf]
          %v7474 = vld [vmem:[%s7410 + $0xfc] sm:$0xf]
          %v7539 = vunpack.c.l.b16 %v7411
          %v7540 = vunpack.c.l.b16 %v7412
          %v7541 = vunpack.c.l.b16 %v7413
          %v7542 = vunpack.c.l.b16 %v7414
          %v7543 = vunpack.c.l.b16 %v7415
          %v7544 = vunpack.c.l.b16 %v7416
          %v7545 = vunpack.c.l.b16 %v7417
          %v7546 = vunpack.c.l.b16 %v7418
          %v7547 = vunpack.c.l.b16 %v7419
          %v7548 = vunpack.c.l.b16 %v7420
          %v7549 = vunpack.c.l.b16 %v7421
          %v7550 = vunpack.c.l.b16 %v7422
          %v7551 = vunpack.c.l.b16 %v7423
          %v7552 = vunpack.c.l.b16 %v7424
          %v7553 = vunpack.c.l.b16 %v7425
          %v7554 = vunpack.c.l.b16 %v7426
          %v7555 = vunpack.c.l.b16 %v7427
          %v7556 = vunpack.c.l.b16 %v7428
          %v7557 = vunpack.c.l.b16 %v7429
          %v7558 = vunpack.c.l.b16 %v7430
          %v7559 = vunpack.c.l.b16 %v7431
          %v7560 = vunpack.c.l.b16 %v7432
          %v7561 = vunpack.c.l.b16 %v7433
          %v7562 = vunpack.c.l.b16 %v7434
          %v7563 = vunpack.c.l.b16 %v7435
          %v7564 = vunpack.c.l.b16 %v7436
          %v7565 = vunpack.c.l.b16 %v7437
          %v7566 = vunpack.c.l.b16 %v7438
          %v7567 = vunpack.c.l.b16 %v7439
          %v7568 = vunpack.c.l.b16 %v7440
          %v7569 = vunpack.c.l.b16 %v7441
          %v7570 = vunpack.c.l.b16 %v7442
          %v7571 = vunpack.c.l.b16 %v7443
          %v7572 = vunpack.c.l.b16 %v7444
          %v7573 = vunpack.c.l.b16 %v7445
          %v7574 = vunpack.c.l.b16 %v7446
          %v7575 = vunpack.c.l.b16 %v7447
          %v7576 = vunpack.c.l.b16 %v7448
          %v7577 = vunpack.c.l.b16 %v7449
          %v7578 = vunpack.c.l.b16 %v7450
          %v7579 = vunpack.c.l.b16 %v7451
          %v7580 = vunpack.c.l.b16 %v7452
          %v7581 = vunpack.c.l.b16 %v7453
          %v7582 = vunpack.c.l.b16 %v7454
          %v7583 = vunpack.c.l.b16 %v7455
          %v7584 = vunpack.c.l.b16 %v7456
          %v7585 = vunpack.c.l.b16 %v7457
          %v7586 = vunpack.c.l.b16 %v7458
          %v7587 = vunpack.c.l.b16 %v7459
          %v7588 = vunpack.c.l.b16 %v7460
          %v7589 = vunpack.c.l.b16 %v7461
          %v7590 = vunpack.c.l.b16 %v7462
          %v7591 = vunpack.c.l.b16 %v7463
          %v7592 = vunpack.c.l.b16 %v7464
          %v7593 = vunpack.c.l.b16 %v7465
          %v7594 = vunpack.c.l.b16 %v7466
          %v7595 = vunpack.c.l.b16 %v7467
          %v7596 = vunpack.c.l.b16 %v7468
          %v7597 = vunpack.c.l.b16 %v7469
          %v7598 = vunpack.c.l.b16 %v7470
          %v7599 = vunpack.c.l.b16 %v7471
          %v7600 = vunpack.c.l.b16 %v7472
          %v7601 = vunpack.c.l.b16 %v7473
          %v7602 = vunpack.c.l.b16 %v7474
          %v7603 = vpack.c.b16 %v7540, %v7539
          %v7604 = vpack.c.b16 %v7542, %v7541
          %v7605 = vpack.c.b16 %v7544, %v7543
          %v7606 = vpack.c.b16 %v7546, %v7545
          %v7607 = vpack.c.b16 %v7548, %v7547
          %v7608 = vpack.c.b16 %v7550, %v7549
          %v7609 = vpack.c.b16 %v7552, %v7551
          %v7610 = vpack.c.b16 %v7554, %v7553
          %v7611 = vpack.c.b16 %v7556, %v7555
          %v7612 = vpack.c.b16 %v7558, %v7557
          %v7613 = vpack.c.b16 %v7560, %v7559
          %v7614 = vpack.c.b16 %v7562, %v7561
          %v7615 = vpack.c.b16 %v7564, %v7563
          %v7616 = vpack.c.b16 %v7566, %v7565
          %v7617 = vpack.c.b16 %v7568, %v7567
          %v7618 = vpack.c.b16 %v7570, %v7569
          %v7619 = vpack.c.b16 %v7572, %v7571
          %v7620 = vpack.c.b16 %v7574, %v7573
          %v7621 = vpack.c.b16 %v7576, %v7575
          %v7622 = vpack.c.b16 %v7578, %v7577
          %v7623 = vpack.c.b16 %v7580, %v7579
          %v7624 = vpack.c.b16 %v7582, %v7581
          %v7625 = vpack.c.b16 %v7584, %v7583
          %v7626 = vpack.c.b16 %v7586, %v7585
          %v7627 = vpack.c.b16 %v7588, %v7587
          %v7628 = vpack.c.b16 %v7590, %v7589
          %v7629 = vpack.c.b16 %v7592, %v7591
          %v7630 = vpack.c.b16 %v7594, %v7593
          %v7631 = vpack.c.b16 %v7596, %v7595
          %v7632 = vpack.c.b16 %v7598, %v7597
          %v7633 = vpack.c.b16 %v7600, %v7599
          %v7634 = vpack.c.b16 %v7602, %v7601
          %7667 = vmatprep.subr.bf16.mxu0 0
          %7668 = vmatpush1.bf16.msra.mxu0 %v7610
          %7669 = vmatprep.subr.bf16.mxu0 0
          %7670 = vmatpush1.bf16.msra.mxu0 %v7609
          %7671 = vmatprep.subr.bf16.mxu0 0
          %7672 = vmatpush1.bf16.msra.mxu0 %v7608
          %7673 = vmatprep.subr.bf16.mxu0 0
          %7674 = vmatpush1.bf16.msra.mxu0 %v7607
          %7675 = vmatprep.subr.bf16.mxu0 0
          %7676 = vmatpush1.bf16.msra.mxu0 %v7606
          %7677 = vmatprep.subr.bf16.mxu0 0
          %7678 = vmatpush1.bf16.msra.mxu0 %v7605
          %7679 = vmatprep.subr.bf16.mxu0 0
          %7680 = vmatpush1.bf16.msra.mxu0 %v7604
          %7681 = vmatprep.subr.bf16.mxu0 0
          %7682 = vmatpush1.bf16.msra.mxu0 %v7603
          %7683 = vmatprep.subr.bf16.mxu0 0
          %7684 = vmatpush2.bf16.msra.mxu0 %v7618
          %7685 = vmatprep.subr.bf16.mxu0 0
          %7686 = vmatpush2.bf16.msra.mxu0 %v7617
          %7687 = vmatprep.subr.bf16.mxu0 0
          %7688 = vmatpush2.bf16.msra.mxu0 %v7616
          %7689 = vmatprep.subr.bf16.mxu0 0
          %7690 = vmatpush2.bf16.msra.mxu0 %v7615
          %7691 = vmatprep.subr.bf16.mxu0 0
          %7692 = vmatpush2.bf16.msra.mxu0 %v7614
          %7693 = vmatprep.subr.bf16.mxu0 0
          %7694 = vmatpush2.bf16.msra.mxu0 %v7613
          %7695 = vmatprep.subr.bf16.mxu0 0
          %7696 = vmatpush2.bf16.msra.mxu0 %v7612
          %7697 = vmatprep.subr.bf16.mxu0 0
          %7698 = vmatpush2.bf16.msra.mxu0 %v7611
          %7699 = vmatprep.mubr.bf16.mxu0 %v7374
          %7700 = vmatmul.mubr.bf16.gmra.mxu0 %v7373
          %v7701 = vpop.f32.mrf.mxu0
          %v7702 = vadd.f32 0.0, %v7701
          %v7703 = vpop.f32.mrf.mxu0
          %v7704 = vpop.f32.mrf.mxu0
          %v7705 = vadd.f32 0.0, %v7704
          %v7706 = vpop.f32.mrf.mxu0
          %7707 = vmatprep.mubr.bf16.mxu0 %v7378
          %7708 = vmatmul.mubr.bf16.gmra.mxu0 %v7377
          %v7709 = vpop.f32.mrf.mxu0
          %v7710 = vadd.f32 0.0, %v7709
          %v7711 = vpop.f32.mrf.mxu0
          %v7712 = vpop.f32.mrf.mxu0
          %v7713 = vadd.f32 0.0, %v7712
          %v7714 = vpop.f32.mrf.mxu0
          %7715 = vmatprep.mubr.bf16.mxu0 %v7382
          %7716 = vmatmul.mubr.bf16.gmra.mxu0 %v7381
          %v7717 = vpop.f32.mrf.mxu0
          %v7718 = vadd.f32 0.0, %v7717
          %v7719 = vpop.f32.mrf.mxu0
          %v7720 = vpop.f32.mrf.mxu0
          %v7721 = vadd.f32 0.0, %v7720
          %v7722 = vpop.f32.mrf.mxu0
          %7723 = vmatprep.mubr.bf16.mxu0 %v7386
          %7724 = vmatmul.mubr.bf16.gmra.mxu0 %v7385
          %v7725 = vpop.f32.mrf.mxu0
          %v7726 = vadd.f32 0.0, %v7725
          %v7727 = vpop.f32.mrf.mxu0
          %v7728 = vpop.f32.mrf.mxu0
          %v7729 = vadd.f32 0.0, %v7728
          %v7730 = vpop.f32.mrf.mxu0
          %7731 = vmatprep.mubr.bf16.mxu0 %v7390
          %7732 = vmatmul.mubr.bf16.gmra.mxu0 %v7389
          %v7733 = vpop.f32.mrf.mxu0
          %v7734 = vadd.f32 0.0, %v7733
          %v7735 = vpop.f32.mrf.mxu0
          %v7736 = vpop.f32.mrf.mxu0
          %v7737 = vadd.f32 0.0, %v7736
          %v7738 = vpop.f32.mrf.mxu0
          %7739 = vmatprep.mubr.bf16.mxu0 %v7394
          %7740 = vmatmul.mubr.bf16.gmra.mxu0 %v7393
          %v7741 = vpop.f32.mrf.mxu0
          %v7742 = vadd.f32 0.0, %v7741
          %v7743 = vpop.f32.mrf.mxu0
          %v7744 = vpop.f32.mrf.mxu0
          %v7745 = vadd.f32 0.0, %v7744
          %v7746 = vpop.f32.mrf.mxu0
          %7747 = vmatprep.mubr.bf16.mxu0 %v7398
          %7748 = vmatmul.mubr.bf16.gmra.mxu0 %v7397
          %v7749 = vpop.f32.mrf.mxu0
          %v7750 = vadd.f32 0.0, %v7749
          %v7751 = vpop.f32.mrf.mxu0
          %v7752 = vpop.f32.mrf.mxu0
          %v7753 = vadd.f32 0.0, %v7752
          %v7754 = vpop.f32.mrf.mxu0
          %7755 = vmatprep.mubr.bf16.mxu0 %v7402
          %7756 = vmatmul.mubr.bf16.gmra.mxu0 %v7401
          %v7757 = vpop.f32.mrf.mxu0
          %v7758 = vadd.f32 0.0, %v7757
          %v7759 = vpop.f32.mrf.mxu0
          %v7760 = vpop.f32.mrf.mxu0
          %v7761 = vadd.f32 0.0, %v7760
          %v7762 = vpop.f32.mrf.mxu0
          %7763 = vmatprep.mubr.bf16.mxu0 %v7406
          %7764 = vmatmul.mubr.bf16.gmra.mxu0 %v7405
          %v7765 = vpop.f32.mrf.mxu0
          %v7766 = vadd.f32 0.0, %v7765
          %v7767 = vpop.f32.mrf.mxu0
          %v7768 = vpop.f32.mrf.mxu0
          %v7769 = vpop.f32.mrf.mxu0
          %7770 = vdwg.mxu0
          %7771 = vmatprep.subr.bf16.mxu0 0
          %7772 = vmatpush1.bf16.msra.mxu0 %v7626
          %7773 = vmatprep.subr.bf16.mxu0 0
          %7774 = vmatpush1.bf16.msra.mxu0 %v7625
          %7775 = vmatprep.subr.bf16.mxu0 0
          %7776 = vmatpush1.bf16.msra.mxu0 %v7624
          %7777 = vmatprep.subr.bf16.mxu0 0
          %7778 = vmatpush1.bf16.msra.mxu0 %v7623
          %7779 = vmatprep.subr.bf16.mxu0 0
          %7780 = vmatpush1.bf16.msra.mxu0 %v7622
          %7781 = vmatprep.subr.bf16.mxu0 0
          %7782 = vmatpush1.bf16.msra.mxu0 %v7621
          %7783 = vmatprep.subr.bf16.mxu0 0
          %7784 = vmatpush1.bf16.msra.mxu0 %v7620
          %7785 = vmatprep.subr.bf16.mxu0 0
          %7786 = vmatpush1.bf16.msra.mxu0 %v7619
          %7787 = vmatprep.subr.bf16.mxu0 0
          %7788 = vmatpush2.bf16.msra.mxu0 %v7634
          %7789 = vmatprep.subr.bf16.mxu0 0
          %7790 = vmatpush2.bf16.msra.mxu0 %v7633
          %7791 = vmatprep.subr.bf16.mxu0 0
          %7792 = vmatpush2.bf16.msra.mxu0 %v7632
          %7793 = vmatprep.subr.bf16.mxu0 0
          %7794 = vmatpush2.bf16.msra.mxu0 %v7631
          %7795 = vmatprep.subr.bf16.mxu0 0
          %7796 = vmatpush2.bf16.msra.mxu0 %v7630
          %7797 = vmatprep.subr.bf16.mxu0 0
          %7798 = vmatpush2.bf16.msra.mxu0 %v7629
          %7799 = vmatprep.subr.bf16.mxu0 0
          %7800 = vmatpush2.bf16.msra.mxu0 %v7628
          %7801 = vmatprep.subr.bf16.mxu0 0
          %7802 = vmatpush2.bf16.msra.mxu0 %v7627
          %7803 = vmatprep.mubr.bf16.mxu0 %v7376
          %7804 = vmatmul.mubr.bf16.gmra.mxu0 %v7375
          %v7805 = vpop.f32.mrf.mxu0
          %v7806 = vadd.f32 %v7702, %v7805
          %v7807 = vpop.f32.mrf.mxu0
          %v7808 = vpop.f32.mrf.mxu0
          %v7809 = vadd.f32 %v7705, %v7808
          %v7810 = vpop.f32.mrf.mxu0
          %7811 = vmatprep.mubr.bf16.mxu0 %v7380
          %7812 = vmatmul.mubr.bf16.gmra.mxu0 %v7379
          %v7813 = vpop.f32.mrf.mxu0
          %v7814 = vadd.f32 %v7710, %v7813
          %v7815 = vpop.f32.mrf.mxu0
          %v7816 = vpop.f32.mrf.mxu0
          %v7817 = vadd.f32 %v7713, %v7816
          %v7818 = vpop.f32.mrf.mxu0
          %7819 = vmatprep.mubr.bf16.mxu0 %v7384
          %7820 = vmatmul.mubr.bf16.gmra.mxu0 %v7383
          %v7821 = vpop.f32.mrf.mxu0
          %v7822 = vadd.f32 %v7718, %v7821
          %v7823 = vpop.f32.mrf.mxu0
          %v7824 = vpop.f32.mrf.mxu0
          %v7825 = vadd.f32 %v7721, %v7824
          %v7826 = vpop.f32.mrf.mxu0
          %7827 = vmatprep.mubr.bf16.mxu0 %v7388
          %7828 = vmatmul.mubr.bf16.gmra.mxu0 %v7387
          %v7829 = vpop.f32.mrf.mxu0
          %v7830 = vadd.f32 %v7726, %v7829
          %v7831 = vpop.f32.mrf.mxu0
          %v7832 = vpop.f32.mrf.mxu0
          %v7833 = vadd.f32 %v7729, %v7832
          %v7834 = vpop.f32.mrf.mxu0
          %7835 = vmatprep.mubr.bf16.mxu0 %v7392
          %7836 = vmatmul.mubr.bf16.gmra.mxu0 %v7391
          %v7837 = vpop.f32.mrf.mxu0
          %v7838 = vadd.f32 %v7734, %v7837
          %v7839 = vpop.f32.mrf.mxu0
          %v7840 = vpop.f32.mrf.mxu0
          %v7841 = vadd.f32 %v7737, %v7840
          %v7842 = vpop.f32.mrf.mxu0
          %7843 = vmatprep.mubr.bf16.mxu0 %v7396
          %7844 = vmatmul.mubr.bf16.gmra.mxu0 %v7395
          %v7845 = vpop.f32.mrf.mxu0
          %v7846 = vadd.f32 %v7742, %v7845
          %v7847 = vpop.f32.mrf.mxu0
          %v7848 = vpop.f32.mrf.mxu0
          %v7849 = vadd.f32 %v7745, %v7848
          %v7850 = vpop.f32.mrf.mxu0
          %7851 = vmatprep.mubr.bf16.mxu0 %v7400
          %7852 = vmatmul.mubr.bf16.gmra.mxu0 %v7399
          %v7853 = vpop.f32.mrf.mxu0
          %v7854 = vadd.f32 %v7750, %v7853
          %v7855 = vpop.f32.mrf.mxu0
          %v7856 = vpop.f32.mrf.mxu0
          %v7857 = vadd.f32 %v7753, %v7856
          %v7858 = vpop.f32.mrf.mxu0
          %7859 = vmatprep.mubr.bf16.mxu0 %v7404
          %7860 = vmatmul.mubr.bf16.gmra.mxu0 %v7403
          %v7861 = vpop.f32.mrf.mxu0
          %v7862 = vadd.f32 %v7758, %v7861
          %v7863 = vpop.f32.mrf.mxu0
          %v7864 = vpop.f32.mrf.mxu0
          %v7865 = vadd.f32 %v7761, %v7864
          %v7866 = vpop.f32.mrf.mxu0
          %7867 = vmatprep.mubr.bf16.mxu0 %v7408
          %7868 = vmatmul.mubr.bf16.gmra.mxu0 %v7407
          %v7869 = vpop.f32.mrf.mxu0
          %v7870 = vadd.f32 %v7766, %v7869
          %v7871 = vpop.f32.mrf.mxu0
          %v7872 = vpop.f32.mrf.mxu0
          %v7873 = vpop.f32.mrf.mxu0
          %7874 = vdwg.mxu0
          %v7875 = vadd.f32 %v4881, %v7806
          %v7876 = vadd.f32 %v4882, %v7809
          %v7877 = vadd.f32 %v4883, %v7814
          %v7878 = vadd.f32 %v4884, %v7817
          %v7879 = vadd.f32 %v4885, %v7822
          %v7880 = vadd.f32 %v4886, %v7825
          %v7881 = vadd.f32 %v4887, %v7830
          %v7882 = vadd.f32 %v4888, %v7833
          %v7883 = vadd.f32 %v4889, %v7838
          %v7884 = vadd.f32 %v4890, %v7841
          %v7885 = vadd.f32 %v4891, %v7846
          %v7886 = vadd.f32 %v4892, %v7849
          %v7887 = vadd.f32 %v4893, %v7854
          %v7888 = vadd.f32 %v4894, %v7857
          %v7889 = vadd.f32 %v4895, %v7862
          %v7890 = vadd.f32 %v4896, %v7865
          %v7891 = vadd.f32 %v4897, %v7870
          %s7892 = scalar_lea.vmem %s14, %s1001
          %v7893 = vld [vmem:[%s7892] sm:$0x1]
          %v7895 = vlaneseq
          %v7896 = vshrl.u32 %v7895, 7
          %v7897 = vsub.s32 0, %v7896
          %v7898 = vrot.slane %v7893, %v7897
          %v7900 = vadd.f32 %v7875, %v7898
          %v7901 = vadd.f32 %v7876, %v7898
          %v7902 = vadd.f32 %v7877, %v7898
          %v7903 = vadd.f32 %v7878, %v7898
          %v7904 = vadd.f32 %v7879, %v7898
          %v7905 = vadd.f32 %v7880, %v7898
          %v7906 = vadd.f32 %v7881, %v7898
          %v7907 = vadd.f32 %v7882, %v7898
          %v7908 = vadd.f32 %v7883, %v7898
          %v7909 = vadd.f32 %v7884, %v7898
          %v7910 = vadd.f32 %v7885, %v7898
          %v7911 = vadd.f32 %v7886, %v7898
          %v7912 = vadd.f32 %v7887, %v7898
          %v7913 = vadd.f32 %v7888, %v7898
          %v7914 = vadd.f32 %v7889, %v7898
          %v7915 = vadd.f32 %v7890, %v7898
          %v7916 = vadd.f32 %v7891, %v7898
        $region149: #{tpu_custom_call.1} parent=95 // loop_footer
          %s1005 = sadd.s32 1, %s1001
        $region150: #{tpu_custom_call.1} parent=95 // loop_footer_branch
          %1000 = sbr.rel target = $region146
        $region151: #{tpu_custom_call.1} parent=95 // loop_exit
          _
        %v7917 = vlaneseq
        %v7918 = vshrl.u32 %v7917, 7
        %v7919 = vlaneseq
        %v7920 = vand.u32 %v7919, 127
        %v7921 = vadd.s32 %v7920, 128
        %v7922 = vmul.u32 %v7918, 17
        %vm7923 = vcmp.eq.s32.totalorder %v7920, %v7922
        %vm7924 = vcmp.eq.s32.totalorder %v7921, %v7922
        %v7925 = vsel %vm7923, 1, 0
        %v7926 = vsel %vm7924, 1, 0
        %v7927 = vcvt.s32.f32 %v7925
        %v7928 = vcvt.s32.f32 %v7926
        %vm7929 = vcmask 64512
        %v7931 = vsel %vm7929, %v7928, 0
        %7933 = vmatprep.subr.mxu0 0.0
        %7934 = vmatpush1.msra.mxu0 %v1021
        %7935 = vmatprep.subr.mxu0 0.0
        %7936 = vmatpush1.msra.mxu0 %v1020
        %7937 = vmatprep.subr.mxu0 0.0
        %7938 = vmatpush1.msra.mxu0 %v1019
        %7939 = vmatprep.subr.mxu0 0.0
        %7940 = vmatpush1.msra.mxu0 %v1018
        %7941 = vmatprep.subr.mxu0 0.0
        %7942 = vmatpush1.msra.mxu0 %v1017
        %7943 = vmatprep.subr.mxu0 0.0
        %7944 = vmatpush1.msra.mxu0 %v1016
        %7945 = vmatprep.subr.mxu0 0.0
        %7946 = vmatpush1.msra.mxu0 %v1015
        %7947 = vmatprep.subr.mxu0 0.0
        %7948 = vmatpush1.msra.mxu0 %v1014
        %7949 = vmatprep.subr.mxu0 0.0
        %7950 = vmatpush1.msra.mxu0 %v1013
        %7951 = vmatprep.subr.mxu0 0.0
        %7952 = vmatpush1.msra.mxu0 %v1012
        %7953 = vmatprep.subr.mxu0 0.0
        %7954 = vmatpush1.msra.mxu0 %v1011
        %7955 = vmatprep.subr.mxu0 0.0
        %7956 = vmatpush1.msra.mxu0 %v1010
        %7957 = vmatprep.subr.mxu0 0.0
        %7958 = vmatpush1.msra.mxu0 %v1009
        %7959 = vmatprep.subr.mxu0 0.0
        %7960 = vmatpush1.msra.mxu0 %v1008
        %7961 = vmatprep.subr.mxu0 0.0
        %7962 = vmatpush1.msra.mxu0 %v1007
        %7963 = vmatprep.subr.mxu0 0.0
        %7964 = vmatpush1.msra.mxu0 %v1006
        %7965 = vmatprep.subr.mxu0 0.0
        %7966 = vmatpush2.msra.mxu0 0.0
        %7967 = vmatprep.subr.mxu0 0.0
        %7968 = vmatpush2.msra.mxu0 0.0
        %7969 = vmatprep.subr.mxu0 0.0
        %7970 = vmatpush2.msra.mxu0 0.0
        %7971 = vmatprep.subr.mxu0 0.0
        %7972 = vmatpush2.msra.mxu0 0.0
        %7973 = vmatprep.subr.mxu0 0.0
        %7974 = vmatpush2.msra.mxu0 0.0
        %7975 = vmatprep.subr.mxu0 0.0
        %7976 = vmatpush2.msra.mxu0 0.0
        %7977 = vmatprep.subr.mxu0 0.0
        %7978 = vmatpush2.msra.mxu0 0.0
        %7979 = vmatprep.subr.mxu0 0.0
        %7980 = vmatpush2.msra.mxu0 0.0
        %7981 = vmatprep.subr.mxu0 0.0
        %7982 = vmatpush2.msra.mxu0 0.0
        %7983 = vmatprep.subr.mxu0 0.0
        %7984 = vmatpush2.msra.mxu0 0.0
        %7985 = vmatprep.subr.mxu0 0.0
        %7986 = vmatpush2.msra.mxu0 0.0
        %7987 = vmatprep.subr.mxu0 0.0
        %7988 = vmatpush2.msra.mxu0 0.0
        %7989 = vmatprep.subr.mxu0 0.0
        %7990 = vmatpush2.msra.mxu0 0.0
        %7991 = vmatprep.subr.mxu0 0.0
        %7992 = vmatpush2.msra.mxu0 0.0
        %7993 = vmatprep.subr.mxu0 0.0
        %7994 = vmatpush2.msra.mxu0 0.0
        %7995 = vmatprep.subr.mxu0 0.0
        %7996 = vmatpush2.msra.mxu0 %v1022
        %7997 = vmatprep.mubr.f32.mxu0 %v7931
        %7998 = vmatmul.mubr.f32.gmra.mxu0 %v7927
        %v7999 = vpop.f32.mrf.mxu0
        %v8000 = vadd.f32 0.0, %v7999
        %v8001 = vpop.f32.mrf.mxu0
        %8002 = vdwg.mxu0
        %v8003 = vld [vmem:[%s15] sm:$0x1]
        %v8004 = vld [vmem:[%s16] sm:$0x1]
        %8005 = vadd.xlane.f32.xlu0 %v8000
        %v8006 = vpop.xlane.xlu0 %8005
        %v8007 = vrcp.pop 128.0
        %v8008 = vmul.f32 %v8006, %v8007
        %v8009 = vsub.f32 %v8000, %v8008
        %v8010 = vmul.f32 %v8009, %v8009
        %8011 = vadd.xlane.f32.xlu0 %v8010
        %v8012 = vpop.xlane.xlu0 %8011
        %v8013 = vmul.f32 %v8012, %v8007
        %v8014 = vadd.f32 %v8013, 1e-05
        %v8015 = vrsqrt.pop %v8014
        %v8016 = vmul.f32 %v8009, %v8015
        %v8018 = vlaneseq
        %v8019 = vshrl.u32 %v8018, 7
        %v8020 = vsub.s32 0, %v8019
        %v8021 = vrot.slane %v8003, %v8020
        %v8023 = vmul.f32 %v8016, %v8021
        %v8025 = vlaneseq
        %v8026 = vshrl.u32 %v8025, 7
        %v8027 = vsub.s32 0, %v8026
        %v8028 = vrot.slane %v8004, %v8027
        %v8030 = vadd.f32 %v8023, %v8028
        %v8031 = vpack.c.bf16 %v8030, %v8030
        %v8032 = vld [vmem:[#allocation21] sm:$0xf]
        %v8033 = vld [vmem:[#allocation21 + $0x4] sm:$0xf]
        %v8034 = vld [vmem:[#allocation21 + $0x8] sm:$0xf]
        %v8035 = vld [vmem:[#allocation21 + $0xc] sm:$0xf]
        %v8036 = vld [vmem:[#allocation21 + $0x10] sm:$0xf]
        %v8037 = vld [vmem:[#allocation21 + $0x14] sm:$0xf]
        %v8038 = vld [vmem:[#allocation21 + $0x18] sm:$0xf]
        %v8039 = vld [vmem:[#allocation21 + $0x1c] sm:$0xf]
        %v8040 = vld [vmem:[#allocation21 + $0x20] sm:$0xf]
        %v8041 = vld [vmem:[#allocation21 + $0x24] sm:$0xf]
        %v8042 = vld [vmem:[#allocation21 + $0x28] sm:$0xf]
        %v8043 = vld [vmem:[#allocation21 + $0x2c] sm:$0xf]
        %v8044 = vld [vmem:[#allocation21 + $0x30] sm:$0xf]
        %v8045 = vld [vmem:[#allocation21 + $0x34] sm:$0xf]
        %v8046 = vld [vmem:[#allocation21 + $0x38] sm:$0xf]
        %v8047 = vld [vmem:[#allocation21 + $0x3c] sm:$0xf]
        %v8048 = vld [vmem:[%s18] sm:$0x1]
        %v8050 = vlaneseq
        %v8051 = vshrl.u32 %v8050, 7
        %v8052 = vsub.s32 0, %v8051
        %v8053 = vrot.slane %v8048, %v8052
        %v8071 = vunpack.c.l.b16 %v8032
        %v8072 = vunpack.c.l.b16 %v8033
        %v8073 = vunpack.c.l.b16 %v8034
        %v8074 = vunpack.c.l.b16 %v8035
        %v8075 = vunpack.c.l.b16 %v8036
        %v8076 = vunpack.c.l.b16 %v8037
        %v8077 = vunpack.c.l.b16 %v8038
        %v8078 = vunpack.c.l.b16 %v8039
        %v8079 = vunpack.c.l.b16 %v8040
        %v8080 = vunpack.c.l.b16 %v8041
        %v8081 = vunpack.c.l.b16 %v8042
        %v8082 = vunpack.c.l.b16 %v8043
        %v8083 = vunpack.c.l.b16 %v8044
        %v8084 = vunpack.c.l.b16 %v8045
        %v8085 = vunpack.c.l.b16 %v8046
        %v8086 = vunpack.c.l.b16 %v8047
        %v8087 = vpack.c.b16 %v8072, %v8071
        %v8088 = vpack.c.b16 %v8074, %v8073
        %v8089 = vpack.c.b16 %v8076, %v8075
        %v8090 = vpack.c.b16 %v8078, %v8077
        %v8091 = vpack.c.b16 %v8080, %v8079
        %v8092 = vpack.c.b16 %v8082, %v8081
        %v8093 = vpack.c.b16 %v8084, %v8083
        %v8094 = vpack.c.b16 %v8086, %v8085
        %8103 = vmatprep.subr.bf16.mxu0 0
        %8104 = vmatpush1.bf16.msra.mxu0 %v8094
        %8105 = vmatprep.subr.bf16.mxu0 0
        %8106 = vmatpush1.bf16.msra.mxu0 %v8093
        %8107 = vmatprep.subr.bf16.mxu0 0
        %8108 = vmatpush1.bf16.msra.mxu0 %v8092
        %8109 = vmatprep.subr.bf16.mxu0 0
        %8110 = vmatpush1.bf16.msra.mxu0 %v8091
        %8111 = vmatprep.subr.bf16.mxu0 0
        %8112 = vmatpush1.bf16.msra.mxu0 %v8090
        %8113 = vmatprep.subr.bf16.mxu0 0
        %8114 = vmatpush1.bf16.msra.mxu0 %v8089
        %8115 = vmatprep.subr.bf16.mxu0 0
        %8116 = vmatpush1.bf16.msra.mxu0 %v8088
        %8117 = vmatprep.subr.bf16.mxu0 0
        %8118 = vmatpush1.bf16.msra.mxu0 %v8087
        %8119 = vmatprep.subr.bf16.mxu0 0
        %8120 = vmatpush2.bf16.msra.mxu0 0
        %8121 = vmatprep.subr.bf16.mxu0 0
        %8122 = vmatpush2.bf16.msra.mxu0 0
        %8123 = vmatprep.subr.bf16.mxu0 0
        %8124 = vmatpush2.bf16.msra.mxu0 0
        %8125 = vmatprep.subr.bf16.mxu0 0
        %8126 = vmatpush2.bf16.msra.mxu0 0
        %8127 = vmatprep.subr.bf16.mxu0 0
        %8128 = vmatpush2.bf16.msra.mxu0 0
        %8129 = vmatprep.subr.bf16.mxu0 0
        %8130 = vmatpush2.bf16.msra.mxu0 0
        %8131 = vmatprep.subr.bf16.mxu0 0
        %8132 = vmatpush2.bf16.msra.mxu0 0
        %8133 = vmatprep.subr.bf16.mxu0 0
        %8134 = vmatpush2.bf16.msra.mxu0 0
        %8135 = vmatprep.mubr.bf16.mxu0 0
        %8136 = vmatmul.mubr.bf16.gmra.mxu0 %v8031
        %v8137 = vpop.f32.mrf.mxu0
        %v8138 = vadd.f32 %v8053, %v8137
        %v8139 = vpop.f32.mrf.mxu0
        %v8140 = vpop.f32.mrf.mxu0
        %v8141 = vpop.f32.mrf.mxu0
        %8142 = vdwg.mxu0
        %8143 = vst [vmem:[%s780] sm:$0xff] %v8138
        %s8144 = sand.u32 %s454, 1
        %s8145 = scalar_lea.sflag [#allocation5], %s8144
        %s8146 = sand.u32 %s454, 1
        %s8147 = smul.addr %s8146, 8
        %s8148 = scalar_lea.vmem [#allocation23], %s8147
        // Predicated region
        $region152: #{tpu_custom_call.1} parent=95 // pred_check
          %p8149 = pneg %p464
        $region153: #{tpu_custom_call.1} parent=95 // pred_check_branch
          %8151 = sbr.rel (%p8149) target = $region155
        $region154: #{tpu_custom_call.1} parent=95 // pred_region
          %s8153 = ssub.s32 128, 128
          %8154 = vsyncadd %s8145, %s8153
          %s8155 = smul.addr %s42, 128
          %s8156 = scalar_lea.hbm %s19, %s8155
          %s8158 = sshll.u32 %s8148, 4
          %s8159 = int_to_ptr.vmem [resolvable:$true] %s8158
          %8161 = dma.vmem_to_hbm [thread:$0]  %s8159, 128, %s8156, %s8145
        $region155: #{tpu_custom_call.1} parent=95 // pred_fallthru
          _
      $region96: #{tpu_custom_call.1} parent=5 // pred_fallthru
        _
      %p8162 = scmp.le.s32.totalorder 2, %s37
      // Predicated region
      $region156: #{tpu_custom_call.1} parent=5 // pred_check
        %p8163 = pneg %p8162
      $region157: #{tpu_custom_call.1} parent=5 // pred_check_branch
        %8165 = sbr.rel (%p8163) target = $region159
      $region158: #{tpu_custom_call.1} parent=5 // pred_region
        %s8166 = ssub.s32 %s37, 2
        // Predicated region
        $region160: #{tpu_custom_call.1} parent=158 // pred_check
          %p8167 = pneg %p470
        $region161: #{tpu_custom_call.1} parent=158 // pred_check_branch
          %8169 = sbr.rel (%p8167) target = $region163
        $region162: #{tpu_custom_call.1} parent=158 // pred_region
          %s8170 = sand.u32 %s455, 1
          %s8171 = scalar_lea.sflag [#allocation5], %s8170
          %s8172 = sand.u32 %s455, 1
          %s8173 = smul.addr %s8172, 8
          %s8174 = scalar_lea.vmem [#allocation23], %s8173
          %8175 = dma.done %s8171, 128
        $region163: #{tpu_custom_call.1} parent=158 // pred_fallthru
          _
      $region159: #{tpu_custom_call.1} parent=5 // pred_fallthru
        _
    $region6: #{tpu_custom_call.1} parent=1 // loop_footer
      %s41 = sadd.s32 1, %s37
    $region7: #{tpu_custom_call.1} parent=1 // loop_footer_branch
      %36 = sbr.rel target = $region3
    $region8: #{tpu_custom_call.1} parent=1 // loop_exit
      _
    %8176 = vsyncpa [#allocation4], 1
    %s8177 = scalar_lea.sflag [#allocation4], 1
    %8178 = vsyncpa %s8177, 1
    %8179 = vsyncpa [#allocation7], 1
    %8180 = vsyncpa [#allocation10], 1
    %8181 = vsyncpa [#allocation13], 1
    %8182 = vsyncpa [#allocation16], 1
    %8183 = vsyncpa [#allocation19], 1
    %8184 = vsyncpa [#allocation22], 1
    %8185 = vsyncpa [#allocation5], 1
    %s8186 = scalar_lea.sflag [#allocation5], 1
    %8187 = vsyncpa %s8186, 1

</llo_original>
